<compile_context>
chip_gen: v7x
topology: tpu7x:2x2x1
jax: 0.10.0
libtpu: 0.0.40
codegen_flags: <defaults>
</compile_context>

<pallas_src>
import jax
import jax.numpy as jnp
from jax.experimental import pallas as pl
from jax.experimental.pallas import tpu as pltpu

# ---------------------------------------------------------------------------
# Static schedule.  fc1 expects 2432 = 64 * 38 features, which forces the
# input length L = 1875; all intermediate lengths follow:
#   conv1 (k=7,p=1): 1871  pool(2,3): 624
#   conv2 (k=3,p=1):  624  pool(2,2): 312
#   conv3 (k=3,p=1):  312  pool(2,2): 156
#   conv4 (k=3,p=1):  156  pool(2,2):  78
#   conv5 (k=3,p=0):   76  pool(2,2):  38
# ---------------------------------------------------------------------------
L_IN = 1875
XPAD = 1880                 # padded input rows: 1 left zero (conv1 pad) + 4 right zeros
LP1, LP2, LP3, LP4, LP5 = 624, 312, 156, 78, 38
OFF = 8                     # aligned row offset realizing the convs' left zero-pad
NUM_CLASS = 10
FEAT = 64 * LP5             # 2432
HID_PAD = 128               # fc1 hidden dim padded 100 -> 128 (lane-dense)

# zero-padded conv-input scratch sizes (rows), all data slabs sublane-aligned at OFF
IB2, IB3, IB4, IB5 = 640, 328, 168, 80


# ---------------------------------------------------------------------------
# Pallas kernels
# ---------------------------------------------------------------------------
def _conv_pool_block(in_ref, w_ref, s_ref, *, off, lp, taps=3):
    """Conv1d(k=taps) + BN + ReLU + MaxPool1d(2,2), batch-pair-stacked lanes.

    The pool only needs conv rows 2i and 2i+1, so we accumulate the even and
    odd pooled phases directly from stride-2 slices of the padded input; the
    full-resolution conv output is never materialized.
      in_ref: (H, 2*Cin)  padded input, data rows start at `off`+1 (pad row at
              `off`, another pad row right after the data) -- or off=0, no pad.
      w_ref:  (taps, 2*Cin, 2*Cout)  block-diagonal BN-folded conv weights.
      s_ref:  (1, 2*Cout)            folded BN shift (includes conv bias).
    Returns (lp, 2*Cout) pooled activation (value).
    """
    accE = None
    accO = None
    for k in range(taps):
        wk = w_ref[k]                                           # (2*Cin, 2*Cout)
        xe = in_ref[pl.ds(off + k, lp, stride=2), :]            # conv rows 2i, tap k
        xo = in_ref[pl.ds(off + k + 1, lp, stride=2), :]        # conv rows 2i+1, tap k
        pe = jnp.dot(xe, wk, preferred_element_type=jnp.float32)
        po = jnp.dot(xo, wk, preferred_element_type=jnp.float32)
        accE = pe if accE is None else accE + pe
        accO = po if accO is None else accO + po
    # max(relu(a+s), relu(b+s)) == relu(max(a,b)+s)  (monotone)
    return jnp.maximum(jnp.maximum(accE, accO) + s_ref[...], 0.0)


def trunk_kernel(x_ref, w1_ref, s1_ref, w2_ref, s2_ref, w3_ref, s3_ref,
                 w4_ref, s4_ref, w5_ref, s5_ref, o_ref,
                 ib2, ib3, ib4, ib5):
    # ---- block 1: Conv1d(1,16,k=7,p=1)+BN+ReLU+MaxPool(2,3), decimated VPU ----
    # Only conv rows 3i and 3i+1 survive the stride-3 pool; compute just those
    # two phases from stride-3 slices of the (already pad-embedded) input.
    accA = None
    accB = None
    for k in range(7):
        wk = w1_ref[k]                                          # (1, 32)
        xa = x_ref[pl.ds(k, LP1, stride=3), :]                  # conv rows 3i, tap k
        xb = x_ref[pl.ds(k + 1, LP1, stride=3), :]              # conv rows 3i+1, tap k
        accA = xa * wk if accA is None else accA + xa * wk
        accB = xb * wk if accB is None else accB + xb * wk
    p1 = jnp.maximum(jnp.maximum(accA, accB) + s1_ref[...], 0.0)   # (624, 32)

    # ---- block 2: Conv1d(16,32,k=3,p=1) ------------------------------------
    ib2[0:OFF, :] = jnp.zeros((OFF, 32), jnp.float32)               # left pad rows
    ib2[OFF + LP1:IB2, :] = jnp.zeros((IB2 - OFF - LP1, 32), jnp.float32)
    ib2[OFF:OFF + LP1, :] = p1
    p2 = _conv_pool_block(ib2, w2_ref, s2_ref, off=OFF - 1, lp=LP2)  # (312, 64)

    # ---- block 3: Conv1d(32,64,k=3,p=1) ------------------------------------
    ib3[0:OFF, :] = jnp.zeros((OFF, 64), jnp.float32)
    ib3[OFF + LP2:IB3, :] = jnp.zeros((IB3 - OFF - LP2, 64), jnp.float32)
    ib3[OFF:OFF + LP2, :] = p2
    p3 = _conv_pool_block(ib3, w3_ref, s3_ref, off=OFF - 1, lp=LP3)  # (156, 128)

    # ---- block 4: Conv1d(64,64,k=3,p=1) ------------------------------------
    ib4[0:OFF, :] = jnp.zeros((OFF, 128), jnp.float32)
    ib4[OFF + LP3:IB4, :] = jnp.zeros((IB4 - OFF - LP3, 128), jnp.float32)
    ib4[OFF:OFF + LP3, :] = p3
    p4 = _conv_pool_block(ib4, w4_ref, s4_ref, off=OFF - 1, lp=LP4)  # (78, 128)

    # ---- block 5: Conv1d(64,64,k=3,p=0)  (no pad rows are ever read) --------
    ib5[0:LP4, :] = p4
    p5 = _conv_pool_block(ib5, w5_ref, s5_ref, off=0, lp=LP5)        # (38, 128)

    o_ref[...] = p5                     # (38, 128): lanes [0:64] batch a, [64:128] batch b


def mlp_kernel(x_ref, w1_ref, b1_ref, w2_ref, b2_ref, o_ref):
    h = jnp.dot(x_ref[...], w1_ref[...],
                preferred_element_type=jnp.float32) + b1_ref[...]
    h = jnp.maximum(h, 0.0)
    o_ref[...] = jnp.dot(h, w2_ref[...],
                         preferred_element_type=jnp.float32) + b2_ref[...]


# ---------------------------------------------------------------------------
# pallas_call wrappers
# ---------------------------------------------------------------------------
def conv_trunk(x16, prep):
    """x16: (G, XPAD, 32) pair-stacked padded input.  Returns (G, 38, 128)."""
    G = x16.shape[0]
    bcast3 = lambda g: (0, 0, 0)
    bcast2 = lambda g: (0, 0)
    return pl.pallas_call(
        trunk_kernel,
        out_shape=jax.ShapeDtypeStruct((G, LP5, 128), jnp.float32),
        grid=(G,),
        in_specs=[
            pl.BlockSpec((None, XPAD, 32), lambda g: (g, 0, 0)),
            pl.BlockSpec((7, 1, 32), bcast3),   pl.BlockSpec((1, 32), bcast2),
            pl.BlockSpec((3, 32, 64), bcast3),  pl.BlockSpec((1, 64), bcast2),
            pl.BlockSpec((3, 64, 128), bcast3), pl.BlockSpec((1, 128), bcast2),
            pl.BlockSpec((3, 128, 128), bcast3), pl.BlockSpec((1, 128), bcast2),
            pl.BlockSpec((3, 128, 128), bcast3), pl.BlockSpec((1, 128), bcast2),
        ],
        out_specs=pl.BlockSpec((None, LP5, 128), lambda g: (g, 0, 0)),
        scratch_shapes=[
            pltpu.VMEM((IB2, 32), jnp.float32),    # zero-padded input to conv2
            pltpu.VMEM((IB3, 64), jnp.float32),    # zero-padded input to conv3
            pltpu.VMEM((IB4, 128), jnp.float32),   # zero-padded input to conv4
            pltpu.VMEM((IB5, 128), jnp.float32),   # input to conv5 (no pad)
        ],
        compiler_params=pltpu.CompilerParams(
            dimension_semantics=("parallel",)),
    )(x16, prep["w1"], prep["s1"], prep["w2"], prep["s2"], prep["w3"], prep["s3"],
      prep["w4"], prep["s4"], prep["w5"], prep["s5"])


def mlp_head(x, w1t, b1, w2t, b2):
    B, F = x.shape
    H = w1t.shape[1]
    O = w2t.shape[1]
    return pl.pallas_call(
        mlp_kernel,
        out_shape=jax.ShapeDtypeStruct((B, O), jnp.float32),
        grid=(1,),
        in_specs=[
            pl.BlockSpec((B, F), lambda i: (0, 0)),
            pl.BlockSpec((F, H), lambda i: (0, 0)),
            pl.BlockSpec((1, H), lambda i: (0, 0)),
            pl.BlockSpec((H, O), lambda i: (0, 0)),
            pl.BlockSpec((1, O), lambda i: (0, 0)),
        ],
        out_specs=pl.BlockSpec((B, O), lambda i: (0, 0)),
    )(x, w1t, b1, w2t, b2)


# ---------------------------------------------------------------------------
# Parameter preparation (outside jit): BN folding, pair-stacking, re-layout.
# ---------------------------------------------------------------------------
def prepare_params(params, eps=1e-5):
    def fold(w, b, bn):
        gamma, beta, mean, var = bn
        scale = gamma / jnp.sqrt(var + eps)                          # (Cout,)
        wf = jnp.transpose(w * scale[:, None, None], (2, 1, 0))      # (K, Cin, Cout)
        shift = ((b - mean) * scale + beta)[None, :]                 # (1, Cout)
        return wf, shift

    def stack2(wf):
        # block-diagonal weight for the two lane-stacked batch elements
        K, ci, co = wf.shape
        ws = jnp.zeros((K, 2 * ci, 2 * co), wf.dtype)
        ws = ws.at[:, :ci, :co].set(wf)
        ws = ws.at[:, ci:, co:].set(wf)
        return ws

    prep = {}
    # block 1 runs on the VPU with the input pre-broadcast to 16 lanes/batch,
    # so its stacked weight is just the 16-wide weight tiled twice.
    w1f, s1 = fold(params["w1"], params["cb1"], params["bn1"])       # (7,1,16),(1,16)
    prep["w1"] = jnp.tile(w1f, (1, 1, 2))                            # (7,1,32)
    prep["s1"] = jnp.tile(s1, (1, 2))                                # (1,32)
    for i in range(2, 6):
        wf, s = fold(params[f"w{i}"], params[f"cb{i}"], params[f"bn{i}"])
        prep[f"w{i}"] = stack2(wf)
        prep[f"s{i}"] = jnp.tile(s, (1, 2))

    # fc1 expects PyTorch's channel-major flatten (index c*38 + l); the trunk
    # emits length-major (l, c) features, so permute fc1's columns once here,
    # then pad the hidden dim 100 -> 128 for lane-dense h / fc2-K.
    w1r = params["fc1_w"].reshape(-1, 64, LP5)                       # (100, 64, 38)
    fc1_wt = jnp.transpose(w1r, (2, 1, 0)).reshape(FEAT, -1)         # (2432, 100)
    H = fc1_wt.shape[1]
    prep["fc1_wt"] = jnp.pad(fc1_wt, ((0, 0), (0, HID_PAD - H)))     # (2432, 128)
    prep["fc1_b"] = jnp.pad(params["fc1_b"], (0, HID_PAD - H))[None, :]
    prep["fc2_wt"] = jnp.pad(params["fc2_w"].T, ((0, HID_PAD - H), (0, 0)))  # (128, NC)
    prep["fc2_b"] = params["fc2_b"][None, :]
    return jax.tree_util.tree_map(lambda a: jnp.asarray(a, jnp.float32), prep)


# ---------------------------------------------------------------------------
# Model forward
# ---------------------------------------------------------------------------
def extract_features(x, prep):
    """x: (B, 1875), B even.  Returns (B//2, 38, 128) pair-stacked features."""
    B, L = x.shape
    if L != L_IN:
        raise ValueError(f"expected input length {L_IN}, got {L}")
    if B % 2:
        raise ValueError("batch must be even (pairs are lane-stacked)")
    G = B // 2
    # 1 leading zero realizes conv1's left pad; trailing zeros are inert.
    xp = jnp.pad(x, ((0, 0), (1, XPAD - L - 1)))                      # (B, XPAD)
    # broadcast each batch element across its 16 conv1-output lanes.
    x16 = jnp.repeat(xp.reshape(G, 2, XPAD), 16, axis=1)              # (G, 32, XPAD)
    x16 = jnp.transpose(x16, (0, 2, 1))                               # (G, XPAD, 32)
    return conv_trunk(x16, prep)                                       # (G, 38, 128)


def _unstack_flatten(feats):
    """(G, 38, 128) pair-stacked, length-major -> (2G, 2432) flat (order l*64+c)."""
    G = feats.shape[0]
    return jnp.transpose(feats.reshape(G, LP5, 2, 64), (0, 2, 1, 3)).reshape(2 * G, FEAT)


def forward(x, prep):
    B = x.shape[0]
    xb = x if B % 2 == 0 else jnp.concatenate(
        [x, jnp.zeros((1, x.shape[1]), x.dtype)], axis=0)
    feats = extract_features(xb, prep)                 # (G, 38, 128)
    flat = _unstack_flatten(feats)                     # (2G, 2432)
    out = mlp_head(flat, prep["fc1_wt"], prep["fc1_b"],
                   prep["fc2_wt"], prep["fc2_b"])
    return out[:B]


# ---------------------------------------------------------------------------
# Parameter init (PyTorch default init layout) and a pure-JAX reference.
# ---------------------------------------------------------------------------
def init_params(key, num_class=NUM_CLASS):
    def uni(k, shape, fan_in):
        bound = 1.0 / jnp.sqrt(float(fan_in))
        return jax.random.uniform(k, shape, jnp.float32, -bound, bound)

    def bn(c):
        return (jnp.ones((c,), jnp.float32), jnp.zeros((c,), jnp.float32),
                jnp.zeros((c,), jnp.float32), jnp.ones((c,), jnp.float32))

    ks = jax.random.split(key, 14)
    return {
        "w1": uni(ks[0], (16, 1, 7), 1 * 7),   "cb1": uni(ks[1], (16,), 1 * 7),   "bn1": bn(16),
        "w2": uni(ks[2], (32, 16, 3), 16 * 3), "cb2": uni(ks[3], (32,), 16 * 3),  "bn2": bn(32),
        "w3": uni(ks[4], (64, 32, 3), 32 * 3), "cb3": uni(ks[5], (64,), 32 * 3),  "bn3": bn(64),
        "w4": uni(ks[6], (64, 64, 3), 64 * 3), "cb4": uni(ks[7], (64,), 64 * 3),  "bn4": bn(64),
        "w5": uni(ks[8], (64, 64, 3), 64 * 3), "cb5": uni(ks[9], (64,), 64 * 3),  "bn5": bn(64),
        "fc1_w": uni(ks[10], (100, FEAT), FEAT), "fc1_b": uni(ks[11], (100,), FEAT),
        "fc2_w": uni(ks[12], (num_class, 100), 100), "fc2_b": uni(ks[13], (num_class,), 100),
    }


def reference_forward(x, params, eps=1e-5):
    """Pure-JAX/XLA re-implementation of MyModel.forward (self-check only)."""
    def conv(h, w, b, pad):
        out = jax.lax.conv_general_dilated(
            h, w, window_strides=(1,), padding=[(pad, pad)],
            dimension_numbers=("NCH", "OIH", "NCH"))
        return out + b[None, :, None]

    def bn(h, p):
        gamma, beta, mean, var = p
        inv = gamma / jnp.sqrt(var + eps)
        return (h - mean[None, :, None]) * inv[None, :, None] + beta[None, :, None]

    def pool(h, stride):
        return jax.lax.reduce_window(h, -jnp.inf, jax.lax.max,
                                     (1, 1, 2), (1, 1, stride), "VALID")

    h = x[:, None, :]
    h = pool(jnp.maximum(bn(conv(h, params["w1"], params["cb1"], 1), params["bn1"]), 0.0), 3)
    h = pool(jnp.maximum(bn(conv(h, params["w2"], params["cb2"], 1), params["bn2"]), 0.0), 2)
    h = pool(jnp.maximum(bn(conv(h, params["w3"], params["cb3"], 1), params["bn3"]), 0.0), 2)
    h = pool(jnp.maximum(bn(conv(h, params["w4"], params["cb4"], 1), params["bn4"]), 0.0), 2)
    h = pool(jnp.maximum(bn(conv(h, params["w5"], params["cb5"], 0), params["bn5"]), 0.0), 2)
    feats = h                                                    # (B, 64, 38)
    flat = h.reshape(h.shape[0], -1)
    hid = jnp.maximum(flat @ params["fc1_w"].T + params["fc1_b"], 0.0)
    return hid @ params["fc2_w"].T + params["fc2_b"], feats


if __name__ == "__main__":
    key = jax.random.PRNGKey(0)
    pkey, xkey = jax.random.split(key)
    params = init_params(pkey)
    prep = prepare_params(params)

    B = 2
    x = jax.random.normal(xkey, (B, L_IN), jnp.float32)

    out = jax.block_until_ready(jax.jit(forward)(x, prep))
    assert out.shape == (B, NUM_CLASS), out.shape
    assert out.dtype == jnp.float32

    # Self-check against a pure-JAX/XLA reference of the PyTorch module.
    ref_out, ref_feats = reference_forward(x, params)            # feats: (B, 64, 38)
    feats = jax.block_until_ready(jax.jit(extract_features)(x, prep))   # (1, 38, 128)
    flat = _unstack_flatten(feats)                                       # (B, 2432)
    ref_flat = jnp.transpose(ref_feats, (0, 2, 1)).reshape(B, FEAT)      # same l*64+c order
    feat_err = float(jnp.max(jnp.abs(flat - ref_flat)))
    out_err = float(jnp.max(jnp.abs(out - ref_out)))
    assert feat_err < 2e-2, f"trunk mismatch: {feat_err}"
    assert out_err < 5e-2, f"logit mismatch: {out_err}"

    print("KERNEL_OK")
</pallas_src>

<mosaic_0001>
module attributes {stable_mosaic.version = 11 : i64} {
  func.func @trunk_kernel(%arg0: i32, %arg1: memref<1x1880x32xf32, #tpu.memory_space<vmem>>, %arg2: memref<7x1x32xf32, #tpu.memory_space<vmem>>, %arg3: memref<1x32xf32, #tpu.memory_space<vmem>>, %arg4: memref<3x32x64xf32, #tpu.memory_space<vmem>>, %arg5: memref<1x64xf32, #tpu.memory_space<vmem>>, %arg6: memref<3x64x128xf32, #tpu.memory_space<vmem>>, %arg7: memref<1x128xf32, #tpu.memory_space<vmem>>, %arg8: memref<3x128x128xf32, #tpu.memory_space<vmem>>, %arg9: memref<1x128xf32, #tpu.memory_space<vmem>>, %arg10: memref<3x128x128xf32, #tpu.memory_space<vmem>>, %arg11: memref<1x128xf32, #tpu.memory_space<vmem>>, %arg12: memref<1x38x128xf32, #tpu.memory_space<vmem>>, %arg13: memref<640x32xf32, #tpu.memory_space<vmem>>, %arg14: memref<328x64xf32, #tpu.memory_space<vmem>>, %arg15: memref<168x128xf32, #tpu.memory_space<vmem>>, %arg16: memref<80x128xf32, #tpu.memory_space<vmem>>) attributes {dimension_semantics = [#tpu.dimension_semantics<parallel>], iteration_bounds = array<i64: 1>, scalar_prefetch = 0 : i64, scratch_operands = 4 : i64, tpu.core_type = #tpu.core_type<tc>, window_params = [{transform_indices = @transform_0, window_bounds = array<i64: 1, 1880, 32>}, {pipeline_mode = #tpu.pipeline_mode<synchronous>, transform_indices = @transform_1, window_bounds = array<i64: 7, 1, 32>}, {pipeline_mode = #tpu.pipeline_mode<synchronous>, transform_indices = @transform_2, window_bounds = array<i64: 1, 32>}, {pipeline_mode = #tpu.pipeline_mode<synchronous>, transform_indices = @transform_3, window_bounds = array<i64: 3, 32, 64>}, {pipeline_mode = #tpu.pipeline_mode<synchronous>, transform_indices = @transform_4, window_bounds = array<i64: 1, 64>}, {pipeline_mode = #tpu.pipeline_mode<synchronous>, transform_indices = @transform_5, window_bounds = array<i64: 3, 64, 128>}, {pipeline_mode = #tpu.pipeline_mode<synchronous>, transform_indices = @transform_6, window_bounds = array<i64: 1, 128>}, {pipeline_mode = #tpu.pipeline_mode<synchronous>, transform_indices = @transform_7, window_bounds = array<i64: 3, 128, 128>}, {pipeline_mode = #tpu.pipeline_mode<synchronous>, transform_indices = @transform_8, window_bounds = array<i64: 1, 128>}, {pipeline_mode = #tpu.pipeline_mode<synchronous>, transform_indices = @transform_9, window_bounds = array<i64: 3, 128, 128>}, {pipeline_mode = #tpu.pipeline_mode<synchronous>, transform_indices = @transform_10, window_bounds = array<i64: 1, 128>}, {transform_indices = @transform_11, window_bounds = array<i64: 1, 38, 128>}]} {
    %c0 = arith.constant 0 : index
    %c0_0 = arith.constant 0 : index
    %c0_1 = arith.constant 0 : index
    %0 = vector.load %arg2[%c0, %c0_0, %c0_1] : memref<7x1x32xf32, #tpu.memory_space<vmem>>, vector<1x1x32xf32>
    %1 = vector.shape_cast %0 : vector<1x1x32xf32> to vector<1x32xf32>
    %c0_2 = arith.constant 0 : index
    %c0_3 = arith.constant 0 : index
    %c0_4 = arith.constant 0 : index
    %2 = tpu.strided_load %arg1[%c0_2, %c0_3, %c0_4] {strides = array<i32: 1, 3, 1>} : memref<1x1880x32xf32, #tpu.memory_space<vmem>>, vector<1x624x32xf32>
    %3 = vector.shape_cast %2 : vector<1x624x32xf32> to vector<624x32xf32>
    %c0_5 = arith.constant 0 : index
    %c1 = arith.constant 1 : index
    %c0_6 = arith.constant 0 : index
    %4 = tpu.strided_load %arg1[%c0_5, %c1, %c0_6] {strides = array<i32: 1, 3, 1>} : memref<1x1880x32xf32, #tpu.memory_space<vmem>>, vector<1x624x32xf32>
    %5 = vector.shape_cast %4 : vector<1x624x32xf32> to vector<624x32xf32>
    %6 = vector.broadcast %1 : vector<1x32xf32> to vector<624x32xf32>
    %7 = arith.mulf %3, %6 : vector<624x32xf32>
    %8 = vector.broadcast %1 : vector<1x32xf32> to vector<624x32xf32>
    %9 = arith.mulf %5, %8 : vector<624x32xf32>
    %c1_7 = arith.constant 1 : index
    %c0_8 = arith.constant 0 : index
    %c0_9 = arith.constant 0 : index
    %10 = vector.load %arg2[%c1_7, %c0_8, %c0_9] : memref<7x1x32xf32, #tpu.memory_space<vmem>>, vector<1x1x32xf32>
    %11 = vector.shape_cast %10 : vector<1x1x32xf32> to vector<1x32xf32>
    %c0_10 = arith.constant 0 : index
    %c1_11 = arith.constant 1 : index
    %c0_12 = arith.constant 0 : index
    %12 = tpu.strided_load %arg1[%c0_10, %c1_11, %c0_12] {strides = array<i32: 1, 3, 1>} : memref<1x1880x32xf32, #tpu.memory_space<vmem>>, vector<1x624x32xf32>
    %13 = vector.shape_cast %12 : vector<1x624x32xf32> to vector<624x32xf32>
    %c0_13 = arith.constant 0 : index
    %c2 = arith.constant 2 : index
    %c0_14 = arith.constant 0 : index
    %14 = tpu.strided_load %arg1[%c0_13, %c2, %c0_14] {strides = array<i32: 1, 3, 1>} : memref<1x1880x32xf32, #tpu.memory_space<vmem>>, vector<1x624x32xf32>
    %15 = vector.shape_cast %14 : vector<1x624x32xf32> to vector<624x32xf32>
    %16 = vector.broadcast %11 : vector<1x32xf32> to vector<624x32xf32>
    %17 = arith.mulf %13, %16 : vector<624x32xf32>
    %18 = arith.addf %7, %17 : vector<624x32xf32>
    %19 = vector.broadcast %11 : vector<1x32xf32> to vector<624x32xf32>
    %20 = arith.mulf %15, %19 : vector<624x32xf32>
    %21 = arith.addf %9, %20 : vector<624x32xf32>
    %c2_15 = arith.constant 2 : index
    %c0_16 = arith.constant 0 : index
    %c0_17 = arith.constant 0 : index
    %22 = vector.load %arg2[%c2_15, %c0_16, %c0_17] : memref<7x1x32xf32, #tpu.memory_space<vmem>>, vector<1x1x32xf32>
    %23 = vector.shape_cast %22 : vector<1x1x32xf32> to vector<1x32xf32>
    %c0_18 = arith.constant 0 : index
    %c2_19 = arith.constant 2 : index
    %c0_20 = arith.constant 0 : index
    %24 = tpu.strided_load %arg1[%c0_18, %c2_19, %c0_20] {strides = array<i32: 1, 3, 1>} : memref<1x1880x32xf32, #tpu.memory_space<vmem>>, vector<1x624x32xf32>
    %25 = vector.shape_cast %24 : vector<1x624x32xf32> to vector<624x32xf32>
    %c0_21 = arith.constant 0 : index
    %c3 = arith.constant 3 : index
    %c0_22 = arith.constant 0 : index
    %26 = tpu.strided_load %arg1[%c0_21, %c3, %c0_22] {strides = array<i32: 1, 3, 1>} : memref<1x1880x32xf32, #tpu.memory_space<vmem>>, vector<1x624x32xf32>
    %27 = vector.shape_cast %26 : vector<1x624x32xf32> to vector<624x32xf32>
    %28 = vector.broadcast %23 : vector<1x32xf32> to vector<624x32xf32>
    %29 = arith.mulf %25, %28 : vector<624x32xf32>
    %30 = arith.addf %18, %29 : vector<624x32xf32>
    %31 = vector.broadcast %23 : vector<1x32xf32> to vector<624x32xf32>
    %32 = arith.mulf %27, %31 : vector<624x32xf32>
    %33 = arith.addf %21, %32 : vector<624x32xf32>
    %c3_23 = arith.constant 3 : index
    %c0_24 = arith.constant 0 : index
    %c0_25 = arith.constant 0 : index
    %34 = vector.load %arg2[%c3_23, %c0_24, %c0_25] : memref<7x1x32xf32, #tpu.memory_space<vmem>>, vector<1x1x32xf32>
    %35 = vector.shape_cast %34 : vector<1x1x32xf32> to vector<1x32xf32>
    %c0_26 = arith.constant 0 : index
    %c3_27 = arith.constant 3 : index
    %c0_28 = arith.constant 0 : index
    %36 = tpu.strided_load %arg1[%c0_26, %c3_27, %c0_28] {strides = array<i32: 1, 3, 1>} : memref<1x1880x32xf32, #tpu.memory_space<vmem>>, vector<1x624x32xf32>
    %37 = vector.shape_cast %36 : vector<1x624x32xf32> to vector<624x32xf32>
    %c0_29 = arith.constant 0 : index
    %c4 = arith.constant 4 : index
    %c0_30 = arith.constant 0 : index
    %38 = tpu.strided_load %arg1[%c0_29, %c4, %c0_30] {strides = array<i32: 1, 3, 1>} : memref<1x1880x32xf32, #tpu.memory_space<vmem>>, vector<1x624x32xf32>
    %39 = vector.shape_cast %38 : vector<1x624x32xf32> to vector<624x32xf32>
    %40 = vector.broadcast %35 : vector<1x32xf32> to vector<624x32xf32>
    %41 = arith.mulf %37, %40 : vector<624x32xf32>
    %42 = arith.addf %30, %41 : vector<624x32xf32>
    %43 = vector.broadcast %35 : vector<1x32xf32> to vector<624x32xf32>
    %44 = arith.mulf %39, %43 : vector<624x32xf32>
    %45 = arith.addf %33, %44 : vector<624x32xf32>
    %c4_31 = arith.constant 4 : index
    %c0_32 = arith.constant 0 : index
    %c0_33 = arith.constant 0 : index
    %46 = vector.load %arg2[%c4_31, %c0_32, %c0_33] : memref<7x1x32xf32, #tpu.memory_space<vmem>>, vector<1x1x32xf32>
    %47 = vector.shape_cast %46 : vector<1x1x32xf32> to vector<1x32xf32>
    %c0_34 = arith.constant 0 : index
    %c4_35 = arith.constant 4 : index
    %c0_36 = arith.constant 0 : index
    %48 = tpu.strided_load %arg1[%c0_34, %c4_35, %c0_36] {strides = array<i32: 1, 3, 1>} : memref<1x1880x32xf32, #tpu.memory_space<vmem>>, vector<1x624x32xf32>
    %49 = vector.shape_cast %48 : vector<1x624x32xf32> to vector<624x32xf32>
    %c0_37 = arith.constant 0 : index
    %c5 = arith.constant 5 : index
    %c0_38 = arith.constant 0 : index
    %50 = tpu.strided_load %arg1[%c0_37, %c5, %c0_38] {strides = array<i32: 1, 3, 1>} : memref<1x1880x32xf32, #tpu.memory_space<vmem>>, vector<1x624x32xf32>
    %51 = vector.shape_cast %50 : vector<1x624x32xf32> to vector<624x32xf32>
    %52 = vector.broadcast %47 : vector<1x32xf32> to vector<624x32xf32>
    %53 = arith.mulf %49, %52 : vector<624x32xf32>
    %54 = arith.addf %42, %53 : vector<624x32xf32>
    %55 = vector.broadcast %47 : vector<1x32xf32> to vector<624x32xf32>
    %56 = arith.mulf %51, %55 : vector<624x32xf32>
    %57 = arith.addf %45, %56 : vector<624x32xf32>
    %c5_39 = arith.constant 5 : index
    %c0_40 = arith.constant 0 : index
    %c0_41 = arith.constant 0 : index
    %58 = vector.load %arg2[%c5_39, %c0_40, %c0_41] : memref<7x1x32xf32, #tpu.memory_space<vmem>>, vector<1x1x32xf32>
    %59 = vector.shape_cast %58 : vector<1x1x32xf32> to vector<1x32xf32>
    %c0_42 = arith.constant 0 : index
    %c5_43 = arith.constant 5 : index
    %c0_44 = arith.constant 0 : index
    %60 = tpu.strided_load %arg1[%c0_42, %c5_43, %c0_44] {strides = array<i32: 1, 3, 1>} : memref<1x1880x32xf32, #tpu.memory_space<vmem>>, vector<1x624x32xf32>
    %61 = vector.shape_cast %60 : vector<1x624x32xf32> to vector<624x32xf32>
    %c0_45 = arith.constant 0 : index
    %c6 = arith.constant 6 : index
    %c0_46 = arith.constant 0 : index
    %62 = tpu.strided_load %arg1[%c0_45, %c6, %c0_46] {strides = array<i32: 1, 3, 1>} : memref<1x1880x32xf32, #tpu.memory_space<vmem>>, vector<1x624x32xf32>
    %63 = vector.shape_cast %62 : vector<1x624x32xf32> to vector<624x32xf32>
    %64 = vector.broadcast %59 : vector<1x32xf32> to vector<624x32xf32>
    %65 = arith.mulf %61, %64 : vector<624x32xf32>
    %66 = arith.addf %54, %65 : vector<624x32xf32>
    %67 = vector.broadcast %59 : vector<1x32xf32> to vector<624x32xf32>
    %68 = arith.mulf %63, %67 : vector<624x32xf32>
    %69 = arith.addf %57, %68 : vector<624x32xf32>
    %c6_47 = arith.constant 6 : index
    %c0_48 = arith.constant 0 : index
    %c0_49 = arith.constant 0 : index
    %70 = vector.load %arg2[%c6_47, %c0_48, %c0_49] : memref<7x1x32xf32, #tpu.memory_space<vmem>>, vector<1x1x32xf32>
    %71 = vector.shape_cast %70 : vector<1x1x32xf32> to vector<1x32xf32>
    %c0_50 = arith.constant 0 : index
    %c6_51 = arith.constant 6 : index
    %c0_52 = arith.constant 0 : index
    %72 = tpu.strided_load %arg1[%c0_50, %c6_51, %c0_52] {strides = array<i32: 1, 3, 1>} : memref<1x1880x32xf32, #tpu.memory_space<vmem>>, vector<1x624x32xf32>
    %73 = vector.shape_cast %72 : vector<1x624x32xf32> to vector<624x32xf32>
    %c0_53 = arith.constant 0 : index
    %c7 = arith.constant 7 : index
    %c0_54 = arith.constant 0 : index
    %74 = tpu.strided_load %arg1[%c0_53, %c7, %c0_54] {strides = array<i32: 1, 3, 1>} : memref<1x1880x32xf32, #tpu.memory_space<vmem>>, vector<1x624x32xf32>
    %75 = vector.shape_cast %74 : vector<1x624x32xf32> to vector<624x32xf32>
    %76 = vector.broadcast %71 : vector<1x32xf32> to vector<624x32xf32>
    %77 = arith.mulf %73, %76 : vector<624x32xf32>
    %78 = arith.addf %66, %77 : vector<624x32xf32>
    %79 = vector.broadcast %71 : vector<1x32xf32> to vector<624x32xf32>
    %80 = arith.mulf %75, %79 : vector<624x32xf32>
    %81 = arith.addf %69, %80 : vector<624x32xf32>
    %82 = arith.maximumf %78, %81 : vector<624x32xf32>
    %c0_55 = arith.constant 0 : index
    %c0_56 = arith.constant 0 : index
    %83 = vector.load %arg3[%c0_55, %c0_56] : memref<1x32xf32, #tpu.memory_space<vmem>>, vector<1x32xf32>
    %84 = vector.broadcast %83 : vector<1x32xf32> to vector<624x32xf32>
    %85 = arith.addf %82, %84 : vector<624x32xf32>
    %cst = arith.constant 0.000000e+00 : f32
    %86 = vector.broadcast %cst : f32 to vector<624x32xf32>
    %87 = arith.maximumf %85, %86 : vector<624x32xf32>
    %cst_57 = arith.constant 0.000000e+00 : f32
    %88 = vector.broadcast %cst_57 : f32 to vector<8x32xf32>
    %c0_58 = arith.constant 0 : index
    %c0_59 = arith.constant 0 : index
    %89 = vector.load %arg13[%c0_58, %c0_59] : memref<640x32xf32, #tpu.memory_space<vmem>>, vector<8x32xf32>
    tpu.vector_store %arg13[%c0_58, %c0_59], %88 {strides = array<i32>} : memref<640x32xf32, #tpu.memory_space<vmem>>, vector<8x32xf32>,
    %cst_60 = arith.constant 0.000000e+00 : f32
    %90 = vector.broadcast %cst_60 : f32 to vector<8x32xf32>
    %c632 = arith.constant 632 : index
    %c0_61 = arith.constant 0 : index
    %91 = vector.load %arg13[%c632, %c0_61] : memref<640x32xf32, #tpu.memory_space<vmem>>, vector<8x32xf32>
    tpu.vector_store %arg13[%c632, %c0_61], %90 {strides = array<i32>} : memref<640x32xf32, #tpu.memory_space<vmem>>, vector<8x32xf32>,
    %c8 = arith.constant 8 : index
    %c0_62 = arith.constant 0 : index
    %92 = vector.load %arg13[%c8, %c0_62] : memref<640x32xf32, #tpu.memory_space<vmem>>, vector<624x32xf32>
    tpu.vector_store %arg13[%c8, %c0_62], %87 {strides = array<i32>} : memref<640x32xf32, #tpu.memory_space<vmem>>, vector<624x32xf32>,
    %c0_63 = arith.constant 0 : index
    %c0_64 = arith.constant 0 : index
    %c0_65 = arith.constant 0 : index
    %93 = vector.load %arg4[%c0_63, %c0_64, %c0_65] : memref<3x32x64xf32, #tpu.memory_space<vmem>>, vector<1x32x64xf32>
    %94 = vector.shape_cast %93 : vector<1x32x64xf32> to vector<32x64xf32>
    %c7_66 = arith.constant 7 : index
    %c0_67 = arith.constant 0 : index
    %95 = tpu.strided_load %arg13[%c7_66, %c0_67] {strides = array<i32: 2, 1>} : memref<640x32xf32, #tpu.memory_space<vmem>>, vector<312x32xf32>
    %c8_68 = arith.constant 8 : index
    %c0_69 = arith.constant 0 : index
    %96 = tpu.strided_load %arg13[%c8_68, %c0_69] {strides = array<i32: 2, 1>} : memref<640x32xf32, #tpu.memory_space<vmem>>, vector<312x32xf32>
    %cst_70 = arith.constant dense<0.000000e+00> : vector<312x64xf32>
    %97 = tpu.matmul %95, %94, %cst_70 {dimension_numbers = #tpu.dot_dimension_numbers<[1], [0], [0], [1], [0, 0, 1, 1], [], []>} : vector<312x32xf32>, vector<32x64xf32>, vector<312x64xf32> -> vector<312x64xf32>
    %cst_71 = arith.constant dense<0.000000e+00> : vector<312x64xf32>
    %98 = tpu.matmul %96, %94, %cst_71 {dimension_numbers = #tpu.dot_dimension_numbers<[1], [0], [0], [1], [0, 0, 1, 1], [], []>} : vector<312x32xf32>, vector<32x64xf32>, vector<312x64xf32> -> vector<312x64xf32>
    %c1_72 = arith.constant 1 : index
    %c0_73 = arith.constant 0 : index
    %c0_74 = arith.constant 0 : index
    %99 = vector.load %arg4[%c1_72, %c0_73, %c0_74] : memref<3x32x64xf32, #tpu.memory_space<vmem>>, vector<1x32x64xf32>
    %100 = vector.shape_cast %99 : vector<1x32x64xf32> to vector<32x64xf32>
    %c8_75 = arith.constant 8 : index
    %c0_76 = arith.constant 0 : index
    %101 = tpu.strided_load %arg13[%c8_75, %c0_76] {strides = array<i32: 2, 1>} : memref<640x32xf32, #tpu.memory_space<vmem>>, vector<312x32xf32>
    %c9 = arith.constant 9 : index
    %c0_77 = arith.constant 0 : index
    %102 = tpu.strided_load %arg13[%c9, %c0_77] {strides = array<i32: 2, 1>} : memref<640x32xf32, #tpu.memory_space<vmem>>, vector<312x32xf32>
    %cst_78 = arith.constant dense<0.000000e+00> : vector<312x64xf32>
    %103 = tpu.matmul %101, %100, %cst_78 {dimension_numbers = #tpu.dot_dimension_numbers<[1], [0], [0], [1], [0, 0, 1, 1], [], []>} : vector<312x32xf32>, vector<32x64xf32>, vector<312x64xf32> -> vector<312x64xf32>
    %cst_79 = arith.constant dense<0.000000e+00> : vector<312x64xf32>
    %104 = tpu.matmul %102, %100, %cst_79 {dimension_numbers = #tpu.dot_dimension_numbers<[1], [0], [0], [1], [0, 0, 1, 1], [], []>} : vector<312x32xf32>, vector<32x64xf32>, vector<312x64xf32> -> vector<312x64xf32>
    %105 = arith.addf %97, %103 : vector<312x64xf32>
    %106 = arith.addf %98, %104 : vector<312x64xf32>
    %c2_80 = arith.constant 2 : index
    %c0_81 = arith.constant 0 : index
    %c0_82 = arith.constant 0 : index
    %107 = vector.load %arg4[%c2_80, %c0_81, %c0_82] : memref<3x32x64xf32, #tpu.memory_space<vmem>>, vector<1x32x64xf32>
    %108 = vector.shape_cast %107 : vector<1x32x64xf32> to vector<32x64xf32>
    %c9_83 = arith.constant 9 : index
    %c0_84 = arith.constant 0 : index
    %109 = tpu.strided_load %arg13[%c9_83, %c0_84] {strides = array<i32: 2, 1>} : memref<640x32xf32, #tpu.memory_space<vmem>>, vector<312x32xf32>
    %c10 = arith.constant 10 : index
    %c0_85 = arith.constant 0 : index
    %110 = tpu.strided_load %arg13[%c10, %c0_85] {strides = array<i32: 2, 1>} : memref<640x32xf32, #tpu.memory_space<vmem>>, vector<312x32xf32>
    %cst_86 = arith.constant dense<0.000000e+00> : vector<312x64xf32>
    %111 = tpu.matmul %109, %108, %cst_86 {dimension_numbers = #tpu.dot_dimension_numbers<[1], [0], [0], [1], [0, 0, 1, 1], [], []>} : vector<312x32xf32>, vector<32x64xf32>, vector<312x64xf32> -> vector<312x64xf32>
    %cst_87 = arith.constant dense<0.000000e+00> : vector<312x64xf32>
    %112 = tpu.matmul %110, %108, %cst_87 {dimension_numbers = #tpu.dot_dimension_numbers<[1], [0], [0], [1], [0, 0, 1, 1], [], []>} : vector<312x32xf32>, vector<32x64xf32>, vector<312x64xf32> -> vector<312x64xf32>
    %113 = arith.addf %105, %111 : vector<312x64xf32>
    %114 = arith.addf %106, %112 : vector<312x64xf32>
    %115 = arith.maximumf %113, %114 : vector<312x64xf32>
    %c0_88 = arith.constant 0 : index
    %c0_89 = arith.constant 0 : index
    %116 = vector.load %arg5[%c0_88, %c0_89] : memref<1x64xf32, #tpu.memory_space<vmem>>, vector<1x64xf32>
    %117 = vector.broadcast %116 : vector<1x64xf32> to vector<312x64xf32>
    %118 = arith.addf %115, %117 : vector<312x64xf32>
    %cst_90 = arith.constant 0.000000e+00 : f32
    %119 = vector.broadcast %cst_90 : f32 to vector<312x64xf32>
    %120 = arith.maximumf %118, %119 : vector<312x64xf32>
    %cst_91 = arith.constant 0.000000e+00 : f32
    %121 = vector.broadcast %cst_91 : f32 to vector<8x64xf32>
    %c0_92 = arith.constant 0 : index
    %c0_93 = arith.constant 0 : index
    %122 = vector.load %arg14[%c0_92, %c0_93] : memref<328x64xf32, #tpu.memory_space<vmem>>, vector<8x64xf32>
    tpu.vector_store %arg14[%c0_92, %c0_93], %121 {strides = array<i32>} : memref<328x64xf32, #tpu.memory_space<vmem>>, vector<8x64xf32>,
    %cst_94 = arith.constant 0.000000e+00 : f32
    %123 = vector.broadcast %cst_94 : f32 to vector<8x64xf32>
    %c320 = arith.constant 320 : index
    %c0_95 = arith.constant 0 : index
    %124 = vector.load %arg14[%c320, %c0_95] : memref<328x64xf32, #tpu.memory_space<vmem>>, vector<8x64xf32>
    tpu.vector_store %arg14[%c320, %c0_95], %123 {strides = array<i32>} : memref<328x64xf32, #tpu.memory_space<vmem>>, vector<8x64xf32>,
    %c8_96 = arith.constant 8 : index
    %c0_97 = arith.constant 0 : index
    %125 = vector.load %arg14[%c8_96, %c0_97] : memref<328x64xf32, #tpu.memory_space<vmem>>, vector<312x64xf32>
    tpu.vector_store %arg14[%c8_96, %c0_97], %120 {strides = array<i32>} : memref<328x64xf32, #tpu.memory_space<vmem>>, vector<312x64xf32>,
    %c0_98 = arith.constant 0 : index
    %c0_99 = arith.constant 0 : index
    %c0_100 = arith.constant 0 : index
    %126 = vector.load %arg6[%c0_98, %c0_99, %c0_100] : memref<3x64x128xf32, #tpu.memory_space<vmem>>, vector<1x64x128xf32>
    %127 = vector.shape_cast %126 : vector<1x64x128xf32> to vector<64x128xf32>
    %c7_101 = arith.constant 7 : index
    %c0_102 = arith.constant 0 : index
    %128 = tpu.strided_load %arg14[%c7_101, %c0_102] {strides = array<i32: 2, 1>} : memref<328x64xf32, #tpu.memory_space<vmem>>, vector<156x64xf32>
    %c8_103 = arith.constant 8 : index
    %c0_104 = arith.constant 0 : index
    %129 = tpu.strided_load %arg14[%c8_103, %c0_104] {strides = array<i32: 2, 1>} : memref<328x64xf32, #tpu.memory_space<vmem>>, vector<156x64xf32>
    %cst_105 = arith.constant dense<0.000000e+00> : vector<156x128xf32>
    %130 = tpu.matmul %128, %127, %cst_105 {dimension_numbers = #tpu.dot_dimension_numbers<[1], [0], [0], [1], [0, 0, 1, 1], [], []>} : vector<156x64xf32>, vector<64x128xf32>, vector<156x128xf32> -> vector<156x128xf32>
    %cst_106 = arith.constant dense<0.000000e+00> : vector<156x128xf32>
    %131 = tpu.matmul %129, %127, %cst_106 {dimension_numbers = #tpu.dot_dimension_numbers<[1], [0], [0], [1], [0, 0, 1, 1], [], []>} : vector<156x64xf32>, vector<64x128xf32>, vector<156x128xf32> -> vector<156x128xf32>
    %c1_107 = arith.constant 1 : index
    %c0_108 = arith.constant 0 : index
    %c0_109 = arith.constant 0 : index
    %132 = vector.load %arg6[%c1_107, %c0_108, %c0_109] : memref<3x64x128xf32, #tpu.memory_space<vmem>>, vector<1x64x128xf32>
    %133 = vector.shape_cast %132 : vector<1x64x128xf32> to vector<64x128xf32>
    %c8_110 = arith.constant 8 : index
    %c0_111 = arith.constant 0 : index
    %134 = tpu.strided_load %arg14[%c8_110, %c0_111] {strides = array<i32: 2, 1>} : memref<328x64xf32, #tpu.memory_space<vmem>>, vector<156x64xf32>
    %c9_112 = arith.constant 9 : index
    %c0_113 = arith.constant 0 : index
    %135 = tpu.strided_load %arg14[%c9_112, %c0_113] {strides = array<i32: 2, 1>} : memref<328x64xf32, #tpu.memory_space<vmem>>, vector<156x64xf32>
    %cst_114 = arith.constant dense<0.000000e+00> : vector<156x128xf32>
    %136 = tpu.matmul %134, %133, %cst_114 {dimension_numbers = #tpu.dot_dimension_numbers<[1], [0], [0], [1], [0, 0, 1, 1], [], []>} : vector<156x64xf32>, vector<64x128xf32>, vector<156x128xf32> -> vector<156x128xf32>
    %cst_115 = arith.constant dense<0.000000e+00> : vector<156x128xf32>
    %137 = tpu.matmul %135, %133, %cst_115 {dimension_numbers = #tpu.dot_dimension_numbers<[1], [0], [0], [1], [0, 0, 1, 1], [], []>} : vector<156x64xf32>, vector<64x128xf32>, vector<156x128xf32> -> vector<156x128xf32>
    %138 = arith.addf %130, %136 : vector<156x128xf32>
    %139 = arith.addf %131, %137 : vector<156x128xf32>
    %c2_116 = arith.constant 2 : index
    %c0_117 = arith.constant 0 : index
    %c0_118 = arith.constant 0 : index
    %140 = vector.load %arg6[%c2_116, %c0_117, %c0_118] : memref<3x64x128xf32, #tpu.memory_space<vmem>>, vector<1x64x128xf32>
    %141 = vector.shape_cast %140 : vector<1x64x128xf32> to vector<64x128xf32>
    %c9_119 = arith.constant 9 : index
    %c0_120 = arith.constant 0 : index
    %142 = tpu.strided_load %arg14[%c9_119, %c0_120] {strides = array<i32: 2, 1>} : memref<328x64xf32, #tpu.memory_space<vmem>>, vector<156x64xf32>
    %c10_121 = arith.constant 10 : index
    %c0_122 = arith.constant 0 : index
    %143 = tpu.strided_load %arg14[%c10_121, %c0_122] {strides = array<i32: 2, 1>} : memref<328x64xf32, #tpu.memory_space<vmem>>, vector<156x64xf32>
    %cst_123 = arith.constant dense<0.000000e+00> : vector<156x128xf32>
    %144 = tpu.matmul %142, %141, %cst_123 {dimension_numbers = #tpu.dot_dimension_numbers<[1], [0], [0], [1], [0, 0, 1, 1], [], []>} : vector<156x64xf32>, vector<64x128xf32>, vector<156x128xf32> -> vector<156x128xf32>
    %cst_124 = arith.constant dense<0.000000e+00> : vector<156x128xf32>
    %145 = tpu.matmul %143, %141, %cst_124 {dimension_numbers = #tpu.dot_dimension_numbers<[1], [0], [0], [1], [0, 0, 1, 1], [], []>} : vector<156x64xf32>, vector<64x128xf32>, vector<156x128xf32> -> vector<156x128xf32>
    %146 = arith.addf %138, %144 : vector<156x128xf32>
    %147 = arith.addf %139, %145 : vector<156x128xf32>
    %148 = arith.maximumf %146, %147 : vector<156x128xf32>
    %c0_125 = arith.constant 0 : index
    %c0_126 = arith.constant 0 : index
    %149 = vector.load %arg7[%c0_125, %c0_126] : memref<1x128xf32, #tpu.memory_space<vmem>>, vector<1x128xf32>
    %150 = vector.broadcast %149 : vector<1x128xf32> to vector<156x128xf32>
    %151 = arith.addf %148, %150 : vector<156x128xf32>
    %cst_127 = arith.constant 0.000000e+00 : f32
    %152 = vector.broadcast %cst_127 : f32 to vector<156x128xf32>
    %153 = arith.maximumf %151, %152 : vector<156x128xf32>
    %cst_128 = arith.constant 0.000000e+00 : f32
    %154 = vector.broadcast %cst_128 : f32 to vector<8x128xf32>
    %c0_129 = arith.constant 0 : index
    %c0_130 = arith.constant 0 : index
    %155 = vector.load %arg15[%c0_129, %c0_130] : memref<168x128xf32, #tpu.memory_space<vmem>>, vector<8x128xf32>
    tpu.vector_store %arg15[%c0_129, %c0_130], %154 {strides = array<i32>} : memref<168x128xf32, #tpu.memory_space<vmem>>, vector<8x128xf32>,
    %cst_131 = arith.constant 0.000000e+00 : f32
    %156 = vector.broadcast %cst_131 : f32 to vector<4x128xf32>
    %c164 = arith.constant 164 : index
    %c0_132 = arith.constant 0 : index
    %157 = vector.load %arg15[%c164, %c0_132] : memref<168x128xf32, #tpu.memory_space<vmem>>, vector<4x128xf32>
    tpu.vector_store %arg15[%c164, %c0_132], %156 {strides = array<i32>} : memref<168x128xf32, #tpu.memory_space<vmem>>, vector<4x128xf32>,
    %c8_133 = arith.constant 8 : index
    %c0_134 = arith.constant 0 : index
    %158 = vector.load %arg15[%c8_133, %c0_134] : memref<168x128xf32, #tpu.memory_space<vmem>>, vector<156x128xf32>
    tpu.vector_store %arg15[%c8_133, %c0_134], %153 {strides = array<i32>} : memref<168x128xf32, #tpu.memory_space<vmem>>, vector<156x128xf32>,
    %c0_135 = arith.constant 0 : index
    %c0_136 = arith.constant 0 : index
    %c0_137 = arith.constant 0 : index
    %159 = vector.load %arg8[%c0_135, %c0_136, %c0_137] : memref<3x128x128xf32, #tpu.memory_space<vmem>>, vector<1x128x128xf32>
    %160 = vector.shape_cast %159 : vector<1x128x128xf32> to vector<128x128xf32>
    %c7_138 = arith.constant 7 : index
    %c0_139 = arith.constant 0 : index
    %161 = tpu.strided_load %arg15[%c7_138, %c0_139] {strides = array<i32: 2, 1>} : memref<168x128xf32, #tpu.memory_space<vmem>>, vector<78x128xf32>
    %c8_140 = arith.constant 8 : index
    %c0_141 = arith.constant 0 : index
    %162 = tpu.strided_load %arg15[%c8_140, %c0_141] {strides = array<i32: 2, 1>} : memref<168x128xf32, #tpu.memory_space<vmem>>, vector<78x128xf32>
    %cst_142 = arith.constant dense<0.000000e+00> : vector<78x128xf32>
    %163 = tpu.matmul %161, %160, %cst_142 {dimension_numbers = #tpu.dot_dimension_numbers<[1], [0], [0], [1], [0, 0, 1, 1], [], []>} : vector<78x128xf32>, vector<128x128xf32>, vector<78x128xf32> -> vector<78x128xf32>
    %cst_143 = arith.constant dense<0.000000e+00> : vector<78x128xf32>
    %164 = tpu.matmul %162, %160, %cst_143 {dimension_numbers = #tpu.dot_dimension_numbers<[1], [0], [0], [1], [0, 0, 1, 1], [], []>} : vector<78x128xf32>, vector<128x128xf32>, vector<78x128xf32> -> vector<78x128xf32>
    %c1_144 = arith.constant 1 : index
    %c0_145 = arith.constant 0 : index
    %c0_146 = arith.constant 0 : index
    %165 = vector.load %arg8[%c1_144, %c0_145, %c0_146] : memref<3x128x128xf32, #tpu.memory_space<vmem>>, vector<1x128x128xf32>
    %166 = vector.shape_cast %165 : vector<1x128x128xf32> to vector<128x128xf32>
    %c8_147 = arith.constant 8 : index
    %c0_148 = arith.constant 0 : index
    %167 = tpu.strided_load %arg15[%c8_147, %c0_148] {strides = array<i32: 2, 1>} : memref<168x128xf32, #tpu.memory_space<vmem>>, vector<78x128xf32>
    %c9_149 = arith.constant 9 : index
    %c0_150 = arith.constant 0 : index
    %168 = tpu.strided_load %arg15[%c9_149, %c0_150] {strides = array<i32: 2, 1>} : memref<168x128xf32, #tpu.memory_space<vmem>>, vector<78x128xf32>
    %cst_151 = arith.constant dense<0.000000e+00> : vector<78x128xf32>
    %169 = tpu.matmul %167, %166, %cst_151 {dimension_numbers = #tpu.dot_dimension_numbers<[1], [0], [0], [1], [0, 0, 1, 1], [], []>} : vector<78x128xf32>, vector<128x128xf32>, vector<78x128xf32> -> vector<78x128xf32>
    %cst_152 = arith.constant dense<0.000000e+00> : vector<78x128xf32>
    %170 = tpu.matmul %168, %166, %cst_152 {dimension_numbers = #tpu.dot_dimension_numbers<[1], [0], [0], [1], [0, 0, 1, 1], [], []>} : vector<78x128xf32>, vector<128x128xf32>, vector<78x128xf32> -> vector<78x128xf32>
    %171 = arith.addf %163, %169 : vector<78x128xf32>
    %172 = arith.addf %164, %170 : vector<78x128xf32>
    %c2_153 = arith.constant 2 : index
    %c0_154 = arith.constant 0 : index
    %c0_155 = arith.constant 0 : index
    %173 = vector.load %arg8[%c2_153, %c0_154, %c0_155] : memref<3x128x128xf32, #tpu.memory_space<vmem>>, vector<1x128x128xf32>
    %174 = vector.shape_cast %173 : vector<1x128x128xf32> to vector<128x128xf32>
    %c9_156 = arith.constant 9 : index
    %c0_157 = arith.constant 0 : index
    %175 = tpu.strided_load %arg15[%c9_156, %c0_157] {strides = array<i32: 2, 1>} : memref<168x128xf32, #tpu.memory_space<vmem>>, vector<78x128xf32>
    %c10_158 = arith.constant 10 : index
    %c0_159 = arith.constant 0 : index
    %176 = tpu.strided_load %arg15[%c10_158, %c0_159] {strides = array<i32: 2, 1>} : memref<168x128xf32, #tpu.memory_space<vmem>>, vector<78x128xf32>
    %cst_160 = arith.constant dense<0.000000e+00> : vector<78x128xf32>
    %177 = tpu.matmul %175, %174, %cst_160 {dimension_numbers = #tpu.dot_dimension_numbers<[1], [0], [0], [1], [0, 0, 1, 1], [], []>} : vector<78x128xf32>, vector<128x128xf32>, vector<78x128xf32> -> vector<78x128xf32>
    %cst_161 = arith.constant dense<0.000000e+00> : vector<78x128xf32>
    %178 = tpu.matmul %176, %174, %cst_161 {dimension_numbers = #tpu.dot_dimension_numbers<[1], [0], [0], [1], [0, 0, 1, 1], [], []>} : vector<78x128xf32>, vector<128x128xf32>, vector<78x128xf32> -> vector<78x128xf32>
    %179 = arith.addf %171, %177 : vector<78x128xf32>
    %180 = arith.addf %172, %178 : vector<78x128xf32>
    %181 = arith.maximumf %179, %180 : vector<78x128xf32>
    %c0_162 = arith.constant 0 : index
    %c0_163 = arith.constant 0 : index
    %182 = vector.load %arg9[%c0_162, %c0_163] : memref<1x128xf32, #tpu.memory_space<vmem>>, vector<1x128xf32>
    %183 = vector.broadcast %182 : vector<1x128xf32> to vector<78x128xf32>
    %184 = arith.addf %181, %183 : vector<78x128xf32>
    %cst_164 = arith.constant 0.000000e+00 : f32
    %185 = vector.broadcast %cst_164 : f32 to vector<78x128xf32>
    %186 = arith.maximumf %184, %185 : vector<78x128xf32>
    %c0_165 = arith.constant 0 : index
    %c0_166 = arith.constant 0 : index
    %187 = vector.load %arg16[%c0_165, %c0_166] : memref<80x128xf32, #tpu.memory_space<vmem>>, vector<78x128xf32>
    tpu.vector_store %arg16[%c0_165, %c0_166], %186 {strides = array<i32>} : memref<80x128xf32, #tpu.memory_space<vmem>>, vector<78x128xf32>,
    %c0_167 = arith.constant 0 : index
    %c0_168 = arith.constant 0 : index
    %c0_169 = arith.constant 0 : index
    %188 = vector.load %arg10[%c0_167, %c0_168, %c0_169] : memref<3x128x128xf32, #tpu.memory_space<vmem>>, vector<1x128x128xf32>
    %189 = vector.shape_cast %188 : vector<1x128x128xf32> to vector<128x128xf32>
    %c0_170 = arith.constant 0 : index
    %c0_171 = arith.constant 0 : index
    %190 = tpu.strided_load %arg16[%c0_170, %c0_171] {strides = array<i32: 2, 1>} : memref<80x128xf32, #tpu.memory_space<vmem>>, vector<38x128xf32>
    %c1_172 = arith.constant 1 : index
    %c0_173 = arith.constant 0 : index
    %191 = tpu.strided_load %arg16[%c1_172, %c0_173] {strides = array<i32: 2, 1>} : memref<80x128xf32, #tpu.memory_space<vmem>>, vector<38x128xf32>
    %cst_174 = arith.constant dense<0.000000e+00> : vector<38x128xf32>
    %192 = tpu.matmul %190, %189, %cst_174 {dimension_numbers = #tpu.dot_dimension_numbers<[1], [0], [0], [1], [0, 0, 1, 1], [], []>} : vector<38x128xf32>, vector<128x128xf32>, vector<38x128xf32> -> vector<38x128xf32>
    %cst_175 = arith.constant dense<0.000000e+00> : vector<38x128xf32>
    %193 = tpu.matmul %191, %189, %cst_175 {dimension_numbers = #tpu.dot_dimension_numbers<[1], [0], [0], [1], [0, 0, 1, 1], [], []>} : vector<38x128xf32>, vector<128x128xf32>, vector<38x128xf32> -> vector<38x128xf32>
    %c1_176 = arith.constant 1 : index
    %c0_177 = arith.constant 0 : index
    %c0_178 = arith.constant 0 : index
    %194 = vector.load %arg10[%c1_176, %c0_177, %c0_178] : memref<3x128x128xf32, #tpu.memory_space<vmem>>, vector<1x128x128xf32>
    %195 = vector.shape_cast %194 : vector<1x128x128xf32> to vector<128x128xf32>
    %c1_179 = arith.constant 1 : index
    %c0_180 = arith.constant 0 : index
    %196 = tpu.strided_load %arg16[%c1_179, %c0_180] {strides = array<i32: 2, 1>} : memref<80x128xf32, #tpu.memory_space<vmem>>, vector<38x128xf32>
    %c2_181 = arith.constant 2 : index
    %c0_182 = arith.constant 0 : index
    %197 = tpu.strided_load %arg16[%c2_181, %c0_182] {strides = array<i32: 2, 1>} : memref<80x128xf32, #tpu.memory_space<vmem>>, vector<38x128xf32>
    %cst_183 = arith.constant dense<0.000000e+00> : vector<38x128xf32>
    %198 = tpu.matmul %196, %195, %cst_183 {dimension_numbers = #tpu.dot_dimension_numbers<[1], [0], [0], [1], [0, 0, 1, 1], [], []>} : vector<38x128xf32>, vector<128x128xf32>, vector<38x128xf32> -> vector<38x128xf32>
    %cst_184 = arith.constant dense<0.000000e+00> : vector<38x128xf32>
    %199 = tpu.matmul %197, %195, %cst_184 {dimension_numbers = #tpu.dot_dimension_numbers<[1], [0], [0], [1], [0, 0, 1, 1], [], []>} : vector<38x128xf32>, vector<128x128xf32>, vector<38x128xf32> -> vector<38x128xf32>
    %200 = arith.addf %192, %198 : vector<38x128xf32>
    %201 = arith.addf %193, %199 : vector<38x128xf32>
    %c2_185 = arith.constant 2 : index
    %c0_186 = arith.constant 0 : index
    %c0_187 = arith.constant 0 : index
    %202 = vector.load %arg10[%c2_185, %c0_186, %c0_187] : memref<3x128x128xf32, #tpu.memory_space<vmem>>, vector<1x128x128xf32>
    %203 = vector.shape_cast %202 : vector<1x128x128xf32> to vector<128x128xf32>
    %c2_188 = arith.constant 2 : index
    %c0_189 = arith.constant 0 : index
    %204 = tpu.strided_load %arg16[%c2_188, %c0_189] {strides = array<i32: 2, 1>} : memref<80x128xf32, #tpu.memory_space<vmem>>, vector<38x128xf32>
    %c3_190 = arith.constant 3 : index
    %c0_191 = arith.constant 0 : index
    %205 = tpu.strided_load %arg16[%c3_190, %c0_191] {strides = array<i32: 2, 1>} : memref<80x128xf32, #tpu.memory_space<vmem>>, vector<38x128xf32>
    %cst_192 = arith.constant dense<0.000000e+00> : vector<38x128xf32>
    %206 = tpu.matmul %204, %203, %cst_192 {dimension_numbers = #tpu.dot_dimension_numbers<[1], [0], [0], [1], [0, 0, 1, 1], [], []>} : vector<38x128xf32>, vector<128x128xf32>, vector<38x128xf32> -> vector<38x128xf32>
    %cst_193 = arith.constant dense<0.000000e+00> : vector<38x128xf32>
    %207 = tpu.matmul %205, %203, %cst_193 {dimension_numbers = #tpu.dot_dimension_numbers<[1], [0], [0], [1], [0, 0, 1, 1], [], []>} : vector<38x128xf32>, vector<128x128xf32>, vector<38x128xf32> -> vector<38x128xf32>
    %208 = arith.addf %200, %206 : vector<38x128xf32>
    %209 = arith.addf %201, %207 : vector<38x128xf32>
    %210 = arith.maximumf %208, %209 : vector<38x128xf32>
    %c0_194 = arith.constant 0 : index
    %c0_195 = arith.constant 0 : index
    %211 = vector.load %arg11[%c0_194, %c0_195] : memref<1x128xf32, #tpu.memory_space<vmem>>, vector<1x128xf32>
    %212 = vector.broadcast %211 : vector<1x128xf32> to vector<38x128xf32>
    %213 = arith.addf %210, %212 : vector<38x128xf32>
    %cst_196 = arith.constant 0.000000e+00 : f32
    %214 = vector.broadcast %cst_196 : f32 to vector<38x128xf32>
    %215 = arith.maximumf %213, %214 : vector<38x128xf32>
    %c0_197 = arith.constant 0 : index
    %c0_198 = arith.constant 0 : index
    %c0_199 = arith.constant 0 : index
    %216 = vector.load %arg12[%c0_197, %c0_198, %c0_199] : memref<1x38x128xf32, #tpu.memory_space<vmem>>, vector<1x38x128xf32>
    %217 = vector.shape_cast %216 : vector<1x38x128xf32> to vector<38x128xf32>
    %218 = vector.shape_cast %215 : vector<38x128xf32> to vector<1x38x128xf32>
    tpu.vector_store %arg12[%c0_197, %c0_198, %c0_199], %218 {strides = array<i32>} : memref<1x38x128xf32, #tpu.memory_space<vmem>>, vector<1x38x128xf32>,
    return
  }
  func.func @transform_0(%arg0: i32) -> (i32, i32, i32) {
    %c0_i32 = arith.constant 0 : i32
    %c0_i32_0 = arith.constant 0 : i32
    %c0_i32_1 = arith.constant 0 : i32
    return %arg0, %c0_i32, %c0_i32_0 : i32, i32, i32
  }
  func.func @transform_1(%arg0: i32) -> (i32, i32, i32) {
    %c0_i32 = arith.constant 0 : i32
    %c0_i32_0 = arith.constant 0 : i32
    %c0_i32_1 = arith.constant 0 : i32
    %c0_i32_2 = arith.constant 0 : i32
    return %c0_i32, %c0_i32_0, %c0_i32_1 : i32, i32, i32
  }
  func.func @transform_2(%arg0: i32) -> (i32, i32) {
    %c0_i32 = arith.constant 0 : i32
    %c0_i32_0 = arith.constant 0 : i32
    %c0_i32_1 = arith.constant 0 : i32
    return %c0_i32, %c0_i32_0 : i32, i32
  }
  func.func @transform_3(%arg0: i32) -> (i32, i32, i32) {
    %c0_i32 = arith.constant 0 : i32
    %c0_i32_0 = arith.constant 0 : i32
    %c0_i32_1 = arith.constant 0 : i32
    %c0_i32_2 = arith.constant 0 : i32
    return %c0_i32, %c0_i32_0, %c0_i32_1 : i32, i32, i32
  }
  func.func @transform_4(%arg0: i32) -> (i32, i32) {
    %c0_i32 = arith.constant 0 : i32
    %c0_i32_0 = arith.constant 0 : i32
    %c0_i32_1 = arith.constant 0 : i32
    return %c0_i32, %c0_i32_0 : i32, i32
  }
  func.func @transform_5(%arg0: i32) -> (i32, i32, i32) {
    %c0_i32 = arith.constant 0 : i32
    %c0_i32_0 = arith.constant 0 : i32
    %c0_i32_1 = arith.constant 0 : i32
    %c0_i32_2 = arith.constant 0 : i32
    return %c0_i32, %c0_i32_0, %c0_i32_1 : i32, i32, i32
  }
  func.func @transform_6(%arg0: i32) -> (i32, i32) {
    %c0_i32 = arith.constant 0 : i32
    %c0_i32_0 = arith.constant 0 : i32
    %c0_i32_1 = arith.constant 0 : i32
    return %c0_i32, %c0_i32_0 : i32, i32
  }
  func.func @transform_7(%arg0: i32) -> (i32, i32, i32) {
    %c0_i32 = arith.constant 0 : i32
    %c0_i32_0 = arith.constant 0 : i32
    %c0_i32_1 = arith.constant 0 : i32
    %c0_i32_2 = arith.constant 0 : i32
    return %c0_i32, %c0_i32_0, %c0_i32_1 : i32, i32, i32
  }
  func.func @transform_8(%arg0: i32) -> (i32, i32) {
    %c0_i32 = arith.constant 0 : i32
    %c0_i32_0 = arith.constant 0 : i32
    %c0_i32_1 = arith.constant 0 : i32
    return %c0_i32, %c0_i32_0 : i32, i32
  }
  func.func @transform_9(%arg0: i32) -> (i32, i32, i32) {
    %c0_i32 = arith.constant 0 : i32
    %c0_i32_0 = arith.constant 0 : i32
    %c0_i32_1 = arith.constant 0 : i32
    %c0_i32_2 = arith.constant 0 : i32
    return %c0_i32, %c0_i32_0, %c0_i32_1 : i32, i32, i32
  }
  func.func @transform_10(%arg0: i32) -> (i32, i32) {
    %c0_i32 = arith.constant 0 : i32
    %c0_i32_0 = arith.constant 0 : i32
    %c0_i32_1 = arith.constant 0 : i32
    return %c0_i32, %c0_i32_0 : i32, i32
  }
  func.func @transform_11(%arg0: i32) -> (i32, i32, i32) {
    %c0_i32 = arith.constant 0 : i32
    %c0_i32_0 = arith.constant 0 : i32
    %c0_i32_1 = arith.constant 0 : i32
    return %arg0, %c0_i32, %c0_i32_0 : i32, i32, i32
  }
}

module attributes {stable_mosaic.version = 11 : i64} {
  func.func @mlp_kernel(%arg0: i32, %arg1: memref<2x2432xf32, #tpu.memory_space<vmem>>, %arg2: memref<2432x128xf32, #tpu.memory_space<vmem>>, %arg3: memref<1x128xf32, #tpu.memory_space<vmem>>, %arg4: memref<128x10xf32, #tpu.memory_space<vmem>>, %arg5: memref<1x10xf32, #tpu.memory_space<vmem>>, %arg6: memref<2x10xf32, #tpu.memory_space<vmem>>) attributes {dimension_semantics = [#tpu.dimension_semantics<arbitrary>], iteration_bounds = array<i64: 1>, scalar_prefetch = 0 : i64, scratch_operands = 0 : i64, tpu.core_type = #tpu.core_type<tc>, window_params = [{pipeline_mode = #tpu.pipeline_mode<synchronous>, transform_indices = @transform_0, window_bounds = array<i64: 2, 2432>}, {pipeline_mode = #tpu.pipeline_mode<synchronous>, transform_indices = @transform_1, window_bounds = array<i64: 2432, 128>}, {pipeline_mode = #tpu.pipeline_mode<synchronous>, transform_indices = @transform_2, window_bounds = array<i64: 1, 128>}, {pipeline_mode = #tpu.pipeline_mode<synchronous>, transform_indices = @transform_3, window_bounds = array<i64: 128, 10>}, {pipeline_mode = #tpu.pipeline_mode<synchronous>, transform_indices = @transform_4, window_bounds = array<i64: 1, 10>}, {pipeline_mode = #tpu.pipeline_mode<synchronous>, transform_indices = @transform_5, window_bounds = array<i64: 2, 10>}]} {
    %c0 = arith.constant 0 : index
    %c0_0 = arith.constant 0 : index
    %0 = vector.load %arg1[%c0, %c0_0] : memref<2x2432xf32, #tpu.memory_space<vmem>>, vector<2x2432xf32>
    %c0_1 = arith.constant 0 : index
    %c0_2 = arith.constant 0 : index
    %1 = vector.load %arg2[%c0_1, %c0_2] : memref<2432x128xf32, #tpu.memory_space<vmem>>, vector<2432x128xf32>
    %cst = arith.constant dense<0.000000e+00> : vector<2x128xf32>
    %2 = tpu.matmul %0, %1, %cst {dimension_numbers = #tpu.dot_dimension_numbers<[1], [0], [0], [1], [0, 0, 1, 1], [], []>} : vector<2x2432xf32>, vector<2432x128xf32>, vector<2x128xf32> -> vector<2x128xf32>
    %c0_3 = arith.constant 0 : index
    %c0_4 = arith.constant 0 : index
    %3 = vector.load %arg3[%c0_3, %c0_4] : memref<1x128xf32, #tpu.memory_space<vmem>>, vector<1x128xf32>
    %4 = vector.broadcast %3 : vector<1x128xf32> to vector<2x128xf32>
    %5 = arith.addf %2, %4 : vector<2x128xf32>
    %cst_5 = arith.constant 0.000000e+00 : f32
    %6 = vector.broadcast %cst_5 : f32 to vector<2x128xf32>
    %7 = arith.maximumf %5, %6 : vector<2x128xf32>
    %c0_6 = arith.constant 0 : index
    %c0_7 = arith.constant 0 : index
    %8 = vector.load %arg4[%c0_6, %c0_7] : memref<128x10xf32, #tpu.memory_space<vmem>>, vector<128x10xf32>
    %cst_8 = arith.constant dense<0.000000e+00> : vector<2x10xf32>
    %9 = tpu.matmul %7, %8, %cst_8 {dimension_numbers = #tpu.dot_dimension_numbers<[1], [0], [0], [1], [0, 0, 1, 1], [], []>} : vector<2x128xf32>, vector<128x10xf32>, vector<2x10xf32> -> vector<2x10xf32>
    %c0_9 = arith.constant 0 : index
    %c0_10 = arith.constant 0 : index
    %10 = vector.load %arg5[%c0_9, %c0_10] : memref<1x10xf32, #tpu.memory_space<vmem>>, vector<1x10xf32>
    %11 = vector.broadcast %10 : vector<1x10xf32> to vector<2x10xf32>
    %12 = arith.addf %9, %11 : vector<2x10xf32>
    %c0_11 = arith.constant 0 : index
    %c0_12 = arith.constant 0 : index
    %13 = vector.load %arg6[%c0_11, %c0_12] : memref<2x10xf32, #tpu.memory_space<vmem>>, vector<2x10xf32>
    tpu.vector_store %arg6[%c0_11, %c0_12], %12 {strides = array<i32>} : memref<2x10xf32, #tpu.memory_space<vmem>>, vector<2x10xf32>,
    return
  }
  func.func @transform_0(%arg0: i32) -> (i32, i32) {
    %c0_i32 = arith.constant 0 : i32
    %c0_i32_0 = arith.constant 0 : i32
    %c0_i32_1 = arith.constant 0 : i32
    return %c0_i32, %c0_i32_0 : i32, i32
  }
  func.func @transform_1(%arg0: i32) -> (i32, i32) {
    %c0_i32 = arith.constant 0 : i32
    %c0_i32_0 = arith.constant 0 : i32
    %c0_i32_1 = arith.constant 0 : i32
    return %c0_i32, %c0_i32_0 : i32, i32
  }
  func.func @transform_2(%arg0: i32) -> (i32, i32) {
    %c0_i32 = arith.constant 0 : i32
    %c0_i32_0 = arith.constant 0 : i32
    %c0_i32_1 = arith.constant 0 : i32
    return %c0_i32, %c0_i32_0 : i32, i32
  }
  func.func @transform_3(%arg0: i32) -> (i32, i32) {
    %c0_i32 = arith.constant 0 : i32
    %c0_i32_0 = arith.constant 0 : i32
    %c0_i32_1 = arith.constant 0 : i32
    return %c0_i32, %c0_i32_0 : i32, i32
  }
  func.func @transform_4(%arg0: i32) -> (i32, i32) {
    %c0_i32 = arith.constant 0 : i32
    %c0_i32_0 = arith.constant 0 : i32
    %c0_i32_1 = arith.constant 0 : i32
    return %c0_i32, %c0_i32_0 : i32, i32
  }
  func.func @transform_5(%arg0: i32) -> (i32, i32) {
    %c0_i32 = arith.constant 0 : i32
    %c0_i32_0 = arith.constant 0 : i32
    %c0_i32_1 = arith.constant 0 : i32
    return %c0_i32, %c0_i32_0 : i32, i32
  }
}

</mosaic_0001>

<llo_original>
// kernel: forward.3
$region0: #{forward.3}
  #allocation0 [shape = 'u32[]', space=smem, size = 0x4, offset = 0x4, fixed_abs, tag = 'smem constant byte address 0x4 - core index']
  #allocation1 [shape = 'u32[144,128]{1,0:T(1,128)}', space=vmem, size = 0x12000, scoped, tag = 'internal scratch']
  %s0 = inlined_call_operand.vmem [shape: f32[2,2432], index: 0, kind: input, shape index: {}]
  %s1 = inlined_call_operand.vmem [shape: f32[2432,128], index: 1, kind: input, shape index: {}]
  %s2 = inlined_call_operand.vmem [shape: f32[1,128], index: 2, kind: input, shape index: {}]
  %s3 = inlined_call_operand.vmem [shape: f32[128,10], index: 3, kind: input, shape index: {}]
  %s4 = inlined_call_operand.vmem [shape: f32[1,10], index: 4, kind: input, shape index: {}]
  %s5 = inlined_call_operand.hbm [shape: f32[2,10], index: 5, kind: output, shape index: {}]
  %s6 = sld [smem:[#allocation0]]
  $region30: #{forward.3} parent=0
    _
  %s8 = ssub.s32 1, %s6
  %s9 = scalar_select 0, %s8, %s6
  $region1: #{forward.3} parent=0
    #allocation2 [shape = 'u8[1024]{0}', space=vmem, size = 0x400, scoped, tag = 'output window, operand 0, single buffered']
    #allocation3 [shape = 's32[1]{0}', space=sflag, size = 0x4, scoped, tag = 'scoped memory for forward.3']
    %10 = vsyncpa [#allocation3], 0
    // Predicated region
    $region2: #{forward.3} parent=1 // pred_check
      _
    $region3: #{forward.3} parent=1 // pred_check_branch
      %12 = sbr.rel (0) target = $region5
    $region4: #{forward.3} parent=1 // pred_region
      _
    $region5: #{forward.3} parent=1 // pred_fallthru
      _
    // Predicated region
    $region6: #{forward.3} parent=1 // pred_check
      _
    $region7: #{forward.3} parent=1 // pred_check_branch
      %14 = sbr.rel (0) target = $region9
    $region8: #{forward.3} parent=1 // pred_region
      _
    $region9: #{forward.3} parent=1 // pred_fallthru
      _
    // Predicated region
    $region10: #{forward.3} parent=1 // pred_check
      _
    $region11: #{forward.3} parent=1 // pred_check_branch
      %16 = sbr.rel (0) target = $region13
    $region12: #{forward.3} parent=1 // pred_region
      _
    $region13: #{forward.3} parent=1 // pred_fallthru
      _
    // Predicated region
    $region14: #{forward.3} parent=1 // pred_check
      _
    $region15: #{forward.3} parent=1 // pred_check_branch
      %18 = sbr.rel (0) target = $region17
    $region16: #{forward.3} parent=1 // pred_region
      _
    $region17: #{forward.3} parent=1 // pred_fallthru
      _
    // Predicated region
    $region18: #{forward.3} parent=1 // pred_check
      _
    $region19: #{forward.3} parent=1 // pred_check_branch
      %20 = sbr.rel (0) target = $region21
    $region20: #{forward.3} parent=1 // pred_region
      _
    $region21: #{forward.3} parent=1 // pred_fallthru
      _
    %v21 = vld [vmem:[%s0] sm:$0xff]
    %v22 = vld [vmem:[%s0 + $0x8] sm:$0xff]
    %v23 = vld [vmem:[%s0 + $0x10] sm:$0xff]
    %v24 = vld [vmem:[%s0 + $0x18] sm:$0xff]
    %v25 = vld [vmem:[%s0 + $0x20] sm:$0x3f]
    %v26 = vld [vmem:[%s1] sm:$0xff]
    %v27 = vld [vmem:[%s1 + $0x8] sm:$0xff]
    %v28 = vld [vmem:[%s1 + $0x10] sm:$0xff]
    %v29 = vld [vmem:[%s1 + $0x18] sm:$0xff]
    %v30 = vld [vmem:[%s1 + $0x20] sm:$0xff]
    %v31 = vld [vmem:[%s1 + $0x28] sm:$0xff]
    %v32 = vld [vmem:[%s1 + $0x30] sm:$0xff]
    %v33 = vld [vmem:[%s1 + $0x38] sm:$0xff]
    %v34 = vld [vmem:[%s1 + $0x40] sm:$0xff]
    %v35 = vld [vmem:[%s1 + $0x48] sm:$0xff]
    %v36 = vld [vmem:[%s1 + $0x50] sm:$0xff]
    %v37 = vld [vmem:[%s1 + $0x58] sm:$0xff]
    %v38 = vld [vmem:[%s1 + $0x60] sm:$0xff]
    %v39 = vld [vmem:[%s1 + $0x68] sm:$0xff]
    %v40 = vld [vmem:[%s1 + $0x70] sm:$0xff]
    %v41 = vld [vmem:[%s1 + $0x78] sm:$0xff]
    %v42 = vld [vmem:[%s1 + $0x80] sm:$0xff]
    %v43 = vld [vmem:[%s1 + $0x88] sm:$0xff]
    %v44 = vld [vmem:[%s1 + $0x90] sm:$0xff]
    %v45 = vld [vmem:[%s1 + $0x98] sm:$0xff]
    %v46 = vld [vmem:[%s1 + $0xa0] sm:$0xff]
    %v47 = vld [vmem:[%s1 + $0xa8] sm:$0xff]
    %v48 = vld [vmem:[%s1 + $0xb0] sm:$0xff]
    %v49 = vld [vmem:[%s1 + $0xb8] sm:$0xff]
    %v50 = vld [vmem:[%s1 + $0xc0] sm:$0xff]
    %v51 = vld [vmem:[%s1 + $0xc8] sm:$0xff]
    %v52 = vld [vmem:[%s1 + $0xd0] sm:$0xff]
    %v53 = vld [vmem:[%s1 + $0xd8] sm:$0xff]
    %v54 = vld [vmem:[%s1 + $0xe0] sm:$0xff]
    %v55 = vld [vmem:[%s1 + $0xe8] sm:$0xff]
    %v56 = vld [vmem:[%s1 + $0xf0] sm:$0xff]
    %v57 = vld [vmem:[%s1 + $0xf8] sm:$0xff]
    %v58 = vld [vmem:[%s1 + $0x100] sm:$0xff]
    %v59 = vld [vmem:[%s1 + $0x108] sm:$0xff]
    %v60 = vld [vmem:[%s1 + $0x110] sm:$0xff]
    %v61 = vld [vmem:[%s1 + $0x118] sm:$0xff]
    %v62 = vld [vmem:[%s1 + $0x120] sm:$0xff]
    %v63 = vld [vmem:[%s1 + $0x128] sm:$0xff]
    %v64 = vld [vmem:[%s1 + $0x130] sm:$0xff]
    %v65 = vld [vmem:[%s1 + $0x138] sm:$0xff]
    %v66 = vld [vmem:[%s1 + $0x140] sm:$0xff]
    %v67 = vld [vmem:[%s1 + $0x148] sm:$0xff]
    %v68 = vld [vmem:[%s1 + $0x150] sm:$0xff]
    %v69 = vld [vmem:[%s1 + $0x158] sm:$0xff]
    %v70 = vld [vmem:[%s1 + $0x160] sm:$0xff]
    %v71 = vld [vmem:[%s1 + $0x168] sm:$0xff]
    %v72 = vld [vmem:[%s1 + $0x170] sm:$0xff]
    %v73 = vld [vmem:[%s1 + $0x178] sm:$0xff]
    %v74 = vld [vmem:[%s1 + $0x180] sm:$0xff]
    %v75 = vld [vmem:[%s1 + $0x188] sm:$0xff]
    %v76 = vld [vmem:[%s1 + $0x190] sm:$0xff]
    %v77 = vld [vmem:[%s1 + $0x198] sm:$0xff]
    %v78 = vld [vmem:[%s1 + $0x1a0] sm:$0xff]
    %v79 = vld [vmem:[%s1 + $0x1a8] sm:$0xff]
    %v80 = vld [vmem:[%s1 + $0x1b0] sm:$0xff]
    %v81 = vld [vmem:[%s1 + $0x1b8] sm:$0xff]
    %v82 = vld [vmem:[%s1 + $0x1c0] sm:$0xff]
    %v83 = vld [vmem:[%s1 + $0x1c8] sm:$0xff]
    %v84 = vld [vmem:[%s1 + $0x1d0] sm:$0xff]
    %v85 = vld [vmem:[%s1 + $0x1d8] sm:$0xff]
    %v86 = vld [vmem:[%s1 + $0x1e0] sm:$0xff]
    %v87 = vld [vmem:[%s1 + $0x1e8] sm:$0xff]
    %v88 = vld [vmem:[%s1 + $0x1f0] sm:$0xff]
    %v89 = vld [vmem:[%s1 + $0x1f8] sm:$0xff]
    %v90 = vld [vmem:[%s1 + $0x200] sm:$0xff]
    %v91 = vld [vmem:[%s1 + $0x208] sm:$0xff]
    %v92 = vld [vmem:[%s1 + $0x210] sm:$0xff]
    %v93 = vld [vmem:[%s1 + $0x218] sm:$0xff]
    %v94 = vld [vmem:[%s1 + $0x220] sm:$0xff]
    %v95 = vld [vmem:[%s1 + $0x228] sm:$0xff]
    %v96 = vld [vmem:[%s1 + $0x230] sm:$0xff]
    %v97 = vld [vmem:[%s1 + $0x238] sm:$0xff]
    %v98 = vld [vmem:[%s1 + $0x240] sm:$0xff]
    %v99 = vld [vmem:[%s1 + $0x248] sm:$0xff]
    %v100 = vld [vmem:[%s1 + $0x250] sm:$0xff]
    %v101 = vld [vmem:[%s1 + $0x258] sm:$0xff]
    %v102 = vld [vmem:[%s1 + $0x260] sm:$0xff]
    %v103 = vld [vmem:[%s1 + $0x268] sm:$0xff]
    %v104 = vld [vmem:[%s1 + $0x270] sm:$0xff]
    %v105 = vld [vmem:[%s1 + $0x278] sm:$0xff]
    %v106 = vld [vmem:[%s1 + $0x280] sm:$0xff]
    %v107 = vld [vmem:[%s1 + $0x288] sm:$0xff]
    %v108 = vld [vmem:[%s1 + $0x290] sm:$0xff]
    %v109 = vld [vmem:[%s1 + $0x298] sm:$0xff]
    %v110 = vld [vmem:[%s1 + $0x2a0] sm:$0xff]
    %v111 = vld [vmem:[%s1 + $0x2a8] sm:$0xff]
    %v112 = vld [vmem:[%s1 + $0x2b0] sm:$0xff]
    %v113 = vld [vmem:[%s1 + $0x2b8] sm:$0xff]
    %v114 = vld [vmem:[%s1 + $0x2c0] sm:$0xff]
    %v115 = vld [vmem:[%s1 + $0x2c8] sm:$0xff]
    %v116 = vld [vmem:[%s1 + $0x2d0] sm:$0xff]
    %v117 = vld [vmem:[%s1 + $0x2d8] sm:$0xff]
    %v118 = vld [vmem:[%s1 + $0x2e0] sm:$0xff]
    %v119 = vld [vmem:[%s1 + $0x2e8] sm:$0xff]
    %v120 = vld [vmem:[%s1 + $0x2f0] sm:$0xff]
    %v121 = vld [vmem:[%s1 + $0x2f8] sm:$0xff]
    %v122 = vld [vmem:[%s1 + $0x300] sm:$0xff]
    %v123 = vld [vmem:[%s1 + $0x308] sm:$0xff]
    %v124 = vld [vmem:[%s1 + $0x310] sm:$0xff]
    %v125 = vld [vmem:[%s1 + $0x318] sm:$0xff]
    %v126 = vld [vmem:[%s1 + $0x320] sm:$0xff]
    %v127 = vld [vmem:[%s1 + $0x328] sm:$0xff]
    %v128 = vld [vmem:[%s1 + $0x330] sm:$0xff]
    %v129 = vld [vmem:[%s1 + $0x338] sm:$0xff]
    %v130 = vld [vmem:[%s1 + $0x340] sm:$0xff]
    %v131 = vld [vmem:[%s1 + $0x348] sm:$0xff]
    %v132 = vld [vmem:[%s1 + $0x350] sm:$0xff]
    %v133 = vld [vmem:[%s1 + $0x358] sm:$0xff]
    %v134 = vld [vmem:[%s1 + $0x360] sm:$0xff]
    %v135 = vld [vmem:[%s1 + $0x368] sm:$0xff]
    %v136 = vld [vmem:[%s1 + $0x370] sm:$0xff]
    %v137 = vld [vmem:[%s1 + $0x378] sm:$0xff]
    %v138 = vld [vmem:[%s1 + $0x380] sm:$0xff]
    %v139 = vld [vmem:[%s1 + $0x388] sm:$0xff]
    %v140 = vld [vmem:[%s1 + $0x390] sm:$0xff]
    %v141 = vld [vmem:[%s1 + $0x398] sm:$0xff]
    %v142 = vld [vmem:[%s1 + $0x3a0] sm:$0xff]
    %v143 = vld [vmem:[%s1 + $0x3a8] sm:$0xff]
    %v144 = vld [vmem:[%s1 + $0x3b0] sm:$0xff]
    %v145 = vld [vmem:[%s1 + $0x3b8] sm:$0xff]
    %v146 = vld [vmem:[%s1 + $0x3c0] sm:$0xff]
    %v147 = vld [vmem:[%s1 + $0x3c8] sm:$0xff]
    %v148 = vld [vmem:[%s1 + $0x3d0] sm:$0xff]
    %v149 = vld [vmem:[%s1 + $0x3d8] sm:$0xff]
    %v150 = vld [vmem:[%s1 + $0x3e0] sm:$0xff]
    %v151 = vld [vmem:[%s1 + $0x3e8] sm:$0xff]
    %v152 = vld [vmem:[%s1 + $0x3f0] sm:$0xff]
    %v153 = vld [vmem:[%s1 + $0x3f8] sm:$0xff]
    %v154 = vld [vmem:[%s1 + $0x400] sm:$0xff]
    %v155 = vld [vmem:[%s1 + $0x408] sm:$0xff]
    %v156 = vld [vmem:[%s1 + $0x410] sm:$0xff]
    %v157 = vld [vmem:[%s1 + $0x418] sm:$0xff]
    %v158 = vld [vmem:[%s1 + $0x420] sm:$0xff]
    %v159 = vld [vmem:[%s1 + $0x428] sm:$0xff]
    %v160 = vld [vmem:[%s1 + $0x430] sm:$0xff]
    %v161 = vld [vmem:[%s1 + $0x438] sm:$0xff]
    %v162 = vld [vmem:[%s1 + $0x440] sm:$0xff]
    %v163 = vld [vmem:[%s1 + $0x448] sm:$0xff]
    %v164 = vld [vmem:[%s1 + $0x450] sm:$0xff]
    %v165 = vld [vmem:[%s1 + $0x458] sm:$0xff]
    %v166 = vld [vmem:[%s1 + $0x460] sm:$0xff]
    %v167 = vld [vmem:[%s1 + $0x468] sm:$0xff]
    %v168 = vld [vmem:[%s1 + $0x470] sm:$0xff]
    %v169 = vld [vmem:[%s1 + $0x478] sm:$0xff]
    %v170 = vld [vmem:[%s1 + $0x480] sm:$0xff]
    %v171 = vld [vmem:[%s1 + $0x488] sm:$0xff]
    %v172 = vld [vmem:[%s1 + $0x490] sm:$0xff]
    %v173 = vld [vmem:[%s1 + $0x498] sm:$0xff]
    %v174 = vld [vmem:[%s1 + $0x4a0] sm:$0xff]
    %v175 = vld [vmem:[%s1 + $0x4a8] sm:$0xff]
    %v176 = vld [vmem:[%s1 + $0x4b0] sm:$0xff]
    %v177 = vld [vmem:[%s1 + $0x4b8] sm:$0xff]
    %v178 = vld [vmem:[%s1 + $0x4c0] sm:$0xff]
    %v179 = vld [vmem:[%s1 + $0x4c8] sm:$0xff]
    %v180 = vld [vmem:[%s1 + $0x4d0] sm:$0xff]
    %v181 = vld [vmem:[%s1 + $0x4d8] sm:$0xff]
    %v182 = vld [vmem:[%s1 + $0x4e0] sm:$0xff]
    %v183 = vld [vmem:[%s1 + $0x4e8] sm:$0xff]
    %v184 = vld [vmem:[%s1 + $0x4f0] sm:$0xff]
    %v185 = vld [vmem:[%s1 + $0x4f8] sm:$0xff]
    %v186 = vld [vmem:[%s1 + $0x500] sm:$0xff]
    %v187 = vld [vmem:[%s1 + $0x508] sm:$0xff]
    %v188 = vld [vmem:[%s1 + $0x510] sm:$0xff]
    %v189 = vld [vmem:[%s1 + $0x518] sm:$0xff]
    %v190 = vld [vmem:[%s1 + $0x520] sm:$0xff]
    %v191 = vld [vmem:[%s1 + $0x528] sm:$0xff]
    %v192 = vld [vmem:[%s1 + $0x530] sm:$0xff]
    %v193 = vld [vmem:[%s1 + $0x538] sm:$0xff]
    %v194 = vld [vmem:[%s1 + $0x540] sm:$0xff]
    %v195 = vld [vmem:[%s1 + $0x548] sm:$0xff]
    %v196 = vld [vmem:[%s1 + $0x550] sm:$0xff]
    %v197 = vld [vmem:[%s1 + $0x558] sm:$0xff]
    %v198 = vld [vmem:[%s1 + $0x560] sm:$0xff]
    %v199 = vld [vmem:[%s1 + $0x568] sm:$0xff]
    %v200 = vld [vmem:[%s1 + $0x570] sm:$0xff]
    %v201 = vld [vmem:[%s1 + $0x578] sm:$0xff]
    %v202 = vld [vmem:[%s1 + $0x580] sm:$0xff]
    %v203 = vld [vmem:[%s1 + $0x588] sm:$0xff]
    %v204 = vld [vmem:[%s1 + $0x590] sm:$0xff]
    %v205 = vld [vmem:[%s1 + $0x598] sm:$0xff]
    %v206 = vld [vmem:[%s1 + $0x5a0] sm:$0xff]
    %v207 = vld [vmem:[%s1 + $0x5a8] sm:$0xff]
    %v208 = vld [vmem:[%s1 + $0x5b0] sm:$0xff]
    %v209 = vld [vmem:[%s1 + $0x5b8] sm:$0xff]
    %v210 = vld [vmem:[%s1 + $0x5c0] sm:$0xff]
    %v211 = vld [vmem:[%s1 + $0x5c8] sm:$0xff]
    %v212 = vld [vmem:[%s1 + $0x5d0] sm:$0xff]
    %v213 = vld [vmem:[%s1 + $0x5d8] sm:$0xff]
    %v214 = vld [vmem:[%s1 + $0x5e0] sm:$0xff]
    %v215 = vld [vmem:[%s1 + $0x5e8] sm:$0xff]
    %v216 = vld [vmem:[%s1 + $0x5f0] sm:$0xff]
    %v217 = vld [vmem:[%s1 + $0x5f8] sm:$0xff]
    %v218 = vld [vmem:[%s1 + $0x600] sm:$0xff]
    %v219 = vld [vmem:[%s1 + $0x608] sm:$0xff]
    %v220 = vld [vmem:[%s1 + $0x610] sm:$0xff]
    %v221 = vld [vmem:[%s1 + $0x618] sm:$0xff]
    %v222 = vld [vmem:[%s1 + $0x620] sm:$0xff]
    %v223 = vld [vmem:[%s1 + $0x628] sm:$0xff]
    %v224 = vld [vmem:[%s1 + $0x630] sm:$0xff]
    %v225 = vld [vmem:[%s1 + $0x638] sm:$0xff]
    %v226 = vld [vmem:[%s1 + $0x640] sm:$0xff]
    %v227 = vld [vmem:[%s1 + $0x648] sm:$0xff]
    %v228 = vld [vmem:[%s1 + $0x650] sm:$0xff]
    %v229 = vld [vmem:[%s1 + $0x658] sm:$0xff]
    %v230 = vld [vmem:[%s1 + $0x660] sm:$0xff]
    %v231 = vld [vmem:[%s1 + $0x668] sm:$0xff]
    %v232 = vld [vmem:[%s1 + $0x670] sm:$0xff]
    %v233 = vld [vmem:[%s1 + $0x678] sm:$0xff]
    %v234 = vld [vmem:[%s1 + $0x680] sm:$0xff]
    %v235 = vld [vmem:[%s1 + $0x688] sm:$0xff]
    %v236 = vld [vmem:[%s1 + $0x690] sm:$0xff]
    %v237 = vld [vmem:[%s1 + $0x698] sm:$0xff]
    %v238 = vld [vmem:[%s1 + $0x6a0] sm:$0xff]
    %v239 = vld [vmem:[%s1 + $0x6a8] sm:$0xff]
    %v240 = vld [vmem:[%s1 + $0x6b0] sm:$0xff]
    %v241 = vld [vmem:[%s1 + $0x6b8] sm:$0xff]
    %v242 = vld [vmem:[%s1 + $0x6c0] sm:$0xff]
    %v243 = vld [vmem:[%s1 + $0x6c8] sm:$0xff]
    %v244 = vld [vmem:[%s1 + $0x6d0] sm:$0xff]
    %v245 = vld [vmem:[%s1 + $0x6d8] sm:$0xff]
    %v246 = vld [vmem:[%s1 + $0x6e0] sm:$0xff]
    %v247 = vld [vmem:[%s1 + $0x6e8] sm:$0xff]
    %v248 = vld [vmem:[%s1 + $0x6f0] sm:$0xff]
    %v249 = vld [vmem:[%s1 + $0x6f8] sm:$0xff]
    %v250 = vld [vmem:[%s1 + $0x700] sm:$0xff]
    %v251 = vld [vmem:[%s1 + $0x708] sm:$0xff]
    %v252 = vld [vmem:[%s1 + $0x710] sm:$0xff]
    %v253 = vld [vmem:[%s1 + $0x718] sm:$0xff]
    %v254 = vld [vmem:[%s1 + $0x720] sm:$0xff]
    %v255 = vld [vmem:[%s1 + $0x728] sm:$0xff]
    %v256 = vld [vmem:[%s1 + $0x730] sm:$0xff]
    %v257 = vld [vmem:[%s1 + $0x738] sm:$0xff]
    %v258 = vld [vmem:[%s1 + $0x740] sm:$0xff]
    %v259 = vld [vmem:[%s1 + $0x748] sm:$0xff]
    %v260 = vld [vmem:[%s1 + $0x750] sm:$0xff]
    %v261 = vld [vmem:[%s1 + $0x758] sm:$0xff]
    %v262 = vld [vmem:[%s1 + $0x760] sm:$0xff]
    %v263 = vld [vmem:[%s1 + $0x768] sm:$0xff]
    %v264 = vld [vmem:[%s1 + $0x770] sm:$0xff]
    %v265 = vld [vmem:[%s1 + $0x778] sm:$0xff]
    %v266 = vld [vmem:[%s1 + $0x780] sm:$0xff]
    %v267 = vld [vmem:[%s1 + $0x788] sm:$0xff]
    %v268 = vld [vmem:[%s1 + $0x790] sm:$0xff]
    %v269 = vld [vmem:[%s1 + $0x798] sm:$0xff]
    %v270 = vld [vmem:[%s1 + $0x7a0] sm:$0xff]
    %v271 = vld [vmem:[%s1 + $0x7a8] sm:$0xff]
    %v272 = vld [vmem:[%s1 + $0x7b0] sm:$0xff]
    %v273 = vld [vmem:[%s1 + $0x7b8] sm:$0xff]
    %v274 = vld [vmem:[%s1 + $0x7c0] sm:$0xff]
    %v275 = vld [vmem:[%s1 + $0x7c8] sm:$0xff]
    %v276 = vld [vmem:[%s1 + $0x7d0] sm:$0xff]
    %v277 = vld [vmem:[%s1 + $0x7d8] sm:$0xff]
    %v278 = vld [vmem:[%s1 + $0x7e0] sm:$0xff]
    %v279 = vld [vmem:[%s1 + $0x7e8] sm:$0xff]
    %v280 = vld [vmem:[%s1 + $0x7f0] sm:$0xff]
    %v281 = vld [vmem:[%s1 + $0x7f8] sm:$0xff]
    %v282 = vld [vmem:[%s1 + $0x800] sm:$0xff]
    %v283 = vld [vmem:[%s1 + $0x808] sm:$0xff]
    %v284 = vld [vmem:[%s1 + $0x810] sm:$0xff]
    %v285 = vld [vmem:[%s1 + $0x818] sm:$0xff]
    %v286 = vld [vmem:[%s1 + $0x820] sm:$0xff]
    %v287 = vld [vmem:[%s1 + $0x828] sm:$0xff]
    %v288 = vld [vmem:[%s1 + $0x830] sm:$0xff]
    %v289 = vld [vmem:[%s1 + $0x838] sm:$0xff]
    %v290 = vld [vmem:[%s1 + $0x840] sm:$0xff]
    %v291 = vld [vmem:[%s1 + $0x848] sm:$0xff]
    %v292 = vld [vmem:[%s1 + $0x850] sm:$0xff]
    %v293 = vld [vmem:[%s1 + $0x858] sm:$0xff]
    %v294 = vld [vmem:[%s1 + $0x860] sm:$0xff]
    %v295 = vld [vmem:[%s1 + $0x868] sm:$0xff]
    %v296 = vld [vmem:[%s1 + $0x870] sm:$0xff]
    %v297 = vld [vmem:[%s1 + $0x878] sm:$0xff]
    %v298 = vld [vmem:[%s1 + $0x880] sm:$0xff]
    %v299 = vld [vmem:[%s1 + $0x888] sm:$0xff]
    %v300 = vld [vmem:[%s1 + $0x890] sm:$0xff]
    %v301 = vld [vmem:[%s1 + $0x898] sm:$0xff]
    %v302 = vld [vmem:[%s1 + $0x8a0] sm:$0xff]
    %v303 = vld [vmem:[%s1 + $0x8a8] sm:$0xff]
    %v304 = vld [vmem:[%s1 + $0x8b0] sm:$0xff]
    %v305 = vld [vmem:[%s1 + $0x8b8] sm:$0xff]
    %v306 = vld [vmem:[%s1 + $0x8c0] sm:$0xff]
    %v307 = vld [vmem:[%s1 + $0x8c8] sm:$0xff]
    %v308 = vld [vmem:[%s1 + $0x8d0] sm:$0xff]
    %v309 = vld [vmem:[%s1 + $0x8d8] sm:$0xff]
    %v310 = vld [vmem:[%s1 + $0x8e0] sm:$0xff]
    %v311 = vld [vmem:[%s1 + $0x8e8] sm:$0xff]
    %v312 = vld [vmem:[%s1 + $0x8f0] sm:$0xff]
    %v313 = vld [vmem:[%s1 + $0x8f8] sm:$0xff]
    %v314 = vld [vmem:[%s1 + $0x900] sm:$0xff]
    %v315 = vld [vmem:[%s1 + $0x908] sm:$0xff]
    %v316 = vld [vmem:[%s1 + $0x910] sm:$0xff]
    %v317 = vld [vmem:[%s1 + $0x918] sm:$0xff]
    %v318 = vld [vmem:[%s1 + $0x920] sm:$0xff]
    %v319 = vld [vmem:[%s1 + $0x928] sm:$0xff]
    %v320 = vld [vmem:[%s1 + $0x930] sm:$0xff]
    %v321 = vld [vmem:[%s1 + $0x938] sm:$0xff]
    %v322 = vld [vmem:[%s1 + $0x940] sm:$0xff]
    %v323 = vld [vmem:[%s1 + $0x948] sm:$0xff]
    %v324 = vld [vmem:[%s1 + $0x950] sm:$0xff]
    %v325 = vld [vmem:[%s1 + $0x958] sm:$0xff]
    %v326 = vld [vmem:[%s1 + $0x960] sm:$0xff]
    %v327 = vld [vmem:[%s1 + $0x968] sm:$0xff]
    %v328 = vld [vmem:[%s1 + $0x970] sm:$0xff]
    %v329 = vld [vmem:[%s1 + $0x978] sm:$0xff]
    %v330 = vld [vmem:[%s2] sm:$0x1]
    %v332 = vlaneseq
    %v333 = vshrl.u32 %v332, 7
    %v334 = vsub.s32 0, %v333
    %v335 = vrot.slane %v330, %v334
    %v342 = vcombine.high %v21, %v21
    %v344 = vunpack.c.l.s4 1983009808
    %v345 = vunpack.c.0.s8 %v344
    %v346 = vlaneseq
    %v347 = vshrl.u32 %v346, 7
    %v348 = vsub.s32 %v345, %v347
    %v349 = vrot.slane %v21, %v348
    %v351 = vunpack.c.l.s4 1983009808
    %v352 = vunpack.c.0.s8 %v351
    %v353 = vlaneseq
    %v354 = vshrl.u32 %v353, 7
    %v355 = vsub.s32 %v352, %v354
    %v356 = vrot.slane %v342, %v355
    %v357 = vcombine.high %v349, %v349
    %v358 = vcombine.high %v356, %v356
    %v359 = vcombine.high %v22, %v22
    %v361 = vunpack.c.l.s4 1983009808
    %v362 = vunpack.c.0.s8 %v361
    %v363 = vlaneseq
    %v364 = vshrl.u32 %v363, 7
    %v365 = vsub.s32 %v362, %v364
    %v366 = vrot.slane %v22, %v365
    %v368 = vunpack.c.l.s4 1983009808
    %v369 = vunpack.c.0.s8 %v368
    %v370 = vlaneseq
    %v371 = vshrl.u32 %v370, 7
    %v372 = vsub.s32 %v369, %v371
    %v373 = vrot.slane %v359, %v372
    %v374 = vcombine.high %v366, %v366
    %v375 = vcombine.high %v373, %v373
    %v376 = vcombine.high %v23, %v23
    %v378 = vunpack.c.l.s4 1983009808
    %v379 = vunpack.c.0.s8 %v378
    %v380 = vlaneseq
    %v381 = vshrl.u32 %v380, 7
    %v382 = vsub.s32 %v379, %v381
    %v383 = vrot.slane %v23, %v382
    %v385 = vunpack.c.l.s4 1983009808
    %v386 = vunpack.c.0.s8 %v385
    %v387 = vlaneseq
    %v388 = vshrl.u32 %v387, 7
    %v389 = vsub.s32 %v386, %v388
    %v390 = vrot.slane %v376, %v389
    %v391 = vcombine.high %v383, %v383
    %v392 = vcombine.high %v390, %v390
    %v393 = vcombine.high %v24, %v24
    %v395 = vunpack.c.l.s4 1983009808
    %v396 = vunpack.c.0.s8 %v395
    %v397 = vlaneseq
    %v398 = vshrl.u32 %v397, 7
    %v399 = vsub.s32 %v396, %v398
    %v400 = vrot.slane %v24, %v399
    %v402 = vunpack.c.l.s4 1983009808
    %v403 = vunpack.c.0.s8 %v402
    %v404 = vlaneseq
    %v405 = vshrl.u32 %v404, 7
    %v406 = vsub.s32 %v403, %v405
    %v407 = vrot.slane %v393, %v406
    %v408 = vcombine.high %v400, %v400
    %v409 = vcombine.high %v407, %v407
    %v410 = vcombine.high %v25, %v25
    %v412 = vunpack.c.l.s4 1983009808
    %v413 = vunpack.c.0.s8 %v412
    %v414 = vlaneseq
    %v415 = vshrl.u32 %v414, 7
    %v416 = vsub.s32 %v413, %v415
    %v417 = vrot.slane %v25, %v416
    %v419 = vunpack.c.l.s4 1983009808
    %v420 = vunpack.c.0.s8 %v419
    %v421 = vlaneseq
    %v422 = vshrl.u32 %v421, 7
    %v423 = vsub.s32 %v420, %v422
    %v424 = vrot.slane %v410, %v423
    %v425 = vcombine.high %v417, %v417
    %445 = vmatprep.subr.mxu0 0.0
    %446 = vmatpush1.msra.mxu0 %v26
    %447 = vmatprep.subr.mxu0 0.0
    %448 = vmatpush1.msra.mxu0 %v27
    %449 = vmatprep.subr.mxu0 0.0
    %450 = vmatpush1.msra.mxu0 %v28
    %451 = vmatprep.subr.mxu0 0.0
    %452 = vmatpush1.msra.mxu0 %v29
    %453 = vmatprep.subr.mxu0 0.0
    %454 = vmatpush1.msra.mxu0 %v30
    %455 = vmatprep.subr.mxu0 0.0
    %456 = vmatpush1.msra.mxu0 %v31
    %457 = vmatprep.subr.mxu0 0.0
    %458 = vmatpush1.msra.mxu0 %v32
    %459 = vmatprep.subr.mxu0 0.0
    %460 = vmatpush1.msra.mxu0 %v33
    %461 = vmatprep.subr.mxu0 0.0
    %462 = vmatpush1.msra.mxu0 %v34
    %463 = vmatprep.subr.mxu0 0.0
    %464 = vmatpush1.msra.mxu0 %v35
    %465 = vmatprep.subr.mxu0 0.0
    %466 = vmatpush1.msra.mxu0 %v36
    %467 = vmatprep.subr.mxu0 0.0
    %468 = vmatpush1.msra.mxu0 %v37
    %469 = vmatprep.subr.mxu0 0.0
    %470 = vmatpush1.msra.mxu0 %v38
    %471 = vmatprep.subr.mxu0 0.0
    %472 = vmatpush1.msra.mxu0 %v39
    %473 = vmatprep.subr.mxu0 0.0
    %474 = vmatpush1.msra.mxu0 %v40
    %475 = vmatprep.subr.mxu0 0.0
    %476 = vmatpush1.msra.mxu0 %v41
    %477 = vmatprep.subr.mxu0 0.0
    %478 = vmatpush1.msra.mxu0 %v42
    %479 = vmatprep.subr.mxu0 0.0
    %480 = vmatpush1.msra.mxu0 %v43
    %481 = vmatprep.subr.mxu0 0.0
    %482 = vmatpush1.msra.mxu0 %v44
    %483 = vmatprep.subr.mxu0 0.0
    %484 = vmatpush1.msra.mxu0 %v45
    %485 = vmatprep.subr.mxu0 0.0
    %486 = vmatpush1.msra.mxu0 %v46
    %487 = vmatprep.subr.mxu0 0.0
    %488 = vmatpush1.msra.mxu0 %v47
    %489 = vmatprep.subr.mxu0 0.0
    %490 = vmatpush1.msra.mxu0 %v48
    %491 = vmatprep.subr.mxu0 0.0
    %492 = vmatpush1.msra.mxu0 %v49
    %493 = vmatprep.subr.mxu0 0.0
    %494 = vmatpush1.msra.mxu0 %v50
    %495 = vmatprep.subr.mxu0 0.0
    %496 = vmatpush1.msra.mxu0 %v51
    %497 = vmatprep.subr.mxu0 0.0
    %498 = vmatpush1.msra.mxu0 %v52
    %499 = vmatprep.subr.mxu0 0.0
    %500 = vmatpush1.msra.mxu0 %v53
    %501 = vmatprep.subr.mxu0 0.0
    %502 = vmatpush1.msra.mxu0 %v54
    %503 = vmatprep.subr.mxu0 0.0
    %504 = vmatpush1.msra.mxu0 %v55
    %505 = vmatprep.subr.mxu0 0.0
    %506 = vmatpush1.msra.mxu0 %v56
    %507 = vmatprep.subr.mxu0 0.0
    %508 = vmatpush1.msra.mxu0 %v57
    %509 = vmatprep.mubr.f32.mxu0 %v357
    %510 = vmatmul.mubr.f32.gmra.mrb[0].mxu0 %v349
    %v511 = vpop.f32.mrb[0].mxu0
    %v512 = vadd.f32 %v335, %v511
    %v513 = vpop.f32.mrb[0].mxu0
    %514 = vdwg.mxu0
    %515 = vmatprep.subr.mxu0 0.0
    %516 = vmatpush1.msra.mxu0 %v58
    %517 = vmatprep.subr.mxu0 0.0
    %518 = vmatpush1.msra.mxu0 %v59
    %519 = vmatprep.subr.mxu0 0.0
    %520 = vmatpush1.msra.mxu0 %v60
    %521 = vmatprep.subr.mxu0 0.0
    %522 = vmatpush1.msra.mxu0 %v61
    %523 = vmatprep.subr.mxu0 0.0
    %524 = vmatpush1.msra.mxu0 %v62
    %525 = vmatprep.subr.mxu0 0.0
    %526 = vmatpush1.msra.mxu0 %v63
    %527 = vmatprep.subr.mxu0 0.0
    %528 = vmatpush1.msra.mxu0 %v64
    %529 = vmatprep.subr.mxu0 0.0
    %530 = vmatpush1.msra.mxu0 %v65
    %531 = vmatprep.subr.mxu0 0.0
    %532 = vmatpush1.msra.mxu0 %v66
    %533 = vmatprep.subr.mxu0 0.0
    %534 = vmatpush1.msra.mxu0 %v67
    %535 = vmatprep.subr.mxu0 0.0
    %536 = vmatpush1.msra.mxu0 %v68
    %537 = vmatprep.subr.mxu0 0.0
    %538 = vmatpush1.msra.mxu0 %v69
    %539 = vmatprep.subr.mxu0 0.0
    %540 = vmatpush1.msra.mxu0 %v70
    %541 = vmatprep.subr.mxu0 0.0
    %542 = vmatpush1.msra.mxu0 %v71
    %543 = vmatprep.subr.mxu0 0.0
    %544 = vmatpush1.msra.mxu0 %v72
    %545 = vmatprep.subr.mxu0 0.0
    %546 = vmatpush1.msra.mxu0 %v73
    %547 = vmatprep.subr.mxu0 0.0
    %548 = vmatpush1.msra.mxu0 %v74
    %549 = vmatprep.subr.mxu0 0.0
    %550 = vmatpush1.msra.mxu0 %v75
    %551 = vmatprep.subr.mxu0 0.0
    %552 = vmatpush1.msra.mxu0 %v76
    %553 = vmatprep.subr.mxu0 0.0
    %554 = vmatpush1.msra.mxu0 %v77
    %555 = vmatprep.subr.mxu0 0.0
    %556 = vmatpush1.msra.mxu0 %v78
    %557 = vmatprep.subr.mxu0 0.0
    %558 = vmatpush1.msra.mxu0 %v79
    %559 = vmatprep.subr.mxu0 0.0
    %560 = vmatpush1.msra.mxu0 %v80
    %561 = vmatprep.subr.mxu0 0.0
    %562 = vmatpush1.msra.mxu0 %v81
    %563 = vmatprep.subr.mxu0 0.0
    %564 = vmatpush1.msra.mxu0 %v82
    %565 = vmatprep.subr.mxu0 0.0
    %566 = vmatpush1.msra.mxu0 %v83
    %567 = vmatprep.subr.mxu0 0.0
    %568 = vmatpush1.msra.mxu0 %v84
    %569 = vmatprep.subr.mxu0 0.0
    %570 = vmatpush1.msra.mxu0 %v85
    %571 = vmatprep.subr.mxu0 0.0
    %572 = vmatpush1.msra.mxu0 %v86
    %573 = vmatprep.subr.mxu0 0.0
    %574 = vmatpush1.msra.mxu0 %v87
    %575 = vmatprep.subr.mxu0 0.0
    %576 = vmatpush1.msra.mxu0 %v88
    %577 = vmatprep.subr.mxu0 0.0
    %578 = vmatpush1.msra.mxu0 %v89
    %579 = vmatprep.mubr.f32.mxu0 %v358
    %580 = vmatmul.mubr.f32.gmra.mrb[0].mxu0 %v356
    %v581 = vpop.f32.mrb[0].mxu0
    %v582 = vadd.f32 %v512, %v581
    %v583 = vpop.f32.mrb[0].mxu0
    %584 = vdwg.mxu0
    %585 = vmatprep.subr.mxu0 0.0
    %586 = vmatpush1.msra.mxu0 %v90
    %587 = vmatprep.subr.mxu0 0.0
    %588 = vmatpush1.msra.mxu0 %v91
    %589 = vmatprep.subr.mxu0 0.0
    %590 = vmatpush1.msra.mxu0 %v92
    %591 = vmatprep.subr.mxu0 0.0
    %592 = vmatpush1.msra.mxu0 %v93
    %593 = vmatprep.subr.mxu0 0.0
    %594 = vmatpush1.msra.mxu0 %v94
    %595 = vmatprep.subr.mxu0 0.0
    %596 = vmatpush1.msra.mxu0 %v95
    %597 = vmatprep.subr.mxu0 0.0
    %598 = vmatpush1.msra.mxu0 %v96
    %599 = vmatprep.subr.mxu0 0.0
    %600 = vmatpush1.msra.mxu0 %v97
    %601 = vmatprep.subr.mxu0 0.0
    %602 = vmatpush1.msra.mxu0 %v98
    %603 = vmatprep.subr.mxu0 0.0
    %604 = vmatpush1.msra.mxu0 %v99
    %605 = vmatprep.subr.mxu0 0.0
    %606 = vmatpush1.msra.mxu0 %v100
    %607 = vmatprep.subr.mxu0 0.0
    %608 = vmatpush1.msra.mxu0 %v101
    %609 = vmatprep.subr.mxu0 0.0
    %610 = vmatpush1.msra.mxu0 %v102
    %611 = vmatprep.subr.mxu0 0.0
    %612 = vmatpush1.msra.mxu0 %v103
    %613 = vmatprep.subr.mxu0 0.0
    %614 = vmatpush1.msra.mxu0 %v104
    %615 = vmatprep.subr.mxu0 0.0
    %616 = vmatpush1.msra.mxu0 %v105
    %617 = vmatprep.subr.mxu0 0.0
    %618 = vmatpush1.msra.mxu0 %v106
    %619 = vmatprep.subr.mxu0 0.0
    %620 = vmatpush1.msra.mxu0 %v107
    %621 = vmatprep.subr.mxu0 0.0
    %622 = vmatpush1.msra.mxu0 %v108
    %623 = vmatprep.subr.mxu0 0.0
    %624 = vmatpush1.msra.mxu0 %v109
    %625 = vmatprep.subr.mxu0 0.0
    %626 = vmatpush1.msra.mxu0 %v110
    %627 = vmatprep.subr.mxu0 0.0
    %628 = vmatpush1.msra.mxu0 %v111
    %629 = vmatprep.subr.mxu0 0.0
    %630 = vmatpush1.msra.mxu0 %v112
    %631 = vmatprep.subr.mxu0 0.0
    %632 = vmatpush1.msra.mxu0 %v113
    %633 = vmatprep.subr.mxu0 0.0
    %634 = vmatpush1.msra.mxu0 %v114
    %635 = vmatprep.subr.mxu0 0.0
    %636 = vmatpush1.msra.mxu0 %v115
    %637 = vmatprep.subr.mxu0 0.0
    %638 = vmatpush1.msra.mxu0 %v116
    %639 = vmatprep.subr.mxu0 0.0
    %640 = vmatpush1.msra.mxu0 %v117
    %641 = vmatprep.subr.mxu0 0.0
    %642 = vmatpush1.msra.mxu0 %v118
    %643 = vmatprep.subr.mxu0 0.0
    %644 = vmatpush1.msra.mxu0 %v119
    %645 = vmatprep.subr.mxu0 0.0
    %646 = vmatpush1.msra.mxu0 %v120
    %647 = vmatprep.subr.mxu0 0.0
    %648 = vmatpush1.msra.mxu0 %v121
    %649 = vmatprep.mubr.f32.mxu0 %v374
    %650 = vmatmul.mubr.f32.gmra.mrb[0].mxu0 %v366
    %v651 = vpop.f32.mrb[0].mxu0
    %v652 = vadd.f32 %v582, %v651
    %v653 = vpop.f32.mrb[0].mxu0
    %654 = vdwg.mxu0
    %655 = vmatprep.subr.mxu0 0.0
    %656 = vmatpush1.msra.mxu0 %v122
    %657 = vmatprep.subr.mxu0 0.0
    %658 = vmatpush1.msra.mxu0 %v123
    %659 = vmatprep.subr.mxu0 0.0
    %660 = vmatpush1.msra.mxu0 %v124
    %661 = vmatprep.subr.mxu0 0.0
    %662 = vmatpush1.msra.mxu0 %v125
    %663 = vmatprep.subr.mxu0 0.0
    %664 = vmatpush1.msra.mxu0 %v126
    %665 = vmatprep.subr.mxu0 0.0
    %666 = vmatpush1.msra.mxu0 %v127
    %667 = vmatprep.subr.mxu0 0.0
    %668 = vmatpush1.msra.mxu0 %v128
    %669 = vmatprep.subr.mxu0 0.0
    %670 = vmatpush1.msra.mxu0 %v129
    %671 = vmatprep.subr.mxu0 0.0
    %672 = vmatpush1.msra.mxu0 %v130
    %673 = vmatprep.subr.mxu0 0.0
    %674 = vmatpush1.msra.mxu0 %v131
    %675 = vmatprep.subr.mxu0 0.0
    %676 = vmatpush1.msra.mxu0 %v132
    %677 = vmatprep.subr.mxu0 0.0
    %678 = vmatpush1.msra.mxu0 %v133
    %679 = vmatprep.subr.mxu0 0.0
    %680 = vmatpush1.msra.mxu0 %v134
    %681 = vmatprep.subr.mxu0 0.0
    %682 = vmatpush1.msra.mxu0 %v135
    %683 = vmatprep.subr.mxu0 0.0
    %684 = vmatpush1.msra.mxu0 %v136
    %685 = vmatprep.subr.mxu0 0.0
    %686 = vmatpush1.msra.mxu0 %v137
    %687 = vmatprep.subr.mxu0 0.0
    %688 = vmatpush1.msra.mxu0 %v138
    %689 = vmatprep.subr.mxu0 0.0
    %690 = vmatpush1.msra.mxu0 %v139
    %691 = vmatprep.subr.mxu0 0.0
    %692 = vmatpush1.msra.mxu0 %v140
    %693 = vmatprep.subr.mxu0 0.0
    %694 = vmatpush1.msra.mxu0 %v141
    %695 = vmatprep.subr.mxu0 0.0
    %696 = vmatpush1.msra.mxu0 %v142
    %697 = vmatprep.subr.mxu0 0.0
    %698 = vmatpush1.msra.mxu0 %v143
    %699 = vmatprep.subr.mxu0 0.0
    %700 = vmatpush1.msra.mxu0 %v144
    %701 = vmatprep.subr.mxu0 0.0
    %702 = vmatpush1.msra.mxu0 %v145
    %703 = vmatprep.subr.mxu0 0.0
    %704 = vmatpush1.msra.mxu0 %v146
    %705 = vmatprep.subr.mxu0 0.0
    %706 = vmatpush1.msra.mxu0 %v147
    %707 = vmatprep.subr.mxu0 0.0
    %708 = vmatpush1.msra.mxu0 %v148
    %709 = vmatprep.subr.mxu0 0.0
    %710 = vmatpush1.msra.mxu0 %v149
    %711 = vmatprep.subr.mxu0 0.0
    %712 = vmatpush1.msra.mxu0 %v150
    %713 = vmatprep.subr.mxu0 0.0
    %714 = vmatpush1.msra.mxu0 %v151
    %715 = vmatprep.subr.mxu0 0.0
    %716 = vmatpush1.msra.mxu0 %v152
    %717 = vmatprep.subr.mxu0 0.0
    %718 = vmatpush1.msra.mxu0 %v153
    %719 = vmatprep.mubr.f32.mxu0 %v375
    %720 = vmatmul.mubr.f32.gmra.mrb[0].mxu0 %v373
    %v721 = vpop.f32.mrb[0].mxu0
    %v722 = vadd.f32 %v652, %v721
    %v723 = vpop.f32.mrb[0].mxu0
    %724 = vdwg.mxu0
    %725 = vmatprep.subr.mxu0 0.0
    %726 = vmatpush1.msra.mxu0 %v154
    %727 = vmatprep.subr.mxu0 0.0
    %728 = vmatpush1.msra.mxu0 %v155
    %729 = vmatprep.subr.mxu0 0.0
    %730 = vmatpush1.msra.mxu0 %v156
    %731 = vmatprep.subr.mxu0 0.0
    %732 = vmatpush1.msra.mxu0 %v157
    %733 = vmatprep.subr.mxu0 0.0
    %734 = vmatpush1.msra.mxu0 %v158
    %735 = vmatprep.subr.mxu0 0.0
    %736 = vmatpush1.msra.mxu0 %v159
    %737 = vmatprep.subr.mxu0 0.0
    %738 = vmatpush1.msra.mxu0 %v160
    %739 = vmatprep.subr.mxu0 0.0
    %740 = vmatpush1.msra.mxu0 %v161
    %741 = vmatprep.subr.mxu0 0.0
    %742 = vmatpush1.msra.mxu0 %v162
    %743 = vmatprep.subr.mxu0 0.0
    %744 = vmatpush1.msra.mxu0 %v163
    %745 = vmatprep.subr.mxu0 0.0
    %746 = vmatpush1.msra.mxu0 %v164
    %747 = vmatprep.subr.mxu0 0.0
    %748 = vmatpush1.msra.mxu0 %v165
    %749 = vmatprep.subr.mxu0 0.0
    %750 = vmatpush1.msra.mxu0 %v166
    %751 = vmatprep.subr.mxu0 0.0
    %752 = vmatpush1.msra.mxu0 %v167
    %753 = vmatprep.subr.mxu0 0.0
    %754 = vmatpush1.msra.mxu0 %v168
    %755 = vmatprep.subr.mxu0 0.0
    %756 = vmatpush1.msra.mxu0 %v169
    %757 = vmatprep.subr.mxu0 0.0
    %758 = vmatpush1.msra.mxu0 %v170
    %759 = vmatprep.subr.mxu0 0.0
    %760 = vmatpush1.msra.mxu0 %v171
    %761 = vmatprep.subr.mxu0 0.0
    %762 = vmatpush1.msra.mxu0 %v172
    %763 = vmatprep.subr.mxu0 0.0
    %764 = vmatpush1.msra.mxu0 %v173
    %765 = vmatprep.subr.mxu0 0.0
    %766 = vmatpush1.msra.mxu0 %v174
    %767 = vmatprep.subr.mxu0 0.0
    %768 = vmatpush1.msra.mxu0 %v175
    %769 = vmatprep.subr.mxu0 0.0
    %770 = vmatpush1.msra.mxu0 %v176
    %771 = vmatprep.subr.mxu0 0.0
    %772 = vmatpush1.msra.mxu0 %v177
    %773 = vmatprep.subr.mxu0 0.0
    %774 = vmatpush1.msra.mxu0 %v178
    %775 = vmatprep.subr.mxu0 0.0
    %776 = vmatpush1.msra.mxu0 %v179
    %777 = vmatprep.subr.mxu0 0.0
    %778 = vmatpush1.msra.mxu0 %v180
    %779 = vmatprep.subr.mxu0 0.0
    %780 = vmatpush1.msra.mxu0 %v181
    %781 = vmatprep.subr.mxu0 0.0
    %782 = vmatpush1.msra.mxu0 %v182
    %783 = vmatprep.subr.mxu0 0.0
    %784 = vmatpush1.msra.mxu0 %v183
    %785 = vmatprep.subr.mxu0 0.0
    %786 = vmatpush1.msra.mxu0 %v184
    %787 = vmatprep.subr.mxu0 0.0
    %788 = vmatpush1.msra.mxu0 %v185
    %789 = vmatprep.mubr.f32.mxu0 %v391
    %790 = vmatmul.mubr.f32.gmra.mrb[0].mxu0 %v383
    %v791 = vpop.f32.mrb[0].mxu0
    %v792 = vadd.f32 %v722, %v791
    %v793 = vpop.f32.mrb[0].mxu0
    %794 = vdwg.mxu0
    %795 = vmatprep.subr.mxu0 0.0
    %796 = vmatpush1.msra.mxu0 %v186
    %797 = vmatprep.subr.mxu0 0.0
    %798 = vmatpush1.msra.mxu0 %v187
    %799 = vmatprep.subr.mxu0 0.0
    %800 = vmatpush1.msra.mxu0 %v188
    %801 = vmatprep.subr.mxu0 0.0
    %802 = vmatpush1.msra.mxu0 %v189
    %803 = vmatprep.subr.mxu0 0.0
    %804 = vmatpush1.msra.mxu0 %v190
    %805 = vmatprep.subr.mxu0 0.0
    %806 = vmatpush1.msra.mxu0 %v191
    %807 = vmatprep.subr.mxu0 0.0
    %808 = vmatpush1.msra.mxu0 %v192
    %809 = vmatprep.subr.mxu0 0.0
    %810 = vmatpush1.msra.mxu0 %v193
    %811 = vmatprep.subr.mxu0 0.0
    %812 = vmatpush1.msra.mxu0 %v194
    %813 = vmatprep.subr.mxu0 0.0
    %814 = vmatpush1.msra.mxu0 %v195
    %815 = vmatprep.subr.mxu0 0.0
    %816 = vmatpush1.msra.mxu0 %v196
    %817 = vmatprep.subr.mxu0 0.0
    %818 = vmatpush1.msra.mxu0 %v197
    %819 = vmatprep.subr.mxu0 0.0
    %820 = vmatpush1.msra.mxu0 %v198
    %821 = vmatprep.subr.mxu0 0.0
    %822 = vmatpush1.msra.mxu0 %v199
    %823 = vmatprep.subr.mxu0 0.0
    %824 = vmatpush1.msra.mxu0 %v200
    %825 = vmatprep.subr.mxu0 0.0
    %826 = vmatpush1.msra.mxu0 %v201
    %827 = vmatprep.subr.mxu0 0.0
    %828 = vmatpush1.msra.mxu0 %v202
    %829 = vmatprep.subr.mxu0 0.0
    %830 = vmatpush1.msra.mxu0 %v203
    %831 = vmatprep.subr.mxu0 0.0
    %832 = vmatpush1.msra.mxu0 %v204
    %833 = vmatprep.subr.mxu0 0.0
    %834 = vmatpush1.msra.mxu0 %v205
    %835 = vmatprep.subr.mxu0 0.0
    %836 = vmatpush1.msra.mxu0 %v206
    %837 = vmatprep.subr.mxu0 0.0
    %838 = vmatpush1.msra.mxu0 %v207
    %839 = vmatprep.subr.mxu0 0.0
    %840 = vmatpush1.msra.mxu0 %v208
    %841 = vmatprep.subr.mxu0 0.0
    %842 = vmatpush1.msra.mxu0 %v209
    %843 = vmatprep.subr.mxu0 0.0
    %844 = vmatpush1.msra.mxu0 %v210
    %845 = vmatprep.subr.mxu0 0.0
    %846 = vmatpush1.msra.mxu0 %v211
    %847 = vmatprep.subr.mxu0 0.0
    %848 = vmatpush1.msra.mxu0 %v212
    %849 = vmatprep.subr.mxu0 0.0
    %850 = vmatpush1.msra.mxu0 %v213
    %851 = vmatprep.subr.mxu0 0.0
    %852 = vmatpush1.msra.mxu0 %v214
    %853 = vmatprep.subr.mxu0 0.0
    %854 = vmatpush1.msra.mxu0 %v215
    %855 = vmatprep.subr.mxu0 0.0
    %856 = vmatpush1.msra.mxu0 %v216
    %857 = vmatprep.subr.mxu0 0.0
    %858 = vmatpush1.msra.mxu0 %v217
    %859 = vmatprep.mubr.f32.mxu0 %v392
    %860 = vmatmul.mubr.f32.gmra.mrb[0].mxu0 %v390
    %v861 = vpop.f32.mrb[0].mxu0
    %v862 = vadd.f32 %v792, %v861
    %v863 = vpop.f32.mrb[0].mxu0
    %864 = vdwg.mxu0
    %865 = vmatprep.subr.mxu0 0.0
    %866 = vmatpush1.msra.mxu0 %v218
    %867 = vmatprep.subr.mxu0 0.0
    %868 = vmatpush1.msra.mxu0 %v219
    %869 = vmatprep.subr.mxu0 0.0
    %870 = vmatpush1.msra.mxu0 %v220
    %871 = vmatprep.subr.mxu0 0.0
    %872 = vmatpush1.msra.mxu0 %v221
    %873 = vmatprep.subr.mxu0 0.0
    %874 = vmatpush1.msra.mxu0 %v222
    %875 = vmatprep.subr.mxu0 0.0
    %876 = vmatpush1.msra.mxu0 %v223
    %877 = vmatprep.subr.mxu0 0.0
    %878 = vmatpush1.msra.mxu0 %v224
    %879 = vmatprep.subr.mxu0 0.0
    %880 = vmatpush1.msra.mxu0 %v225
    %881 = vmatprep.subr.mxu0 0.0
    %882 = vmatpush1.msra.mxu0 %v226
    %883 = vmatprep.subr.mxu0 0.0
    %884 = vmatpush1.msra.mxu0 %v227
    %885 = vmatprep.subr.mxu0 0.0
    %886 = vmatpush1.msra.mxu0 %v228
    %887 = vmatprep.subr.mxu0 0.0
    %888 = vmatpush1.msra.mxu0 %v229
    %889 = vmatprep.subr.mxu0 0.0
    %890 = vmatpush1.msra.mxu0 %v230
    %891 = vmatprep.subr.mxu0 0.0
    %892 = vmatpush1.msra.mxu0 %v231
    %893 = vmatprep.subr.mxu0 0.0
    %894 = vmatpush1.msra.mxu0 %v232
    %895 = vmatprep.subr.mxu0 0.0
    %896 = vmatpush1.msra.mxu0 %v233
    %897 = vmatprep.subr.mxu0 0.0
    %898 = vmatpush1.msra.mxu0 %v234
    %899 = vmatprep.subr.mxu0 0.0
    %900 = vmatpush1.msra.mxu0 %v235
    %901 = vmatprep.subr.mxu0 0.0
    %902 = vmatpush1.msra.mxu0 %v236
    %903 = vmatprep.subr.mxu0 0.0
    %904 = vmatpush1.msra.mxu0 %v237
    %905 = vmatprep.subr.mxu0 0.0
    %906 = vmatpush1.msra.mxu0 %v238
    %907 = vmatprep.subr.mxu0 0.0
    %908 = vmatpush1.msra.mxu0 %v239
    %909 = vmatprep.subr.mxu0 0.0
    %910 = vmatpush1.msra.mxu0 %v240
    %911 = vmatprep.subr.mxu0 0.0
    %912 = vmatpush1.msra.mxu0 %v241
    %913 = vmatprep.subr.mxu0 0.0
    %914 = vmatpush1.msra.mxu0 %v242
    %915 = vmatprep.subr.mxu0 0.0
    %916 = vmatpush1.msra.mxu0 %v243
    %917 = vmatprep.subr.mxu0 0.0
    %918 = vmatpush1.msra.mxu0 %v244
    %919 = vmatprep.subr.mxu0 0.0
    %920 = vmatpush1.msra.mxu0 %v245
    %921 = vmatprep.subr.mxu0 0.0
    %922 = vmatpush1.msra.mxu0 %v246
    %923 = vmatprep.subr.mxu0 0.0
    %924 = vmatpush1.msra.mxu0 %v247
    %925 = vmatprep.subr.mxu0 0.0
    %926 = vmatpush1.msra.mxu0 %v248
    %927 = vmatprep.subr.mxu0 0.0
    %928 = vmatpush1.msra.mxu0 %v249
    %929 = vmatprep.mubr.f32.mxu0 %v408
    %930 = vmatmul.mubr.f32.gmra.mrb[0].mxu0 %v400
    %v931 = vpop.f32.mrb[0].mxu0
    %v932 = vadd.f32 %v862, %v931
    %v933 = vpop.f32.mrb[0].mxu0
    %934 = vdwg.mxu0
    %935 = vmatprep.subr.mxu0 0.0
    %936 = vmatpush1.msra.mxu0 %v250
    %937 = vmatprep.subr.mxu0 0.0
    %938 = vmatpush1.msra.mxu0 %v251
    %939 = vmatprep.subr.mxu0 0.0
    %940 = vmatpush1.msra.mxu0 %v252
    %941 = vmatprep.subr.mxu0 0.0
    %942 = vmatpush1.msra.mxu0 %v253
    %943 = vmatprep.subr.mxu0 0.0
    %944 = vmatpush1.msra.mxu0 %v254
    %945 = vmatprep.subr.mxu0 0.0
    %946 = vmatpush1.msra.mxu0 %v255
    %947 = vmatprep.subr.mxu0 0.0
    %948 = vmatpush1.msra.mxu0 %v256
    %949 = vmatprep.subr.mxu0 0.0
    %950 = vmatpush1.msra.mxu0 %v257
    %951 = vmatprep.subr.mxu0 0.0
    %952 = vmatpush1.msra.mxu0 %v258
    %953 = vmatprep.subr.mxu0 0.0
    %954 = vmatpush1.msra.mxu0 %v259
    %955 = vmatprep.subr.mxu0 0.0
    %956 = vmatpush1.msra.mxu0 %v260
    %957 = vmatprep.subr.mxu0 0.0
    %958 = vmatpush1.msra.mxu0 %v261
    %959 = vmatprep.subr.mxu0 0.0
    %960 = vmatpush1.msra.mxu0 %v262
    %961 = vmatprep.subr.mxu0 0.0
    %962 = vmatpush1.msra.mxu0 %v263
    %963 = vmatprep.subr.mxu0 0.0
    %964 = vmatpush1.msra.mxu0 %v264
    %965 = vmatprep.subr.mxu0 0.0
    %966 = vmatpush1.msra.mxu0 %v265
    %967 = vmatprep.subr.mxu0 0.0
    %968 = vmatpush1.msra.mxu0 %v266
    %969 = vmatprep.subr.mxu0 0.0
    %970 = vmatpush1.msra.mxu0 %v267
    %971 = vmatprep.subr.mxu0 0.0
    %972 = vmatpush1.msra.mxu0 %v268
    %973 = vmatprep.subr.mxu0 0.0
    %974 = vmatpush1.msra.mxu0 %v269
    %975 = vmatprep.subr.mxu0 0.0
    %976 = vmatpush1.msra.mxu0 %v270
    %977 = vmatprep.subr.mxu0 0.0
    %978 = vmatpush1.msra.mxu0 %v271
    %979 = vmatprep.subr.mxu0 0.0
    %980 = vmatpush1.msra.mxu0 %v272
    %981 = vmatprep.subr.mxu0 0.0
    %982 = vmatpush1.msra.mxu0 %v273
    %983 = vmatprep.subr.mxu0 0.0
    %984 = vmatpush1.msra.mxu0 %v274
    %985 = vmatprep.subr.mxu0 0.0
    %986 = vmatpush1.msra.mxu0 %v275
    %987 = vmatprep.subr.mxu0 0.0
    %988 = vmatpush1.msra.mxu0 %v276
    %989 = vmatprep.subr.mxu0 0.0
    %990 = vmatpush1.msra.mxu0 %v277
    %991 = vmatprep.subr.mxu0 0.0
    %992 = vmatpush1.msra.mxu0 %v278
    %993 = vmatprep.subr.mxu0 0.0
    %994 = vmatpush1.msra.mxu0 %v279
    %995 = vmatprep.subr.mxu0 0.0
    %996 = vmatpush1.msra.mxu0 %v280
    %997 = vmatprep.subr.mxu0 0.0
    %998 = vmatpush1.msra.mxu0 %v281
    %999 = vmatprep.mubr.f32.mxu0 %v409
    %1000 = vmatmul.mubr.f32.gmra.mrb[0].mxu0 %v407
    %v1001 = vpop.f32.mrb[0].mxu0
    %v1002 = vadd.f32 %v932, %v1001
    %v1003 = vpop.f32.mrb[0].mxu0
    %1004 = vdwg.mxu0
    %1005 = vmatprep.subr.mxu0 0.0
    %1006 = vmatpush1.msra.mxu0 %v282
    %1007 = vmatprep.subr.mxu0 0.0
    %1008 = vmatpush1.msra.mxu0 %v283
    %1009 = vmatprep.subr.mxu0 0.0
    %1010 = vmatpush1.msra.mxu0 %v284
    %1011 = vmatprep.subr.mxu0 0.0
    %1012 = vmatpush1.msra.mxu0 %v285
    %1013 = vmatprep.subr.mxu0 0.0
    %1014 = vmatpush1.msra.mxu0 %v286
    %1015 = vmatprep.subr.mxu0 0.0
    %1016 = vmatpush1.msra.mxu0 %v287
    %1017 = vmatprep.subr.mxu0 0.0
    %1018 = vmatpush1.msra.mxu0 %v288
    %1019 = vmatprep.subr.mxu0 0.0
    %1020 = vmatpush1.msra.mxu0 %v289
    %1021 = vmatprep.subr.mxu0 0.0
    %1022 = vmatpush1.msra.mxu0 %v290
    %1023 = vmatprep.subr.mxu0 0.0
    %1024 = vmatpush1.msra.mxu0 %v291
    %1025 = vmatprep.subr.mxu0 0.0
    %1026 = vmatpush1.msra.mxu0 %v292
    %1027 = vmatprep.subr.mxu0 0.0
    %1028 = vmatpush1.msra.mxu0 %v293
    %1029 = vmatprep.subr.mxu0 0.0
    %1030 = vmatpush1.msra.mxu0 %v294
    %1031 = vmatprep.subr.mxu0 0.0
    %1032 = vmatpush1.msra.mxu0 %v295
    %1033 = vmatprep.subr.mxu0 0.0
    %1034 = vmatpush1.msra.mxu0 %v296
    %1035 = vmatprep.subr.mxu0 0.0
    %1036 = vmatpush1.msra.mxu0 %v297
    %1037 = vmatprep.subr.mxu0 0.0
    %1038 = vmatpush1.msra.mxu0 %v298
    %1039 = vmatprep.subr.mxu0 0.0
    %1040 = vmatpush1.msra.mxu0 %v299
    %1041 = vmatprep.subr.mxu0 0.0
    %1042 = vmatpush1.msra.mxu0 %v300
    %1043 = vmatprep.subr.mxu0 0.0
    %1044 = vmatpush1.msra.mxu0 %v301
    %1045 = vmatprep.subr.mxu0 0.0
    %1046 = vmatpush1.msra.mxu0 %v302
    %1047 = vmatprep.subr.mxu0 0.0
    %1048 = vmatpush1.msra.mxu0 %v303
    %1049 = vmatprep.subr.mxu0 0.0
    %1050 = vmatpush1.msra.mxu0 %v304
    %1051 = vmatprep.subr.mxu0 0.0
    %1052 = vmatpush1.msra.mxu0 %v305
    %1053 = vmatprep.subr.mxu0 0.0
    %1054 = vmatpush1.msra.mxu0 %v306
    %1055 = vmatprep.subr.mxu0 0.0
    %1056 = vmatpush1.msra.mxu0 %v307
    %1057 = vmatprep.subr.mxu0 0.0
    %1058 = vmatpush1.msra.mxu0 %v308
    %1059 = vmatprep.subr.mxu0 0.0
    %1060 = vmatpush1.msra.mxu0 %v309
    %1061 = vmatprep.subr.mxu0 0.0
    %1062 = vmatpush1.msra.mxu0 %v310
    %1063 = vmatprep.subr.mxu0 0.0
    %1064 = vmatpush1.msra.mxu0 %v311
    %1065 = vmatprep.subr.mxu0 0.0
    %1066 = vmatpush1.msra.mxu0 %v312
    %1067 = vmatprep.subr.mxu0 0.0
    %1068 = vmatpush1.msra.mxu0 %v313
    %1069 = vmatprep.mubr.f32.mxu0 %v425
    %1070 = vmatmul.mubr.f32.gmra.mrb[0].mxu0 %v417
    %v1071 = vpop.f32.mrb[0].mxu0
    %v1072 = vadd.f32 %v1002, %v1071
    %v1073 = vpop.f32.mrb[0].mxu0
    %1074 = vdwg.mxu0
    %1075 = vmatprep.subr.mxu0 0.0
    %1076 = vmatpush1.msra.mxu0 %v314
    %1077 = vmatprep.subr.mxu0 0.0
    %1078 = vmatpush1.msra.mxu0 %v315
    %1079 = vmatprep.subr.mxu0 0.0
    %1080 = vmatpush1.msra.mxu0 %v316
    %1081 = vmatprep.subr.mxu0 0.0
    %1082 = vmatpush1.msra.mxu0 %v317
    %1083 = vmatprep.subr.mxu0 0.0
    %1084 = vmatpush1.msra.mxu0 %v318
    %1085 = vmatprep.subr.mxu0 0.0
    %1086 = vmatpush1.msra.mxu0 %v319
    %1087 = vmatprep.subr.mxu0 0.0
    %1088 = vmatpush1.msra.mxu0 %v320
    %1089 = vmatprep.subr.mxu0 0.0
    %1090 = vmatpush1.msra.mxu0 %v321
    %1091 = vmatprep.subr.mxu0 0.0
    %1092 = vmatpush1.msra.mxu0 %v322
    %1093 = vmatprep.subr.mxu0 0.0
    %1094 = vmatpush1.msra.mxu0 %v323
    %1095 = vmatprep.subr.mxu0 0.0
    %1096 = vmatpush1.msra.mxu0 %v324
    %1097 = vmatprep.subr.mxu0 0.0
    %1098 = vmatpush1.msra.mxu0 %v325
    %1099 = vmatprep.subr.mxu0 0.0
    %1100 = vmatpush1.msra.mxu0 %v326
    %1101 = vmatprep.subr.mxu0 0.0
    %1102 = vmatpush1.msra.mxu0 %v327
    %1103 = vmatprep.subr.mxu0 0.0
    %1104 = vmatpush1.msra.mxu0 %v328
    %1105 = vmatprep.subr.mxu0 0.0
    %1106 = vmatpush1.msra.mxu0 %v329
    %1107 = vmatprep.subr.mxu0 0.0
    %1108 = vmatpush1.msra.mxu0 0.0
    %1109 = vmatprep.subr.mxu0 0.0
    %1110 = vmatpush1.msra.mxu0 0.0
    %1111 = vmatprep.subr.mxu0 0.0
    %1112 = vmatpush1.msra.mxu0 0.0
    %1113 = vmatprep.subr.mxu0 0.0
    %1114 = vmatpush1.msra.mxu0 0.0
    %1115 = vmatprep.subr.mxu0 0.0
    %1116 = vmatpush1.msra.mxu0 0.0
    %1117 = vmatprep.subr.mxu0 0.0
    %1118 = vmatpush1.msra.mxu0 0.0
    %1119 = vmatprep.subr.mxu0 0.0
    %1120 = vmatpush1.msra.mxu0 0.0
    %1121 = vmatprep.subr.mxu0 0.0
    %1122 = vmatpush1.msra.mxu0 0.0
    %1123 = vmatprep.subr.mxu0 0.0
    %1124 = vmatpush1.msra.mxu0 0.0
    %1125 = vmatprep.subr.mxu0 0.0
    %1126 = vmatpush1.msra.mxu0 0.0
    %1127 = vmatprep.subr.mxu0 0.0
    %1128 = vmatpush1.msra.mxu0 0.0
    %1129 = vmatprep.subr.mxu0 0.0
    %1130 = vmatpush1.msra.mxu0 0.0
    %1131 = vmatprep.subr.mxu0 0.0
    %1132 = vmatpush1.msra.mxu0 0.0
    %1133 = vmatprep.subr.mxu0 0.0
    %1134 = vmatpush1.msra.mxu0 0.0
    %1135 = vmatprep.subr.mxu0 0.0
    %1136 = vmatpush1.msra.mxu0 0.0
    %1137 = vmatprep.subr.mxu0 0.0
    %1138 = vmatpush1.msra.mxu0 0.0
    %1139 = vmatprep.mubr.f32.mxu0 0.0
    %1140 = vmatmul.mubr.f32.gmra.mrb[0].mxu0 %v424
    %v1141 = vpop.f32.mrb[0].mxu0
    %v1142 = vadd.f32 %v1072, %v1141
    %v1143 = vpop.f32.mrb[0].mxu0
    %1144 = vdwg.mxu0
    %v1145 = vmax.f32 %v1142, 0.0
    %v1146 = vld [vmem:[%s3] sm:$0xff]
    %v1147 = vld [vmem:[%s3 + $0x8] sm:$0xff]
    %v1148 = vld [vmem:[%s3 + $0x10] sm:$0xff]
    %v1149 = vld [vmem:[%s3 + $0x18] sm:$0xff]
    %v1150 = vld [vmem:[%s3 + $0x20] sm:$0xff]
    %v1151 = vld [vmem:[%s3 + $0x28] sm:$0xff]
    %v1152 = vld [vmem:[%s3 + $0x30] sm:$0xff]
    %v1153 = vld [vmem:[%s3 + $0x38] sm:$0xff]
    %v1154 = vld [vmem:[%s3 + $0x40] sm:$0xff]
    %v1155 = vld [vmem:[%s3 + $0x48] sm:$0xff]
    %v1156 = vld [vmem:[%s3 + $0x50] sm:$0xff]
    %v1157 = vld [vmem:[%s3 + $0x58] sm:$0xff]
    %v1158 = vld [vmem:[%s3 + $0x60] sm:$0xff]
    %v1159 = vld [vmem:[%s3 + $0x68] sm:$0xff]
    %v1160 = vld [vmem:[%s3 + $0x70] sm:$0xff]
    %v1161 = vld [vmem:[%s3 + $0x78] sm:$0xff]
    %v1162 = vld [vmem:[%s4] sm:$0x1]
    %v1164 = vlaneseq
    %v1165 = vshrl.u32 %v1164, 7
    %v1166 = vsub.s32 0, %v1165
    %v1167 = vrot.slane %v1162, %v1166
    %1169 = vmatprep.subr.mxu0 0.0
    %1170 = vmatpush1.msra.mxu0 %v1146
    %1171 = vmatprep.subr.mxu0 0.0
    %1172 = vmatpush1.msra.mxu0 %v1147
    %1173 = vmatprep.subr.mxu0 0.0
    %1174 = vmatpush1.msra.mxu0 %v1148
    %1175 = vmatprep.subr.mxu0 0.0
    %1176 = vmatpush1.msra.mxu0 %v1149
    %1177 = vmatprep.subr.mxu0 0.0
    %1178 = vmatpush1.msra.mxu0 %v1150
    %1179 = vmatprep.subr.mxu0 0.0
    %1180 = vmatpush1.msra.mxu0 %v1151
    %1181 = vmatprep.subr.mxu0 0.0
    %1182 = vmatpush1.msra.mxu0 %v1152
    %1183 = vmatprep.subr.mxu0 0.0
    %1184 = vmatpush1.msra.mxu0 %v1153
    %1185 = vmatprep.subr.mxu0 0.0
    %1186 = vmatpush1.msra.mxu0 %v1154
    %1187 = vmatprep.subr.mxu0 0.0
    %1188 = vmatpush1.msra.mxu0 %v1155
    %1189 = vmatprep.subr.mxu0 0.0
    %1190 = vmatpush1.msra.mxu0 %v1156
    %1191 = vmatprep.subr.mxu0 0.0
    %1192 = vmatpush1.msra.mxu0 %v1157
    %1193 = vmatprep.subr.mxu0 0.0
    %1194 = vmatpush1.msra.mxu0 %v1158
    %1195 = vmatprep.subr.mxu0 0.0
    %1196 = vmatpush1.msra.mxu0 %v1159
    %1197 = vmatprep.subr.mxu0 0.0
    %1198 = vmatpush1.msra.mxu0 %v1160
    %1199 = vmatprep.subr.mxu0 0.0
    %1200 = vmatpush1.msra.mxu0 %v1161
    %1201 = vmatprep.subr.mxu0 0.0
    %1202 = vmatpush1.msra.mxu0 0.0
    %1203 = vmatprep.subr.mxu0 0.0
    %1204 = vmatpush1.msra.mxu0 0.0
    %1205 = vmatprep.subr.mxu0 0.0
    %1206 = vmatpush1.msra.mxu0 0.0
    %1207 = vmatprep.subr.mxu0 0.0
    %1208 = vmatpush1.msra.mxu0 0.0
    %1209 = vmatprep.subr.mxu0 0.0
    %1210 = vmatpush1.msra.mxu0 0.0
    %1211 = vmatprep.subr.mxu0 0.0
    %1212 = vmatpush1.msra.mxu0 0.0
    %1213 = vmatprep.subr.mxu0 0.0
    %1214 = vmatpush1.msra.mxu0 0.0
    %1215 = vmatprep.subr.mxu0 0.0
    %1216 = vmatpush1.msra.mxu0 0.0
    %1217 = vmatprep.subr.mxu0 0.0
    %1218 = vmatpush1.msra.mxu0 0.0
    %1219 = vmatprep.subr.mxu0 0.0
    %1220 = vmatpush1.msra.mxu0 0.0
    %1221 = vmatprep.subr.mxu0 0.0
    %1222 = vmatpush1.msra.mxu0 0.0
    %1223 = vmatprep.subr.mxu0 0.0
    %1224 = vmatpush1.msra.mxu0 0.0
    %1225 = vmatprep.subr.mxu0 0.0
    %1226 = vmatpush1.msra.mxu0 0.0
    %1227 = vmatprep.subr.mxu0 0.0
    %1228 = vmatpush1.msra.mxu0 0.0
    %1229 = vmatprep.subr.mxu0 0.0
    %1230 = vmatpush1.msra.mxu0 0.0
    %1231 = vmatprep.subr.mxu0 0.0
    %1232 = vmatpush1.msra.mxu0 0.0
    %1233 = vmatprep.mubr.f32.mxu0 0.0
    %1234 = vmatmul.mubr.f32.gmra.mrb[0].mxu0 %v1145
    %v1235 = vpop.f32.mrb[0].mxu0
    %v1236 = vadd.f32 %v1167, %v1235
    %v1237 = vpop.f32.mrb[0].mxu0
    %1238 = vdwg.mxu0
    %vm1239 = vcmask 74752
    %1240 = vst.msk [vmem:[#allocation2] sm:$0x3] %vm1239, %v1236
    // Predicated region
    $region22: #{forward.3} parent=1 // pred_check
      _
    $region23: #{forward.3} parent=1 // pred_check_branch
      %1242 = sbr.rel (0) target = $region25
    $region24: #{forward.3} parent=1 // pred_region
      %s1244 = ssub.s32 32, 32
      %1245 = vsyncadd [#allocation3], %s1244
      %s1247 = sshll.u32 [#allocation2], 4
      %s1248 = int_to_ptr.vmem [resolvable:$true] %s1247
      %1250 = dma.vmem_to_hbm [thread:$0]  %s1248, 32, %s5, [#allocation3]
    $region25: #{forward.3} parent=1 // pred_fallthru
      _
    // Predicated region
    $region26: #{forward.3} parent=1 // pred_check
      _
    $region27: #{forward.3} parent=1 // pred_check_branch
      %1252 = sbr.rel (0) target = $region29
    $region28: #{forward.3} parent=1 // pred_region
      %1253 = dma.done [#allocation3], 32
    $region29: #{forward.3} parent=1 // pred_fallthru
      _
    %1254 = vsyncpa [#allocation3], 1

// kernel: forward.2
$region0: #{forward.2}
  #allocation0 [shape = 'u32[]', space=smem, size = 0x4, offset = 0x4, fixed_abs, tag = 'smem constant byte address 0x4 - core index']
  #allocation1 [shape = 'u32[144,128]{1,0:T(1,128)}', space=vmem, size = 0x12000, scoped, tag = 'internal scratch']
  #allocation2 [shape = 'f32[640,32]{1,0:T(8,128)}', space=vmem, size = 0x50000, scoped, tag = 'scratch operand']
  #allocation3 [shape = 'f32[328,64]{1,0:T(8,128)}', space=vmem, size = 0x29000, scoped, tag = 'scratch operand']
  #allocation4 [shape = 'f32[168,128]{1,0:T(8,128)}', space=vmem, size = 0x15000, scoped, tag = 'scratch operand']
  #allocation5 [shape = 'f32[80,128]{1,0:T(8,128)}', space=vmem, size = 0xa000, scoped, tag = 'scratch operand']
  %s0 = inlined_call_operand.vmem [shape: f32[1,1880,32], index: 0, kind: input, shape index: {}]
  %s1 = inlined_call_operand.vmem [shape: f32[7,1,32], index: 1, kind: input, shape index: {}]
  %s2 = inlined_call_operand.vmem [shape: f32[1,32], index: 2, kind: input, shape index: {}]
  %s3 = inlined_call_operand.vmem [shape: f32[3,32,64], index: 3, kind: input, shape index: {}]
  %s4 = inlined_call_operand.vmem [shape: f32[1,64], index: 4, kind: input, shape index: {}]
  %s5 = inlined_call_operand.vmem [shape: f32[3,64,128], index: 5, kind: input, shape index: {}]
  %s6 = inlined_call_operand.vmem [shape: f32[1,128], index: 6, kind: input, shape index: {}]
  %s7 = inlined_call_operand.vmem [shape: f32[3,128,128], index: 7, kind: input, shape index: {}]
  %s8 = inlined_call_operand.vmem [shape: f32[1,128], index: 8, kind: input, shape index: {}]
  %s9 = inlined_call_operand.vmem [shape: f32[3,128,128], index: 9, kind: input, shape index: {}]
  %s10 = inlined_call_operand.vmem [shape: f32[1,128], index: 10, kind: input, shape index: {}]
  %s11 = inlined_call_operand.vmem [shape: f32[1,38,128], index: 11, kind: output, shape index: {}]
  %s12 = sld [smem:[#allocation0]]
  $region54: #{forward.2} parent=0
    _
  %s14 = ssub.s32 1, %s12
  %s15 = scalar_select 0, %s14, %s12
  // Predicated region
  $region2: #{forward.2} parent=0 // pred_check
    _
  $region3: #{forward.2} parent=0 // pred_check_branch
    %17 = sbr.rel (0) target = $region5
  $region4: #{forward.2} parent=0 // pred_region
    _
  $region5: #{forward.2} parent=0 // pred_fallthru
    _
  // Predicated region
  $region6: #{forward.2} parent=0 // pred_check
    _
  $region7: #{forward.2} parent=0 // pred_check_branch
    %19 = sbr.rel (0) target = $region9
  $region8: #{forward.2} parent=0 // pred_region
    _
  $region9: #{forward.2} parent=0 // pred_fallthru
    _
  // Predicated region
  $region10: #{forward.2} parent=0 // pred_check
    _
  $region11: #{forward.2} parent=0 // pred_check_branch
    %21 = sbr.rel (0) target = $region13
  $region12: #{forward.2} parent=0 // pred_region
    _
  $region13: #{forward.2} parent=0 // pred_fallthru
    _
  // Predicated region
  $region14: #{forward.2} parent=0 // pred_check
    _
  $region15: #{forward.2} parent=0 // pred_check_branch
    %23 = sbr.rel (0) target = $region17
  $region16: #{forward.2} parent=0 // pred_region
    _
  $region17: #{forward.2} parent=0 // pred_fallthru
    _
  // Predicated region
  $region18: #{forward.2} parent=0 // pred_check
    _
  $region19: #{forward.2} parent=0 // pred_check_branch
    %25 = sbr.rel (0) target = $region21
  $region20: #{forward.2} parent=0 // pred_region
    _
  $region21: #{forward.2} parent=0 // pred_fallthru
    _
  // Predicated region
  $region22: #{forward.2} parent=0 // pred_check
    _
  $region23: #{forward.2} parent=0 // pred_check_branch
    %27 = sbr.rel (0) target = $region25
  $region24: #{forward.2} parent=0 // pred_region
    _
  $region25: #{forward.2} parent=0 // pred_fallthru
    _
  // Predicated region
  $region26: #{forward.2} parent=0 // pred_check
    _
  $region27: #{forward.2} parent=0 // pred_check_branch
    %29 = sbr.rel (0) target = $region29
  $region28: #{forward.2} parent=0 // pred_region
    _
  $region29: #{forward.2} parent=0 // pred_fallthru
    _
  // Predicated region
  $region30: #{forward.2} parent=0 // pred_check
    _
  $region31: #{forward.2} parent=0 // pred_check_branch
    %31 = sbr.rel (0) target = $region33
  $region32: #{forward.2} parent=0 // pred_region
    _
  $region33: #{forward.2} parent=0 // pred_fallthru
    _
  // Predicated region
  $region34: #{forward.2} parent=0 // pred_check
    _
  $region35: #{forward.2} parent=0 // pred_check_branch
    %33 = sbr.rel (0) target = $region37
  $region36: #{forward.2} parent=0 // pred_region
    _
  $region37: #{forward.2} parent=0 // pred_fallthru
    _
  // Predicated region
  $region38: #{forward.2} parent=0 // pred_check
    _
  $region39: #{forward.2} parent=0 // pred_check_branch
    %35 = sbr.rel (0) target = $region41
  $region40: #{forward.2} parent=0 // pred_region
    _
  $region41: #{forward.2} parent=0 // pred_fallthru
    _
  // Predicated region
  $region42: #{forward.2} parent=0 // pred_check
    _
  $region43: #{forward.2} parent=0 // pred_check_branch
    %37 = sbr.rel (0) target = $region45
  $region44: #{forward.2} parent=0 // pred_region
    _
  $region45: #{forward.2} parent=0 // pred_fallthru
    _
  %v38 = vld [vmem:[%s1] sm:$0x1]
  %v39 = vld [vmem:[%s0] ss:$3 sm:$0xff]
  %s40 = scalar_lea.vmem %s0, 24
  %v41 = vld [vmem:[%s40] ss:$3 sm:$0xff]
  %s42 = scalar_lea.vmem %s0, 48
  %v43 = vld [vmem:[%s42] ss:$3 sm:$0xff]
  %s44 = scalar_lea.vmem %s0, 72
  %v45 = vld [vmem:[%s44] ss:$3 sm:$0xff]
  %s46 = scalar_lea.vmem %s0, 96
  %v47 = vld [vmem:[%s46] ss:$3 sm:$0xff]
  %s48 = scalar_lea.vmem %s0, 120
  %v49 = vld [vmem:[%s48] ss:$3 sm:$0xff]
  %s50 = scalar_lea.vmem %s0, 144
  %v51 = vld [vmem:[%s50] ss:$3 sm:$0xff]
  %s52 = scalar_lea.vmem %s0, 168
  %v53 = vld [vmem:[%s52] ss:$3 sm:$0xff]
  %s54 = scalar_lea.vmem %s0, 192
  %v55 = vld [vmem:[%s54] ss:$3 sm:$0xff]
  %s56 = scalar_lea.vmem %s0, 216
  %v57 = vld [vmem:[%s56] ss:$3 sm:$0xff]
  %s58 = scalar_lea.vmem %s0, 240
  %v59 = vld [vmem:[%s58] ss:$3 sm:$0xff]
  %s60 = scalar_lea.vmem %s0, 264
  %v61 = vld [vmem:[%s60] ss:$3 sm:$0xff]
  %s62 = scalar_lea.vmem %s0, 288
  %v63 = vld [vmem:[%s62] ss:$3 sm:$0xff]
  %s64 = scalar_lea.vmem %s0, 312
  %v65 = vld [vmem:[%s64] ss:$3 sm:$0xff]
  %s66 = scalar_lea.vmem %s0, 336
  %v67 = vld [vmem:[%s66] ss:$3 sm:$0xff]
  %s68 = scalar_lea.vmem %s0, 360
  %v69 = vld [vmem:[%s68] ss:$3 sm:$0xff]
  %s70 = scalar_lea.vmem %s0, 384
  %v71 = vld [vmem:[%s70] ss:$3 sm:$0xff]
  %s72 = scalar_lea.vmem %s0, 408
  %v73 = vld [vmem:[%s72] ss:$3 sm:$0xff]
  %s74 = scalar_lea.vmem %s0, 432
  %v75 = vld [vmem:[%s74] ss:$3 sm:$0xff]
  %s76 = scalar_lea.vmem %s0, 456
  %v77 = vld [vmem:[%s76] ss:$3 sm:$0xff]
  %s78 = scalar_lea.vmem %s0, 480
  %v79 = vld [vmem:[%s78] ss:$3 sm:$0xff]
  %s80 = scalar_lea.vmem %s0, 504
  %v81 = vld [vmem:[%s80] ss:$3 sm:$0xff]
  %s82 = scalar_lea.vmem %s0, 528
  %v83 = vld [vmem:[%s82] ss:$3 sm:$0xff]
  %s84 = scalar_lea.vmem %s0, 552
  %v85 = vld [vmem:[%s84] ss:$3 sm:$0xff]
  %s86 = scalar_lea.vmem %s0, 576
  %v87 = vld [vmem:[%s86] ss:$3 sm:$0xff]
  %s88 = scalar_lea.vmem %s0, 600
  %v89 = vld [vmem:[%s88] ss:$3 sm:$0xff]
  %s90 = scalar_lea.vmem %s0, 624
  %v91 = vld [vmem:[%s90] ss:$3 sm:$0xff]
  %s92 = scalar_lea.vmem %s0, 648
  %v93 = vld [vmem:[%s92] ss:$3 sm:$0xff]
  %s94 = scalar_lea.vmem %s0, 672
  %v95 = vld [vmem:[%s94] ss:$3 sm:$0xff]
  %s96 = scalar_lea.vmem %s0, 696
  %v97 = vld [vmem:[%s96] ss:$3 sm:$0xff]
  %s98 = scalar_lea.vmem %s0, 720
  %v99 = vld [vmem:[%s98] ss:$3 sm:$0xff]
  %s100 = scalar_lea.vmem %s0, 744
  %v101 = vld [vmem:[%s100] ss:$3 sm:$0xff]
  %s102 = scalar_lea.vmem %s0, 768
  %v103 = vld [vmem:[%s102] ss:$3 sm:$0xff]
  %s104 = scalar_lea.vmem %s0, 792
  %v105 = vld [vmem:[%s104] ss:$3 sm:$0xff]
  %s106 = scalar_lea.vmem %s0, 816
  %v107 = vld [vmem:[%s106] ss:$3 sm:$0xff]
  %s108 = scalar_lea.vmem %s0, 840
  %v109 = vld [vmem:[%s108] ss:$3 sm:$0xff]
  %s110 = scalar_lea.vmem %s0, 864
  %v111 = vld [vmem:[%s110] ss:$3 sm:$0xff]
  %s112 = scalar_lea.vmem %s0, 888
  %v113 = vld [vmem:[%s112] ss:$3 sm:$0xff]
  %s114 = scalar_lea.vmem %s0, 912
  %v115 = vld [vmem:[%s114] ss:$3 sm:$0xff]
  %s116 = scalar_lea.vmem %s0, 936
  %v117 = vld [vmem:[%s116] ss:$3 sm:$0xff]
  %s118 = scalar_lea.vmem %s0, 960
  %v119 = vld [vmem:[%s118] ss:$3 sm:$0xff]
  %s120 = scalar_lea.vmem %s0, 984
  %v121 = vld [vmem:[%s120] ss:$3 sm:$0xff]
  %s122 = scalar_lea.vmem %s0, 1008
  %v123 = vld [vmem:[%s122] ss:$3 sm:$0xff]
  %s124 = scalar_lea.vmem %s0, 1032
  %v125 = vld [vmem:[%s124] ss:$3 sm:$0xff]
  %s126 = scalar_lea.vmem %s0, 1056
  %v127 = vld [vmem:[%s126] ss:$3 sm:$0xff]
  %s128 = scalar_lea.vmem %s0, 1080
  %v129 = vld [vmem:[%s128] ss:$3 sm:$0xff]
  %s130 = scalar_lea.vmem %s0, 1104
  %v131 = vld [vmem:[%s130] ss:$3 sm:$0xff]
  %s132 = scalar_lea.vmem %s0, 1128
  %v133 = vld [vmem:[%s132] ss:$3 sm:$0xff]
  %s134 = scalar_lea.vmem %s0, 1152
  %v135 = vld [vmem:[%s134] ss:$3 sm:$0xff]
  %s136 = scalar_lea.vmem %s0, 1176
  %v137 = vld [vmem:[%s136] ss:$3 sm:$0xff]
  %s138 = scalar_lea.vmem %s0, 1200
  %v139 = vld [vmem:[%s138] ss:$3 sm:$0xff]
  %s140 = scalar_lea.vmem %s0, 1224
  %v141 = vld [vmem:[%s140] ss:$3 sm:$0xff]
  %s142 = scalar_lea.vmem %s0, 1248
  %v143 = vld [vmem:[%s142] ss:$3 sm:$0xff]
  %s144 = scalar_lea.vmem %s0, 1272
  %v145 = vld [vmem:[%s144] ss:$3 sm:$0xff]
  %s146 = scalar_lea.vmem %s0, 1296
  %v147 = vld [vmem:[%s146] ss:$3 sm:$0xff]
  %s148 = scalar_lea.vmem %s0, 1320
  %v149 = vld [vmem:[%s148] ss:$3 sm:$0xff]
  %s150 = scalar_lea.vmem %s0, 1344
  %v151 = vld [vmem:[%s150] ss:$3 sm:$0xff]
  %s152 = scalar_lea.vmem %s0, 1368
  %v153 = vld [vmem:[%s152] ss:$3 sm:$0xff]
  %s154 = scalar_lea.vmem %s0, 1392
  %v155 = vld [vmem:[%s154] ss:$3 sm:$0xff]
  %s156 = scalar_lea.vmem %s0, 1416
  %v157 = vld [vmem:[%s156] ss:$3 sm:$0xff]
  %s158 = scalar_lea.vmem %s0, 1440
  %v159 = vld [vmem:[%s158] ss:$3 sm:$0xff]
  %s160 = scalar_lea.vmem %s0, 1464
  %v161 = vld [vmem:[%s160] ss:$3 sm:$0xff]
  %s162 = scalar_lea.vmem %s0, 1488
  %v163 = vld [vmem:[%s162] ss:$3 sm:$0xff]
  %s164 = scalar_lea.vmem %s0, 1512
  %v165 = vld [vmem:[%s164] ss:$3 sm:$0xff]
  %s166 = scalar_lea.vmem %s0, 1536
  %v167 = vld [vmem:[%s166] ss:$3 sm:$0xff]
  %s168 = scalar_lea.vmem %s0, 1560
  %v169 = vld [vmem:[%s168] ss:$3 sm:$0xff]
  %s170 = scalar_lea.vmem %s0, 1584
  %v171 = vld [vmem:[%s170] ss:$3 sm:$0xff]
  %s172 = scalar_lea.vmem %s0, 1608
  %v173 = vld [vmem:[%s172] ss:$3 sm:$0xff]
  %s174 = scalar_lea.vmem %s0, 1632
  %v175 = vld [vmem:[%s174] ss:$3 sm:$0xff]
  %s176 = scalar_lea.vmem %s0, 1656
  %v177 = vld [vmem:[%s176] ss:$3 sm:$0xff]
  %s178 = scalar_lea.vmem %s0, 1680
  %v179 = vld [vmem:[%s178] ss:$3 sm:$0xff]
  %s180 = scalar_lea.vmem %s0, 1704
  %v181 = vld [vmem:[%s180] ss:$3 sm:$0xff]
  %s182 = scalar_lea.vmem %s0, 1728
  %v183 = vld [vmem:[%s182] ss:$3 sm:$0xff]
  %s184 = scalar_lea.vmem %s0, 1752
  %v185 = vld [vmem:[%s184] ss:$3 sm:$0xff]
  %s186 = scalar_lea.vmem %s0, 1776
  %v187 = vld [vmem:[%s186] ss:$3 sm:$0xff]
  %s188 = scalar_lea.vmem %s0, 1800
  %v189 = vld [vmem:[%s188] ss:$3 sm:$0xff]
  %s190 = scalar_lea.vmem %s0, 1824
  %v191 = vld [vmem:[%s190] ss:$3 sm:$0xff]
  %s192 = scalar_lea.vmem %s0, 1848
  %v193 = vld [vmem:[%s192] ss:$3 sm:$0xff]
  %s194 = scalar_lea.vmem %s0, 1
  %v195 = vld [vmem:[%s194] ss:$3 sm:$0xff]
  %s196 = scalar_lea.vmem %s0, 25
  %v197 = vld [vmem:[%s196] ss:$3 sm:$0xff]
  %s198 = scalar_lea.vmem %s0, 49
  %v199 = vld [vmem:[%s198] ss:$3 sm:$0xff]
  %s200 = scalar_lea.vmem %s0, 73
  %v201 = vld [vmem:[%s200] ss:$3 sm:$0xff]
  %s202 = scalar_lea.vmem %s0, 97
  %v203 = vld [vmem:[%s202] ss:$3 sm:$0xff]
  %s204 = scalar_lea.vmem %s0, 121
  %v205 = vld [vmem:[%s204] ss:$3 sm:$0xff]
  %s206 = scalar_lea.vmem %s0, 145
  %v207 = vld [vmem:[%s206] ss:$3 sm:$0xff]
  %s208 = scalar_lea.vmem %s0, 169
  %v209 = vld [vmem:[%s208] ss:$3 sm:$0xff]
  %s210 = scalar_lea.vmem %s0, 193
  %v211 = vld [vmem:[%s210] ss:$3 sm:$0xff]
  %s212 = scalar_lea.vmem %s0, 217
  %v213 = vld [vmem:[%s212] ss:$3 sm:$0xff]
  %s214 = scalar_lea.vmem %s0, 241
  %v215 = vld [vmem:[%s214] ss:$3 sm:$0xff]
  %s216 = scalar_lea.vmem %s0, 265
  %v217 = vld [vmem:[%s216] ss:$3 sm:$0xff]
  %s218 = scalar_lea.vmem %s0, 289
  %v219 = vld [vmem:[%s218] ss:$3 sm:$0xff]
  %s220 = scalar_lea.vmem %s0, 313
  %v221 = vld [vmem:[%s220] ss:$3 sm:$0xff]
  %s222 = scalar_lea.vmem %s0, 337
  %v223 = vld [vmem:[%s222] ss:$3 sm:$0xff]
  %s224 = scalar_lea.vmem %s0, 361
  %v225 = vld [vmem:[%s224] ss:$3 sm:$0xff]
  %s226 = scalar_lea.vmem %s0, 385
  %v227 = vld [vmem:[%s226] ss:$3 sm:$0xff]
  %s228 = scalar_lea.vmem %s0, 409
  %v229 = vld [vmem:[%s228] ss:$3 sm:$0xff]
  %s230 = scalar_lea.vmem %s0, 433
  %v231 = vld [vmem:[%s230] ss:$3 sm:$0xff]
  %s232 = scalar_lea.vmem %s0, 457
  %v233 = vld [vmem:[%s232] ss:$3 sm:$0xff]
  %s234 = scalar_lea.vmem %s0, 481
  %v235 = vld [vmem:[%s234] ss:$3 sm:$0xff]
  %s236 = scalar_lea.vmem %s0, 505
  %v237 = vld [vmem:[%s236] ss:$3 sm:$0xff]
  %s238 = scalar_lea.vmem %s0, 529
  %v239 = vld [vmem:[%s238] ss:$3 sm:$0xff]
  %s240 = scalar_lea.vmem %s0, 553
  %v241 = vld [vmem:[%s240] ss:$3 sm:$0xff]
  %s242 = scalar_lea.vmem %s0, 577
  %v243 = vld [vmem:[%s242] ss:$3 sm:$0xff]
  %s244 = scalar_lea.vmem %s0, 601
  %v245 = vld [vmem:[%s244] ss:$3 sm:$0xff]
  %s246 = scalar_lea.vmem %s0, 625
  %v247 = vld [vmem:[%s246] ss:$3 sm:$0xff]
  %s248 = scalar_lea.vmem %s0, 649
  %v249 = vld [vmem:[%s248] ss:$3 sm:$0xff]
  %s250 = scalar_lea.vmem %s0, 673
  %v251 = vld [vmem:[%s250] ss:$3 sm:$0xff]
  %s252 = scalar_lea.vmem %s0, 697
  %v253 = vld [vmem:[%s252] ss:$3 sm:$0xff]
  %s254 = scalar_lea.vmem %s0, 721
  %v255 = vld [vmem:[%s254] ss:$3 sm:$0xff]
  %s256 = scalar_lea.vmem %s0, 745
  %v257 = vld [vmem:[%s256] ss:$3 sm:$0xff]
  %s258 = scalar_lea.vmem %s0, 769
  %v259 = vld [vmem:[%s258] ss:$3 sm:$0xff]
  %s260 = scalar_lea.vmem %s0, 793
  %v261 = vld [vmem:[%s260] ss:$3 sm:$0xff]
  %s262 = scalar_lea.vmem %s0, 817
  %v263 = vld [vmem:[%s262] ss:$3 sm:$0xff]
  %s264 = scalar_lea.vmem %s0, 841
  %v265 = vld [vmem:[%s264] ss:$3 sm:$0xff]
  %s266 = scalar_lea.vmem %s0, 865
  %v267 = vld [vmem:[%s266] ss:$3 sm:$0xff]
  %s268 = scalar_lea.vmem %s0, 889
  %v269 = vld [vmem:[%s268] ss:$3 sm:$0xff]
  %s270 = scalar_lea.vmem %s0, 913
  %v271 = vld [vmem:[%s270] ss:$3 sm:$0xff]
  %s272 = scalar_lea.vmem %s0, 937
  %v273 = vld [vmem:[%s272] ss:$3 sm:$0xff]
  %s274 = scalar_lea.vmem %s0, 961
  %v275 = vld [vmem:[%s274] ss:$3 sm:$0xff]
  %s276 = scalar_lea.vmem %s0, 985
  %v277 = vld [vmem:[%s276] ss:$3 sm:$0xff]
  %s278 = scalar_lea.vmem %s0, 1009
  %v279 = vld [vmem:[%s278] ss:$3 sm:$0xff]
  %s280 = scalar_lea.vmem %s0, 1033
  %v281 = vld [vmem:[%s280] ss:$3 sm:$0xff]
  %s282 = scalar_lea.vmem %s0, 1057
  %v283 = vld [vmem:[%s282] ss:$3 sm:$0xff]
  %s284 = scalar_lea.vmem %s0, 1081
  %v285 = vld [vmem:[%s284] ss:$3 sm:$0xff]
  %s286 = scalar_lea.vmem %s0, 1105
  %v287 = vld [vmem:[%s286] ss:$3 sm:$0xff]
  %s288 = scalar_lea.vmem %s0, 1129
  %v289 = vld [vmem:[%s288] ss:$3 sm:$0xff]
  %s290 = scalar_lea.vmem %s0, 1153
  %v291 = vld [vmem:[%s290] ss:$3 sm:$0xff]
  %s292 = scalar_lea.vmem %s0, 1177
  %v293 = vld [vmem:[%s292] ss:$3 sm:$0xff]
  %s294 = scalar_lea.vmem %s0, 1201
  %v295 = vld [vmem:[%s294] ss:$3 sm:$0xff]
  %s296 = scalar_lea.vmem %s0, 1225
  %v297 = vld [vmem:[%s296] ss:$3 sm:$0xff]
  %s298 = scalar_lea.vmem %s0, 1249
  %v299 = vld [vmem:[%s298] ss:$3 sm:$0xff]
  %s300 = scalar_lea.vmem %s0, 1273
  %v301 = vld [vmem:[%s300] ss:$3 sm:$0xff]
  %s302 = scalar_lea.vmem %s0, 1297
  %v303 = vld [vmem:[%s302] ss:$3 sm:$0xff]
  %s304 = scalar_lea.vmem %s0, 1321
  %v305 = vld [vmem:[%s304] ss:$3 sm:$0xff]
  %s306 = scalar_lea.vmem %s0, 1345
  %v307 = vld [vmem:[%s306] ss:$3 sm:$0xff]
  %s308 = scalar_lea.vmem %s0, 1369
  %v309 = vld [vmem:[%s308] ss:$3 sm:$0xff]
  %s310 = scalar_lea.vmem %s0, 1393
  %v311 = vld [vmem:[%s310] ss:$3 sm:$0xff]
  %s312 = scalar_lea.vmem %s0, 1417
  %v313 = vld [vmem:[%s312] ss:$3 sm:$0xff]
  %s314 = scalar_lea.vmem %s0, 1441
  %v315 = vld [vmem:[%s314] ss:$3 sm:$0xff]
  %s316 = scalar_lea.vmem %s0, 1465
  %v317 = vld [vmem:[%s316] ss:$3 sm:$0xff]
  %s318 = scalar_lea.vmem %s0, 1489
  %v319 = vld [vmem:[%s318] ss:$3 sm:$0xff]
  %s320 = scalar_lea.vmem %s0, 1513
  %v321 = vld [vmem:[%s320] ss:$3 sm:$0xff]
  %s322 = scalar_lea.vmem %s0, 1537
  %v323 = vld [vmem:[%s322] ss:$3 sm:$0xff]
  %s324 = scalar_lea.vmem %s0, 1561
  %v325 = vld [vmem:[%s324] ss:$3 sm:$0xff]
  %s326 = scalar_lea.vmem %s0, 1585
  %v327 = vld [vmem:[%s326] ss:$3 sm:$0xff]
  %s328 = scalar_lea.vmem %s0, 1609
  %v329 = vld [vmem:[%s328] ss:$3 sm:$0xff]
  %s330 = scalar_lea.vmem %s0, 1633
  %v331 = vld [vmem:[%s330] ss:$3 sm:$0xff]
  %s332 = scalar_lea.vmem %s0, 1657
  %v333 = vld [vmem:[%s332] ss:$3 sm:$0xff]
  %s334 = scalar_lea.vmem %s0, 1681
  %v335 = vld [vmem:[%s334] ss:$3 sm:$0xff]
  %s336 = scalar_lea.vmem %s0, 1705
  %v337 = vld [vmem:[%s336] ss:$3 sm:$0xff]
  %s338 = scalar_lea.vmem %s0, 1729
  %v339 = vld [vmem:[%s338] ss:$3 sm:$0xff]
  %s340 = scalar_lea.vmem %s0, 1753
  %v341 = vld [vmem:[%s340] ss:$3 sm:$0xff]
  %s342 = scalar_lea.vmem %s0, 1777
  %v343 = vld [vmem:[%s342] ss:$3 sm:$0xff]
  %s344 = scalar_lea.vmem %s0, 1801
  %v345 = vld [vmem:[%s344] ss:$3 sm:$0xff]
  %s346 = scalar_lea.vmem %s0, 1825
  %v347 = vld [vmem:[%s346] ss:$3 sm:$0xff]
  %s348 = scalar_lea.vmem %s0, 1849
  %v349 = vld [vmem:[%s348] ss:$3 sm:$0xff]
  %v351 = vlaneseq
  %v352 = vshrl.u32 %v351, 7
  %v353 = vsub.s32 0, %v352
  %v354 = vrot.slane %v38, %v353
  %v356 = vmul.f32 %v39, %v354
  %v357 = vmul.f32 %v41, %v354
  %v358 = vmul.f32 %v43, %v354
  %v359 = vmul.f32 %v45, %v354
  %v360 = vmul.f32 %v47, %v354
  %v361 = vmul.f32 %v49, %v354
  %v362 = vmul.f32 %v51, %v354
  %v363 = vmul.f32 %v53, %v354
  %v364 = vmul.f32 %v55, %v354
  %v365 = vmul.f32 %v57, %v354
  %v366 = vmul.f32 %v59, %v354
  %v367 = vmul.f32 %v61, %v354
  %v368 = vmul.f32 %v63, %v354
  %v369 = vmul.f32 %v65, %v354
  %v370 = vmul.f32 %v67, %v354
  %v371 = vmul.f32 %v69, %v354
  %v372 = vmul.f32 %v71, %v354
  %v373 = vmul.f32 %v73, %v354
  %v374 = vmul.f32 %v75, %v354
  %v375 = vmul.f32 %v77, %v354
  %v376 = vmul.f32 %v79, %v354
  %v377 = vmul.f32 %v81, %v354
  %v378 = vmul.f32 %v83, %v354
  %v379 = vmul.f32 %v85, %v354
  %v380 = vmul.f32 %v87, %v354
  %v381 = vmul.f32 %v89, %v354
  %v382 = vmul.f32 %v91, %v354
  %v383 = vmul.f32 %v93, %v354
  %v384 = vmul.f32 %v95, %v354
  %v385 = vmul.f32 %v97, %v354
  %v386 = vmul.f32 %v99, %v354
  %v387 = vmul.f32 %v101, %v354
  %v388 = vmul.f32 %v103, %v354
  %v389 = vmul.f32 %v105, %v354
  %v390 = vmul.f32 %v107, %v354
  %v391 = vmul.f32 %v109, %v354
  %v392 = vmul.f32 %v111, %v354
  %v393 = vmul.f32 %v113, %v354
  %v394 = vmul.f32 %v115, %v354
  %v395 = vmul.f32 %v117, %v354
  %v396 = vmul.f32 %v119, %v354
  %v397 = vmul.f32 %v121, %v354
  %v398 = vmul.f32 %v123, %v354
  %v399 = vmul.f32 %v125, %v354
  %v400 = vmul.f32 %v127, %v354
  %v401 = vmul.f32 %v129, %v354
  %v402 = vmul.f32 %v131, %v354
  %v403 = vmul.f32 %v133, %v354
  %v404 = vmul.f32 %v135, %v354
  %v405 = vmul.f32 %v137, %v354
  %v406 = vmul.f32 %v139, %v354
  %v407 = vmul.f32 %v141, %v354
  %v408 = vmul.f32 %v143, %v354
  %v409 = vmul.f32 %v145, %v354
  %v410 = vmul.f32 %v147, %v354
  %v411 = vmul.f32 %v149, %v354
  %v412 = vmul.f32 %v151, %v354
  %v413 = vmul.f32 %v153, %v354
  %v414 = vmul.f32 %v155, %v354
  %v415 = vmul.f32 %v157, %v354
  %v416 = vmul.f32 %v159, %v354
  %v417 = vmul.f32 %v161, %v354
  %v418 = vmul.f32 %v163, %v354
  %v419 = vmul.f32 %v165, %v354
  %v420 = vmul.f32 %v167, %v354
  %v421 = vmul.f32 %v169, %v354
  %v422 = vmul.f32 %v171, %v354
  %v423 = vmul.f32 %v173, %v354
  %v424 = vmul.f32 %v175, %v354
  %v425 = vmul.f32 %v177, %v354
  %v426 = vmul.f32 %v179, %v354
  %v427 = vmul.f32 %v181, %v354
  %v428 = vmul.f32 %v183, %v354
  %v429 = vmul.f32 %v185, %v354
  %v430 = vmul.f32 %v187, %v354
  %v431 = vmul.f32 %v189, %v354
  %v432 = vmul.f32 %v191, %v354
  %v433 = vmul.f32 %v193, %v354
  %v434 = vmul.f32 %v195, %v354
  %v435 = vmul.f32 %v197, %v354
  %v436 = vmul.f32 %v199, %v354
  %v437 = vmul.f32 %v201, %v354
  %v438 = vmul.f32 %v203, %v354
  %v439 = vmul.f32 %v205, %v354
  %v440 = vmul.f32 %v207, %v354
  %v441 = vmul.f32 %v209, %v354
  %v442 = vmul.f32 %v211, %v354
  %v443 = vmul.f32 %v213, %v354
  %v444 = vmul.f32 %v215, %v354
  %v445 = vmul.f32 %v217, %v354
  %v446 = vmul.f32 %v219, %v354
  %v447 = vmul.f32 %v221, %v354
  %v448 = vmul.f32 %v223, %v354
  %v449 = vmul.f32 %v225, %v354
  %v450 = vmul.f32 %v227, %v354
  %v451 = vmul.f32 %v229, %v354
  %v452 = vmul.f32 %v231, %v354
  %v453 = vmul.f32 %v233, %v354
  %v454 = vmul.f32 %v235, %v354
  %v455 = vmul.f32 %v237, %v354
  %v456 = vmul.f32 %v239, %v354
  %v457 = vmul.f32 %v241, %v354
  %v458 = vmul.f32 %v243, %v354
  %v459 = vmul.f32 %v245, %v354
  %v460 = vmul.f32 %v247, %v354
  %v461 = vmul.f32 %v249, %v354
  %v462 = vmul.f32 %v251, %v354
  %v463 = vmul.f32 %v253, %v354
  %v464 = vmul.f32 %v255, %v354
  %v465 = vmul.f32 %v257, %v354
  %v466 = vmul.f32 %v259, %v354
  %v467 = vmul.f32 %v261, %v354
  %v468 = vmul.f32 %v263, %v354
  %v469 = vmul.f32 %v265, %v354
  %v470 = vmul.f32 %v267, %v354
  %v471 = vmul.f32 %v269, %v354
  %v472 = vmul.f32 %v271, %v354
  %v473 = vmul.f32 %v273, %v354
  %v474 = vmul.f32 %v275, %v354
  %v475 = vmul.f32 %v277, %v354
  %v476 = vmul.f32 %v279, %v354
  %v477 = vmul.f32 %v281, %v354
  %v478 = vmul.f32 %v283, %v354
  %v479 = vmul.f32 %v285, %v354
  %v480 = vmul.f32 %v287, %v354
  %v481 = vmul.f32 %v289, %v354
  %v482 = vmul.f32 %v291, %v354
  %v483 = vmul.f32 %v293, %v354
  %v484 = vmul.f32 %v295, %v354
  %v485 = vmul.f32 %v297, %v354
  %v486 = vmul.f32 %v299, %v354
  %v487 = vmul.f32 %v301, %v354
  %v488 = vmul.f32 %v303, %v354
  %v489 = vmul.f32 %v305, %v354
  %v490 = vmul.f32 %v307, %v354
  %v491 = vmul.f32 %v309, %v354
  %v492 = vmul.f32 %v311, %v354
  %v493 = vmul.f32 %v313, %v354
  %v494 = vmul.f32 %v315, %v354
  %v495 = vmul.f32 %v317, %v354
  %v496 = vmul.f32 %v319, %v354
  %v497 = vmul.f32 %v321, %v354
  %v498 = vmul.f32 %v323, %v354
  %v499 = vmul.f32 %v325, %v354
  %v500 = vmul.f32 %v327, %v354
  %v501 = vmul.f32 %v329, %v354
  %v502 = vmul.f32 %v331, %v354
  %v503 = vmul.f32 %v333, %v354
  %v504 = vmul.f32 %v335, %v354
  %v505 = vmul.f32 %v337, %v354
  %v506 = vmul.f32 %v339, %v354
  %v507 = vmul.f32 %v341, %v354
  %v508 = vmul.f32 %v343, %v354
  %v509 = vmul.f32 %v345, %v354
  %v510 = vmul.f32 %v347, %v354
  %v511 = vmul.f32 %v349, %v354
  %s512 = scalar_lea.vmem %s1, 1
  %v513 = vld [vmem:[%s512] sm:$0x1]
  %s514 = scalar_lea.vmem %s0, 2
  %v515 = vld [vmem:[%s514] ss:$3 sm:$0xff]
  %s516 = scalar_lea.vmem %s0, 26
  %v517 = vld [vmem:[%s516] ss:$3 sm:$0xff]
  %s518 = scalar_lea.vmem %s0, 50
  %v519 = vld [vmem:[%s518] ss:$3 sm:$0xff]
  %s520 = scalar_lea.vmem %s0, 74
  %v521 = vld [vmem:[%s520] ss:$3 sm:$0xff]
  %s522 = scalar_lea.vmem %s0, 98
  %v523 = vld [vmem:[%s522] ss:$3 sm:$0xff]
  %s524 = scalar_lea.vmem %s0, 122
  %v525 = vld [vmem:[%s524] ss:$3 sm:$0xff]
  %s526 = scalar_lea.vmem %s0, 146
  %v527 = vld [vmem:[%s526] ss:$3 sm:$0xff]
  %s528 = scalar_lea.vmem %s0, 170
  %v529 = vld [vmem:[%s528] ss:$3 sm:$0xff]
  %s530 = scalar_lea.vmem %s0, 194
  %v531 = vld [vmem:[%s530] ss:$3 sm:$0xff]
  %s532 = scalar_lea.vmem %s0, 218
  %v533 = vld [vmem:[%s532] ss:$3 sm:$0xff]
  %s534 = scalar_lea.vmem %s0, 242
  %v535 = vld [vmem:[%s534] ss:$3 sm:$0xff]
  %s536 = scalar_lea.vmem %s0, 266
  %v537 = vld [vmem:[%s536] ss:$3 sm:$0xff]
  %s538 = scalar_lea.vmem %s0, 290
  %v539 = vld [vmem:[%s538] ss:$3 sm:$0xff]
  %s540 = scalar_lea.vmem %s0, 314
  %v541 = vld [vmem:[%s540] ss:$3 sm:$0xff]
  %s542 = scalar_lea.vmem %s0, 338
  %v543 = vld [vmem:[%s542] ss:$3 sm:$0xff]
  %s544 = scalar_lea.vmem %s0, 362
  %v545 = vld [vmem:[%s544] ss:$3 sm:$0xff]
  %s546 = scalar_lea.vmem %s0, 386
  %v547 = vld [vmem:[%s546] ss:$3 sm:$0xff]
  %s548 = scalar_lea.vmem %s0, 410
  %v549 = vld [vmem:[%s548] ss:$3 sm:$0xff]
  %s550 = scalar_lea.vmem %s0, 434
  %v551 = vld [vmem:[%s550] ss:$3 sm:$0xff]
  %s552 = scalar_lea.vmem %s0, 458
  %v553 = vld [vmem:[%s552] ss:$3 sm:$0xff]
  %s554 = scalar_lea.vmem %s0, 482
  %v555 = vld [vmem:[%s554] ss:$3 sm:$0xff]
  %s556 = scalar_lea.vmem %s0, 506
  %v557 = vld [vmem:[%s556] ss:$3 sm:$0xff]
  %s558 = scalar_lea.vmem %s0, 530
  %v559 = vld [vmem:[%s558] ss:$3 sm:$0xff]
  %s560 = scalar_lea.vmem %s0, 554
  %v561 = vld [vmem:[%s560] ss:$3 sm:$0xff]
  %s562 = scalar_lea.vmem %s0, 578
  %v563 = vld [vmem:[%s562] ss:$3 sm:$0xff]
  %s564 = scalar_lea.vmem %s0, 602
  %v565 = vld [vmem:[%s564] ss:$3 sm:$0xff]
  %s566 = scalar_lea.vmem %s0, 626
  %v567 = vld [vmem:[%s566] ss:$3 sm:$0xff]
  %s568 = scalar_lea.vmem %s0, 650
  %v569 = vld [vmem:[%s568] ss:$3 sm:$0xff]
  %s570 = scalar_lea.vmem %s0, 674
  %v571 = vld [vmem:[%s570] ss:$3 sm:$0xff]
  %s572 = scalar_lea.vmem %s0, 698
  %v573 = vld [vmem:[%s572] ss:$3 sm:$0xff]
  %s574 = scalar_lea.vmem %s0, 722
  %v575 = vld [vmem:[%s574] ss:$3 sm:$0xff]
  %s576 = scalar_lea.vmem %s0, 746
  %v577 = vld [vmem:[%s576] ss:$3 sm:$0xff]
  %s578 = scalar_lea.vmem %s0, 770
  %v579 = vld [vmem:[%s578] ss:$3 sm:$0xff]
  %s580 = scalar_lea.vmem %s0, 794
  %v581 = vld [vmem:[%s580] ss:$3 sm:$0xff]
  %s582 = scalar_lea.vmem %s0, 818
  %v583 = vld [vmem:[%s582] ss:$3 sm:$0xff]
  %s584 = scalar_lea.vmem %s0, 842
  %v585 = vld [vmem:[%s584] ss:$3 sm:$0xff]
  %s586 = scalar_lea.vmem %s0, 866
  %v587 = vld [vmem:[%s586] ss:$3 sm:$0xff]
  %s588 = scalar_lea.vmem %s0, 890
  %v589 = vld [vmem:[%s588] ss:$3 sm:$0xff]
  %s590 = scalar_lea.vmem %s0, 914
  %v591 = vld [vmem:[%s590] ss:$3 sm:$0xff]
  %s592 = scalar_lea.vmem %s0, 938
  %v593 = vld [vmem:[%s592] ss:$3 sm:$0xff]
  %s594 = scalar_lea.vmem %s0, 962
  %v595 = vld [vmem:[%s594] ss:$3 sm:$0xff]
  %s596 = scalar_lea.vmem %s0, 986
  %v597 = vld [vmem:[%s596] ss:$3 sm:$0xff]
  %s598 = scalar_lea.vmem %s0, 1010
  %v599 = vld [vmem:[%s598] ss:$3 sm:$0xff]
  %s600 = scalar_lea.vmem %s0, 1034
  %v601 = vld [vmem:[%s600] ss:$3 sm:$0xff]
  %s602 = scalar_lea.vmem %s0, 1058
  %v603 = vld [vmem:[%s602] ss:$3 sm:$0xff]
  %s604 = scalar_lea.vmem %s0, 1082
  %v605 = vld [vmem:[%s604] ss:$3 sm:$0xff]
  %s606 = scalar_lea.vmem %s0, 1106
  %v607 = vld [vmem:[%s606] ss:$3 sm:$0xff]
  %s608 = scalar_lea.vmem %s0, 1130
  %v609 = vld [vmem:[%s608] ss:$3 sm:$0xff]
  %s610 = scalar_lea.vmem %s0, 1154
  %v611 = vld [vmem:[%s610] ss:$3 sm:$0xff]
  %s612 = scalar_lea.vmem %s0, 1178
  %v613 = vld [vmem:[%s612] ss:$3 sm:$0xff]
  %s614 = scalar_lea.vmem %s0, 1202
  %v615 = vld [vmem:[%s614] ss:$3 sm:$0xff]
  %s616 = scalar_lea.vmem %s0, 1226
  %v617 = vld [vmem:[%s616] ss:$3 sm:$0xff]
  %s618 = scalar_lea.vmem %s0, 1250
  %v619 = vld [vmem:[%s618] ss:$3 sm:$0xff]
  %s620 = scalar_lea.vmem %s0, 1274
  %v621 = vld [vmem:[%s620] ss:$3 sm:$0xff]
  %s622 = scalar_lea.vmem %s0, 1298
  %v623 = vld [vmem:[%s622] ss:$3 sm:$0xff]
  %s624 = scalar_lea.vmem %s0, 1322
  %v625 = vld [vmem:[%s624] ss:$3 sm:$0xff]
  %s626 = scalar_lea.vmem %s0, 1346
  %v627 = vld [vmem:[%s626] ss:$3 sm:$0xff]
  %s628 = scalar_lea.vmem %s0, 1370
  %v629 = vld [vmem:[%s628] ss:$3 sm:$0xff]
  %s630 = scalar_lea.vmem %s0, 1394
  %v631 = vld [vmem:[%s630] ss:$3 sm:$0xff]
  %s632 = scalar_lea.vmem %s0, 1418
  %v633 = vld [vmem:[%s632] ss:$3 sm:$0xff]
  %s634 = scalar_lea.vmem %s0, 1442
  %v635 = vld [vmem:[%s634] ss:$3 sm:$0xff]
  %s636 = scalar_lea.vmem %s0, 1466
  %v637 = vld [vmem:[%s636] ss:$3 sm:$0xff]
  %s638 = scalar_lea.vmem %s0, 1490
  %v639 = vld [vmem:[%s638] ss:$3 sm:$0xff]
  %s640 = scalar_lea.vmem %s0, 1514
  %v641 = vld [vmem:[%s640] ss:$3 sm:$0xff]
  %s642 = scalar_lea.vmem %s0, 1538
  %v643 = vld [vmem:[%s642] ss:$3 sm:$0xff]
  %s644 = scalar_lea.vmem %s0, 1562
  %v645 = vld [vmem:[%s644] ss:$3 sm:$0xff]
  %s646 = scalar_lea.vmem %s0, 1586
  %v647 = vld [vmem:[%s646] ss:$3 sm:$0xff]
  %s648 = scalar_lea.vmem %s0, 1610
  %v649 = vld [vmem:[%s648] ss:$3 sm:$0xff]
  %s650 = scalar_lea.vmem %s0, 1634
  %v651 = vld [vmem:[%s650] ss:$3 sm:$0xff]
  %s652 = scalar_lea.vmem %s0, 1658
  %v653 = vld [vmem:[%s652] ss:$3 sm:$0xff]
  %s654 = scalar_lea.vmem %s0, 1682
  %v655 = vld [vmem:[%s654] ss:$3 sm:$0xff]
  %s656 = scalar_lea.vmem %s0, 1706
  %v657 = vld [vmem:[%s656] ss:$3 sm:$0xff]
  %s658 = scalar_lea.vmem %s0, 1730
  %v659 = vld [vmem:[%s658] ss:$3 sm:$0xff]
  %s660 = scalar_lea.vmem %s0, 1754
  %v661 = vld [vmem:[%s660] ss:$3 sm:$0xff]
  %s662 = scalar_lea.vmem %s0, 1778
  %v663 = vld [vmem:[%s662] ss:$3 sm:$0xff]
  %s664 = scalar_lea.vmem %s0, 1802
  %v665 = vld [vmem:[%s664] ss:$3 sm:$0xff]
  %s666 = scalar_lea.vmem %s0, 1826
  %v667 = vld [vmem:[%s666] ss:$3 sm:$0xff]
  %s668 = scalar_lea.vmem %s0, 1850
  %v669 = vld [vmem:[%s668] ss:$3 sm:$0xff]
  %v671 = vlaneseq
  %v672 = vshrl.u32 %v671, 7
  %v673 = vsub.s32 0, %v672
  %v674 = vrot.slane %v513, %v673
  %v676 = vmul.f32 %v195, %v674
  %v677 = vmul.f32 %v197, %v674
  %v678 = vmul.f32 %v199, %v674
  %v679 = vmul.f32 %v201, %v674
  %v680 = vmul.f32 %v203, %v674
  %v681 = vmul.f32 %v205, %v674
  %v682 = vmul.f32 %v207, %v674
  %v683 = vmul.f32 %v209, %v674
  %v684 = vmul.f32 %v211, %v674
  %v685 = vmul.f32 %v213, %v674
  %v686 = vmul.f32 %v215, %v674
  %v687 = vmul.f32 %v217, %v674
  %v688 = vmul.f32 %v219, %v674
  %v689 = vmul.f32 %v221, %v674
  %v690 = vmul.f32 %v223, %v674
  %v691 = vmul.f32 %v225, %v674
  %v692 = vmul.f32 %v227, %v674
  %v693 = vmul.f32 %v229, %v674
  %v694 = vmul.f32 %v231, %v674
  %v695 = vmul.f32 %v233, %v674
  %v696 = vmul.f32 %v235, %v674
  %v697 = vmul.f32 %v237, %v674
  %v698 = vmul.f32 %v239, %v674
  %v699 = vmul.f32 %v241, %v674
  %v700 = vmul.f32 %v243, %v674
  %v701 = vmul.f32 %v245, %v674
  %v702 = vmul.f32 %v247, %v674
  %v703 = vmul.f32 %v249, %v674
  %v704 = vmul.f32 %v251, %v674
  %v705 = vmul.f32 %v253, %v674
  %v706 = vmul.f32 %v255, %v674
  %v707 = vmul.f32 %v257, %v674
  %v708 = vmul.f32 %v259, %v674
  %v709 = vmul.f32 %v261, %v674
  %v710 = vmul.f32 %v263, %v674
  %v711 = vmul.f32 %v265, %v674
  %v712 = vmul.f32 %v267, %v674
  %v713 = vmul.f32 %v269, %v674
  %v714 = vmul.f32 %v271, %v674
  %v715 = vmul.f32 %v273, %v674
  %v716 = vmul.f32 %v275, %v674
  %v717 = vmul.f32 %v277, %v674
  %v718 = vmul.f32 %v279, %v674
  %v719 = vmul.f32 %v281, %v674
  %v720 = vmul.f32 %v283, %v674
  %v721 = vmul.f32 %v285, %v674
  %v722 = vmul.f32 %v287, %v674
  %v723 = vmul.f32 %v289, %v674
  %v724 = vmul.f32 %v291, %v674
  %v725 = vmul.f32 %v293, %v674
  %v726 = vmul.f32 %v295, %v674
  %v727 = vmul.f32 %v297, %v674
  %v728 = vmul.f32 %v299, %v674
  %v729 = vmul.f32 %v301, %v674
  %v730 = vmul.f32 %v303, %v674
  %v731 = vmul.f32 %v305, %v674
  %v732 = vmul.f32 %v307, %v674
  %v733 = vmul.f32 %v309, %v674
  %v734 = vmul.f32 %v311, %v674
  %v735 = vmul.f32 %v313, %v674
  %v736 = vmul.f32 %v315, %v674
  %v737 = vmul.f32 %v317, %v674
  %v738 = vmul.f32 %v319, %v674
  %v739 = vmul.f32 %v321, %v674
  %v740 = vmul.f32 %v323, %v674
  %v741 = vmul.f32 %v325, %v674
  %v742 = vmul.f32 %v327, %v674
  %v743 = vmul.f32 %v329, %v674
  %v744 = vmul.f32 %v331, %v674
  %v745 = vmul.f32 %v333, %v674
  %v746 = vmul.f32 %v335, %v674
  %v747 = vmul.f32 %v337, %v674
  %v748 = vmul.f32 %v339, %v674
  %v749 = vmul.f32 %v341, %v674
  %v750 = vmul.f32 %v343, %v674
  %v751 = vmul.f32 %v345, %v674
  %v752 = vmul.f32 %v347, %v674
  %v753 = vmul.f32 %v349, %v674
  %v754 = vadd.f32 %v356, %v676
  %v755 = vadd.f32 %v357, %v677
  %v756 = vadd.f32 %v358, %v678
  %v757 = vadd.f32 %v359, %v679
  %v758 = vadd.f32 %v360, %v680
  %v759 = vadd.f32 %v361, %v681
  %v760 = vadd.f32 %v362, %v682
  %v761 = vadd.f32 %v363, %v683
  %v762 = vadd.f32 %v364, %v684
  %v763 = vadd.f32 %v365, %v685
  %v764 = vadd.f32 %v366, %v686
  %v765 = vadd.f32 %v367, %v687
  %v766 = vadd.f32 %v368, %v688
  %v767 = vadd.f32 %v369, %v689
  %v768 = vadd.f32 %v370, %v690
  %v769 = vadd.f32 %v371, %v691
  %v770 = vadd.f32 %v372, %v692
  %v771 = vadd.f32 %v373, %v693
  %v772 = vadd.f32 %v374, %v694
  %v773 = vadd.f32 %v375, %v695
  %v774 = vadd.f32 %v376, %v696
  %v775 = vadd.f32 %v377, %v697
  %v776 = vadd.f32 %v378, %v698
  %v777 = vadd.f32 %v379, %v699
  %v778 = vadd.f32 %v380, %v700
  %v779 = vadd.f32 %v381, %v701
  %v780 = vadd.f32 %v382, %v702
  %v781 = vadd.f32 %v383, %v703
  %v782 = vadd.f32 %v384, %v704
  %v783 = vadd.f32 %v385, %v705
  %v784 = vadd.f32 %v386, %v706
  %v785 = vadd.f32 %v387, %v707
  %v786 = vadd.f32 %v388, %v708
  %v787 = vadd.f32 %v389, %v709
  %v788 = vadd.f32 %v390, %v710
  %v789 = vadd.f32 %v391, %v711
  %v790 = vadd.f32 %v392, %v712
  %v791 = vadd.f32 %v393, %v713
  %v792 = vadd.f32 %v394, %v714
  %v793 = vadd.f32 %v395, %v715
  %v794 = vadd.f32 %v396, %v716
  %v795 = vadd.f32 %v397, %v717
  %v796 = vadd.f32 %v398, %v718
  %v797 = vadd.f32 %v399, %v719
  %v798 = vadd.f32 %v400, %v720
  %v799 = vadd.f32 %v401, %v721
  %v800 = vadd.f32 %v402, %v722
  %v801 = vadd.f32 %v403, %v723
  %v802 = vadd.f32 %v404, %v724
  %v803 = vadd.f32 %v405, %v725
  %v804 = vadd.f32 %v406, %v726
  %v805 = vadd.f32 %v407, %v727
  %v806 = vadd.f32 %v408, %v728
  %v807 = vadd.f32 %v409, %v729
  %v808 = vadd.f32 %v410, %v730
  %v809 = vadd.f32 %v411, %v731
  %v810 = vadd.f32 %v412, %v732
  %v811 = vadd.f32 %v413, %v733
  %v812 = vadd.f32 %v414, %v734
  %v813 = vadd.f32 %v415, %v735
  %v814 = vadd.f32 %v416, %v736
  %v815 = vadd.f32 %v417, %v737
  %v816 = vadd.f32 %v418, %v738
  %v817 = vadd.f32 %v419, %v739
  %v818 = vadd.f32 %v420, %v740
  %v819 = vadd.f32 %v421, %v741
  %v820 = vadd.f32 %v422, %v742
  %v821 = vadd.f32 %v423, %v743
  %v822 = vadd.f32 %v424, %v744
  %v823 = vadd.f32 %v425, %v745
  %v824 = vadd.f32 %v426, %v746
  %v825 = vadd.f32 %v427, %v747
  %v826 = vadd.f32 %v428, %v748
  %v827 = vadd.f32 %v429, %v749
  %v828 = vadd.f32 %v430, %v750
  %v829 = vadd.f32 %v431, %v751
  %v830 = vadd.f32 %v432, %v752
  %v831 = vadd.f32 %v433, %v753
  %v832 = vmul.f32 %v515, %v674
  %v833 = vmul.f32 %v517, %v674
  %v834 = vmul.f32 %v519, %v674
  %v835 = vmul.f32 %v521, %v674
  %v836 = vmul.f32 %v523, %v674
  %v837 = vmul.f32 %v525, %v674
  %v838 = vmul.f32 %v527, %v674
  %v839 = vmul.f32 %v529, %v674
  %v840 = vmul.f32 %v531, %v674
  %v841 = vmul.f32 %v533, %v674
  %v842 = vmul.f32 %v535, %v674
  %v843 = vmul.f32 %v537, %v674
  %v844 = vmul.f32 %v539, %v674
  %v845 = vmul.f32 %v541, %v674
  %v846 = vmul.f32 %v543, %v674
  %v847 = vmul.f32 %v545, %v674
  %v848 = vmul.f32 %v547, %v674
  %v849 = vmul.f32 %v549, %v674
  %v850 = vmul.f32 %v551, %v674
  %v851 = vmul.f32 %v553, %v674
  %v852 = vmul.f32 %v555, %v674
  %v853 = vmul.f32 %v557, %v674
  %v854 = vmul.f32 %v559, %v674
  %v855 = vmul.f32 %v561, %v674
  %v856 = vmul.f32 %v563, %v674
  %v857 = vmul.f32 %v565, %v674
  %v858 = vmul.f32 %v567, %v674
  %v859 = vmul.f32 %v569, %v674
  %v860 = vmul.f32 %v571, %v674
  %v861 = vmul.f32 %v573, %v674
  %v862 = vmul.f32 %v575, %v674
  %v863 = vmul.f32 %v577, %v674
  %v864 = vmul.f32 %v579, %v674
  %v865 = vmul.f32 %v581, %v674
  %v866 = vmul.f32 %v583, %v674
  %v867 = vmul.f32 %v585, %v674
  %v868 = vmul.f32 %v587, %v674
  %v869 = vmul.f32 %v589, %v674
  %v870 = vmul.f32 %v591, %v674
  %v871 = vmul.f32 %v593, %v674
  %v872 = vmul.f32 %v595, %v674
  %v873 = vmul.f32 %v597, %v674
  %v874 = vmul.f32 %v599, %v674
  %v875 = vmul.f32 %v601, %v674
  %v876 = vmul.f32 %v603, %v674
  %v877 = vmul.f32 %v605, %v674
  %v878 = vmul.f32 %v607, %v674
  %v879 = vmul.f32 %v609, %v674
  %v880 = vmul.f32 %v611, %v674
  %v881 = vmul.f32 %v613, %v674
  %v882 = vmul.f32 %v615, %v674
  %v883 = vmul.f32 %v617, %v674
  %v884 = vmul.f32 %v619, %v674
  %v885 = vmul.f32 %v621, %v674
  %v886 = vmul.f32 %v623, %v674
  %v887 = vmul.f32 %v625, %v674
  %v888 = vmul.f32 %v627, %v674
  %v889 = vmul.f32 %v629, %v674
  %v890 = vmul.f32 %v631, %v674
  %v891 = vmul.f32 %v633, %v674
  %v892 = vmul.f32 %v635, %v674
  %v893 = vmul.f32 %v637, %v674
  %v894 = vmul.f32 %v639, %v674
  %v895 = vmul.f32 %v641, %v674
  %v896 = vmul.f32 %v643, %v674
  %v897 = vmul.f32 %v645, %v674
  %v898 = vmul.f32 %v647, %v674
  %v899 = vmul.f32 %v649, %v674
  %v900 = vmul.f32 %v651, %v674
  %v901 = vmul.f32 %v653, %v674
  %v902 = vmul.f32 %v655, %v674
  %v903 = vmul.f32 %v657, %v674
  %v904 = vmul.f32 %v659, %v674
  %v905 = vmul.f32 %v661, %v674
  %v906 = vmul.f32 %v663, %v674
  %v907 = vmul.f32 %v665, %v674
  %v908 = vmul.f32 %v667, %v674
  %v909 = vmul.f32 %v669, %v674
  %v910 = vadd.f32 %v434, %v832
  %v911 = vadd.f32 %v435, %v833
  %v912 = vadd.f32 %v436, %v834
  %v913 = vadd.f32 %v437, %v835
  %v914 = vadd.f32 %v438, %v836
  %v915 = vadd.f32 %v439, %v837
  %v916 = vadd.f32 %v440, %v838
  %v917 = vadd.f32 %v441, %v839
  %v918 = vadd.f32 %v442, %v840
  %v919 = vadd.f32 %v443, %v841
  %v920 = vadd.f32 %v444, %v842
  %v921 = vadd.f32 %v445, %v843
  %v922 = vadd.f32 %v446, %v844
  %v923 = vadd.f32 %v447, %v845
  %v924 = vadd.f32 %v448, %v846
  %v925 = vadd.f32 %v449, %v847
  %v926 = vadd.f32 %v450, %v848
  %v927 = vadd.f32 %v451, %v849
  %v928 = vadd.f32 %v452, %v850
  %v929 = vadd.f32 %v453, %v851
  %v930 = vadd.f32 %v454, %v852
  %v931 = vadd.f32 %v455, %v853
  %v932 = vadd.f32 %v456, %v854
  %v933 = vadd.f32 %v457, %v855
  %v934 = vadd.f32 %v458, %v856
  %v935 = vadd.f32 %v459, %v857
  %v936 = vadd.f32 %v460, %v858
  %v937 = vadd.f32 %v461, %v859
  %v938 = vadd.f32 %v462, %v860
  %v939 = vadd.f32 %v463, %v861
  %v940 = vadd.f32 %v464, %v862
  %v941 = vadd.f32 %v465, %v863
  %v942 = vadd.f32 %v466, %v864
  %v943 = vadd.f32 %v467, %v865
  %v944 = vadd.f32 %v468, %v866
  %v945 = vadd.f32 %v469, %v867
  %v946 = vadd.f32 %v470, %v868
  %v947 = vadd.f32 %v471, %v869
  %v948 = vadd.f32 %v472, %v870
  %v949 = vadd.f32 %v473, %v871
  %v950 = vadd.f32 %v474, %v872
  %v951 = vadd.f32 %v475, %v873
  %v952 = vadd.f32 %v476, %v874
  %v953 = vadd.f32 %v477, %v875
  %v954 = vadd.f32 %v478, %v876
  %v955 = vadd.f32 %v479, %v877
  %v956 = vadd.f32 %v480, %v878
  %v957 = vadd.f32 %v481, %v879
  %v958 = vadd.f32 %v482, %v880
  %v959 = vadd.f32 %v483, %v881
  %v960 = vadd.f32 %v484, %v882
  %v961 = vadd.f32 %v485, %v883
  %v962 = vadd.f32 %v486, %v884
  %v963 = vadd.f32 %v487, %v885
  %v964 = vadd.f32 %v488, %v886
  %v965 = vadd.f32 %v489, %v887
  %v966 = vadd.f32 %v490, %v888
  %v967 = vadd.f32 %v491, %v889
  %v968 = vadd.f32 %v492, %v890
  %v969 = vadd.f32 %v493, %v891
  %v970 = vadd.f32 %v494, %v892
  %v971 = vadd.f32 %v495, %v893
  %v972 = vadd.f32 %v496, %v894
  %v973 = vadd.f32 %v497, %v895
  %v974 = vadd.f32 %v498, %v896
  %v975 = vadd.f32 %v499, %v897
  %v976 = vadd.f32 %v500, %v898
  %v977 = vadd.f32 %v501, %v899
  %v978 = vadd.f32 %v502, %v900
  %v979 = vadd.f32 %v503, %v901
  %v980 = vadd.f32 %v504, %v902
  %v981 = vadd.f32 %v505, %v903
  %v982 = vadd.f32 %v506, %v904
  %v983 = vadd.f32 %v507, %v905
  %v984 = vadd.f32 %v508, %v906
  %v985 = vadd.f32 %v509, %v907
  %v986 = vadd.f32 %v510, %v908
  %v987 = vadd.f32 %v511, %v909
  %s988 = scalar_lea.vmem %s1, 2
  %v989 = vld [vmem:[%s988] sm:$0x1]
  %s990 = scalar_lea.vmem %s0, 3
  %v991 = vld [vmem:[%s990] ss:$3 sm:$0xff]
  %s992 = scalar_lea.vmem %s0, 27
  %v993 = vld [vmem:[%s992] ss:$3 sm:$0xff]
  %s994 = scalar_lea.vmem %s0, 51
  %v995 = vld [vmem:[%s994] ss:$3 sm:$0xff]
  %s996 = scalar_lea.vmem %s0, 75
  %v997 = vld [vmem:[%s996] ss:$3 sm:$0xff]
  %s998 = scalar_lea.vmem %s0, 99
  %v999 = vld [vmem:[%s998] ss:$3 sm:$0xff]
  %s1000 = scalar_lea.vmem %s0, 123
  %v1001 = vld [vmem:[%s1000] ss:$3 sm:$0xff]
  %s1002 = scalar_lea.vmem %s0, 147
  %v1003 = vld [vmem:[%s1002] ss:$3 sm:$0xff]
  %s1004 = scalar_lea.vmem %s0, 171
  %v1005 = vld [vmem:[%s1004] ss:$3 sm:$0xff]
  %s1006 = scalar_lea.vmem %s0, 195
  %v1007 = vld [vmem:[%s1006] ss:$3 sm:$0xff]
  %s1008 = scalar_lea.vmem %s0, 219
  %v1009 = vld [vmem:[%s1008] ss:$3 sm:$0xff]
  %s1010 = scalar_lea.vmem %s0, 243
  %v1011 = vld [vmem:[%s1010] ss:$3 sm:$0xff]
  %s1012 = scalar_lea.vmem %s0, 267
  %v1013 = vld [vmem:[%s1012] ss:$3 sm:$0xff]
  %s1014 = scalar_lea.vmem %s0, 291
  %v1015 = vld [vmem:[%s1014] ss:$3 sm:$0xff]
  %s1016 = scalar_lea.vmem %s0, 315
  %v1017 = vld [vmem:[%s1016] ss:$3 sm:$0xff]
  %s1018 = scalar_lea.vmem %s0, 339
  %v1019 = vld [vmem:[%s1018] ss:$3 sm:$0xff]
  %s1020 = scalar_lea.vmem %s0, 363
  %v1021 = vld [vmem:[%s1020] ss:$3 sm:$0xff]
  %s1022 = scalar_lea.vmem %s0, 387
  %v1023 = vld [vmem:[%s1022] ss:$3 sm:$0xff]
  %s1024 = scalar_lea.vmem %s0, 411
  %v1025 = vld [vmem:[%s1024] ss:$3 sm:$0xff]
  %s1026 = scalar_lea.vmem %s0, 435
  %v1027 = vld [vmem:[%s1026] ss:$3 sm:$0xff]
  %s1028 = scalar_lea.vmem %s0, 459
  %v1029 = vld [vmem:[%s1028] ss:$3 sm:$0xff]
  %s1030 = scalar_lea.vmem %s0, 483
  %v1031 = vld [vmem:[%s1030] ss:$3 sm:$0xff]
  %s1032 = scalar_lea.vmem %s0, 507
  %v1033 = vld [vmem:[%s1032] ss:$3 sm:$0xff]
  %s1034 = scalar_lea.vmem %s0, 531
  %v1035 = vld [vmem:[%s1034] ss:$3 sm:$0xff]
  %s1036 = scalar_lea.vmem %s0, 555
  %v1037 = vld [vmem:[%s1036] ss:$3 sm:$0xff]
  %s1038 = scalar_lea.vmem %s0, 579
  %v1039 = vld [vmem:[%s1038] ss:$3 sm:$0xff]
  %s1040 = scalar_lea.vmem %s0, 603
  %v1041 = vld [vmem:[%s1040] ss:$3 sm:$0xff]
  %s1042 = scalar_lea.vmem %s0, 627
  %v1043 = vld [vmem:[%s1042] ss:$3 sm:$0xff]
  %s1044 = scalar_lea.vmem %s0, 651
  %v1045 = vld [vmem:[%s1044] ss:$3 sm:$0xff]
  %s1046 = scalar_lea.vmem %s0, 675
  %v1047 = vld [vmem:[%s1046] ss:$3 sm:$0xff]
  %s1048 = scalar_lea.vmem %s0, 699
  %v1049 = vld [vmem:[%s1048] ss:$3 sm:$0xff]
  %s1050 = scalar_lea.vmem %s0, 723
  %v1051 = vld [vmem:[%s1050] ss:$3 sm:$0xff]
  %s1052 = scalar_lea.vmem %s0, 747
  %v1053 = vld [vmem:[%s1052] ss:$3 sm:$0xff]
  %s1054 = scalar_lea.vmem %s0, 771
  %v1055 = vld [vmem:[%s1054] ss:$3 sm:$0xff]
  %s1056 = scalar_lea.vmem %s0, 795
  %v1057 = vld [vmem:[%s1056] ss:$3 sm:$0xff]
  %s1058 = scalar_lea.vmem %s0, 819
  %v1059 = vld [vmem:[%s1058] ss:$3 sm:$0xff]
  %s1060 = scalar_lea.vmem %s0, 843
  %v1061 = vld [vmem:[%s1060] ss:$3 sm:$0xff]
  %s1062 = scalar_lea.vmem %s0, 867
  %v1063 = vld [vmem:[%s1062] ss:$3 sm:$0xff]
  %s1064 = scalar_lea.vmem %s0, 891
  %v1065 = vld [vmem:[%s1064] ss:$3 sm:$0xff]
  %s1066 = scalar_lea.vmem %s0, 915
  %v1067 = vld [vmem:[%s1066] ss:$3 sm:$0xff]
  %s1068 = scalar_lea.vmem %s0, 939
  %v1069 = vld [vmem:[%s1068] ss:$3 sm:$0xff]
  %s1070 = scalar_lea.vmem %s0, 963
  %v1071 = vld [vmem:[%s1070] ss:$3 sm:$0xff]
  %s1072 = scalar_lea.vmem %s0, 987
  %v1073 = vld [vmem:[%s1072] ss:$3 sm:$0xff]
  %s1074 = scalar_lea.vmem %s0, 1011
  %v1075 = vld [vmem:[%s1074] ss:$3 sm:$0xff]
  %s1076 = scalar_lea.vmem %s0, 1035
  %v1077 = vld [vmem:[%s1076] ss:$3 sm:$0xff]
  %s1078 = scalar_lea.vmem %s0, 1059
  %v1079 = vld [vmem:[%s1078] ss:$3 sm:$0xff]
  %s1080 = scalar_lea.vmem %s0, 1083
  %v1081 = vld [vmem:[%s1080] ss:$3 sm:$0xff]
  %s1082 = scalar_lea.vmem %s0, 1107
  %v1083 = vld [vmem:[%s1082] ss:$3 sm:$0xff]
  %s1084 = scalar_lea.vmem %s0, 1131
  %v1085 = vld [vmem:[%s1084] ss:$3 sm:$0xff]
  %s1086 = scalar_lea.vmem %s0, 1155
  %v1087 = vld [vmem:[%s1086] ss:$3 sm:$0xff]
  %s1088 = scalar_lea.vmem %s0, 1179
  %v1089 = vld [vmem:[%s1088] ss:$3 sm:$0xff]
  %s1090 = scalar_lea.vmem %s0, 1203
  %v1091 = vld [vmem:[%s1090] ss:$3 sm:$0xff]
  %s1092 = scalar_lea.vmem %s0, 1227
  %v1093 = vld [vmem:[%s1092] ss:$3 sm:$0xff]
  %s1094 = scalar_lea.vmem %s0, 1251
  %v1095 = vld [vmem:[%s1094] ss:$3 sm:$0xff]
  %s1096 = scalar_lea.vmem %s0, 1275
  %v1097 = vld [vmem:[%s1096] ss:$3 sm:$0xff]
  %s1098 = scalar_lea.vmem %s0, 1299
  %v1099 = vld [vmem:[%s1098] ss:$3 sm:$0xff]
  %s1100 = scalar_lea.vmem %s0, 1323
  %v1101 = vld [vmem:[%s1100] ss:$3 sm:$0xff]
  %s1102 = scalar_lea.vmem %s0, 1347
  %v1103 = vld [vmem:[%s1102] ss:$3 sm:$0xff]
  %s1104 = scalar_lea.vmem %s0, 1371
  %v1105 = vld [vmem:[%s1104] ss:$3 sm:$0xff]
  %s1106 = scalar_lea.vmem %s0, 1395
  %v1107 = vld [vmem:[%s1106] ss:$3 sm:$0xff]
  %s1108 = scalar_lea.vmem %s0, 1419
  %v1109 = vld [vmem:[%s1108] ss:$3 sm:$0xff]
  %s1110 = scalar_lea.vmem %s0, 1443
  %v1111 = vld [vmem:[%s1110] ss:$3 sm:$0xff]
  %s1112 = scalar_lea.vmem %s0, 1467
  %v1113 = vld [vmem:[%s1112] ss:$3 sm:$0xff]
  %s1114 = scalar_lea.vmem %s0, 1491
  %v1115 = vld [vmem:[%s1114] ss:$3 sm:$0xff]
  %s1116 = scalar_lea.vmem %s0, 1515
  %v1117 = vld [vmem:[%s1116] ss:$3 sm:$0xff]
  %s1118 = scalar_lea.vmem %s0, 1539
  %v1119 = vld [vmem:[%s1118] ss:$3 sm:$0xff]
  %s1120 = scalar_lea.vmem %s0, 1563
  %v1121 = vld [vmem:[%s1120] ss:$3 sm:$0xff]
  %s1122 = scalar_lea.vmem %s0, 1587
  %v1123 = vld [vmem:[%s1122] ss:$3 sm:$0xff]
  %s1124 = scalar_lea.vmem %s0, 1611
  %v1125 = vld [vmem:[%s1124] ss:$3 sm:$0xff]
  %s1126 = scalar_lea.vmem %s0, 1635
  %v1127 = vld [vmem:[%s1126] ss:$3 sm:$0xff]
  %s1128 = scalar_lea.vmem %s0, 1659
  %v1129 = vld [vmem:[%s1128] ss:$3 sm:$0xff]
  %s1130 = scalar_lea.vmem %s0, 1683
  %v1131 = vld [vmem:[%s1130] ss:$3 sm:$0xff]
  %s1132 = scalar_lea.vmem %s0, 1707
  %v1133 = vld [vmem:[%s1132] ss:$3 sm:$0xff]
  %s1134 = scalar_lea.vmem %s0, 1731
  %v1135 = vld [vmem:[%s1134] ss:$3 sm:$0xff]
  %s1136 = scalar_lea.vmem %s0, 1755
  %v1137 = vld [vmem:[%s1136] ss:$3 sm:$0xff]
  %s1138 = scalar_lea.vmem %s0, 1779
  %v1139 = vld [vmem:[%s1138] ss:$3 sm:$0xff]
  %s1140 = scalar_lea.vmem %s0, 1803
  %v1141 = vld [vmem:[%s1140] ss:$3 sm:$0xff]
  %s1142 = scalar_lea.vmem %s0, 1827
  %v1143 = vld [vmem:[%s1142] ss:$3 sm:$0xff]
  %s1144 = scalar_lea.vmem %s0, 1851
  %v1145 = vld [vmem:[%s1144] ss:$3 sm:$0xff]
  %v1147 = vlaneseq
  %v1148 = vshrl.u32 %v1147, 7
  %v1149 = vsub.s32 0, %v1148
  %v1150 = vrot.slane %v989, %v1149
  %v1152 = vmul.f32 %v515, %v1150
  %v1153 = vmul.f32 %v517, %v1150
  %v1154 = vmul.f32 %v519, %v1150
  %v1155 = vmul.f32 %v521, %v1150
  %v1156 = vmul.f32 %v523, %v1150
  %v1157 = vmul.f32 %v525, %v1150
  %v1158 = vmul.f32 %v527, %v1150
  %v1159 = vmul.f32 %v529, %v1150
  %v1160 = vmul.f32 %v531, %v1150
  %v1161 = vmul.f32 %v533, %v1150
  %v1162 = vmul.f32 %v535, %v1150
  %v1163 = vmul.f32 %v537, %v1150
  %v1164 = vmul.f32 %v539, %v1150
  %v1165 = vmul.f32 %v541, %v1150
  %v1166 = vmul.f32 %v543, %v1150
  %v1167 = vmul.f32 %v545, %v1150
  %v1168 = vmul.f32 %v547, %v1150
  %v1169 = vmul.f32 %v549, %v1150
  %v1170 = vmul.f32 %v551, %v1150
  %v1171 = vmul.f32 %v553, %v1150
  %v1172 = vmul.f32 %v555, %v1150
  %v1173 = vmul.f32 %v557, %v1150
  %v1174 = vmul.f32 %v559, %v1150
  %v1175 = vmul.f32 %v561, %v1150
  %v1176 = vmul.f32 %v563, %v1150
  %v1177 = vmul.f32 %v565, %v1150
  %v1178 = vmul.f32 %v567, %v1150
  %v1179 = vmul.f32 %v569, %v1150
  %v1180 = vmul.f32 %v571, %v1150
  %v1181 = vmul.f32 %v573, %v1150
  %v1182 = vmul.f32 %v575, %v1150
  %v1183 = vmul.f32 %v577, %v1150
  %v1184 = vmul.f32 %v579, %v1150
  %v1185 = vmul.f32 %v581, %v1150
  %v1186 = vmul.f32 %v583, %v1150
  %v1187 = vmul.f32 %v585, %v1150
  %v1188 = vmul.f32 %v587, %v1150
  %v1189 = vmul.f32 %v589, %v1150
  %v1190 = vmul.f32 %v591, %v1150
  %v1191 = vmul.f32 %v593, %v1150
  %v1192 = vmul.f32 %v595, %v1150
  %v1193 = vmul.f32 %v597, %v1150
  %v1194 = vmul.f32 %v599, %v1150
  %v1195 = vmul.f32 %v601, %v1150
  %v1196 = vmul.f32 %v603, %v1150
  %v1197 = vmul.f32 %v605, %v1150
  %v1198 = vmul.f32 %v607, %v1150
  %v1199 = vmul.f32 %v609, %v1150
  %v1200 = vmul.f32 %v611, %v1150
  %v1201 = vmul.f32 %v613, %v1150
  %v1202 = vmul.f32 %v615, %v1150
  %v1203 = vmul.f32 %v617, %v1150
  %v1204 = vmul.f32 %v619, %v1150
  %v1205 = vmul.f32 %v621, %v1150
  %v1206 = vmul.f32 %v623, %v1150
  %v1207 = vmul.f32 %v625, %v1150
  %v1208 = vmul.f32 %v627, %v1150
  %v1209 = vmul.f32 %v629, %v1150
  %v1210 = vmul.f32 %v631, %v1150
  %v1211 = vmul.f32 %v633, %v1150
  %v1212 = vmul.f32 %v635, %v1150
  %v1213 = vmul.f32 %v637, %v1150
  %v1214 = vmul.f32 %v639, %v1150
  %v1215 = vmul.f32 %v641, %v1150
  %v1216 = vmul.f32 %v643, %v1150
  %v1217 = vmul.f32 %v645, %v1150
  %v1218 = vmul.f32 %v647, %v1150
  %v1219 = vmul.f32 %v649, %v1150
  %v1220 = vmul.f32 %v651, %v1150
  %v1221 = vmul.f32 %v653, %v1150
  %v1222 = vmul.f32 %v655, %v1150
  %v1223 = vmul.f32 %v657, %v1150
  %v1224 = vmul.f32 %v659, %v1150
  %v1225 = vmul.f32 %v661, %v1150
  %v1226 = vmul.f32 %v663, %v1150
  %v1227 = vmul.f32 %v665, %v1150
  %v1228 = vmul.f32 %v667, %v1150
  %v1229 = vmul.f32 %v669, %v1150
  %v1230 = vadd.f32 %v754, %v1152
  %v1231 = vadd.f32 %v755, %v1153
  %v1232 = vadd.f32 %v756, %v1154
  %v1233 = vadd.f32 %v757, %v1155
  %v1234 = vadd.f32 %v758, %v1156
  %v1235 = vadd.f32 %v759, %v1157
  %v1236 = vadd.f32 %v760, %v1158
  %v1237 = vadd.f32 %v761, %v1159
  %v1238 = vadd.f32 %v762, %v1160
  %v1239 = vadd.f32 %v763, %v1161
  %v1240 = vadd.f32 %v764, %v1162
  %v1241 = vadd.f32 %v765, %v1163
  %v1242 = vadd.f32 %v766, %v1164
  %v1243 = vadd.f32 %v767, %v1165
  %v1244 = vadd.f32 %v768, %v1166
  %v1245 = vadd.f32 %v769, %v1167
  %v1246 = vadd.f32 %v770, %v1168
  %v1247 = vadd.f32 %v771, %v1169
  %v1248 = vadd.f32 %v772, %v1170
  %v1249 = vadd.f32 %v773, %v1171
  %v1250 = vadd.f32 %v774, %v1172
  %v1251 = vadd.f32 %v775, %v1173
  %v1252 = vadd.f32 %v776, %v1174
  %v1253 = vadd.f32 %v777, %v1175
  %v1254 = vadd.f32 %v778, %v1176
  %v1255 = vadd.f32 %v779, %v1177
  %v1256 = vadd.f32 %v780, %v1178
  %v1257 = vadd.f32 %v781, %v1179
  %v1258 = vadd.f32 %v782, %v1180
  %v1259 = vadd.f32 %v783, %v1181
  %v1260 = vadd.f32 %v784, %v1182
  %v1261 = vadd.f32 %v785, %v1183
  %v1262 = vadd.f32 %v786, %v1184
  %v1263 = vadd.f32 %v787, %v1185
  %v1264 = vadd.f32 %v788, %v1186
  %v1265 = vadd.f32 %v789, %v1187
  %v1266 = vadd.f32 %v790, %v1188
  %v1267 = vadd.f32 %v791, %v1189
  %v1268 = vadd.f32 %v792, %v1190
  %v1269 = vadd.f32 %v793, %v1191
  %v1270 = vadd.f32 %v794, %v1192
  %v1271 = vadd.f32 %v795, %v1193
  %v1272 = vadd.f32 %v796, %v1194
  %v1273 = vadd.f32 %v797, %v1195
  %v1274 = vadd.f32 %v798, %v1196
  %v1275 = vadd.f32 %v799, %v1197
  %v1276 = vadd.f32 %v800, %v1198
  %v1277 = vadd.f32 %v801, %v1199
  %v1278 = vadd.f32 %v802, %v1200
  %v1279 = vadd.f32 %v803, %v1201
  %v1280 = vadd.f32 %v804, %v1202
  %v1281 = vadd.f32 %v805, %v1203
  %v1282 = vadd.f32 %v806, %v1204
  %v1283 = vadd.f32 %v807, %v1205
  %v1284 = vadd.f32 %v808, %v1206
  %v1285 = vadd.f32 %v809, %v1207
  %v1286 = vadd.f32 %v810, %v1208
  %v1287 = vadd.f32 %v811, %v1209
  %v1288 = vadd.f32 %v812, %v1210
  %v1289 = vadd.f32 %v813, %v1211
  %v1290 = vadd.f32 %v814, %v1212
  %v1291 = vadd.f32 %v815, %v1213
  %v1292 = vadd.f32 %v816, %v1214
  %v1293 = vadd.f32 %v817, %v1215
  %v1294 = vadd.f32 %v818, %v1216
  %v1295 = vadd.f32 %v819, %v1217
  %v1296 = vadd.f32 %v820, %v1218
  %v1297 = vadd.f32 %v821, %v1219
  %v1298 = vadd.f32 %v822, %v1220
  %v1299 = vadd.f32 %v823, %v1221
  %v1300 = vadd.f32 %v824, %v1222
  %v1301 = vadd.f32 %v825, %v1223
  %v1302 = vadd.f32 %v826, %v1224
  %v1303 = vadd.f32 %v827, %v1225
  %v1304 = vadd.f32 %v828, %v1226
  %v1305 = vadd.f32 %v829, %v1227
  %v1306 = vadd.f32 %v830, %v1228
  %v1307 = vadd.f32 %v831, %v1229
  %v1308 = vmul.f32 %v991, %v1150
  %v1309 = vmul.f32 %v993, %v1150
  %v1310 = vmul.f32 %v995, %v1150
  %v1311 = vmul.f32 %v997, %v1150
  %v1312 = vmul.f32 %v999, %v1150
  %v1313 = vmul.f32 %v1001, %v1150
  %v1314 = vmul.f32 %v1003, %v1150
  %v1315 = vmul.f32 %v1005, %v1150
  %v1316 = vmul.f32 %v1007, %v1150
  %v1317 = vmul.f32 %v1009, %v1150
  %v1318 = vmul.f32 %v1011, %v1150
  %v1319 = vmul.f32 %v1013, %v1150
  %v1320 = vmul.f32 %v1015, %v1150
  %v1321 = vmul.f32 %v1017, %v1150
  %v1322 = vmul.f32 %v1019, %v1150
  %v1323 = vmul.f32 %v1021, %v1150
  %v1324 = vmul.f32 %v1023, %v1150
  %v1325 = vmul.f32 %v1025, %v1150
  %v1326 = vmul.f32 %v1027, %v1150
  %v1327 = vmul.f32 %v1029, %v1150
  %v1328 = vmul.f32 %v1031, %v1150
  %v1329 = vmul.f32 %v1033, %v1150
  %v1330 = vmul.f32 %v1035, %v1150
  %v1331 = vmul.f32 %v1037, %v1150
  %v1332 = vmul.f32 %v1039, %v1150
  %v1333 = vmul.f32 %v1041, %v1150
  %v1334 = vmul.f32 %v1043, %v1150
  %v1335 = vmul.f32 %v1045, %v1150
  %v1336 = vmul.f32 %v1047, %v1150
  %v1337 = vmul.f32 %v1049, %v1150
  %v1338 = vmul.f32 %v1051, %v1150
  %v1339 = vmul.f32 %v1053, %v1150
  %v1340 = vmul.f32 %v1055, %v1150
  %v1341 = vmul.f32 %v1057, %v1150
  %v1342 = vmul.f32 %v1059, %v1150
  %v1343 = vmul.f32 %v1061, %v1150
  %v1344 = vmul.f32 %v1063, %v1150
  %v1345 = vmul.f32 %v1065, %v1150
  %v1346 = vmul.f32 %v1067, %v1150
  %v1347 = vmul.f32 %v1069, %v1150
  %v1348 = vmul.f32 %v1071, %v1150
  %v1349 = vmul.f32 %v1073, %v1150
  %v1350 = vmul.f32 %v1075, %v1150
  %v1351 = vmul.f32 %v1077, %v1150
  %v1352 = vmul.f32 %v1079, %v1150
  %v1353 = vmul.f32 %v1081, %v1150
  %v1354 = vmul.f32 %v1083, %v1150
  %v1355 = vmul.f32 %v1085, %v1150
  %v1356 = vmul.f32 %v1087, %v1150
  %v1357 = vmul.f32 %v1089, %v1150
  %v1358 = vmul.f32 %v1091, %v1150
  %v1359 = vmul.f32 %v1093, %v1150
  %v1360 = vmul.f32 %v1095, %v1150
  %v1361 = vmul.f32 %v1097, %v1150
  %v1362 = vmul.f32 %v1099, %v1150
  %v1363 = vmul.f32 %v1101, %v1150
  %v1364 = vmul.f32 %v1103, %v1150
  %v1365 = vmul.f32 %v1105, %v1150
  %v1366 = vmul.f32 %v1107, %v1150
  %v1367 = vmul.f32 %v1109, %v1150
  %v1368 = vmul.f32 %v1111, %v1150
  %v1369 = vmul.f32 %v1113, %v1150
  %v1370 = vmul.f32 %v1115, %v1150
  %v1371 = vmul.f32 %v1117, %v1150
  %v1372 = vmul.f32 %v1119, %v1150
  %v1373 = vmul.f32 %v1121, %v1150
  %v1374 = vmul.f32 %v1123, %v1150
  %v1375 = vmul.f32 %v1125, %v1150
  %v1376 = vmul.f32 %v1127, %v1150
  %v1377 = vmul.f32 %v1129, %v1150
  %v1378 = vmul.f32 %v1131, %v1150
  %v1379 = vmul.f32 %v1133, %v1150
  %v1380 = vmul.f32 %v1135, %v1150
  %v1381 = vmul.f32 %v1137, %v1150
  %v1382 = vmul.f32 %v1139, %v1150
  %v1383 = vmul.f32 %v1141, %v1150
  %v1384 = vmul.f32 %v1143, %v1150
  %v1385 = vmul.f32 %v1145, %v1150
  %v1386 = vadd.f32 %v910, %v1308
  %v1387 = vadd.f32 %v911, %v1309
  %v1388 = vadd.f32 %v912, %v1310
  %v1389 = vadd.f32 %v913, %v1311
  %v1390 = vadd.f32 %v914, %v1312
  %v1391 = vadd.f32 %v915, %v1313
  %v1392 = vadd.f32 %v916, %v1314
  %v1393 = vadd.f32 %v917, %v1315
  %v1394 = vadd.f32 %v918, %v1316
  %v1395 = vadd.f32 %v919, %v1317
  %v1396 = vadd.f32 %v920, %v1318
  %v1397 = vadd.f32 %v921, %v1319
  %v1398 = vadd.f32 %v922, %v1320
  %v1399 = vadd.f32 %v923, %v1321
  %v1400 = vadd.f32 %v924, %v1322
  %v1401 = vadd.f32 %v925, %v1323
  %v1402 = vadd.f32 %v926, %v1324
  %v1403 = vadd.f32 %v927, %v1325
  %v1404 = vadd.f32 %v928, %v1326
  %v1405 = vadd.f32 %v929, %v1327
  %v1406 = vadd.f32 %v930, %v1328
  %v1407 = vadd.f32 %v931, %v1329
  %v1408 = vadd.f32 %v932, %v1330
  %v1409 = vadd.f32 %v933, %v1331
  %v1410 = vadd.f32 %v934, %v1332
  %v1411 = vadd.f32 %v935, %v1333
  %v1412 = vadd.f32 %v936, %v1334
  %v1413 = vadd.f32 %v937, %v1335
  %v1414 = vadd.f32 %v938, %v1336
  %v1415 = vadd.f32 %v939, %v1337
  %v1416 = vadd.f32 %v940, %v1338
  %v1417 = vadd.f32 %v941, %v1339
  %v1418 = vadd.f32 %v942, %v1340
  %v1419 = vadd.f32 %v943, %v1341
  %v1420 = vadd.f32 %v944, %v1342
  %v1421 = vadd.f32 %v945, %v1343
  %v1422 = vadd.f32 %v946, %v1344
  %v1423 = vadd.f32 %v947, %v1345
  %v1424 = vadd.f32 %v948, %v1346
  %v1425 = vadd.f32 %v949, %v1347
  %v1426 = vadd.f32 %v950, %v1348
  %v1427 = vadd.f32 %v951, %v1349
  %v1428 = vadd.f32 %v952, %v1350
  %v1429 = vadd.f32 %v953, %v1351
  %v1430 = vadd.f32 %v954, %v1352
  %v1431 = vadd.f32 %v955, %v1353
  %v1432 = vadd.f32 %v956, %v1354
  %v1433 = vadd.f32 %v957, %v1355
  %v1434 = vadd.f32 %v958, %v1356
  %v1435 = vadd.f32 %v959, %v1357
  %v1436 = vadd.f32 %v960, %v1358
  %v1437 = vadd.f32 %v961, %v1359
  %v1438 = vadd.f32 %v962, %v1360
  %v1439 = vadd.f32 %v963, %v1361
  %v1440 = vadd.f32 %v964, %v1362
  %v1441 = vadd.f32 %v965, %v1363
  %v1442 = vadd.f32 %v966, %v1364
  %v1443 = vadd.f32 %v967, %v1365
  %v1444 = vadd.f32 %v968, %v1366
  %v1445 = vadd.f32 %v969, %v1367
  %v1446 = vadd.f32 %v970, %v1368
  %v1447 = vadd.f32 %v971, %v1369
  %v1448 = vadd.f32 %v972, %v1370
  %v1449 = vadd.f32 %v973, %v1371
  %v1450 = vadd.f32 %v974, %v1372
  %v1451 = vadd.f32 %v975, %v1373
  %v1452 = vadd.f32 %v976, %v1374
  %v1453 = vadd.f32 %v977, %v1375
  %v1454 = vadd.f32 %v978, %v1376
  %v1455 = vadd.f32 %v979, %v1377
  %v1456 = vadd.f32 %v980, %v1378
  %v1457 = vadd.f32 %v981, %v1379
  %v1458 = vadd.f32 %v982, %v1380
  %v1459 = vadd.f32 %v983, %v1381
  %v1460 = vadd.f32 %v984, %v1382
  %v1461 = vadd.f32 %v985, %v1383
  %v1462 = vadd.f32 %v986, %v1384
  %v1463 = vadd.f32 %v987, %v1385
  %s1464 = scalar_lea.vmem %s1, 3
  %v1465 = vld [vmem:[%s1464] sm:$0x1]
  %s1466 = scalar_lea.vmem %s0, 4
  %v1467 = vld [vmem:[%s1466] ss:$3 sm:$0xff]
  %s1468 = scalar_lea.vmem %s0, 28
  %v1469 = vld [vmem:[%s1468] ss:$3 sm:$0xff]
  %s1470 = scalar_lea.vmem %s0, 52
  %v1471 = vld [vmem:[%s1470] ss:$3 sm:$0xff]
  %s1472 = scalar_lea.vmem %s0, 76
  %v1473 = vld [vmem:[%s1472] ss:$3 sm:$0xff]
  %s1474 = scalar_lea.vmem %s0, 100
  %v1475 = vld [vmem:[%s1474] ss:$3 sm:$0xff]
  %s1476 = scalar_lea.vmem %s0, 124
  %v1477 = vld [vmem:[%s1476] ss:$3 sm:$0xff]
  %s1478 = scalar_lea.vmem %s0, 148
  %v1479 = vld [vmem:[%s1478] ss:$3 sm:$0xff]
  %s1480 = scalar_lea.vmem %s0, 172
  %v1481 = vld [vmem:[%s1480] ss:$3 sm:$0xff]
  %s1482 = scalar_lea.vmem %s0, 196
  %v1483 = vld [vmem:[%s1482] ss:$3 sm:$0xff]
  %s1484 = scalar_lea.vmem %s0, 220
  %v1485 = vld [vmem:[%s1484] ss:$3 sm:$0xff]
  %s1486 = scalar_lea.vmem %s0, 244
  %v1487 = vld [vmem:[%s1486] ss:$3 sm:$0xff]
  %s1488 = scalar_lea.vmem %s0, 268
  %v1489 = vld [vmem:[%s1488] ss:$3 sm:$0xff]
  %s1490 = scalar_lea.vmem %s0, 292
  %v1491 = vld [vmem:[%s1490] ss:$3 sm:$0xff]
  %s1492 = scalar_lea.vmem %s0, 316
  %v1493 = vld [vmem:[%s1492] ss:$3 sm:$0xff]
  %s1494 = scalar_lea.vmem %s0, 340
  %v1495 = vld [vmem:[%s1494] ss:$3 sm:$0xff]
  %s1496 = scalar_lea.vmem %s0, 364
  %v1497 = vld [vmem:[%s1496] ss:$3 sm:$0xff]
  %s1498 = scalar_lea.vmem %s0, 388
  %v1499 = vld [vmem:[%s1498] ss:$3 sm:$0xff]
  %s1500 = scalar_lea.vmem %s0, 412
  %v1501 = vld [vmem:[%s1500] ss:$3 sm:$0xff]
  %s1502 = scalar_lea.vmem %s0, 436
  %v1503 = vld [vmem:[%s1502] ss:$3 sm:$0xff]
  %s1504 = scalar_lea.vmem %s0, 460
  %v1505 = vld [vmem:[%s1504] ss:$3 sm:$0xff]
  %s1506 = scalar_lea.vmem %s0, 484
  %v1507 = vld [vmem:[%s1506] ss:$3 sm:$0xff]
  %s1508 = scalar_lea.vmem %s0, 508
  %v1509 = vld [vmem:[%s1508] ss:$3 sm:$0xff]
  %s1510 = scalar_lea.vmem %s0, 532
  %v1511 = vld [vmem:[%s1510] ss:$3 sm:$0xff]
  %s1512 = scalar_lea.vmem %s0, 556
  %v1513 = vld [vmem:[%s1512] ss:$3 sm:$0xff]
  %s1514 = scalar_lea.vmem %s0, 580
  %v1515 = vld [vmem:[%s1514] ss:$3 sm:$0xff]
  %s1516 = scalar_lea.vmem %s0, 604
  %v1517 = vld [vmem:[%s1516] ss:$3 sm:$0xff]
  %s1518 = scalar_lea.vmem %s0, 628
  %v1519 = vld [vmem:[%s1518] ss:$3 sm:$0xff]
  %s1520 = scalar_lea.vmem %s0, 652
  %v1521 = vld [vmem:[%s1520] ss:$3 sm:$0xff]
  %s1522 = scalar_lea.vmem %s0, 676
  %v1523 = vld [vmem:[%s1522] ss:$3 sm:$0xff]
  %s1524 = scalar_lea.vmem %s0, 700
  %v1525 = vld [vmem:[%s1524] ss:$3 sm:$0xff]
  %s1526 = scalar_lea.vmem %s0, 724
  %v1527 = vld [vmem:[%s1526] ss:$3 sm:$0xff]
  %s1528 = scalar_lea.vmem %s0, 748
  %v1529 = vld [vmem:[%s1528] ss:$3 sm:$0xff]
  %s1530 = scalar_lea.vmem %s0, 772
  %v1531 = vld [vmem:[%s1530] ss:$3 sm:$0xff]
  %s1532 = scalar_lea.vmem %s0, 796
  %v1533 = vld [vmem:[%s1532] ss:$3 sm:$0xff]
  %s1534 = scalar_lea.vmem %s0, 820
  %v1535 = vld [vmem:[%s1534] ss:$3 sm:$0xff]
  %s1536 = scalar_lea.vmem %s0, 844
  %v1537 = vld [vmem:[%s1536] ss:$3 sm:$0xff]
  %s1538 = scalar_lea.vmem %s0, 868
  %v1539 = vld [vmem:[%s1538] ss:$3 sm:$0xff]
  %s1540 = scalar_lea.vmem %s0, 892
  %v1541 = vld [vmem:[%s1540] ss:$3 sm:$0xff]
  %s1542 = scalar_lea.vmem %s0, 916
  %v1543 = vld [vmem:[%s1542] ss:$3 sm:$0xff]
  %s1544 = scalar_lea.vmem %s0, 940
  %v1545 = vld [vmem:[%s1544] ss:$3 sm:$0xff]
  %s1546 = scalar_lea.vmem %s0, 964
  %v1547 = vld [vmem:[%s1546] ss:$3 sm:$0xff]
  %s1548 = scalar_lea.vmem %s0, 988
  %v1549 = vld [vmem:[%s1548] ss:$3 sm:$0xff]
  %s1550 = scalar_lea.vmem %s0, 1012
  %v1551 = vld [vmem:[%s1550] ss:$3 sm:$0xff]
  %s1552 = scalar_lea.vmem %s0, 1036
  %v1553 = vld [vmem:[%s1552] ss:$3 sm:$0xff]
  %s1554 = scalar_lea.vmem %s0, 1060
  %v1555 = vld [vmem:[%s1554] ss:$3 sm:$0xff]
  %s1556 = scalar_lea.vmem %s0, 1084
  %v1557 = vld [vmem:[%s1556] ss:$3 sm:$0xff]
  %s1558 = scalar_lea.vmem %s0, 1108
  %v1559 = vld [vmem:[%s1558] ss:$3 sm:$0xff]
  %s1560 = scalar_lea.vmem %s0, 1132
  %v1561 = vld [vmem:[%s1560] ss:$3 sm:$0xff]
  %s1562 = scalar_lea.vmem %s0, 1156
  %v1563 = vld [vmem:[%s1562] ss:$3 sm:$0xff]
  %s1564 = scalar_lea.vmem %s0, 1180
  %v1565 = vld [vmem:[%s1564] ss:$3 sm:$0xff]
  %s1566 = scalar_lea.vmem %s0, 1204
  %v1567 = vld [vmem:[%s1566] ss:$3 sm:$0xff]
  %s1568 = scalar_lea.vmem %s0, 1228
  %v1569 = vld [vmem:[%s1568] ss:$3 sm:$0xff]
  %s1570 = scalar_lea.vmem %s0, 1252
  %v1571 = vld [vmem:[%s1570] ss:$3 sm:$0xff]
  %s1572 = scalar_lea.vmem %s0, 1276
  %v1573 = vld [vmem:[%s1572] ss:$3 sm:$0xff]
  %s1574 = scalar_lea.vmem %s0, 1300
  %v1575 = vld [vmem:[%s1574] ss:$3 sm:$0xff]
  %s1576 = scalar_lea.vmem %s0, 1324
  %v1577 = vld [vmem:[%s1576] ss:$3 sm:$0xff]
  %s1578 = scalar_lea.vmem %s0, 1348
  %v1579 = vld [vmem:[%s1578] ss:$3 sm:$0xff]
  %s1580 = scalar_lea.vmem %s0, 1372
  %v1581 = vld [vmem:[%s1580] ss:$3 sm:$0xff]
  %s1582 = scalar_lea.vmem %s0, 1396
  %v1583 = vld [vmem:[%s1582] ss:$3 sm:$0xff]
  %s1584 = scalar_lea.vmem %s0, 1420
  %v1585 = vld [vmem:[%s1584] ss:$3 sm:$0xff]
  %s1586 = scalar_lea.vmem %s0, 1444
  %v1587 = vld [vmem:[%s1586] ss:$3 sm:$0xff]
  %s1588 = scalar_lea.vmem %s0, 1468
  %v1589 = vld [vmem:[%s1588] ss:$3 sm:$0xff]
  %s1590 = scalar_lea.vmem %s0, 1492
  %v1591 = vld [vmem:[%s1590] ss:$3 sm:$0xff]
  %s1592 = scalar_lea.vmem %s0, 1516
  %v1593 = vld [vmem:[%s1592] ss:$3 sm:$0xff]
  %s1594 = scalar_lea.vmem %s0, 1540
  %v1595 = vld [vmem:[%s1594] ss:$3 sm:$0xff]
  %s1596 = scalar_lea.vmem %s0, 1564
  %v1597 = vld [vmem:[%s1596] ss:$3 sm:$0xff]
  %s1598 = scalar_lea.vmem %s0, 1588
  %v1599 = vld [vmem:[%s1598] ss:$3 sm:$0xff]
  %s1600 = scalar_lea.vmem %s0, 1612
  %v1601 = vld [vmem:[%s1600] ss:$3 sm:$0xff]
  %s1602 = scalar_lea.vmem %s0, 1636
  %v1603 = vld [vmem:[%s1602] ss:$3 sm:$0xff]
  %s1604 = scalar_lea.vmem %s0, 1660
  %v1605 = vld [vmem:[%s1604] ss:$3 sm:$0xff]
  %s1606 = scalar_lea.vmem %s0, 1684
  %v1607 = vld [vmem:[%s1606] ss:$3 sm:$0xff]
  %s1608 = scalar_lea.vmem %s0, 1708
  %v1609 = vld [vmem:[%s1608] ss:$3 sm:$0xff]
  %s1610 = scalar_lea.vmem %s0, 1732
  %v1611 = vld [vmem:[%s1610] ss:$3 sm:$0xff]
  %s1612 = scalar_lea.vmem %s0, 1756
  %v1613 = vld [vmem:[%s1612] ss:$3 sm:$0xff]
  %s1614 = scalar_lea.vmem %s0, 1780
  %v1615 = vld [vmem:[%s1614] ss:$3 sm:$0xff]
  %s1616 = scalar_lea.vmem %s0, 1804
  %v1617 = vld [vmem:[%s1616] ss:$3 sm:$0xff]
  %s1618 = scalar_lea.vmem %s0, 1828
  %v1619 = vld [vmem:[%s1618] ss:$3 sm:$0xff]
  %s1620 = scalar_lea.vmem %s0, 1852
  %v1621 = vld [vmem:[%s1620] ss:$3 sm:$0xff]
  %v1623 = vlaneseq
  %v1624 = vshrl.u32 %v1623, 7
  %v1625 = vsub.s32 0, %v1624
  %v1626 = vrot.slane %v1465, %v1625
  %v1628 = vmul.f32 %v991, %v1626
  %v1629 = vmul.f32 %v993, %v1626
  %v1630 = vmul.f32 %v995, %v1626
  %v1631 = vmul.f32 %v997, %v1626
  %v1632 = vmul.f32 %v999, %v1626
  %v1633 = vmul.f32 %v1001, %v1626
  %v1634 = vmul.f32 %v1003, %v1626
  %v1635 = vmul.f32 %v1005, %v1626
  %v1636 = vmul.f32 %v1007, %v1626
  %v1637 = vmul.f32 %v1009, %v1626
  %v1638 = vmul.f32 %v1011, %v1626
  %v1639 = vmul.f32 %v1013, %v1626
  %v1640 = vmul.f32 %v1015, %v1626
  %v1641 = vmul.f32 %v1017, %v1626
  %v1642 = vmul.f32 %v1019, %v1626
  %v1643 = vmul.f32 %v1021, %v1626
  %v1644 = vmul.f32 %v1023, %v1626
  %v1645 = vmul.f32 %v1025, %v1626
  %v1646 = vmul.f32 %v1027, %v1626
  %v1647 = vmul.f32 %v1029, %v1626
  %v1648 = vmul.f32 %v1031, %v1626
  %v1649 = vmul.f32 %v1033, %v1626
  %v1650 = vmul.f32 %v1035, %v1626
  %v1651 = vmul.f32 %v1037, %v1626
  %v1652 = vmul.f32 %v1039, %v1626
  %v1653 = vmul.f32 %v1041, %v1626
  %v1654 = vmul.f32 %v1043, %v1626
  %v1655 = vmul.f32 %v1045, %v1626
  %v1656 = vmul.f32 %v1047, %v1626
  %v1657 = vmul.f32 %v1049, %v1626
  %v1658 = vmul.f32 %v1051, %v1626
  %v1659 = vmul.f32 %v1053, %v1626
  %v1660 = vmul.f32 %v1055, %v1626
  %v1661 = vmul.f32 %v1057, %v1626
  %v1662 = vmul.f32 %v1059, %v1626
  %v1663 = vmul.f32 %v1061, %v1626
  %v1664 = vmul.f32 %v1063, %v1626
  %v1665 = vmul.f32 %v1065, %v1626
  %v1666 = vmul.f32 %v1067, %v1626
  %v1667 = vmul.f32 %v1069, %v1626
  %v1668 = vmul.f32 %v1071, %v1626
  %v1669 = vmul.f32 %v1073, %v1626
  %v1670 = vmul.f32 %v1075, %v1626
  %v1671 = vmul.f32 %v1077, %v1626
  %v1672 = vmul.f32 %v1079, %v1626
  %v1673 = vmul.f32 %v1081, %v1626
  %v1674 = vmul.f32 %v1083, %v1626
  %v1675 = vmul.f32 %v1085, %v1626
  %v1676 = vmul.f32 %v1087, %v1626
  %v1677 = vmul.f32 %v1089, %v1626
  %v1678 = vmul.f32 %v1091, %v1626
  %v1679 = vmul.f32 %v1093, %v1626
  %v1680 = vmul.f32 %v1095, %v1626
  %v1681 = vmul.f32 %v1097, %v1626
  %v1682 = vmul.f32 %v1099, %v1626
  %v1683 = vmul.f32 %v1101, %v1626
  %v1684 = vmul.f32 %v1103, %v1626
  %v1685 = vmul.f32 %v1105, %v1626
  %v1686 = vmul.f32 %v1107, %v1626
  %v1687 = vmul.f32 %v1109, %v1626
  %v1688 = vmul.f32 %v1111, %v1626
  %v1689 = vmul.f32 %v1113, %v1626
  %v1690 = vmul.f32 %v1115, %v1626
  %v1691 = vmul.f32 %v1117, %v1626
  %v1692 = vmul.f32 %v1119, %v1626
  %v1693 = vmul.f32 %v1121, %v1626
  %v1694 = vmul.f32 %v1123, %v1626
  %v1695 = vmul.f32 %v1125, %v1626
  %v1696 = vmul.f32 %v1127, %v1626
  %v1697 = vmul.f32 %v1129, %v1626
  %v1698 = vmul.f32 %v1131, %v1626
  %v1699 = vmul.f32 %v1133, %v1626
  %v1700 = vmul.f32 %v1135, %v1626
  %v1701 = vmul.f32 %v1137, %v1626
  %v1702 = vmul.f32 %v1139, %v1626
  %v1703 = vmul.f32 %v1141, %v1626
  %v1704 = vmul.f32 %v1143, %v1626
  %v1705 = vmul.f32 %v1145, %v1626
  %v1706 = vadd.f32 %v1230, %v1628
  %v1707 = vadd.f32 %v1231, %v1629
  %v1708 = vadd.f32 %v1232, %v1630
  %v1709 = vadd.f32 %v1233, %v1631
  %v1710 = vadd.f32 %v1234, %v1632
  %v1711 = vadd.f32 %v1235, %v1633
  %v1712 = vadd.f32 %v1236, %v1634
  %v1713 = vadd.f32 %v1237, %v1635
  %v1714 = vadd.f32 %v1238, %v1636
  %v1715 = vadd.f32 %v1239, %v1637
  %v1716 = vadd.f32 %v1240, %v1638
  %v1717 = vadd.f32 %v1241, %v1639
  %v1718 = vadd.f32 %v1242, %v1640
  %v1719 = vadd.f32 %v1243, %v1641
  %v1720 = vadd.f32 %v1244, %v1642
  %v1721 = vadd.f32 %v1245, %v1643
  %v1722 = vadd.f32 %v1246, %v1644
  %v1723 = vadd.f32 %v1247, %v1645
  %v1724 = vadd.f32 %v1248, %v1646
  %v1725 = vadd.f32 %v1249, %v1647
  %v1726 = vadd.f32 %v1250, %v1648
  %v1727 = vadd.f32 %v1251, %v1649
  %v1728 = vadd.f32 %v1252, %v1650
  %v1729 = vadd.f32 %v1253, %v1651
  %v1730 = vadd.f32 %v1254, %v1652
  %v1731 = vadd.f32 %v1255, %v1653
  %v1732 = vadd.f32 %v1256, %v1654
  %v1733 = vadd.f32 %v1257, %v1655
  %v1734 = vadd.f32 %v1258, %v1656
  %v1735 = vadd.f32 %v1259, %v1657
  %v1736 = vadd.f32 %v1260, %v1658
  %v1737 = vadd.f32 %v1261, %v1659
  %v1738 = vadd.f32 %v1262, %v1660
  %v1739 = vadd.f32 %v1263, %v1661
  %v1740 = vadd.f32 %v1264, %v1662
  %v1741 = vadd.f32 %v1265, %v1663
  %v1742 = vadd.f32 %v1266, %v1664
  %v1743 = vadd.f32 %v1267, %v1665
  %v1744 = vadd.f32 %v1268, %v1666
  %v1745 = vadd.f32 %v1269, %v1667
  %v1746 = vadd.f32 %v1270, %v1668
  %v1747 = vadd.f32 %v1271, %v1669
  %v1748 = vadd.f32 %v1272, %v1670
  %v1749 = vadd.f32 %v1273, %v1671
  %v1750 = vadd.f32 %v1274, %v1672
  %v1751 = vadd.f32 %v1275, %v1673
  %v1752 = vadd.f32 %v1276, %v1674
  %v1753 = vadd.f32 %v1277, %v1675
  %v1754 = vadd.f32 %v1278, %v1676
  %v1755 = vadd.f32 %v1279, %v1677
  %v1756 = vadd.f32 %v1280, %v1678
  %v1757 = vadd.f32 %v1281, %v1679
  %v1758 = vadd.f32 %v1282, %v1680
  %v1759 = vadd.f32 %v1283, %v1681
  %v1760 = vadd.f32 %v1284, %v1682
  %v1761 = vadd.f32 %v1285, %v1683
  %v1762 = vadd.f32 %v1286, %v1684
  %v1763 = vadd.f32 %v1287, %v1685
  %v1764 = vadd.f32 %v1288, %v1686
  %v1765 = vadd.f32 %v1289, %v1687
  %v1766 = vadd.f32 %v1290, %v1688
  %v1767 = vadd.f32 %v1291, %v1689
  %v1768 = vadd.f32 %v1292, %v1690
  %v1769 = vadd.f32 %v1293, %v1691
  %v1770 = vadd.f32 %v1294, %v1692
  %v1771 = vadd.f32 %v1295, %v1693
  %v1772 = vadd.f32 %v1296, %v1694
  %v1773 = vadd.f32 %v1297, %v1695
  %v1774 = vadd.f32 %v1298, %v1696
  %v1775 = vadd.f32 %v1299, %v1697
  %v1776 = vadd.f32 %v1300, %v1698
  %v1777 = vadd.f32 %v1301, %v1699
  %v1778 = vadd.f32 %v1302, %v1700
  %v1779 = vadd.f32 %v1303, %v1701
  %v1780 = vadd.f32 %v1304, %v1702
  %v1781 = vadd.f32 %v1305, %v1703
  %v1782 = vadd.f32 %v1306, %v1704
  %v1783 = vadd.f32 %v1307, %v1705
  %v1784 = vmul.f32 %v1467, %v1626
  %v1785 = vmul.f32 %v1469, %v1626
  %v1786 = vmul.f32 %v1471, %v1626
  %v1787 = vmul.f32 %v1473, %v1626
  %v1788 = vmul.f32 %v1475, %v1626
  %v1789 = vmul.f32 %v1477, %v1626
  %v1790 = vmul.f32 %v1479, %v1626
  %v1791 = vmul.f32 %v1481, %v1626
  %v1792 = vmul.f32 %v1483, %v1626
  %v1793 = vmul.f32 %v1485, %v1626
  %v1794 = vmul.f32 %v1487, %v1626
  %v1795 = vmul.f32 %v1489, %v1626
  %v1796 = vmul.f32 %v1491, %v1626
  %v1797 = vmul.f32 %v1493, %v1626
  %v1798 = vmul.f32 %v1495, %v1626
  %v1799 = vmul.f32 %v1497, %v1626
  %v1800 = vmul.f32 %v1499, %v1626
  %v1801 = vmul.f32 %v1501, %v1626
  %v1802 = vmul.f32 %v1503, %v1626
  %v1803 = vmul.f32 %v1505, %v1626
  %v1804 = vmul.f32 %v1507, %v1626
  %v1805 = vmul.f32 %v1509, %v1626
  %v1806 = vmul.f32 %v1511, %v1626
  %v1807 = vmul.f32 %v1513, %v1626
  %v1808 = vmul.f32 %v1515, %v1626
  %v1809 = vmul.f32 %v1517, %v1626
  %v1810 = vmul.f32 %v1519, %v1626
  %v1811 = vmul.f32 %v1521, %v1626
  %v1812 = vmul.f32 %v1523, %v1626
  %v1813 = vmul.f32 %v1525, %v1626
  %v1814 = vmul.f32 %v1527, %v1626
  %v1815 = vmul.f32 %v1529, %v1626
  %v1816 = vmul.f32 %v1531, %v1626
  %v1817 = vmul.f32 %v1533, %v1626
  %v1818 = vmul.f32 %v1535, %v1626
  %v1819 = vmul.f32 %v1537, %v1626
  %v1820 = vmul.f32 %v1539, %v1626
  %v1821 = vmul.f32 %v1541, %v1626
  %v1822 = vmul.f32 %v1543, %v1626
  %v1823 = vmul.f32 %v1545, %v1626
  %v1824 = vmul.f32 %v1547, %v1626
  %v1825 = vmul.f32 %v1549, %v1626
  %v1826 = vmul.f32 %v1551, %v1626
  %v1827 = vmul.f32 %v1553, %v1626
  %v1828 = vmul.f32 %v1555, %v1626
  %v1829 = vmul.f32 %v1557, %v1626
  %v1830 = vmul.f32 %v1559, %v1626
  %v1831 = vmul.f32 %v1561, %v1626
  %v1832 = vmul.f32 %v1563, %v1626
  %v1833 = vmul.f32 %v1565, %v1626
  %v1834 = vmul.f32 %v1567, %v1626
  %v1835 = vmul.f32 %v1569, %v1626
  %v1836 = vmul.f32 %v1571, %v1626
  %v1837 = vmul.f32 %v1573, %v1626
  %v1838 = vmul.f32 %v1575, %v1626
  %v1839 = vmul.f32 %v1577, %v1626
  %v1840 = vmul.f32 %v1579, %v1626
  %v1841 = vmul.f32 %v1581, %v1626
  %v1842 = vmul.f32 %v1583, %v1626
  %v1843 = vmul.f32 %v1585, %v1626
  %v1844 = vmul.f32 %v1587, %v1626
  %v1845 = vmul.f32 %v1589, %v1626
  %v1846 = vmul.f32 %v1591, %v1626
  %v1847 = vmul.f32 %v1593, %v1626
  %v1848 = vmul.f32 %v1595, %v1626
  %v1849 = vmul.f32 %v1597, %v1626
  %v1850 = vmul.f32 %v1599, %v1626
  %v1851 = vmul.f32 %v1601, %v1626
  %v1852 = vmul.f32 %v1603, %v1626
  %v1853 = vmul.f32 %v1605, %v1626
  %v1854 = vmul.f32 %v1607, %v1626
  %v1855 = vmul.f32 %v1609, %v1626
  %v1856 = vmul.f32 %v1611, %v1626
  %v1857 = vmul.f32 %v1613, %v1626
  %v1858 = vmul.f32 %v1615, %v1626
  %v1859 = vmul.f32 %v1617, %v1626
  %v1860 = vmul.f32 %v1619, %v1626
  %v1861 = vmul.f32 %v1621, %v1626
  %v1862 = vadd.f32 %v1386, %v1784
  %v1863 = vadd.f32 %v1387, %v1785
  %v1864 = vadd.f32 %v1388, %v1786
  %v1865 = vadd.f32 %v1389, %v1787
  %v1866 = vadd.f32 %v1390, %v1788
  %v1867 = vadd.f32 %v1391, %v1789
  %v1868 = vadd.f32 %v1392, %v1790
  %v1869 = vadd.f32 %v1393, %v1791
  %v1870 = vadd.f32 %v1394, %v1792
  %v1871 = vadd.f32 %v1395, %v1793
  %v1872 = vadd.f32 %v1396, %v1794
  %v1873 = vadd.f32 %v1397, %v1795
  %v1874 = vadd.f32 %v1398, %v1796
  %v1875 = vadd.f32 %v1399, %v1797
  %v1876 = vadd.f32 %v1400, %v1798
  %v1877 = vadd.f32 %v1401, %v1799
  %v1878 = vadd.f32 %v1402, %v1800
  %v1879 = vadd.f32 %v1403, %v1801
  %v1880 = vadd.f32 %v1404, %v1802
  %v1881 = vadd.f32 %v1405, %v1803
  %v1882 = vadd.f32 %v1406, %v1804
  %v1883 = vadd.f32 %v1407, %v1805
  %v1884 = vadd.f32 %v1408, %v1806
  %v1885 = vadd.f32 %v1409, %v1807
  %v1886 = vadd.f32 %v1410, %v1808
  %v1887 = vadd.f32 %v1411, %v1809
  %v1888 = vadd.f32 %v1412, %v1810
  %v1889 = vadd.f32 %v1413, %v1811
  %v1890 = vadd.f32 %v1414, %v1812
  %v1891 = vadd.f32 %v1415, %v1813
  %v1892 = vadd.f32 %v1416, %v1814
  %v1893 = vadd.f32 %v1417, %v1815
  %v1894 = vadd.f32 %v1418, %v1816
  %v1895 = vadd.f32 %v1419, %v1817
  %v1896 = vadd.f32 %v1420, %v1818
  %v1897 = vadd.f32 %v1421, %v1819
  %v1898 = vadd.f32 %v1422, %v1820
  %v1899 = vadd.f32 %v1423, %v1821
  %v1900 = vadd.f32 %v1424, %v1822
  %v1901 = vadd.f32 %v1425, %v1823
  %v1902 = vadd.f32 %v1426, %v1824
  %v1903 = vadd.f32 %v1427, %v1825
  %v1904 = vadd.f32 %v1428, %v1826
  %v1905 = vadd.f32 %v1429, %v1827
  %v1906 = vadd.f32 %v1430, %v1828
  %v1907 = vadd.f32 %v1431, %v1829
  %v1908 = vadd.f32 %v1432, %v1830
  %v1909 = vadd.f32 %v1433, %v1831
  %v1910 = vadd.f32 %v1434, %v1832
  %v1911 = vadd.f32 %v1435, %v1833
  %v1912 = vadd.f32 %v1436, %v1834
  %v1913 = vadd.f32 %v1437, %v1835
  %v1914 = vadd.f32 %v1438, %v1836
  %v1915 = vadd.f32 %v1439, %v1837
  %v1916 = vadd.f32 %v1440, %v1838
  %v1917 = vadd.f32 %v1441, %v1839
  %v1918 = vadd.f32 %v1442, %v1840
  %v1919 = vadd.f32 %v1443, %v1841
  %v1920 = vadd.f32 %v1444, %v1842
  %v1921 = vadd.f32 %v1445, %v1843
  %v1922 = vadd.f32 %v1446, %v1844
  %v1923 = vadd.f32 %v1447, %v1845
  %v1924 = vadd.f32 %v1448, %v1846
  %v1925 = vadd.f32 %v1449, %v1847
  %v1926 = vadd.f32 %v1450, %v1848
  %v1927 = vadd.f32 %v1451, %v1849
  %v1928 = vadd.f32 %v1452, %v1850
  %v1929 = vadd.f32 %v1453, %v1851
  %v1930 = vadd.f32 %v1454, %v1852
  %v1931 = vadd.f32 %v1455, %v1853
  %v1932 = vadd.f32 %v1456, %v1854
  %v1933 = vadd.f32 %v1457, %v1855
  %v1934 = vadd.f32 %v1458, %v1856
  %v1935 = vadd.f32 %v1459, %v1857
  %v1936 = vadd.f32 %v1460, %v1858
  %v1937 = vadd.f32 %v1461, %v1859
  %v1938 = vadd.f32 %v1462, %v1860
  %v1939 = vadd.f32 %v1463, %v1861
  %s1940 = scalar_lea.vmem %s1, 4
  %v1941 = vld [vmem:[%s1940] sm:$0x1]
  %s1942 = scalar_lea.vmem %s0, 5
  %v1943 = vld [vmem:[%s1942] ss:$3 sm:$0xff]
  %s1944 = scalar_lea.vmem %s0, 29
  %v1945 = vld [vmem:[%s1944] ss:$3 sm:$0xff]
  %s1946 = scalar_lea.vmem %s0, 53
  %v1947 = vld [vmem:[%s1946] ss:$3 sm:$0xff]
  %s1948 = scalar_lea.vmem %s0, 77
  %v1949 = vld [vmem:[%s1948] ss:$3 sm:$0xff]
  %s1950 = scalar_lea.vmem %s0, 101
  %v1951 = vld [vmem:[%s1950] ss:$3 sm:$0xff]
  %s1952 = scalar_lea.vmem %s0, 125
  %v1953 = vld [vmem:[%s1952] ss:$3 sm:$0xff]
  %s1954 = scalar_lea.vmem %s0, 149
  %v1955 = vld [vmem:[%s1954] ss:$3 sm:$0xff]
  %s1956 = scalar_lea.vmem %s0, 173
  %v1957 = vld [vmem:[%s1956] ss:$3 sm:$0xff]
  %s1958 = scalar_lea.vmem %s0, 197
  %v1959 = vld [vmem:[%s1958] ss:$3 sm:$0xff]
  %s1960 = scalar_lea.vmem %s0, 221
  %v1961 = vld [vmem:[%s1960] ss:$3 sm:$0xff]
  %s1962 = scalar_lea.vmem %s0, 245
  %v1963 = vld [vmem:[%s1962] ss:$3 sm:$0xff]
  %s1964 = scalar_lea.vmem %s0, 269
  %v1965 = vld [vmem:[%s1964] ss:$3 sm:$0xff]
  %s1966 = scalar_lea.vmem %s0, 293
  %v1967 = vld [vmem:[%s1966] ss:$3 sm:$0xff]
  %s1968 = scalar_lea.vmem %s0, 317
  %v1969 = vld [vmem:[%s1968] ss:$3 sm:$0xff]
  %s1970 = scalar_lea.vmem %s0, 341
  %v1971 = vld [vmem:[%s1970] ss:$3 sm:$0xff]
  %s1972 = scalar_lea.vmem %s0, 365
  %v1973 = vld [vmem:[%s1972] ss:$3 sm:$0xff]
  %s1974 = scalar_lea.vmem %s0, 389
  %v1975 = vld [vmem:[%s1974] ss:$3 sm:$0xff]
  %s1976 = scalar_lea.vmem %s0, 413
  %v1977 = vld [vmem:[%s1976] ss:$3 sm:$0xff]
  %s1978 = scalar_lea.vmem %s0, 437
  %v1979 = vld [vmem:[%s1978] ss:$3 sm:$0xff]
  %s1980 = scalar_lea.vmem %s0, 461
  %v1981 = vld [vmem:[%s1980] ss:$3 sm:$0xff]
  %s1982 = scalar_lea.vmem %s0, 485
  %v1983 = vld [vmem:[%s1982] ss:$3 sm:$0xff]
  %s1984 = scalar_lea.vmem %s0, 509
  %v1985 = vld [vmem:[%s1984] ss:$3 sm:$0xff]
  %s1986 = scalar_lea.vmem %s0, 533
  %v1987 = vld [vmem:[%s1986] ss:$3 sm:$0xff]
  %s1988 = scalar_lea.vmem %s0, 557
  %v1989 = vld [vmem:[%s1988] ss:$3 sm:$0xff]
  %s1990 = scalar_lea.vmem %s0, 581
  %v1991 = vld [vmem:[%s1990] ss:$3 sm:$0xff]
  %s1992 = scalar_lea.vmem %s0, 605
  %v1993 = vld [vmem:[%s1992] ss:$3 sm:$0xff]
  %s1994 = scalar_lea.vmem %s0, 629
  %v1995 = vld [vmem:[%s1994] ss:$3 sm:$0xff]
  %s1996 = scalar_lea.vmem %s0, 653
  %v1997 = vld [vmem:[%s1996] ss:$3 sm:$0xff]
  %s1998 = scalar_lea.vmem %s0, 677
  %v1999 = vld [vmem:[%s1998] ss:$3 sm:$0xff]
  %s2000 = scalar_lea.vmem %s0, 701
  %v2001 = vld [vmem:[%s2000] ss:$3 sm:$0xff]
  %s2002 = scalar_lea.vmem %s0, 725
  %v2003 = vld [vmem:[%s2002] ss:$3 sm:$0xff]
  %s2004 = scalar_lea.vmem %s0, 749
  %v2005 = vld [vmem:[%s2004] ss:$3 sm:$0xff]
  %s2006 = scalar_lea.vmem %s0, 773
  %v2007 = vld [vmem:[%s2006] ss:$3 sm:$0xff]
  %s2008 = scalar_lea.vmem %s0, 797
  %v2009 = vld [vmem:[%s2008] ss:$3 sm:$0xff]
  %s2010 = scalar_lea.vmem %s0, 821
  %v2011 = vld [vmem:[%s2010] ss:$3 sm:$0xff]
  %s2012 = scalar_lea.vmem %s0, 845
  %v2013 = vld [vmem:[%s2012] ss:$3 sm:$0xff]
  %s2014 = scalar_lea.vmem %s0, 869
  %v2015 = vld [vmem:[%s2014] ss:$3 sm:$0xff]
  %s2016 = scalar_lea.vmem %s0, 893
  %v2017 = vld [vmem:[%s2016] ss:$3 sm:$0xff]
  %s2018 = scalar_lea.vmem %s0, 917
  %v2019 = vld [vmem:[%s2018] ss:$3 sm:$0xff]
  %s2020 = scalar_lea.vmem %s0, 941
  %v2021 = vld [vmem:[%s2020] ss:$3 sm:$0xff]
  %s2022 = scalar_lea.vmem %s0, 965
  %v2023 = vld [vmem:[%s2022] ss:$3 sm:$0xff]
  %s2024 = scalar_lea.vmem %s0, 989
  %v2025 = vld [vmem:[%s2024] ss:$3 sm:$0xff]
  %s2026 = scalar_lea.vmem %s0, 1013
  %v2027 = vld [vmem:[%s2026] ss:$3 sm:$0xff]
  %s2028 = scalar_lea.vmem %s0, 1037
  %v2029 = vld [vmem:[%s2028] ss:$3 sm:$0xff]
  %s2030 = scalar_lea.vmem %s0, 1061
  %v2031 = vld [vmem:[%s2030] ss:$3 sm:$0xff]
  %s2032 = scalar_lea.vmem %s0, 1085
  %v2033 = vld [vmem:[%s2032] ss:$3 sm:$0xff]
  %s2034 = scalar_lea.vmem %s0, 1109
  %v2035 = vld [vmem:[%s2034] ss:$3 sm:$0xff]
  %s2036 = scalar_lea.vmem %s0, 1133
  %v2037 = vld [vmem:[%s2036] ss:$3 sm:$0xff]
  %s2038 = scalar_lea.vmem %s0, 1157
  %v2039 = vld [vmem:[%s2038] ss:$3 sm:$0xff]
  %s2040 = scalar_lea.vmem %s0, 1181
  %v2041 = vld [vmem:[%s2040] ss:$3 sm:$0xff]
  %s2042 = scalar_lea.vmem %s0, 1205
  %v2043 = vld [vmem:[%s2042] ss:$3 sm:$0xff]
  %s2044 = scalar_lea.vmem %s0, 1229
  %v2045 = vld [vmem:[%s2044] ss:$3 sm:$0xff]
  %s2046 = scalar_lea.vmem %s0, 1253
  %v2047 = vld [vmem:[%s2046] ss:$3 sm:$0xff]
  %s2048 = scalar_lea.vmem %s0, 1277
  %v2049 = vld [vmem:[%s2048] ss:$3 sm:$0xff]
  %s2050 = scalar_lea.vmem %s0, 1301
  %v2051 = vld [vmem:[%s2050] ss:$3 sm:$0xff]
  %s2052 = scalar_lea.vmem %s0, 1325
  %v2053 = vld [vmem:[%s2052] ss:$3 sm:$0xff]
  %s2054 = scalar_lea.vmem %s0, 1349
  %v2055 = vld [vmem:[%s2054] ss:$3 sm:$0xff]
  %s2056 = scalar_lea.vmem %s0, 1373
  %v2057 = vld [vmem:[%s2056] ss:$3 sm:$0xff]
  %s2058 = scalar_lea.vmem %s0, 1397
  %v2059 = vld [vmem:[%s2058] ss:$3 sm:$0xff]
  %s2060 = scalar_lea.vmem %s0, 1421
  %v2061 = vld [vmem:[%s2060] ss:$3 sm:$0xff]
  %s2062 = scalar_lea.vmem %s0, 1445
  %v2063 = vld [vmem:[%s2062] ss:$3 sm:$0xff]
  %s2064 = scalar_lea.vmem %s0, 1469
  %v2065 = vld [vmem:[%s2064] ss:$3 sm:$0xff]
  %s2066 = scalar_lea.vmem %s0, 1493
  %v2067 = vld [vmem:[%s2066] ss:$3 sm:$0xff]
  %s2068 = scalar_lea.vmem %s0, 1517
  %v2069 = vld [vmem:[%s2068] ss:$3 sm:$0xff]
  %s2070 = scalar_lea.vmem %s0, 1541
  %v2071 = vld [vmem:[%s2070] ss:$3 sm:$0xff]
  %s2072 = scalar_lea.vmem %s0, 1565
  %v2073 = vld [vmem:[%s2072] ss:$3 sm:$0xff]
  %s2074 = scalar_lea.vmem %s0, 1589
  %v2075 = vld [vmem:[%s2074] ss:$3 sm:$0xff]
  %s2076 = scalar_lea.vmem %s0, 1613
  %v2077 = vld [vmem:[%s2076] ss:$3 sm:$0xff]
  %s2078 = scalar_lea.vmem %s0, 1637
  %v2079 = vld [vmem:[%s2078] ss:$3 sm:$0xff]
  %s2080 = scalar_lea.vmem %s0, 1661
  %v2081 = vld [vmem:[%s2080] ss:$3 sm:$0xff]
  %s2082 = scalar_lea.vmem %s0, 1685
  %v2083 = vld [vmem:[%s2082] ss:$3 sm:$0xff]
  %s2084 = scalar_lea.vmem %s0, 1709
  %v2085 = vld [vmem:[%s2084] ss:$3 sm:$0xff]
  %s2086 = scalar_lea.vmem %s0, 1733
  %v2087 = vld [vmem:[%s2086] ss:$3 sm:$0xff]
  %s2088 = scalar_lea.vmem %s0, 1757
  %v2089 = vld [vmem:[%s2088] ss:$3 sm:$0xff]
  %s2090 = scalar_lea.vmem %s0, 1781
  %v2091 = vld [vmem:[%s2090] ss:$3 sm:$0xff]
  %s2092 = scalar_lea.vmem %s0, 1805
  %v2093 = vld [vmem:[%s2092] ss:$3 sm:$0xff]
  %s2094 = scalar_lea.vmem %s0, 1829
  %v2095 = vld [vmem:[%s2094] ss:$3 sm:$0xff]
  %s2096 = scalar_lea.vmem %s0, 1853
  %v2097 = vld [vmem:[%s2096] ss:$3 sm:$0xff]
  %v2099 = vlaneseq
  %v2100 = vshrl.u32 %v2099, 7
  %v2101 = vsub.s32 0, %v2100
  %v2102 = vrot.slane %v1941, %v2101
  %v2104 = vmul.f32 %v1467, %v2102
  %v2105 = vmul.f32 %v1469, %v2102
  %v2106 = vmul.f32 %v1471, %v2102
  %v2107 = vmul.f32 %v1473, %v2102
  %v2108 = vmul.f32 %v1475, %v2102
  %v2109 = vmul.f32 %v1477, %v2102
  %v2110 = vmul.f32 %v1479, %v2102
  %v2111 = vmul.f32 %v1481, %v2102
  %v2112 = vmul.f32 %v1483, %v2102
  %v2113 = vmul.f32 %v1485, %v2102
  %v2114 = vmul.f32 %v1487, %v2102
  %v2115 = vmul.f32 %v1489, %v2102
  %v2116 = vmul.f32 %v1491, %v2102
  %v2117 = vmul.f32 %v1493, %v2102
  %v2118 = vmul.f32 %v1495, %v2102
  %v2119 = vmul.f32 %v1497, %v2102
  %v2120 = vmul.f32 %v1499, %v2102
  %v2121 = vmul.f32 %v1501, %v2102
  %v2122 = vmul.f32 %v1503, %v2102
  %v2123 = vmul.f32 %v1505, %v2102
  %v2124 = vmul.f32 %v1507, %v2102
  %v2125 = vmul.f32 %v1509, %v2102
  %v2126 = vmul.f32 %v1511, %v2102
  %v2127 = vmul.f32 %v1513, %v2102
  %v2128 = vmul.f32 %v1515, %v2102
  %v2129 = vmul.f32 %v1517, %v2102
  %v2130 = vmul.f32 %v1519, %v2102
  %v2131 = vmul.f32 %v1521, %v2102
  %v2132 = vmul.f32 %v1523, %v2102
  %v2133 = vmul.f32 %v1525, %v2102
  %v2134 = vmul.f32 %v1527, %v2102
  %v2135 = vmul.f32 %v1529, %v2102
  %v2136 = vmul.f32 %v1531, %v2102
  %v2137 = vmul.f32 %v1533, %v2102
  %v2138 = vmul.f32 %v1535, %v2102
  %v2139 = vmul.f32 %v1537, %v2102
  %v2140 = vmul.f32 %v1539, %v2102
  %v2141 = vmul.f32 %v1541, %v2102
  %v2142 = vmul.f32 %v1543, %v2102
  %v2143 = vmul.f32 %v1545, %v2102
  %v2144 = vmul.f32 %v1547, %v2102
  %v2145 = vmul.f32 %v1549, %v2102
  %v2146 = vmul.f32 %v1551, %v2102
  %v2147 = vmul.f32 %v1553, %v2102
  %v2148 = vmul.f32 %v1555, %v2102
  %v2149 = vmul.f32 %v1557, %v2102
  %v2150 = vmul.f32 %v1559, %v2102
  %v2151 = vmul.f32 %v1561, %v2102
  %v2152 = vmul.f32 %v1563, %v2102
  %v2153 = vmul.f32 %v1565, %v2102
  %v2154 = vmul.f32 %v1567, %v2102
  %v2155 = vmul.f32 %v1569, %v2102
  %v2156 = vmul.f32 %v1571, %v2102
  %v2157 = vmul.f32 %v1573, %v2102
  %v2158 = vmul.f32 %v1575, %v2102
  %v2159 = vmul.f32 %v1577, %v2102
  %v2160 = vmul.f32 %v1579, %v2102
  %v2161 = vmul.f32 %v1581, %v2102
  %v2162 = vmul.f32 %v1583, %v2102
  %v2163 = vmul.f32 %v1585, %v2102
  %v2164 = vmul.f32 %v1587, %v2102
  %v2165 = vmul.f32 %v1589, %v2102
  %v2166 = vmul.f32 %v1591, %v2102
  %v2167 = vmul.f32 %v1593, %v2102
  %v2168 = vmul.f32 %v1595, %v2102
  %v2169 = vmul.f32 %v1597, %v2102
  %v2170 = vmul.f32 %v1599, %v2102
  %v2171 = vmul.f32 %v1601, %v2102
  %v2172 = vmul.f32 %v1603, %v2102
  %v2173 = vmul.f32 %v1605, %v2102
  %v2174 = vmul.f32 %v1607, %v2102
  %v2175 = vmul.f32 %v1609, %v2102
  %v2176 = vmul.f32 %v1611, %v2102
  %v2177 = vmul.f32 %v1613, %v2102
  %v2178 = vmul.f32 %v1615, %v2102
  %v2179 = vmul.f32 %v1617, %v2102
  %v2180 = vmul.f32 %v1619, %v2102
  %v2181 = vmul.f32 %v1621, %v2102
  %v2182 = vadd.f32 %v1706, %v2104
  %v2183 = vadd.f32 %v1707, %v2105
  %v2184 = vadd.f32 %v1708, %v2106
  %v2185 = vadd.f32 %v1709, %v2107
  %v2186 = vadd.f32 %v1710, %v2108
  %v2187 = vadd.f32 %v1711, %v2109
  %v2188 = vadd.f32 %v1712, %v2110
  %v2189 = vadd.f32 %v1713, %v2111
  %v2190 = vadd.f32 %v1714, %v2112
  %v2191 = vadd.f32 %v1715, %v2113
  %v2192 = vadd.f32 %v1716, %v2114
  %v2193 = vadd.f32 %v1717, %v2115
  %v2194 = vadd.f32 %v1718, %v2116
  %v2195 = vadd.f32 %v1719, %v2117
  %v2196 = vadd.f32 %v1720, %v2118
  %v2197 = vadd.f32 %v1721, %v2119
  %v2198 = vadd.f32 %v1722, %v2120
  %v2199 = vadd.f32 %v1723, %v2121
  %v2200 = vadd.f32 %v1724, %v2122
  %v2201 = vadd.f32 %v1725, %v2123
  %v2202 = vadd.f32 %v1726, %v2124
  %v2203 = vadd.f32 %v1727, %v2125
  %v2204 = vadd.f32 %v1728, %v2126
  %v2205 = vadd.f32 %v1729, %v2127
  %v2206 = vadd.f32 %v1730, %v2128
  %v2207 = vadd.f32 %v1731, %v2129
  %v2208 = vadd.f32 %v1732, %v2130
  %v2209 = vadd.f32 %v1733, %v2131
  %v2210 = vadd.f32 %v1734, %v2132
  %v2211 = vadd.f32 %v1735, %v2133
  %v2212 = vadd.f32 %v1736, %v2134
  %v2213 = vadd.f32 %v1737, %v2135
  %v2214 = vadd.f32 %v1738, %v2136
  %v2215 = vadd.f32 %v1739, %v2137
  %v2216 = vadd.f32 %v1740, %v2138
  %v2217 = vadd.f32 %v1741, %v2139
  %v2218 = vadd.f32 %v1742, %v2140
  %v2219 = vadd.f32 %v1743, %v2141
  %v2220 = vadd.f32 %v1744, %v2142
  %v2221 = vadd.f32 %v1745, %v2143
  %v2222 = vadd.f32 %v1746, %v2144
  %v2223 = vadd.f32 %v1747, %v2145
  %v2224 = vadd.f32 %v1748, %v2146
  %v2225 = vadd.f32 %v1749, %v2147
  %v2226 = vadd.f32 %v1750, %v2148
  %v2227 = vadd.f32 %v1751, %v2149
  %v2228 = vadd.f32 %v1752, %v2150
  %v2229 = vadd.f32 %v1753, %v2151
  %v2230 = vadd.f32 %v1754, %v2152
  %v2231 = vadd.f32 %v1755, %v2153
  %v2232 = vadd.f32 %v1756, %v2154
  %v2233 = vadd.f32 %v1757, %v2155
  %v2234 = vadd.f32 %v1758, %v2156
  %v2235 = vadd.f32 %v1759, %v2157
  %v2236 = vadd.f32 %v1760, %v2158
  %v2237 = vadd.f32 %v1761, %v2159
  %v2238 = vadd.f32 %v1762, %v2160
  %v2239 = vadd.f32 %v1763, %v2161
  %v2240 = vadd.f32 %v1764, %v2162
  %v2241 = vadd.f32 %v1765, %v2163
  %v2242 = vadd.f32 %v1766, %v2164
  %v2243 = vadd.f32 %v1767, %v2165
  %v2244 = vadd.f32 %v1768, %v2166
  %v2245 = vadd.f32 %v1769, %v2167
  %v2246 = vadd.f32 %v1770, %v2168
  %v2247 = vadd.f32 %v1771, %v2169
  %v2248 = vadd.f32 %v1772, %v2170
  %v2249 = vadd.f32 %v1773, %v2171
  %v2250 = vadd.f32 %v1774, %v2172
  %v2251 = vadd.f32 %v1775, %v2173
  %v2252 = vadd.f32 %v1776, %v2174
  %v2253 = vadd.f32 %v1777, %v2175
  %v2254 = vadd.f32 %v1778, %v2176
  %v2255 = vadd.f32 %v1779, %v2177
  %v2256 = vadd.f32 %v1780, %v2178
  %v2257 = vadd.f32 %v1781, %v2179
  %v2258 = vadd.f32 %v1782, %v2180
  %v2259 = vadd.f32 %v1783, %v2181
  %v2260 = vmul.f32 %v1943, %v2102
  %v2261 = vmul.f32 %v1945, %v2102
  %v2262 = vmul.f32 %v1947, %v2102
  %v2263 = vmul.f32 %v1949, %v2102
  %v2264 = vmul.f32 %v1951, %v2102
  %v2265 = vmul.f32 %v1953, %v2102
  %v2266 = vmul.f32 %v1955, %v2102
  %v2267 = vmul.f32 %v1957, %v2102
  %v2268 = vmul.f32 %v1959, %v2102
  %v2269 = vmul.f32 %v1961, %v2102
  %v2270 = vmul.f32 %v1963, %v2102
  %v2271 = vmul.f32 %v1965, %v2102
  %v2272 = vmul.f32 %v1967, %v2102
  %v2273 = vmul.f32 %v1969, %v2102
  %v2274 = vmul.f32 %v1971, %v2102
  %v2275 = vmul.f32 %v1973, %v2102
  %v2276 = vmul.f32 %v1975, %v2102
  %v2277 = vmul.f32 %v1977, %v2102
  %v2278 = vmul.f32 %v1979, %v2102
  %v2279 = vmul.f32 %v1981, %v2102
  %v2280 = vmul.f32 %v1983, %v2102
  %v2281 = vmul.f32 %v1985, %v2102
  %v2282 = vmul.f32 %v1987, %v2102
  %v2283 = vmul.f32 %v1989, %v2102
  %v2284 = vmul.f32 %v1991, %v2102
  %v2285 = vmul.f32 %v1993, %v2102
  %v2286 = vmul.f32 %v1995, %v2102
  %v2287 = vmul.f32 %v1997, %v2102
  %v2288 = vmul.f32 %v1999, %v2102
  %v2289 = vmul.f32 %v2001, %v2102
  %v2290 = vmul.f32 %v2003, %v2102
  %v2291 = vmul.f32 %v2005, %v2102
  %v2292 = vmul.f32 %v2007, %v2102
  %v2293 = vmul.f32 %v2009, %v2102
  %v2294 = vmul.f32 %v2011, %v2102
  %v2295 = vmul.f32 %v2013, %v2102
  %v2296 = vmul.f32 %v2015, %v2102
  %v2297 = vmul.f32 %v2017, %v2102
  %v2298 = vmul.f32 %v2019, %v2102
  %v2299 = vmul.f32 %v2021, %v2102
  %v2300 = vmul.f32 %v2023, %v2102
  %v2301 = vmul.f32 %v2025, %v2102
  %v2302 = vmul.f32 %v2027, %v2102
  %v2303 = vmul.f32 %v2029, %v2102
  %v2304 = vmul.f32 %v2031, %v2102
  %v2305 = vmul.f32 %v2033, %v2102
  %v2306 = vmul.f32 %v2035, %v2102
  %v2307 = vmul.f32 %v2037, %v2102
  %v2308 = vmul.f32 %v2039, %v2102
  %v2309 = vmul.f32 %v2041, %v2102
  %v2310 = vmul.f32 %v2043, %v2102
  %v2311 = vmul.f32 %v2045, %v2102
  %v2312 = vmul.f32 %v2047, %v2102
  %v2313 = vmul.f32 %v2049, %v2102
  %v2314 = vmul.f32 %v2051, %v2102
  %v2315 = vmul.f32 %v2053, %v2102
  %v2316 = vmul.f32 %v2055, %v2102
  %v2317 = vmul.f32 %v2057, %v2102
  %v2318 = vmul.f32 %v2059, %v2102
  %v2319 = vmul.f32 %v2061, %v2102
  %v2320 = vmul.f32 %v2063, %v2102
  %v2321 = vmul.f32 %v2065, %v2102
  %v2322 = vmul.f32 %v2067, %v2102
  %v2323 = vmul.f32 %v2069, %v2102
  %v2324 = vmul.f32 %v2071, %v2102
  %v2325 = vmul.f32 %v2073, %v2102
  %v2326 = vmul.f32 %v2075, %v2102
  %v2327 = vmul.f32 %v2077, %v2102
  %v2328 = vmul.f32 %v2079, %v2102
  %v2329 = vmul.f32 %v2081, %v2102
  %v2330 = vmul.f32 %v2083, %v2102
  %v2331 = vmul.f32 %v2085, %v2102
  %v2332 = vmul.f32 %v2087, %v2102
  %v2333 = vmul.f32 %v2089, %v2102
  %v2334 = vmul.f32 %v2091, %v2102
  %v2335 = vmul.f32 %v2093, %v2102
  %v2336 = vmul.f32 %v2095, %v2102
  %v2337 = vmul.f32 %v2097, %v2102
  %v2338 = vadd.f32 %v1862, %v2260
  %v2339 = vadd.f32 %v1863, %v2261
  %v2340 = vadd.f32 %v1864, %v2262
  %v2341 = vadd.f32 %v1865, %v2263
  %v2342 = vadd.f32 %v1866, %v2264
  %v2343 = vadd.f32 %v1867, %v2265
  %v2344 = vadd.f32 %v1868, %v2266
  %v2345 = vadd.f32 %v1869, %v2267
  %v2346 = vadd.f32 %v1870, %v2268
  %v2347 = vadd.f32 %v1871, %v2269
  %v2348 = vadd.f32 %v1872, %v2270
  %v2349 = vadd.f32 %v1873, %v2271
  %v2350 = vadd.f32 %v1874, %v2272
  %v2351 = vadd.f32 %v1875, %v2273
  %v2352 = vadd.f32 %v1876, %v2274
  %v2353 = vadd.f32 %v1877, %v2275
  %v2354 = vadd.f32 %v1878, %v2276
  %v2355 = vadd.f32 %v1879, %v2277
  %v2356 = vadd.f32 %v1880, %v2278
  %v2357 = vadd.f32 %v1881, %v2279
  %v2358 = vadd.f32 %v1882, %v2280
  %v2359 = vadd.f32 %v1883, %v2281
  %v2360 = vadd.f32 %v1884, %v2282
  %v2361 = vadd.f32 %v1885, %v2283
  %v2362 = vadd.f32 %v1886, %v2284
  %v2363 = vadd.f32 %v1887, %v2285
  %v2364 = vadd.f32 %v1888, %v2286
  %v2365 = vadd.f32 %v1889, %v2287
  %v2366 = vadd.f32 %v1890, %v2288
  %v2367 = vadd.f32 %v1891, %v2289
  %v2368 = vadd.f32 %v1892, %v2290
  %v2369 = vadd.f32 %v1893, %v2291
  %v2370 = vadd.f32 %v1894, %v2292
  %v2371 = vadd.f32 %v1895, %v2293
  %v2372 = vadd.f32 %v1896, %v2294
  %v2373 = vadd.f32 %v1897, %v2295
  %v2374 = vadd.f32 %v1898, %v2296
  %v2375 = vadd.f32 %v1899, %v2297
  %v2376 = vadd.f32 %v1900, %v2298
  %v2377 = vadd.f32 %v1901, %v2299
  %v2378 = vadd.f32 %v1902, %v2300
  %v2379 = vadd.f32 %v1903, %v2301
  %v2380 = vadd.f32 %v1904, %v2302
  %v2381 = vadd.f32 %v1905, %v2303
  %v2382 = vadd.f32 %v1906, %v2304
  %v2383 = vadd.f32 %v1907, %v2305
  %v2384 = vadd.f32 %v1908, %v2306
  %v2385 = vadd.f32 %v1909, %v2307
  %v2386 = vadd.f32 %v1910, %v2308
  %v2387 = vadd.f32 %v1911, %v2309
  %v2388 = vadd.f32 %v1912, %v2310
  %v2389 = vadd.f32 %v1913, %v2311
  %v2390 = vadd.f32 %v1914, %v2312
  %v2391 = vadd.f32 %v1915, %v2313
  %v2392 = vadd.f32 %v1916, %v2314
  %v2393 = vadd.f32 %v1917, %v2315
  %v2394 = vadd.f32 %v1918, %v2316
  %v2395 = vadd.f32 %v1919, %v2317
  %v2396 = vadd.f32 %v1920, %v2318
  %v2397 = vadd.f32 %v1921, %v2319
  %v2398 = vadd.f32 %v1922, %v2320
  %v2399 = vadd.f32 %v1923, %v2321
  %v2400 = vadd.f32 %v1924, %v2322
  %v2401 = vadd.f32 %v1925, %v2323
  %v2402 = vadd.f32 %v1926, %v2324
  %v2403 = vadd.f32 %v1927, %v2325
  %v2404 = vadd.f32 %v1928, %v2326
  %v2405 = vadd.f32 %v1929, %v2327
  %v2406 = vadd.f32 %v1930, %v2328
  %v2407 = vadd.f32 %v1931, %v2329
  %v2408 = vadd.f32 %v1932, %v2330
  %v2409 = vadd.f32 %v1933, %v2331
  %v2410 = vadd.f32 %v1934, %v2332
  %v2411 = vadd.f32 %v1935, %v2333
  %v2412 = vadd.f32 %v1936, %v2334
  %v2413 = vadd.f32 %v1937, %v2335
  %v2414 = vadd.f32 %v1938, %v2336
  %v2415 = vadd.f32 %v1939, %v2337
  %s2416 = scalar_lea.vmem %s1, 5
  %v2417 = vld [vmem:[%s2416] sm:$0x1]
  %s2418 = scalar_lea.vmem %s0, 6
  %v2419 = vld [vmem:[%s2418] ss:$3 sm:$0xff]
  %s2420 = scalar_lea.vmem %s0, 30
  %v2421 = vld [vmem:[%s2420] ss:$3 sm:$0xff]
  %s2422 = scalar_lea.vmem %s0, 54
  %v2423 = vld [vmem:[%s2422] ss:$3 sm:$0xff]
  %s2424 = scalar_lea.vmem %s0, 78
  %v2425 = vld [vmem:[%s2424] ss:$3 sm:$0xff]
  %s2426 = scalar_lea.vmem %s0, 102
  %v2427 = vld [vmem:[%s2426] ss:$3 sm:$0xff]
  %s2428 = scalar_lea.vmem %s0, 126
  %v2429 = vld [vmem:[%s2428] ss:$3 sm:$0xff]
  %s2430 = scalar_lea.vmem %s0, 150
  %v2431 = vld [vmem:[%s2430] ss:$3 sm:$0xff]
  %s2432 = scalar_lea.vmem %s0, 174
  %v2433 = vld [vmem:[%s2432] ss:$3 sm:$0xff]
  %s2434 = scalar_lea.vmem %s0, 198
  %v2435 = vld [vmem:[%s2434] ss:$3 sm:$0xff]
  %s2436 = scalar_lea.vmem %s0, 222
  %v2437 = vld [vmem:[%s2436] ss:$3 sm:$0xff]
  %s2438 = scalar_lea.vmem %s0, 246
  %v2439 = vld [vmem:[%s2438] ss:$3 sm:$0xff]
  %s2440 = scalar_lea.vmem %s0, 270
  %v2441 = vld [vmem:[%s2440] ss:$3 sm:$0xff]
  %s2442 = scalar_lea.vmem %s0, 294
  %v2443 = vld [vmem:[%s2442] ss:$3 sm:$0xff]
  %s2444 = scalar_lea.vmem %s0, 318
  %v2445 = vld [vmem:[%s2444] ss:$3 sm:$0xff]
  %s2446 = scalar_lea.vmem %s0, 342
  %v2447 = vld [vmem:[%s2446] ss:$3 sm:$0xff]
  %s2448 = scalar_lea.vmem %s0, 366
  %v2449 = vld [vmem:[%s2448] ss:$3 sm:$0xff]
  %s2450 = scalar_lea.vmem %s0, 390
  %v2451 = vld [vmem:[%s2450] ss:$3 sm:$0xff]
  %s2452 = scalar_lea.vmem %s0, 414
  %v2453 = vld [vmem:[%s2452] ss:$3 sm:$0xff]
  %s2454 = scalar_lea.vmem %s0, 438
  %v2455 = vld [vmem:[%s2454] ss:$3 sm:$0xff]
  %s2456 = scalar_lea.vmem %s0, 462
  %v2457 = vld [vmem:[%s2456] ss:$3 sm:$0xff]
  %s2458 = scalar_lea.vmem %s0, 486
  %v2459 = vld [vmem:[%s2458] ss:$3 sm:$0xff]
  %s2460 = scalar_lea.vmem %s0, 510
  %v2461 = vld [vmem:[%s2460] ss:$3 sm:$0xff]
  %s2462 = scalar_lea.vmem %s0, 534
  %v2463 = vld [vmem:[%s2462] ss:$3 sm:$0xff]
  %s2464 = scalar_lea.vmem %s0, 558
  %v2465 = vld [vmem:[%s2464] ss:$3 sm:$0xff]
  %s2466 = scalar_lea.vmem %s0, 582
  %v2467 = vld [vmem:[%s2466] ss:$3 sm:$0xff]
  %s2468 = scalar_lea.vmem %s0, 606
  %v2469 = vld [vmem:[%s2468] ss:$3 sm:$0xff]
  %s2470 = scalar_lea.vmem %s0, 630
  %v2471 = vld [vmem:[%s2470] ss:$3 sm:$0xff]
  %s2472 = scalar_lea.vmem %s0, 654
  %v2473 = vld [vmem:[%s2472] ss:$3 sm:$0xff]
  %s2474 = scalar_lea.vmem %s0, 678
  %v2475 = vld [vmem:[%s2474] ss:$3 sm:$0xff]
  %s2476 = scalar_lea.vmem %s0, 702
  %v2477 = vld [vmem:[%s2476] ss:$3 sm:$0xff]
  %s2478 = scalar_lea.vmem %s0, 726
  %v2479 = vld [vmem:[%s2478] ss:$3 sm:$0xff]
  %s2480 = scalar_lea.vmem %s0, 750
  %v2481 = vld [vmem:[%s2480] ss:$3 sm:$0xff]
  %s2482 = scalar_lea.vmem %s0, 774
  %v2483 = vld [vmem:[%s2482] ss:$3 sm:$0xff]
  %s2484 = scalar_lea.vmem %s0, 798
  %v2485 = vld [vmem:[%s2484] ss:$3 sm:$0xff]
  %s2486 = scalar_lea.vmem %s0, 822
  %v2487 = vld [vmem:[%s2486] ss:$3 sm:$0xff]
  %s2488 = scalar_lea.vmem %s0, 846
  %v2489 = vld [vmem:[%s2488] ss:$3 sm:$0xff]
  %s2490 = scalar_lea.vmem %s0, 870
  %v2491 = vld [vmem:[%s2490] ss:$3 sm:$0xff]
  %s2492 = scalar_lea.vmem %s0, 894
  %v2493 = vld [vmem:[%s2492] ss:$3 sm:$0xff]
  %s2494 = scalar_lea.vmem %s0, 918
  %v2495 = vld [vmem:[%s2494] ss:$3 sm:$0xff]
  %s2496 = scalar_lea.vmem %s0, 942
  %v2497 = vld [vmem:[%s2496] ss:$3 sm:$0xff]
  %s2498 = scalar_lea.vmem %s0, 966
  %v2499 = vld [vmem:[%s2498] ss:$3 sm:$0xff]
  %s2500 = scalar_lea.vmem %s0, 990
  %v2501 = vld [vmem:[%s2500] ss:$3 sm:$0xff]
  %s2502 = scalar_lea.vmem %s0, 1014
  %v2503 = vld [vmem:[%s2502] ss:$3 sm:$0xff]
  %s2504 = scalar_lea.vmem %s0, 1038
  %v2505 = vld [vmem:[%s2504] ss:$3 sm:$0xff]
  %s2506 = scalar_lea.vmem %s0, 1062
  %v2507 = vld [vmem:[%s2506] ss:$3 sm:$0xff]
  %s2508 = scalar_lea.vmem %s0, 1086
  %v2509 = vld [vmem:[%s2508] ss:$3 sm:$0xff]
  %s2510 = scalar_lea.vmem %s0, 1110
  %v2511 = vld [vmem:[%s2510] ss:$3 sm:$0xff]
  %s2512 = scalar_lea.vmem %s0, 1134
  %v2513 = vld [vmem:[%s2512] ss:$3 sm:$0xff]
  %s2514 = scalar_lea.vmem %s0, 1158
  %v2515 = vld [vmem:[%s2514] ss:$3 sm:$0xff]
  %s2516 = scalar_lea.vmem %s0, 1182
  %v2517 = vld [vmem:[%s2516] ss:$3 sm:$0xff]
  %s2518 = scalar_lea.vmem %s0, 1206
  %v2519 = vld [vmem:[%s2518] ss:$3 sm:$0xff]
  %s2520 = scalar_lea.vmem %s0, 1230
  %v2521 = vld [vmem:[%s2520] ss:$3 sm:$0xff]
  %s2522 = scalar_lea.vmem %s0, 1254
  %v2523 = vld [vmem:[%s2522] ss:$3 sm:$0xff]
  %s2524 = scalar_lea.vmem %s0, 1278
  %v2525 = vld [vmem:[%s2524] ss:$3 sm:$0xff]
  %s2526 = scalar_lea.vmem %s0, 1302
  %v2527 = vld [vmem:[%s2526] ss:$3 sm:$0xff]
  %s2528 = scalar_lea.vmem %s0, 1326
  %v2529 = vld [vmem:[%s2528] ss:$3 sm:$0xff]
  %s2530 = scalar_lea.vmem %s0, 1350
  %v2531 = vld [vmem:[%s2530] ss:$3 sm:$0xff]
  %s2532 = scalar_lea.vmem %s0, 1374
  %v2533 = vld [vmem:[%s2532] ss:$3 sm:$0xff]
  %s2534 = scalar_lea.vmem %s0, 1398
  %v2535 = vld [vmem:[%s2534] ss:$3 sm:$0xff]
  %s2536 = scalar_lea.vmem %s0, 1422
  %v2537 = vld [vmem:[%s2536] ss:$3 sm:$0xff]
  %s2538 = scalar_lea.vmem %s0, 1446
  %v2539 = vld [vmem:[%s2538] ss:$3 sm:$0xff]
  %s2540 = scalar_lea.vmem %s0, 1470
  %v2541 = vld [vmem:[%s2540] ss:$3 sm:$0xff]
  %s2542 = scalar_lea.vmem %s0, 1494
  %v2543 = vld [vmem:[%s2542] ss:$3 sm:$0xff]
  %s2544 = scalar_lea.vmem %s0, 1518
  %v2545 = vld [vmem:[%s2544] ss:$3 sm:$0xff]
  %s2546 = scalar_lea.vmem %s0, 1542
  %v2547 = vld [vmem:[%s2546] ss:$3 sm:$0xff]
  %s2548 = scalar_lea.vmem %s0, 1566
  %v2549 = vld [vmem:[%s2548] ss:$3 sm:$0xff]
  %s2550 = scalar_lea.vmem %s0, 1590
  %v2551 = vld [vmem:[%s2550] ss:$3 sm:$0xff]
  %s2552 = scalar_lea.vmem %s0, 1614
  %v2553 = vld [vmem:[%s2552] ss:$3 sm:$0xff]
  %s2554 = scalar_lea.vmem %s0, 1638
  %v2555 = vld [vmem:[%s2554] ss:$3 sm:$0xff]
  %s2556 = scalar_lea.vmem %s0, 1662
  %v2557 = vld [vmem:[%s2556] ss:$3 sm:$0xff]
  %s2558 = scalar_lea.vmem %s0, 1686
  %v2559 = vld [vmem:[%s2558] ss:$3 sm:$0xff]
  %s2560 = scalar_lea.vmem %s0, 1710
  %v2561 = vld [vmem:[%s2560] ss:$3 sm:$0xff]
  %s2562 = scalar_lea.vmem %s0, 1734
  %v2563 = vld [vmem:[%s2562] ss:$3 sm:$0xff]
  %s2564 = scalar_lea.vmem %s0, 1758
  %v2565 = vld [vmem:[%s2564] ss:$3 sm:$0xff]
  %s2566 = scalar_lea.vmem %s0, 1782
  %v2567 = vld [vmem:[%s2566] ss:$3 sm:$0xff]
  %s2568 = scalar_lea.vmem %s0, 1806
  %v2569 = vld [vmem:[%s2568] ss:$3 sm:$0xff]
  %s2570 = scalar_lea.vmem %s0, 1830
  %v2571 = vld [vmem:[%s2570] ss:$3 sm:$0xff]
  %s2572 = scalar_lea.vmem %s0, 1854
  %v2573 = vld [vmem:[%s2572] ss:$3 sm:$0xff]
  %v2575 = vlaneseq
  %v2576 = vshrl.u32 %v2575, 7
  %v2577 = vsub.s32 0, %v2576
  %v2578 = vrot.slane %v2417, %v2577
  %v2580 = vmul.f32 %v1943, %v2578
  %v2581 = vmul.f32 %v1945, %v2578
  %v2582 = vmul.f32 %v1947, %v2578
  %v2583 = vmul.f32 %v1949, %v2578
  %v2584 = vmul.f32 %v1951, %v2578
  %v2585 = vmul.f32 %v1953, %v2578
  %v2586 = vmul.f32 %v1955, %v2578
  %v2587 = vmul.f32 %v1957, %v2578
  %v2588 = vmul.f32 %v1959, %v2578
  %v2589 = vmul.f32 %v1961, %v2578
  %v2590 = vmul.f32 %v1963, %v2578
  %v2591 = vmul.f32 %v1965, %v2578
  %v2592 = vmul.f32 %v1967, %v2578
  %v2593 = vmul.f32 %v1969, %v2578
  %v2594 = vmul.f32 %v1971, %v2578
  %v2595 = vmul.f32 %v1973, %v2578
  %v2596 = vmul.f32 %v1975, %v2578
  %v2597 = vmul.f32 %v1977, %v2578
  %v2598 = vmul.f32 %v1979, %v2578
  %v2599 = vmul.f32 %v1981, %v2578
  %v2600 = vmul.f32 %v1983, %v2578
  %v2601 = vmul.f32 %v1985, %v2578
  %v2602 = vmul.f32 %v1987, %v2578
  %v2603 = vmul.f32 %v1989, %v2578
  %v2604 = vmul.f32 %v1991, %v2578
  %v2605 = vmul.f32 %v1993, %v2578
  %v2606 = vmul.f32 %v1995, %v2578
  %v2607 = vmul.f32 %v1997, %v2578
  %v2608 = vmul.f32 %v1999, %v2578
  %v2609 = vmul.f32 %v2001, %v2578
  %v2610 = vmul.f32 %v2003, %v2578
  %v2611 = vmul.f32 %v2005, %v2578
  %v2612 = vmul.f32 %v2007, %v2578
  %v2613 = vmul.f32 %v2009, %v2578
  %v2614 = vmul.f32 %v2011, %v2578
  %v2615 = vmul.f32 %v2013, %v2578
  %v2616 = vmul.f32 %v2015, %v2578
  %v2617 = vmul.f32 %v2017, %v2578
  %v2618 = vmul.f32 %v2019, %v2578
  %v2619 = vmul.f32 %v2021, %v2578
  %v2620 = vmul.f32 %v2023, %v2578
  %v2621 = vmul.f32 %v2025, %v2578
  %v2622 = vmul.f32 %v2027, %v2578
  %v2623 = vmul.f32 %v2029, %v2578
  %v2624 = vmul.f32 %v2031, %v2578
  %v2625 = vmul.f32 %v2033, %v2578
  %v2626 = vmul.f32 %v2035, %v2578
  %v2627 = vmul.f32 %v2037, %v2578
  %v2628 = vmul.f32 %v2039, %v2578
  %v2629 = vmul.f32 %v2041, %v2578
  %v2630 = vmul.f32 %v2043, %v2578
  %v2631 = vmul.f32 %v2045, %v2578
  %v2632 = vmul.f32 %v2047, %v2578
  %v2633 = vmul.f32 %v2049, %v2578
  %v2634 = vmul.f32 %v2051, %v2578
  %v2635 = vmul.f32 %v2053, %v2578
  %v2636 = vmul.f32 %v2055, %v2578
  %v2637 = vmul.f32 %v2057, %v2578
  %v2638 = vmul.f32 %v2059, %v2578
  %v2639 = vmul.f32 %v2061, %v2578
  %v2640 = vmul.f32 %v2063, %v2578
  %v2641 = vmul.f32 %v2065, %v2578
  %v2642 = vmul.f32 %v2067, %v2578
  %v2643 = vmul.f32 %v2069, %v2578
  %v2644 = vmul.f32 %v2071, %v2578
  %v2645 = vmul.f32 %v2073, %v2578
  %v2646 = vmul.f32 %v2075, %v2578
  %v2647 = vmul.f32 %v2077, %v2578
  %v2648 = vmul.f32 %v2079, %v2578
  %v2649 = vmul.f32 %v2081, %v2578
  %v2650 = vmul.f32 %v2083, %v2578
  %v2651 = vmul.f32 %v2085, %v2578
  %v2652 = vmul.f32 %v2087, %v2578
  %v2653 = vmul.f32 %v2089, %v2578
  %v2654 = vmul.f32 %v2091, %v2578
  %v2655 = vmul.f32 %v2093, %v2578
  %v2656 = vmul.f32 %v2095, %v2578
  %v2657 = vmul.f32 %v2097, %v2578
  %v2658 = vadd.f32 %v2182, %v2580
  %v2659 = vadd.f32 %v2183, %v2581
  %v2660 = vadd.f32 %v2184, %v2582
  %v2661 = vadd.f32 %v2185, %v2583
  %v2662 = vadd.f32 %v2186, %v2584
  %v2663 = vadd.f32 %v2187, %v2585
  %v2664 = vadd.f32 %v2188, %v2586
  %v2665 = vadd.f32 %v2189, %v2587
  %v2666 = vadd.f32 %v2190, %v2588
  %v2667 = vadd.f32 %v2191, %v2589
  %v2668 = vadd.f32 %v2192, %v2590
  %v2669 = vadd.f32 %v2193, %v2591
  %v2670 = vadd.f32 %v2194, %v2592
  %v2671 = vadd.f32 %v2195, %v2593
  %v2672 = vadd.f32 %v2196, %v2594
  %v2673 = vadd.f32 %v2197, %v2595
  %v2674 = vadd.f32 %v2198, %v2596
  %v2675 = vadd.f32 %v2199, %v2597
  %v2676 = vadd.f32 %v2200, %v2598
  %v2677 = vadd.f32 %v2201, %v2599
  %v2678 = vadd.f32 %v2202, %v2600
  %v2679 = vadd.f32 %v2203, %v2601
  %v2680 = vadd.f32 %v2204, %v2602
  %v2681 = vadd.f32 %v2205, %v2603
  %v2682 = vadd.f32 %v2206, %v2604
  %v2683 = vadd.f32 %v2207, %v2605
  %v2684 = vadd.f32 %v2208, %v2606
  %v2685 = vadd.f32 %v2209, %v2607
  %v2686 = vadd.f32 %v2210, %v2608
  %v2687 = vadd.f32 %v2211, %v2609
  %v2688 = vadd.f32 %v2212, %v2610
  %v2689 = vadd.f32 %v2213, %v2611
  %v2690 = vadd.f32 %v2214, %v2612
  %v2691 = vadd.f32 %v2215, %v2613
  %v2692 = vadd.f32 %v2216, %v2614
  %v2693 = vadd.f32 %v2217, %v2615
  %v2694 = vadd.f32 %v2218, %v2616
  %v2695 = vadd.f32 %v2219, %v2617
  %v2696 = vadd.f32 %v2220, %v2618
  %v2697 = vadd.f32 %v2221, %v2619
  %v2698 = vadd.f32 %v2222, %v2620
  %v2699 = vadd.f32 %v2223, %v2621
  %v2700 = vadd.f32 %v2224, %v2622
  %v2701 = vadd.f32 %v2225, %v2623
  %v2702 = vadd.f32 %v2226, %v2624
  %v2703 = vadd.f32 %v2227, %v2625
  %v2704 = vadd.f32 %v2228, %v2626
  %v2705 = vadd.f32 %v2229, %v2627
  %v2706 = vadd.f32 %v2230, %v2628
  %v2707 = vadd.f32 %v2231, %v2629
  %v2708 = vadd.f32 %v2232, %v2630
  %v2709 = vadd.f32 %v2233, %v2631
  %v2710 = vadd.f32 %v2234, %v2632
  %v2711 = vadd.f32 %v2235, %v2633
  %v2712 = vadd.f32 %v2236, %v2634
  %v2713 = vadd.f32 %v2237, %v2635
  %v2714 = vadd.f32 %v2238, %v2636
  %v2715 = vadd.f32 %v2239, %v2637
  %v2716 = vadd.f32 %v2240, %v2638
  %v2717 = vadd.f32 %v2241, %v2639
  %v2718 = vadd.f32 %v2242, %v2640
  %v2719 = vadd.f32 %v2243, %v2641
  %v2720 = vadd.f32 %v2244, %v2642
  %v2721 = vadd.f32 %v2245, %v2643
  %v2722 = vadd.f32 %v2246, %v2644
  %v2723 = vadd.f32 %v2247, %v2645
  %v2724 = vadd.f32 %v2248, %v2646
  %v2725 = vadd.f32 %v2249, %v2647
  %v2726 = vadd.f32 %v2250, %v2648
  %v2727 = vadd.f32 %v2251, %v2649
  %v2728 = vadd.f32 %v2252, %v2650
  %v2729 = vadd.f32 %v2253, %v2651
  %v2730 = vadd.f32 %v2254, %v2652
  %v2731 = vadd.f32 %v2255, %v2653
  %v2732 = vadd.f32 %v2256, %v2654
  %v2733 = vadd.f32 %v2257, %v2655
  %v2734 = vadd.f32 %v2258, %v2656
  %v2735 = vadd.f32 %v2259, %v2657
  %v2736 = vmul.f32 %v2419, %v2578
  %v2737 = vmul.f32 %v2421, %v2578
  %v2738 = vmul.f32 %v2423, %v2578
  %v2739 = vmul.f32 %v2425, %v2578
  %v2740 = vmul.f32 %v2427, %v2578
  %v2741 = vmul.f32 %v2429, %v2578
  %v2742 = vmul.f32 %v2431, %v2578
  %v2743 = vmul.f32 %v2433, %v2578
  %v2744 = vmul.f32 %v2435, %v2578
  %v2745 = vmul.f32 %v2437, %v2578
  %v2746 = vmul.f32 %v2439, %v2578
  %v2747 = vmul.f32 %v2441, %v2578
  %v2748 = vmul.f32 %v2443, %v2578
  %v2749 = vmul.f32 %v2445, %v2578
  %v2750 = vmul.f32 %v2447, %v2578
  %v2751 = vmul.f32 %v2449, %v2578
  %v2752 = vmul.f32 %v2451, %v2578
  %v2753 = vmul.f32 %v2453, %v2578
  %v2754 = vmul.f32 %v2455, %v2578
  %v2755 = vmul.f32 %v2457, %v2578
  %v2756 = vmul.f32 %v2459, %v2578
  %v2757 = vmul.f32 %v2461, %v2578
  %v2758 = vmul.f32 %v2463, %v2578
  %v2759 = vmul.f32 %v2465, %v2578
  %v2760 = vmul.f32 %v2467, %v2578
  %v2761 = vmul.f32 %v2469, %v2578
  %v2762 = vmul.f32 %v2471, %v2578
  %v2763 = vmul.f32 %v2473, %v2578
  %v2764 = vmul.f32 %v2475, %v2578
  %v2765 = vmul.f32 %v2477, %v2578
  %v2766 = vmul.f32 %v2479, %v2578
  %v2767 = vmul.f32 %v2481, %v2578
  %v2768 = vmul.f32 %v2483, %v2578
  %v2769 = vmul.f32 %v2485, %v2578
  %v2770 = vmul.f32 %v2487, %v2578
  %v2771 = vmul.f32 %v2489, %v2578
  %v2772 = vmul.f32 %v2491, %v2578
  %v2773 = vmul.f32 %v2493, %v2578
  %v2774 = vmul.f32 %v2495, %v2578
  %v2775 = vmul.f32 %v2497, %v2578
  %v2776 = vmul.f32 %v2499, %v2578
  %v2777 = vmul.f32 %v2501, %v2578
  %v2778 = vmul.f32 %v2503, %v2578
  %v2779 = vmul.f32 %v2505, %v2578
  %v2780 = vmul.f32 %v2507, %v2578
  %v2781 = vmul.f32 %v2509, %v2578
  %v2782 = vmul.f32 %v2511, %v2578
  %v2783 = vmul.f32 %v2513, %v2578
  %v2784 = vmul.f32 %v2515, %v2578
  %v2785 = vmul.f32 %v2517, %v2578
  %v2786 = vmul.f32 %v2519, %v2578
  %v2787 = vmul.f32 %v2521, %v2578
  %v2788 = vmul.f32 %v2523, %v2578
  %v2789 = vmul.f32 %v2525, %v2578
  %v2790 = vmul.f32 %v2527, %v2578
  %v2791 = vmul.f32 %v2529, %v2578
  %v2792 = vmul.f32 %v2531, %v2578
  %v2793 = vmul.f32 %v2533, %v2578
  %v2794 = vmul.f32 %v2535, %v2578
  %v2795 = vmul.f32 %v2537, %v2578
  %v2796 = vmul.f32 %v2539, %v2578
  %v2797 = vmul.f32 %v2541, %v2578
  %v2798 = vmul.f32 %v2543, %v2578
  %v2799 = vmul.f32 %v2545, %v2578
  %v2800 = vmul.f32 %v2547, %v2578
  %v2801 = vmul.f32 %v2549, %v2578
  %v2802 = vmul.f32 %v2551, %v2578
  %v2803 = vmul.f32 %v2553, %v2578
  %v2804 = vmul.f32 %v2555, %v2578
  %v2805 = vmul.f32 %v2557, %v2578
  %v2806 = vmul.f32 %v2559, %v2578
  %v2807 = vmul.f32 %v2561, %v2578
  %v2808 = vmul.f32 %v2563, %v2578
  %v2809 = vmul.f32 %v2565, %v2578
  %v2810 = vmul.f32 %v2567, %v2578
  %v2811 = vmul.f32 %v2569, %v2578
  %v2812 = vmul.f32 %v2571, %v2578
  %v2813 = vmul.f32 %v2573, %v2578
  %v2814 = vadd.f32 %v2338, %v2736
  %v2815 = vadd.f32 %v2339, %v2737
  %v2816 = vadd.f32 %v2340, %v2738
  %v2817 = vadd.f32 %v2341, %v2739
  %v2818 = vadd.f32 %v2342, %v2740
  %v2819 = vadd.f32 %v2343, %v2741
  %v2820 = vadd.f32 %v2344, %v2742
  %v2821 = vadd.f32 %v2345, %v2743
  %v2822 = vadd.f32 %v2346, %v2744
  %v2823 = vadd.f32 %v2347, %v2745
  %v2824 = vadd.f32 %v2348, %v2746
  %v2825 = vadd.f32 %v2349, %v2747
  %v2826 = vadd.f32 %v2350, %v2748
  %v2827 = vadd.f32 %v2351, %v2749
  %v2828 = vadd.f32 %v2352, %v2750
  %v2829 = vadd.f32 %v2353, %v2751
  %v2830 = vadd.f32 %v2354, %v2752
  %v2831 = vadd.f32 %v2355, %v2753
  %v2832 = vadd.f32 %v2356, %v2754
  %v2833 = vadd.f32 %v2357, %v2755
  %v2834 = vadd.f32 %v2358, %v2756
  %v2835 = vadd.f32 %v2359, %v2757
  %v2836 = vadd.f32 %v2360, %v2758
  %v2837 = vadd.f32 %v2361, %v2759
  %v2838 = vadd.f32 %v2362, %v2760
  %v2839 = vadd.f32 %v2363, %v2761
  %v2840 = vadd.f32 %v2364, %v2762
  %v2841 = vadd.f32 %v2365, %v2763
  %v2842 = vadd.f32 %v2366, %v2764
  %v2843 = vadd.f32 %v2367, %v2765
  %v2844 = vadd.f32 %v2368, %v2766
  %v2845 = vadd.f32 %v2369, %v2767
  %v2846 = vadd.f32 %v2370, %v2768
  %v2847 = vadd.f32 %v2371, %v2769
  %v2848 = vadd.f32 %v2372, %v2770
  %v2849 = vadd.f32 %v2373, %v2771
  %v2850 = vadd.f32 %v2374, %v2772
  %v2851 = vadd.f32 %v2375, %v2773
  %v2852 = vadd.f32 %v2376, %v2774
  %v2853 = vadd.f32 %v2377, %v2775
  %v2854 = vadd.f32 %v2378, %v2776
  %v2855 = vadd.f32 %v2379, %v2777
  %v2856 = vadd.f32 %v2380, %v2778
  %v2857 = vadd.f32 %v2381, %v2779
  %v2858 = vadd.f32 %v2382, %v2780
  %v2859 = vadd.f32 %v2383, %v2781
  %v2860 = vadd.f32 %v2384, %v2782
  %v2861 = vadd.f32 %v2385, %v2783
  %v2862 = vadd.f32 %v2386, %v2784
  %v2863 = vadd.f32 %v2387, %v2785
  %v2864 = vadd.f32 %v2388, %v2786
  %v2865 = vadd.f32 %v2389, %v2787
  %v2866 = vadd.f32 %v2390, %v2788
  %v2867 = vadd.f32 %v2391, %v2789
  %v2868 = vadd.f32 %v2392, %v2790
  %v2869 = vadd.f32 %v2393, %v2791
  %v2870 = vadd.f32 %v2394, %v2792
  %v2871 = vadd.f32 %v2395, %v2793
  %v2872 = vadd.f32 %v2396, %v2794
  %v2873 = vadd.f32 %v2397, %v2795
  %v2874 = vadd.f32 %v2398, %v2796
  %v2875 = vadd.f32 %v2399, %v2797
  %v2876 = vadd.f32 %v2400, %v2798
  %v2877 = vadd.f32 %v2401, %v2799
  %v2878 = vadd.f32 %v2402, %v2800
  %v2879 = vadd.f32 %v2403, %v2801
  %v2880 = vadd.f32 %v2404, %v2802
  %v2881 = vadd.f32 %v2405, %v2803
  %v2882 = vadd.f32 %v2406, %v2804
  %v2883 = vadd.f32 %v2407, %v2805
  %v2884 = vadd.f32 %v2408, %v2806
  %v2885 = vadd.f32 %v2409, %v2807
  %v2886 = vadd.f32 %v2410, %v2808
  %v2887 = vadd.f32 %v2411, %v2809
  %v2888 = vadd.f32 %v2412, %v2810
  %v2889 = vadd.f32 %v2413, %v2811
  %v2890 = vadd.f32 %v2414, %v2812
  %v2891 = vadd.f32 %v2415, %v2813
  %s2892 = scalar_lea.vmem %s1, 6
  %v2893 = vld [vmem:[%s2892] sm:$0x1]
  %s2894 = scalar_lea.vmem %s0, 7
  %v2895 = vld [vmem:[%s2894] ss:$3 sm:$0xff]
  %s2896 = scalar_lea.vmem %s0, 31
  %v2897 = vld [vmem:[%s2896] ss:$3 sm:$0xff]
  %s2898 = scalar_lea.vmem %s0, 55
  %v2899 = vld [vmem:[%s2898] ss:$3 sm:$0xff]
  %s2900 = scalar_lea.vmem %s0, 79
  %v2901 = vld [vmem:[%s2900] ss:$3 sm:$0xff]
  %s2902 = scalar_lea.vmem %s0, 103
  %v2903 = vld [vmem:[%s2902] ss:$3 sm:$0xff]
  %s2904 = scalar_lea.vmem %s0, 127
  %v2905 = vld [vmem:[%s2904] ss:$3 sm:$0xff]
  %s2906 = scalar_lea.vmem %s0, 151
  %v2907 = vld [vmem:[%s2906] ss:$3 sm:$0xff]
  %s2908 = scalar_lea.vmem %s0, 175
  %v2909 = vld [vmem:[%s2908] ss:$3 sm:$0xff]
  %s2910 = scalar_lea.vmem %s0, 199
  %v2911 = vld [vmem:[%s2910] ss:$3 sm:$0xff]
  %s2912 = scalar_lea.vmem %s0, 223
  %v2913 = vld [vmem:[%s2912] ss:$3 sm:$0xff]
  %s2914 = scalar_lea.vmem %s0, 247
  %v2915 = vld [vmem:[%s2914] ss:$3 sm:$0xff]
  %s2916 = scalar_lea.vmem %s0, 271
  %v2917 = vld [vmem:[%s2916] ss:$3 sm:$0xff]
  %s2918 = scalar_lea.vmem %s0, 295
  %v2919 = vld [vmem:[%s2918] ss:$3 sm:$0xff]
  %s2920 = scalar_lea.vmem %s0, 319
  %v2921 = vld [vmem:[%s2920] ss:$3 sm:$0xff]
  %s2922 = scalar_lea.vmem %s0, 343
  %v2923 = vld [vmem:[%s2922] ss:$3 sm:$0xff]
  %s2924 = scalar_lea.vmem %s0, 367
  %v2925 = vld [vmem:[%s2924] ss:$3 sm:$0xff]
  %s2926 = scalar_lea.vmem %s0, 391
  %v2927 = vld [vmem:[%s2926] ss:$3 sm:$0xff]
  %s2928 = scalar_lea.vmem %s0, 415
  %v2929 = vld [vmem:[%s2928] ss:$3 sm:$0xff]
  %s2930 = scalar_lea.vmem %s0, 439
  %v2931 = vld [vmem:[%s2930] ss:$3 sm:$0xff]
  %s2932 = scalar_lea.vmem %s0, 463
  %v2933 = vld [vmem:[%s2932] ss:$3 sm:$0xff]
  %s2934 = scalar_lea.vmem %s0, 487
  %v2935 = vld [vmem:[%s2934] ss:$3 sm:$0xff]
  %s2936 = scalar_lea.vmem %s0, 511
  %v2937 = vld [vmem:[%s2936] ss:$3 sm:$0xff]
  %s2938 = scalar_lea.vmem %s0, 535
  %v2939 = vld [vmem:[%s2938] ss:$3 sm:$0xff]
  %s2940 = scalar_lea.vmem %s0, 559
  %v2941 = vld [vmem:[%s2940] ss:$3 sm:$0xff]
  %s2942 = scalar_lea.vmem %s0, 583
  %v2943 = vld [vmem:[%s2942] ss:$3 sm:$0xff]
  %s2944 = scalar_lea.vmem %s0, 607
  %v2945 = vld [vmem:[%s2944] ss:$3 sm:$0xff]
  %s2946 = scalar_lea.vmem %s0, 631
  %v2947 = vld [vmem:[%s2946] ss:$3 sm:$0xff]
  %s2948 = scalar_lea.vmem %s0, 655
  %v2949 = vld [vmem:[%s2948] ss:$3 sm:$0xff]
  %s2950 = scalar_lea.vmem %s0, 679
  %v2951 = vld [vmem:[%s2950] ss:$3 sm:$0xff]
  %s2952 = scalar_lea.vmem %s0, 703
  %v2953 = vld [vmem:[%s2952] ss:$3 sm:$0xff]
  %s2954 = scalar_lea.vmem %s0, 727
  %v2955 = vld [vmem:[%s2954] ss:$3 sm:$0xff]
  %s2956 = scalar_lea.vmem %s0, 751
  %v2957 = vld [vmem:[%s2956] ss:$3 sm:$0xff]
  %s2958 = scalar_lea.vmem %s0, 775
  %v2959 = vld [vmem:[%s2958] ss:$3 sm:$0xff]
  %s2960 = scalar_lea.vmem %s0, 799
  %v2961 = vld [vmem:[%s2960] ss:$3 sm:$0xff]
  %s2962 = scalar_lea.vmem %s0, 823
  %v2963 = vld [vmem:[%s2962] ss:$3 sm:$0xff]
  %s2964 = scalar_lea.vmem %s0, 847
  %v2965 = vld [vmem:[%s2964] ss:$3 sm:$0xff]
  %s2966 = scalar_lea.vmem %s0, 871
  %v2967 = vld [vmem:[%s2966] ss:$3 sm:$0xff]
  %s2968 = scalar_lea.vmem %s0, 895
  %v2969 = vld [vmem:[%s2968] ss:$3 sm:$0xff]
  %s2970 = scalar_lea.vmem %s0, 919
  %v2971 = vld [vmem:[%s2970] ss:$3 sm:$0xff]
  %s2972 = scalar_lea.vmem %s0, 943
  %v2973 = vld [vmem:[%s2972] ss:$3 sm:$0xff]
  %s2974 = scalar_lea.vmem %s0, 967
  %v2975 = vld [vmem:[%s2974] ss:$3 sm:$0xff]
  %s2976 = scalar_lea.vmem %s0, 991
  %v2977 = vld [vmem:[%s2976] ss:$3 sm:$0xff]
  %s2978 = scalar_lea.vmem %s0, 1015
  %v2979 = vld [vmem:[%s2978] ss:$3 sm:$0xff]
  %s2980 = scalar_lea.vmem %s0, 1039
  %v2981 = vld [vmem:[%s2980] ss:$3 sm:$0xff]
  %s2982 = scalar_lea.vmem %s0, 1063
  %v2983 = vld [vmem:[%s2982] ss:$3 sm:$0xff]
  %s2984 = scalar_lea.vmem %s0, 1087
  %v2985 = vld [vmem:[%s2984] ss:$3 sm:$0xff]
  %s2986 = scalar_lea.vmem %s0, 1111
  %v2987 = vld [vmem:[%s2986] ss:$3 sm:$0xff]
  %s2988 = scalar_lea.vmem %s0, 1135
  %v2989 = vld [vmem:[%s2988] ss:$3 sm:$0xff]
  %s2990 = scalar_lea.vmem %s0, 1159
  %v2991 = vld [vmem:[%s2990] ss:$3 sm:$0xff]
  %s2992 = scalar_lea.vmem %s0, 1183
  %v2993 = vld [vmem:[%s2992] ss:$3 sm:$0xff]
  %s2994 = scalar_lea.vmem %s0, 1207
  %v2995 = vld [vmem:[%s2994] ss:$3 sm:$0xff]
  %s2996 = scalar_lea.vmem %s0, 1231
  %v2997 = vld [vmem:[%s2996] ss:$3 sm:$0xff]
  %s2998 = scalar_lea.vmem %s0, 1255
  %v2999 = vld [vmem:[%s2998] ss:$3 sm:$0xff]
  %s3000 = scalar_lea.vmem %s0, 1279
  %v3001 = vld [vmem:[%s3000] ss:$3 sm:$0xff]
  %s3002 = scalar_lea.vmem %s0, 1303
  %v3003 = vld [vmem:[%s3002] ss:$3 sm:$0xff]
  %s3004 = scalar_lea.vmem %s0, 1327
  %v3005 = vld [vmem:[%s3004] ss:$3 sm:$0xff]
  %s3006 = scalar_lea.vmem %s0, 1351
  %v3007 = vld [vmem:[%s3006] ss:$3 sm:$0xff]
  %s3008 = scalar_lea.vmem %s0, 1375
  %v3009 = vld [vmem:[%s3008] ss:$3 sm:$0xff]
  %s3010 = scalar_lea.vmem %s0, 1399
  %v3011 = vld [vmem:[%s3010] ss:$3 sm:$0xff]
  %s3012 = scalar_lea.vmem %s0, 1423
  %v3013 = vld [vmem:[%s3012] ss:$3 sm:$0xff]
  %s3014 = scalar_lea.vmem %s0, 1447
  %v3015 = vld [vmem:[%s3014] ss:$3 sm:$0xff]
  %s3016 = scalar_lea.vmem %s0, 1471
  %v3017 = vld [vmem:[%s3016] ss:$3 sm:$0xff]
  %s3018 = scalar_lea.vmem %s0, 1495
  %v3019 = vld [vmem:[%s3018] ss:$3 sm:$0xff]
  %s3020 = scalar_lea.vmem %s0, 1519
  %v3021 = vld [vmem:[%s3020] ss:$3 sm:$0xff]
  %s3022 = scalar_lea.vmem %s0, 1543
  %v3023 = vld [vmem:[%s3022] ss:$3 sm:$0xff]
  %s3024 = scalar_lea.vmem %s0, 1567
  %v3025 = vld [vmem:[%s3024] ss:$3 sm:$0xff]
  %s3026 = scalar_lea.vmem %s0, 1591
  %v3027 = vld [vmem:[%s3026] ss:$3 sm:$0xff]
  %s3028 = scalar_lea.vmem %s0, 1615
  %v3029 = vld [vmem:[%s3028] ss:$3 sm:$0xff]
  %s3030 = scalar_lea.vmem %s0, 1639
  %v3031 = vld [vmem:[%s3030] ss:$3 sm:$0xff]
  %s3032 = scalar_lea.vmem %s0, 1663
  %v3033 = vld [vmem:[%s3032] ss:$3 sm:$0xff]
  %s3034 = scalar_lea.vmem %s0, 1687
  %v3035 = vld [vmem:[%s3034] ss:$3 sm:$0xff]
  %s3036 = scalar_lea.vmem %s0, 1711
  %v3037 = vld [vmem:[%s3036] ss:$3 sm:$0xff]
  %s3038 = scalar_lea.vmem %s0, 1735
  %v3039 = vld [vmem:[%s3038] ss:$3 sm:$0xff]
  %s3040 = scalar_lea.vmem %s0, 1759
  %v3041 = vld [vmem:[%s3040] ss:$3 sm:$0xff]
  %s3042 = scalar_lea.vmem %s0, 1783
  %v3043 = vld [vmem:[%s3042] ss:$3 sm:$0xff]
  %s3044 = scalar_lea.vmem %s0, 1807
  %v3045 = vld [vmem:[%s3044] ss:$3 sm:$0xff]
  %s3046 = scalar_lea.vmem %s0, 1831
  %v3047 = vld [vmem:[%s3046] ss:$3 sm:$0xff]
  %s3048 = scalar_lea.vmem %s0, 1855
  %v3049 = vld [vmem:[%s3048] ss:$3 sm:$0xff]
  %v3051 = vlaneseq
  %v3052 = vshrl.u32 %v3051, 7
  %v3053 = vsub.s32 0, %v3052
  %v3054 = vrot.slane %v2893, %v3053
  %v3056 = vmul.f32 %v2419, %v3054
  %v3057 = vmul.f32 %v2421, %v3054
  %v3058 = vmul.f32 %v2423, %v3054
  %v3059 = vmul.f32 %v2425, %v3054
  %v3060 = vmul.f32 %v2427, %v3054
  %v3061 = vmul.f32 %v2429, %v3054
  %v3062 = vmul.f32 %v2431, %v3054
  %v3063 = vmul.f32 %v2433, %v3054
  %v3064 = vmul.f32 %v2435, %v3054
  %v3065 = vmul.f32 %v2437, %v3054
  %v3066 = vmul.f32 %v2439, %v3054
  %v3067 = vmul.f32 %v2441, %v3054
  %v3068 = vmul.f32 %v2443, %v3054
  %v3069 = vmul.f32 %v2445, %v3054
  %v3070 = vmul.f32 %v2447, %v3054
  %v3071 = vmul.f32 %v2449, %v3054
  %v3072 = vmul.f32 %v2451, %v3054
  %v3073 = vmul.f32 %v2453, %v3054
  %v3074 = vmul.f32 %v2455, %v3054
  %v3075 = vmul.f32 %v2457, %v3054
  %v3076 = vmul.f32 %v2459, %v3054
  %v3077 = vmul.f32 %v2461, %v3054
  %v3078 = vmul.f32 %v2463, %v3054
  %v3079 = vmul.f32 %v2465, %v3054
  %v3080 = vmul.f32 %v2467, %v3054
  %v3081 = vmul.f32 %v2469, %v3054
  %v3082 = vmul.f32 %v2471, %v3054
  %v3083 = vmul.f32 %v2473, %v3054
  %v3084 = vmul.f32 %v2475, %v3054
  %v3085 = vmul.f32 %v2477, %v3054
  %v3086 = vmul.f32 %v2479, %v3054
  %v3087 = vmul.f32 %v2481, %v3054
  %v3088 = vmul.f32 %v2483, %v3054
  %v3089 = vmul.f32 %v2485, %v3054
  %v3090 = vmul.f32 %v2487, %v3054
  %v3091 = vmul.f32 %v2489, %v3054
  %v3092 = vmul.f32 %v2491, %v3054
  %v3093 = vmul.f32 %v2493, %v3054
  %v3094 = vmul.f32 %v2495, %v3054
  %v3095 = vmul.f32 %v2497, %v3054
  %v3096 = vmul.f32 %v2499, %v3054
  %v3097 = vmul.f32 %v2501, %v3054
  %v3098 = vmul.f32 %v2503, %v3054
  %v3099 = vmul.f32 %v2505, %v3054
  %v3100 = vmul.f32 %v2507, %v3054
  %v3101 = vmul.f32 %v2509, %v3054
  %v3102 = vmul.f32 %v2511, %v3054
  %v3103 = vmul.f32 %v2513, %v3054
  %v3104 = vmul.f32 %v2515, %v3054
  %v3105 = vmul.f32 %v2517, %v3054
  %v3106 = vmul.f32 %v2519, %v3054
  %v3107 = vmul.f32 %v2521, %v3054
  %v3108 = vmul.f32 %v2523, %v3054
  %v3109 = vmul.f32 %v2525, %v3054
  %v3110 = vmul.f32 %v2527, %v3054
  %v3111 = vmul.f32 %v2529, %v3054
  %v3112 = vmul.f32 %v2531, %v3054
  %v3113 = vmul.f32 %v2533, %v3054
  %v3114 = vmul.f32 %v2535, %v3054
  %v3115 = vmul.f32 %v2537, %v3054
  %v3116 = vmul.f32 %v2539, %v3054
  %v3117 = vmul.f32 %v2541, %v3054
  %v3118 = vmul.f32 %v2543, %v3054
  %v3119 = vmul.f32 %v2545, %v3054
  %v3120 = vmul.f32 %v2547, %v3054
  %v3121 = vmul.f32 %v2549, %v3054
  %v3122 = vmul.f32 %v2551, %v3054
  %v3123 = vmul.f32 %v2553, %v3054
  %v3124 = vmul.f32 %v2555, %v3054
  %v3125 = vmul.f32 %v2557, %v3054
  %v3126 = vmul.f32 %v2559, %v3054
  %v3127 = vmul.f32 %v2561, %v3054
  %v3128 = vmul.f32 %v2563, %v3054
  %v3129 = vmul.f32 %v2565, %v3054
  %v3130 = vmul.f32 %v2567, %v3054
  %v3131 = vmul.f32 %v2569, %v3054
  %v3132 = vmul.f32 %v2571, %v3054
  %v3133 = vmul.f32 %v2573, %v3054
  %v3134 = vadd.f32 %v2658, %v3056
  %v3135 = vadd.f32 %v2659, %v3057
  %v3136 = vadd.f32 %v2660, %v3058
  %v3137 = vadd.f32 %v2661, %v3059
  %v3138 = vadd.f32 %v2662, %v3060
  %v3139 = vadd.f32 %v2663, %v3061
  %v3140 = vadd.f32 %v2664, %v3062
  %v3141 = vadd.f32 %v2665, %v3063
  %v3142 = vadd.f32 %v2666, %v3064
  %v3143 = vadd.f32 %v2667, %v3065
  %v3144 = vadd.f32 %v2668, %v3066
  %v3145 = vadd.f32 %v2669, %v3067
  %v3146 = vadd.f32 %v2670, %v3068
  %v3147 = vadd.f32 %v2671, %v3069
  %v3148 = vadd.f32 %v2672, %v3070
  %v3149 = vadd.f32 %v2673, %v3071
  %v3150 = vadd.f32 %v2674, %v3072
  %v3151 = vadd.f32 %v2675, %v3073
  %v3152 = vadd.f32 %v2676, %v3074
  %v3153 = vadd.f32 %v2677, %v3075
  %v3154 = vadd.f32 %v2678, %v3076
  %v3155 = vadd.f32 %v2679, %v3077
  %v3156 = vadd.f32 %v2680, %v3078
  %v3157 = vadd.f32 %v2681, %v3079
  %v3158 = vadd.f32 %v2682, %v3080
  %v3159 = vadd.f32 %v2683, %v3081
  %v3160 = vadd.f32 %v2684, %v3082
  %v3161 = vadd.f32 %v2685, %v3083
  %v3162 = vadd.f32 %v2686, %v3084
  %v3163 = vadd.f32 %v2687, %v3085
  %v3164 = vadd.f32 %v2688, %v3086
  %v3165 = vadd.f32 %v2689, %v3087
  %v3166 = vadd.f32 %v2690, %v3088
  %v3167 = vadd.f32 %v2691, %v3089
  %v3168 = vadd.f32 %v2692, %v3090
  %v3169 = vadd.f32 %v2693, %v3091
  %v3170 = vadd.f32 %v2694, %v3092
  %v3171 = vadd.f32 %v2695, %v3093
  %v3172 = vadd.f32 %v2696, %v3094
  %v3173 = vadd.f32 %v2697, %v3095
  %v3174 = vadd.f32 %v2698, %v3096
  %v3175 = vadd.f32 %v2699, %v3097
  %v3176 = vadd.f32 %v2700, %v3098
  %v3177 = vadd.f32 %v2701, %v3099
  %v3178 = vadd.f32 %v2702, %v3100
  %v3179 = vadd.f32 %v2703, %v3101
  %v3180 = vadd.f32 %v2704, %v3102
  %v3181 = vadd.f32 %v2705, %v3103
  %v3182 = vadd.f32 %v2706, %v3104
  %v3183 = vadd.f32 %v2707, %v3105
  %v3184 = vadd.f32 %v2708, %v3106
  %v3185 = vadd.f32 %v2709, %v3107
  %v3186 = vadd.f32 %v2710, %v3108
  %v3187 = vadd.f32 %v2711, %v3109
  %v3188 = vadd.f32 %v2712, %v3110
  %v3189 = vadd.f32 %v2713, %v3111
  %v3190 = vadd.f32 %v2714, %v3112
  %v3191 = vadd.f32 %v2715, %v3113
  %v3192 = vadd.f32 %v2716, %v3114
  %v3193 = vadd.f32 %v2717, %v3115
  %v3194 = vadd.f32 %v2718, %v3116
  %v3195 = vadd.f32 %v2719, %v3117
  %v3196 = vadd.f32 %v2720, %v3118
  %v3197 = vadd.f32 %v2721, %v3119
  %v3198 = vadd.f32 %v2722, %v3120
  %v3199 = vadd.f32 %v2723, %v3121
  %v3200 = vadd.f32 %v2724, %v3122
  %v3201 = vadd.f32 %v2725, %v3123
  %v3202 = vadd.f32 %v2726, %v3124
  %v3203 = vadd.f32 %v2727, %v3125
  %v3204 = vadd.f32 %v2728, %v3126
  %v3205 = vadd.f32 %v2729, %v3127
  %v3206 = vadd.f32 %v2730, %v3128
  %v3207 = vadd.f32 %v2731, %v3129
  %v3208 = vadd.f32 %v2732, %v3130
  %v3209 = vadd.f32 %v2733, %v3131
  %v3210 = vadd.f32 %v2734, %v3132
  %v3211 = vadd.f32 %v2735, %v3133
  %v3212 = vmul.f32 %v2895, %v3054
  %v3213 = vmul.f32 %v2897, %v3054
  %v3214 = vmul.f32 %v2899, %v3054
  %v3215 = vmul.f32 %v2901, %v3054
  %v3216 = vmul.f32 %v2903, %v3054
  %v3217 = vmul.f32 %v2905, %v3054
  %v3218 = vmul.f32 %v2907, %v3054
  %v3219 = vmul.f32 %v2909, %v3054
  %v3220 = vmul.f32 %v2911, %v3054
  %v3221 = vmul.f32 %v2913, %v3054
  %v3222 = vmul.f32 %v2915, %v3054
  %v3223 = vmul.f32 %v2917, %v3054
  %v3224 = vmul.f32 %v2919, %v3054
  %v3225 = vmul.f32 %v2921, %v3054
  %v3226 = vmul.f32 %v2923, %v3054
  %v3227 = vmul.f32 %v2925, %v3054
  %v3228 = vmul.f32 %v2927, %v3054
  %v3229 = vmul.f32 %v2929, %v3054
  %v3230 = vmul.f32 %v2931, %v3054
  %v3231 = vmul.f32 %v2933, %v3054
  %v3232 = vmul.f32 %v2935, %v3054
  %v3233 = vmul.f32 %v2937, %v3054
  %v3234 = vmul.f32 %v2939, %v3054
  %v3235 = vmul.f32 %v2941, %v3054
  %v3236 = vmul.f32 %v2943, %v3054
  %v3237 = vmul.f32 %v2945, %v3054
  %v3238 = vmul.f32 %v2947, %v3054
  %v3239 = vmul.f32 %v2949, %v3054
  %v3240 = vmul.f32 %v2951, %v3054
  %v3241 = vmul.f32 %v2953, %v3054
  %v3242 = vmul.f32 %v2955, %v3054
  %v3243 = vmul.f32 %v2957, %v3054
  %v3244 = vmul.f32 %v2959, %v3054
  %v3245 = vmul.f32 %v2961, %v3054
  %v3246 = vmul.f32 %v2963, %v3054
  %v3247 = vmul.f32 %v2965, %v3054
  %v3248 = vmul.f32 %v2967, %v3054
  %v3249 = vmul.f32 %v2969, %v3054
  %v3250 = vmul.f32 %v2971, %v3054
  %v3251 = vmul.f32 %v2973, %v3054
  %v3252 = vmul.f32 %v2975, %v3054
  %v3253 = vmul.f32 %v2977, %v3054
  %v3254 = vmul.f32 %v2979, %v3054
  %v3255 = vmul.f32 %v2981, %v3054
  %v3256 = vmul.f32 %v2983, %v3054
  %v3257 = vmul.f32 %v2985, %v3054
  %v3258 = vmul.f32 %v2987, %v3054
  %v3259 = vmul.f32 %v2989, %v3054
  %v3260 = vmul.f32 %v2991, %v3054
  %v3261 = vmul.f32 %v2993, %v3054
  %v3262 = vmul.f32 %v2995, %v3054
  %v3263 = vmul.f32 %v2997, %v3054
  %v3264 = vmul.f32 %v2999, %v3054
  %v3265 = vmul.f32 %v3001, %v3054
  %v3266 = vmul.f32 %v3003, %v3054
  %v3267 = vmul.f32 %v3005, %v3054
  %v3268 = vmul.f32 %v3007, %v3054
  %v3269 = vmul.f32 %v3009, %v3054
  %v3270 = vmul.f32 %v3011, %v3054
  %v3271 = vmul.f32 %v3013, %v3054
  %v3272 = vmul.f32 %v3015, %v3054
  %v3273 = vmul.f32 %v3017, %v3054
  %v3274 = vmul.f32 %v3019, %v3054
  %v3275 = vmul.f32 %v3021, %v3054
  %v3276 = vmul.f32 %v3023, %v3054
  %v3277 = vmul.f32 %v3025, %v3054
  %v3278 = vmul.f32 %v3027, %v3054
  %v3279 = vmul.f32 %v3029, %v3054
  %v3280 = vmul.f32 %v3031, %v3054
  %v3281 = vmul.f32 %v3033, %v3054
  %v3282 = vmul.f32 %v3035, %v3054
  %v3283 = vmul.f32 %v3037, %v3054
  %v3284 = vmul.f32 %v3039, %v3054
  %v3285 = vmul.f32 %v3041, %v3054
  %v3286 = vmul.f32 %v3043, %v3054
  %v3287 = vmul.f32 %v3045, %v3054
  %v3288 = vmul.f32 %v3047, %v3054
  %v3289 = vmul.f32 %v3049, %v3054
  %v3290 = vadd.f32 %v2814, %v3212
  %v3291 = vadd.f32 %v2815, %v3213
  %v3292 = vadd.f32 %v2816, %v3214
  %v3293 = vadd.f32 %v2817, %v3215
  %v3294 = vadd.f32 %v2818, %v3216
  %v3295 = vadd.f32 %v2819, %v3217
  %v3296 = vadd.f32 %v2820, %v3218
  %v3297 = vadd.f32 %v2821, %v3219
  %v3298 = vadd.f32 %v2822, %v3220
  %v3299 = vadd.f32 %v2823, %v3221
  %v3300 = vadd.f32 %v2824, %v3222
  %v3301 = vadd.f32 %v2825, %v3223
  %v3302 = vadd.f32 %v2826, %v3224
  %v3303 = vadd.f32 %v2827, %v3225
  %v3304 = vadd.f32 %v2828, %v3226
  %v3305 = vadd.f32 %v2829, %v3227
  %v3306 = vadd.f32 %v2830, %v3228
  %v3307 = vadd.f32 %v2831, %v3229
  %v3308 = vadd.f32 %v2832, %v3230
  %v3309 = vadd.f32 %v2833, %v3231
  %v3310 = vadd.f32 %v2834, %v3232
  %v3311 = vadd.f32 %v2835, %v3233
  %v3312 = vadd.f32 %v2836, %v3234
  %v3313 = vadd.f32 %v2837, %v3235
  %v3314 = vadd.f32 %v2838, %v3236
  %v3315 = vadd.f32 %v2839, %v3237
  %v3316 = vadd.f32 %v2840, %v3238
  %v3317 = vadd.f32 %v2841, %v3239
  %v3318 = vadd.f32 %v2842, %v3240
  %v3319 = vadd.f32 %v2843, %v3241
  %v3320 = vadd.f32 %v2844, %v3242
  %v3321 = vadd.f32 %v2845, %v3243
  %v3322 = vadd.f32 %v2846, %v3244
  %v3323 = vadd.f32 %v2847, %v3245
  %v3324 = vadd.f32 %v2848, %v3246
  %v3325 = vadd.f32 %v2849, %v3247
  %v3326 = vadd.f32 %v2850, %v3248
  %v3327 = vadd.f32 %v2851, %v3249
  %v3328 = vadd.f32 %v2852, %v3250
  %v3329 = vadd.f32 %v2853, %v3251
  %v3330 = vadd.f32 %v2854, %v3252
  %v3331 = vadd.f32 %v2855, %v3253
  %v3332 = vadd.f32 %v2856, %v3254
  %v3333 = vadd.f32 %v2857, %v3255
  %v3334 = vadd.f32 %v2858, %v3256
  %v3335 = vadd.f32 %v2859, %v3257
  %v3336 = vadd.f32 %v2860, %v3258
  %v3337 = vadd.f32 %v2861, %v3259
  %v3338 = vadd.f32 %v2862, %v3260
  %v3339 = vadd.f32 %v2863, %v3261
  %v3340 = vadd.f32 %v2864, %v3262
  %v3341 = vadd.f32 %v2865, %v3263
  %v3342 = vadd.f32 %v2866, %v3264
  %v3343 = vadd.f32 %v2867, %v3265
  %v3344 = vadd.f32 %v2868, %v3266
  %v3345 = vadd.f32 %v2869, %v3267
  %v3346 = vadd.f32 %v2870, %v3268
  %v3347 = vadd.f32 %v2871, %v3269
  %v3348 = vadd.f32 %v2872, %v3270
  %v3349 = vadd.f32 %v2873, %v3271
  %v3350 = vadd.f32 %v2874, %v3272
  %v3351 = vadd.f32 %v2875, %v3273
  %v3352 = vadd.f32 %v2876, %v3274
  %v3353 = vadd.f32 %v2877, %v3275
  %v3354 = vadd.f32 %v2878, %v3276
  %v3355 = vadd.f32 %v2879, %v3277
  %v3356 = vadd.f32 %v2880, %v3278
  %v3357 = vadd.f32 %v2881, %v3279
  %v3358 = vadd.f32 %v2882, %v3280
  %v3359 = vadd.f32 %v2883, %v3281
  %v3360 = vadd.f32 %v2884, %v3282
  %v3361 = vadd.f32 %v2885, %v3283
  %v3362 = vadd.f32 %v2886, %v3284
  %v3363 = vadd.f32 %v2887, %v3285
  %v3364 = vadd.f32 %v2888, %v3286
  %v3365 = vadd.f32 %v2889, %v3287
  %v3366 = vadd.f32 %v2890, %v3288
  %v3367 = vadd.f32 %v2891, %v3289
  %v3368 = vmax.f32 %v3134, %v3290
  %v3369 = vmax.f32 %v3135, %v3291
  %v3370 = vmax.f32 %v3136, %v3292
  %v3371 = vmax.f32 %v3137, %v3293
  %v3372 = vmax.f32 %v3138, %v3294
  %v3373 = vmax.f32 %v3139, %v3295
  %v3374 = vmax.f32 %v3140, %v3296
  %v3375 = vmax.f32 %v3141, %v3297
  %v3376 = vmax.f32 %v3142, %v3298
  %v3377 = vmax.f32 %v3143, %v3299
  %v3378 = vmax.f32 %v3144, %v3300
  %v3379 = vmax.f32 %v3145, %v3301
  %v3380 = vmax.f32 %v3146, %v3302
  %v3381 = vmax.f32 %v3147, %v3303
  %v3382 = vmax.f32 %v3148, %v3304
  %v3383 = vmax.f32 %v3149, %v3305
  %v3384 = vmax.f32 %v3150, %v3306
  %v3385 = vmax.f32 %v3151, %v3307
  %v3386 = vmax.f32 %v3152, %v3308
  %v3387 = vmax.f32 %v3153, %v3309
  %v3388 = vmax.f32 %v3154, %v3310
  %v3389 = vmax.f32 %v3155, %v3311
  %v3390 = vmax.f32 %v3156, %v3312
  %v3391 = vmax.f32 %v3157, %v3313
  %v3392 = vmax.f32 %v3158, %v3314
  %v3393 = vmax.f32 %v3159, %v3315
  %v3394 = vmax.f32 %v3160, %v3316
  %v3395 = vmax.f32 %v3161, %v3317
  %v3396 = vmax.f32 %v3162, %v3318
  %v3397 = vmax.f32 %v3163, %v3319
  %v3398 = vmax.f32 %v3164, %v3320
  %v3399 = vmax.f32 %v3165, %v3321
  %v3400 = vmax.f32 %v3166, %v3322
  %v3401 = vmax.f32 %v3167, %v3323
  %v3402 = vmax.f32 %v3168, %v3324
  %v3403 = vmax.f32 %v3169, %v3325
  %v3404 = vmax.f32 %v3170, %v3326
  %v3405 = vmax.f32 %v3171, %v3327
  %v3406 = vmax.f32 %v3172, %v3328
  %v3407 = vmax.f32 %v3173, %v3329
  %v3408 = vmax.f32 %v3174, %v3330
  %v3409 = vmax.f32 %v3175, %v3331
  %v3410 = vmax.f32 %v3176, %v3332
  %v3411 = vmax.f32 %v3177, %v3333
  %v3412 = vmax.f32 %v3178, %v3334
  %v3413 = vmax.f32 %v3179, %v3335
  %v3414 = vmax.f32 %v3180, %v3336
  %v3415 = vmax.f32 %v3181, %v3337
  %v3416 = vmax.f32 %v3182, %v3338
  %v3417 = vmax.f32 %v3183, %v3339
  %v3418 = vmax.f32 %v3184, %v3340
  %v3419 = vmax.f32 %v3185, %v3341
  %v3420 = vmax.f32 %v3186, %v3342
  %v3421 = vmax.f32 %v3187, %v3343
  %v3422 = vmax.f32 %v3188, %v3344
  %v3423 = vmax.f32 %v3189, %v3345
  %v3424 = vmax.f32 %v3190, %v3346
  %v3425 = vmax.f32 %v3191, %v3347
  %v3426 = vmax.f32 %v3192, %v3348
  %v3427 = vmax.f32 %v3193, %v3349
  %v3428 = vmax.f32 %v3194, %v3350
  %v3429 = vmax.f32 %v3195, %v3351
  %v3430 = vmax.f32 %v3196, %v3352
  %v3431 = vmax.f32 %v3197, %v3353
  %v3432 = vmax.f32 %v3198, %v3354
  %v3433 = vmax.f32 %v3199, %v3355
  %v3434 = vmax.f32 %v3200, %v3356
  %v3435 = vmax.f32 %v3201, %v3357
  %v3436 = vmax.f32 %v3202, %v3358
  %v3437 = vmax.f32 %v3203, %v3359
  %v3438 = vmax.f32 %v3204, %v3360
  %v3439 = vmax.f32 %v3205, %v3361
  %v3440 = vmax.f32 %v3206, %v3362
  %v3441 = vmax.f32 %v3207, %v3363
  %v3442 = vmax.f32 %v3208, %v3364
  %v3443 = vmax.f32 %v3209, %v3365
  %v3444 = vmax.f32 %v3210, %v3366
  %v3445 = vmax.f32 %v3211, %v3367
  %v3446 = vld [vmem:[%s2] sm:$0x1]
  %v3448 = vlaneseq
  %v3449 = vshrl.u32 %v3448, 7
  %v3450 = vsub.s32 0, %v3449
  %v3451 = vrot.slane %v3446, %v3450
  %v3453 = vadd.f32 %v3368, %v3451
  %v3454 = vadd.f32 %v3369, %v3451
  %v3455 = vadd.f32 %v3370, %v3451
  %v3456 = vadd.f32 %v3371, %v3451
  %v3457 = vadd.f32 %v3372, %v3451
  %v3458 = vadd.f32 %v3373, %v3451
  %v3459 = vadd.f32 %v3374, %v3451
  %v3460 = vadd.f32 %v3375, %v3451
  %v3461 = vadd.f32 %v3376, %v3451
  %v3462 = vadd.f32 %v3377, %v3451
  %v3463 = vadd.f32 %v3378, %v3451
  %v3464 = vadd.f32 %v3379, %v3451
  %v3465 = vadd.f32 %v3380, %v3451
  %v3466 = vadd.f32 %v3381, %v3451
  %v3467 = vadd.f32 %v3382, %v3451
  %v3468 = vadd.f32 %v3383, %v3451
  %v3469 = vadd.f32 %v3384, %v3451
  %v3470 = vadd.f32 %v3385, %v3451
  %v3471 = vadd.f32 %v3386, %v3451
  %v3472 = vadd.f32 %v3387, %v3451
  %v3473 = vadd.f32 %v3388, %v3451
  %v3474 = vadd.f32 %v3389, %v3451
  %v3475 = vadd.f32 %v3390, %v3451
  %v3476 = vadd.f32 %v3391, %v3451
  %v3477 = vadd.f32 %v3392, %v3451
  %v3478 = vadd.f32 %v3393, %v3451
  %v3479 = vadd.f32 %v3394, %v3451
  %v3480 = vadd.f32 %v3395, %v3451
  %v3481 = vadd.f32 %v3396, %v3451
  %v3482 = vadd.f32 %v3397, %v3451
  %v3483 = vadd.f32 %v3398, %v3451
  %v3484 = vadd.f32 %v3399, %v3451
  %v3485 = vadd.f32 %v3400, %v3451
  %v3486 = vadd.f32 %v3401, %v3451
  %v3487 = vadd.f32 %v3402, %v3451
  %v3488 = vadd.f32 %v3403, %v3451
  %v3489 = vadd.f32 %v3404, %v3451
  %v3490 = vadd.f32 %v3405, %v3451
  %v3491 = vadd.f32 %v3406, %v3451
  %v3492 = vadd.f32 %v3407, %v3451
  %v3493 = vadd.f32 %v3408, %v3451
  %v3494 = vadd.f32 %v3409, %v3451
  %v3495 = vadd.f32 %v3410, %v3451
  %v3496 = vadd.f32 %v3411, %v3451
  %v3497 = vadd.f32 %v3412, %v3451
  %v3498 = vadd.f32 %v3413, %v3451
  %v3499 = vadd.f32 %v3414, %v3451
  %v3500 = vadd.f32 %v3415, %v3451
  %v3501 = vadd.f32 %v3416, %v3451
  %v3502 = vadd.f32 %v3417, %v3451
  %v3503 = vadd.f32 %v3418, %v3451
  %v3504 = vadd.f32 %v3419, %v3451
  %v3505 = vadd.f32 %v3420, %v3451
  %v3506 = vadd.f32 %v3421, %v3451
  %v3507 = vadd.f32 %v3422, %v3451
  %v3508 = vadd.f32 %v3423, %v3451
  %v3509 = vadd.f32 %v3424, %v3451
  %v3510 = vadd.f32 %v3425, %v3451
  %v3511 = vadd.f32 %v3426, %v3451
  %v3512 = vadd.f32 %v3427, %v3451
  %v3513 = vadd.f32 %v3428, %v3451
  %v3514 = vadd.f32 %v3429, %v3451
  %v3515 = vadd.f32 %v3430, %v3451
  %v3516 = vadd.f32 %v3431, %v3451
  %v3517 = vadd.f32 %v3432, %v3451
  %v3518 = vadd.f32 %v3433, %v3451
  %v3519 = vadd.f32 %v3434, %v3451
  %v3520 = vadd.f32 %v3435, %v3451
  %v3521 = vadd.f32 %v3436, %v3451
  %v3522 = vadd.f32 %v3437, %v3451
  %v3523 = vadd.f32 %v3438, %v3451
  %v3524 = vadd.f32 %v3439, %v3451
  %v3525 = vadd.f32 %v3440, %v3451
  %v3526 = vadd.f32 %v3441, %v3451
  %v3527 = vadd.f32 %v3442, %v3451
  %v3528 = vadd.f32 %v3443, %v3451
  %v3529 = vadd.f32 %v3444, %v3451
  %v3530 = vadd.f32 %v3445, %v3451
  %v3531 = vmax.f32 %v3453, 0.0
  %v3532 = vmax.f32 %v3454, 0.0
  %v3533 = vmax.f32 %v3455, 0.0
  %v3534 = vmax.f32 %v3456, 0.0
  %v3535 = vmax.f32 %v3457, 0.0
  %v3536 = vmax.f32 %v3458, 0.0
  %v3537 = vmax.f32 %v3459, 0.0
  %v3538 = vmax.f32 %v3460, 0.0
  %v3539 = vmax.f32 %v3461, 0.0
  %v3540 = vmax.f32 %v3462, 0.0
  %v3541 = vmax.f32 %v3463, 0.0
  %v3542 = vmax.f32 %v3464, 0.0
  %v3543 = vmax.f32 %v3465, 0.0
  %v3544 = vmax.f32 %v3466, 0.0
  %v3545 = vmax.f32 %v3467, 0.0
  %v3546 = vmax.f32 %v3468, 0.0
  %v3547 = vmax.f32 %v3469, 0.0
  %v3548 = vmax.f32 %v3470, 0.0
  %v3549 = vmax.f32 %v3471, 0.0
  %v3550 = vmax.f32 %v3472, 0.0
  %v3551 = vmax.f32 %v3473, 0.0
  %v3552 = vmax.f32 %v3474, 0.0
  %v3553 = vmax.f32 %v3475, 0.0
  %v3554 = vmax.f32 %v3476, 0.0
  %v3555 = vmax.f32 %v3477, 0.0
  %v3556 = vmax.f32 %v3478, 0.0
  %v3557 = vmax.f32 %v3479, 0.0
  %v3558 = vmax.f32 %v3480, 0.0
  %v3559 = vmax.f32 %v3481, 0.0
  %v3560 = vmax.f32 %v3482, 0.0
  %v3561 = vmax.f32 %v3483, 0.0
  %v3562 = vmax.f32 %v3484, 0.0
  %v3563 = vmax.f32 %v3485, 0.0
  %v3564 = vmax.f32 %v3486, 0.0
  %v3565 = vmax.f32 %v3487, 0.0
  %v3566 = vmax.f32 %v3488, 0.0
  %v3567 = vmax.f32 %v3489, 0.0
  %v3568 = vmax.f32 %v3490, 0.0
  %v3569 = vmax.f32 %v3491, 0.0
  %v3570 = vmax.f32 %v3492, 0.0
  %v3571 = vmax.f32 %v3493, 0.0
  %v3572 = vmax.f32 %v3494, 0.0
  %v3573 = vmax.f32 %v3495, 0.0
  %v3574 = vmax.f32 %v3496, 0.0
  %v3575 = vmax.f32 %v3497, 0.0
  %v3576 = vmax.f32 %v3498, 0.0
  %v3577 = vmax.f32 %v3499, 0.0
  %v3578 = vmax.f32 %v3500, 0.0
  %v3579 = vmax.f32 %v3501, 0.0
  %v3580 = vmax.f32 %v3502, 0.0
  %v3581 = vmax.f32 %v3503, 0.0
  %v3582 = vmax.f32 %v3504, 0.0
  %v3583 = vmax.f32 %v3505, 0.0
  %v3584 = vmax.f32 %v3506, 0.0
  %v3585 = vmax.f32 %v3507, 0.0
  %v3586 = vmax.f32 %v3508, 0.0
  %v3587 = vmax.f32 %v3509, 0.0
  %v3588 = vmax.f32 %v3510, 0.0
  %v3589 = vmax.f32 %v3511, 0.0
  %v3590 = vmax.f32 %v3512, 0.0
  %v3591 = vmax.f32 %v3513, 0.0
  %v3592 = vmax.f32 %v3514, 0.0
  %v3593 = vmax.f32 %v3515, 0.0
  %v3594 = vmax.f32 %v3516, 0.0
  %v3595 = vmax.f32 %v3517, 0.0
  %v3596 = vmax.f32 %v3518, 0.0
  %v3597 = vmax.f32 %v3519, 0.0
  %v3598 = vmax.f32 %v3520, 0.0
  %v3599 = vmax.f32 %v3521, 0.0
  %v3600 = vmax.f32 %v3522, 0.0
  %v3601 = vmax.f32 %v3523, 0.0
  %v3602 = vmax.f32 %v3524, 0.0
  %v3603 = vmax.f32 %v3525, 0.0
  %v3604 = vmax.f32 %v3526, 0.0
  %v3605 = vmax.f32 %v3527, 0.0
  %v3606 = vmax.f32 %v3528, 0.0
  %v3607 = vmax.f32 %v3529, 0.0
  %v3608 = vmax.f32 %v3530, 0.0
  %vm3609 = vcmask 261120
  %3610 = vst.msk [vmem:[#allocation2] sm:$0xff] %vm3609, 0.0
  %3611 = vst.msk [vmem:[#allocation2 + $0x278] sm:$0xff] %vm3609, 0.0
  %3612 = vst.msk [vmem:[#allocation2 + $0x8] sm:$0xff] %vm3609, %v3531
  %3613 = vst.msk [vmem:[#allocation2 + $0x10] sm:$0xff] %vm3609, %v3532
  %3614 = vst.msk [vmem:[#allocation2 + $0x18] sm:$0xff] %vm3609, %v3533
  %3615 = vst.msk [vmem:[#allocation2 + $0x20] sm:$0xff] %vm3609, %v3534
  %3616 = vst.msk [vmem:[#allocation2 + $0x28] sm:$0xff] %vm3609, %v3535
  %3617 = vst.msk [vmem:[#allocation2 + $0x30] sm:$0xff] %vm3609, %v3536
  %3618 = vst.msk [vmem:[#allocation2 + $0x38] sm:$0xff] %vm3609, %v3537
  %3619 = vst.msk [vmem:[#allocation2 + $0x40] sm:$0xff] %vm3609, %v3538
  %3620 = vst.msk [vmem:[#allocation2 + $0x48] sm:$0xff] %vm3609, %v3539
  %3621 = vst.msk [vmem:[#allocation2 + $0x50] sm:$0xff] %vm3609, %v3540
  %3622 = vst.msk [vmem:[#allocation2 + $0x58] sm:$0xff] %vm3609, %v3541
  %3623 = vst.msk [vmem:[#allocation2 + $0x60] sm:$0xff] %vm3609, %v3542
  %3624 = vst.msk [vmem:[#allocation2 + $0x68] sm:$0xff] %vm3609, %v3543
  %3625 = vst.msk [vmem:[#allocation2 + $0x70] sm:$0xff] %vm3609, %v3544
  %3626 = vst.msk [vmem:[#allocation2 + $0x78] sm:$0xff] %vm3609, %v3545
  %3627 = vst.msk [vmem:[#allocation2 + $0x80] sm:$0xff] %vm3609, %v3546
  %3628 = vst.msk [vmem:[#allocation2 + $0x88] sm:$0xff] %vm3609, %v3547
  %3629 = vst.msk [vmem:[#allocation2 + $0x90] sm:$0xff] %vm3609, %v3548
  %3630 = vst.msk [vmem:[#allocation2 + $0x98] sm:$0xff] %vm3609, %v3549
  %3631 = vst.msk [vmem:[#allocation2 + $0xa0] sm:$0xff] %vm3609, %v3550
  %3632 = vst.msk [vmem:[#allocation2 + $0xa8] sm:$0xff] %vm3609, %v3551
  %3633 = vst.msk [vmem:[#allocation2 + $0xb0] sm:$0xff] %vm3609, %v3552
  %3634 = vst.msk [vmem:[#allocation2 + $0xb8] sm:$0xff] %vm3609, %v3553
  %3635 = vst.msk [vmem:[#allocation2 + $0xc0] sm:$0xff] %vm3609, %v3554
  %3636 = vst.msk [vmem:[#allocation2 + $0xc8] sm:$0xff] %vm3609, %v3555
  %3637 = vst.msk [vmem:[#allocation2 + $0xd0] sm:$0xff] %vm3609, %v3556
  %3638 = vst.msk [vmem:[#allocation2 + $0xd8] sm:$0xff] %vm3609, %v3557
  %3639 = vst.msk [vmem:[#allocation2 + $0xe0] sm:$0xff] %vm3609, %v3558
  %3640 = vst.msk [vmem:[#allocation2 + $0xe8] sm:$0xff] %vm3609, %v3559
  %3641 = vst.msk [vmem:[#allocation2 + $0xf0] sm:$0xff] %vm3609, %v3560
  %3642 = vst.msk [vmem:[#allocation2 + $0xf8] sm:$0xff] %vm3609, %v3561
  %3643 = vst.msk [vmem:[#allocation2 + $0x100] sm:$0xff] %vm3609, %v3562
  %3644 = vst.msk [vmem:[#allocation2 + $0x108] sm:$0xff] %vm3609, %v3563
  %3645 = vst.msk [vmem:[#allocation2 + $0x110] sm:$0xff] %vm3609, %v3564
  %3646 = vst.msk [vmem:[#allocation2 + $0x118] sm:$0xff] %vm3609, %v3565
  %3647 = vst.msk [vmem:[#allocation2 + $0x120] sm:$0xff] %vm3609, %v3566
  %3648 = vst.msk [vmem:[#allocation2 + $0x128] sm:$0xff] %vm3609, %v3567
  %3649 = vst.msk [vmem:[#allocation2 + $0x130] sm:$0xff] %vm3609, %v3568
  %3650 = vst.msk [vmem:[#allocation2 + $0x138] sm:$0xff] %vm3609, %v3569
  %3651 = vst.msk [vmem:[#allocation2 + $0x140] sm:$0xff] %vm3609, %v3570
  %3652 = vst.msk [vmem:[#allocation2 + $0x148] sm:$0xff] %vm3609, %v3571
  %3653 = vst.msk [vmem:[#allocation2 + $0x150] sm:$0xff] %vm3609, %v3572
  %3654 = vst.msk [vmem:[#allocation2 + $0x158] sm:$0xff] %vm3609, %v3573
  %3655 = vst.msk [vmem:[#allocation2 + $0x160] sm:$0xff] %vm3609, %v3574
  %3656 = vst.msk [vmem:[#allocation2 + $0x168] sm:$0xff] %vm3609, %v3575
  %3657 = vst.msk [vmem:[#allocation2 + $0x170] sm:$0xff] %vm3609, %v3576
  %3658 = vst.msk [vmem:[#allocation2 + $0x178] sm:$0xff] %vm3609, %v3577
  %3659 = vst.msk [vmem:[#allocation2 + $0x180] sm:$0xff] %vm3609, %v3578
  %3660 = vst.msk [vmem:[#allocation2 + $0x188] sm:$0xff] %vm3609, %v3579
  %3661 = vst.msk [vmem:[#allocation2 + $0x190] sm:$0xff] %vm3609, %v3580
  %3662 = vst.msk [vmem:[#allocation2 + $0x198] sm:$0xff] %vm3609, %v3581
  %3663 = vst.msk [vmem:[#allocation2 + $0x1a0] sm:$0xff] %vm3609, %v3582
  %3664 = vst.msk [vmem:[#allocation2 + $0x1a8] sm:$0xff] %vm3609, %v3583
  %3665 = vst.msk [vmem:[#allocation2 + $0x1b0] sm:$0xff] %vm3609, %v3584
  %3666 = vst.msk [vmem:[#allocation2 + $0x1b8] sm:$0xff] %vm3609, %v3585
  %3667 = vst.msk [vmem:[#allocation2 + $0x1c0] sm:$0xff] %vm3609, %v3586
  %3668 = vst.msk [vmem:[#allocation2 + $0x1c8] sm:$0xff] %vm3609, %v3587
  %3669 = vst.msk [vmem:[#allocation2 + $0x1d0] sm:$0xff] %vm3609, %v3588
  %3670 = vst.msk [vmem:[#allocation2 + $0x1d8] sm:$0xff] %vm3609, %v3589
  %3671 = vst.msk [vmem:[#allocation2 + $0x1e0] sm:$0xff] %vm3609, %v3590
  %3672 = vst.msk [vmem:[#allocation2 + $0x1e8] sm:$0xff] %vm3609, %v3591
  %3673 = vst.msk [vmem:[#allocation2 + $0x1f0] sm:$0xff] %vm3609, %v3592
  %3674 = vst.msk [vmem:[#allocation2 + $0x1f8] sm:$0xff] %vm3609, %v3593
  %3675 = vst.msk [vmem:[#allocation2 + $0x200] sm:$0xff] %vm3609, %v3594
  %3676 = vst.msk [vmem:[#allocation2 + $0x208] sm:$0xff] %vm3609, %v3595
  %3677 = vst.msk [vmem:[#allocation2 + $0x210] sm:$0xff] %vm3609, %v3596
  %3678 = vst.msk [vmem:[#allocation2 + $0x218] sm:$0xff] %vm3609, %v3597
  %3679 = vst.msk [vmem:[#allocation2 + $0x220] sm:$0xff] %vm3609, %v3598
  %3680 = vst.msk [vmem:[#allocation2 + $0x228] sm:$0xff] %vm3609, %v3599
  %3681 = vst.msk [vmem:[#allocation2 + $0x230] sm:$0xff] %vm3609, %v3600
  %3682 = vst.msk [vmem:[#allocation2 + $0x238] sm:$0xff] %vm3609, %v3601
  %3683 = vst.msk [vmem:[#allocation2 + $0x240] sm:$0xff] %vm3609, %v3602
  %3684 = vst.msk [vmem:[#allocation2 + $0x248] sm:$0xff] %vm3609, %v3603
  %3685 = vst.msk [vmem:[#allocation2 + $0x250] sm:$0xff] %vm3609, %v3604
  %3686 = vst.msk [vmem:[#allocation2 + $0x258] sm:$0xff] %vm3609, %v3605
  %3687 = vst.msk [vmem:[#allocation2 + $0x260] sm:$0xff] %vm3609, %v3606
  %3688 = vst.msk [vmem:[#allocation2 + $0x268] sm:$0xff] %vm3609, %v3607
  %3689 = vst.msk [vmem:[#allocation2 + $0x270] sm:$0xff] %vm3609, %v3608
  %v3690 = vld [vmem:[%s3] sm:$0xff]
  %v3691 = vld [vmem:[%s3 + $0x8] sm:$0xff]
  %v3692 = vld [vmem:[%s3 + $0x10] sm:$0xff]
  %v3693 = vld [vmem:[%s3 + $0x18] sm:$0xff]
  %s3694 = scalar_lea.vmem [#allocation2], 7
  %v3695 = vld [vmem:[%s3694] ss:$2 sm:$0xff]
  %s3696 = scalar_lea.vmem [#allocation2], 23
  %v3697 = vld [vmem:[%s3696] ss:$2 sm:$0xff]
  %s3698 = scalar_lea.vmem [#allocation2], 39
  %v3699 = vld [vmem:[%s3698] ss:$2 sm:$0xff]
  %s3700 = scalar_lea.vmem [#allocation2], 55
  %v3701 = vld [vmem:[%s3700] ss:$2 sm:$0xff]
  %s3702 = scalar_lea.vmem [#allocation2], 71
  %v3703 = vld [vmem:[%s3702] ss:$2 sm:$0xff]
  %s3704 = scalar_lea.vmem [#allocation2], 87
  %v3705 = vld [vmem:[%s3704] ss:$2 sm:$0xff]
  %s3706 = scalar_lea.vmem [#allocation2], 103
  %v3707 = vld [vmem:[%s3706] ss:$2 sm:$0xff]
  %s3708 = scalar_lea.vmem [#allocation2], 119
  %v3709 = vld [vmem:[%s3708] ss:$2 sm:$0xff]
  %s3710 = scalar_lea.vmem [#allocation2], 135
  %v3711 = vld [vmem:[%s3710] ss:$2 sm:$0xff]
  %s3712 = scalar_lea.vmem [#allocation2], 151
  %v3713 = vld [vmem:[%s3712] ss:$2 sm:$0xff]
  %s3714 = scalar_lea.vmem [#allocation2], 167
  %v3715 = vld [vmem:[%s3714] ss:$2 sm:$0xff]
  %s3716 = scalar_lea.vmem [#allocation2], 183
  %v3717 = vld [vmem:[%s3716] ss:$2 sm:$0xff]
  %s3718 = scalar_lea.vmem [#allocation2], 199
  %v3719 = vld [vmem:[%s3718] ss:$2 sm:$0xff]
  %s3720 = scalar_lea.vmem [#allocation2], 215
  %v3721 = vld [vmem:[%s3720] ss:$2 sm:$0xff]
  %s3722 = scalar_lea.vmem [#allocation2], 231
  %v3723 = vld [vmem:[%s3722] ss:$2 sm:$0xff]
  %s3724 = scalar_lea.vmem [#allocation2], 247
  %v3725 = vld [vmem:[%s3724] ss:$2 sm:$0xff]
  %s3726 = scalar_lea.vmem [#allocation2], 263
  %v3727 = vld [vmem:[%s3726] ss:$2 sm:$0xff]
  %s3728 = scalar_lea.vmem [#allocation2], 279
  %v3729 = vld [vmem:[%s3728] ss:$2 sm:$0xff]
  %s3730 = scalar_lea.vmem [#allocation2], 295
  %v3731 = vld [vmem:[%s3730] ss:$2 sm:$0xff]
  %s3732 = scalar_lea.vmem [#allocation2], 311
  %v3733 = vld [vmem:[%s3732] ss:$2 sm:$0xff]
  %s3734 = scalar_lea.vmem [#allocation2], 327
  %v3735 = vld [vmem:[%s3734] ss:$2 sm:$0xff]
  %s3736 = scalar_lea.vmem [#allocation2], 343
  %v3737 = vld [vmem:[%s3736] ss:$2 sm:$0xff]
  %s3738 = scalar_lea.vmem [#allocation2], 359
  %v3739 = vld [vmem:[%s3738] ss:$2 sm:$0xff]
  %s3740 = scalar_lea.vmem [#allocation2], 375
  %v3741 = vld [vmem:[%s3740] ss:$2 sm:$0xff]
  %s3742 = scalar_lea.vmem [#allocation2], 391
  %v3743 = vld [vmem:[%s3742] ss:$2 sm:$0xff]
  %s3744 = scalar_lea.vmem [#allocation2], 407
  %v3745 = vld [vmem:[%s3744] ss:$2 sm:$0xff]
  %s3746 = scalar_lea.vmem [#allocation2], 423
  %v3747 = vld [vmem:[%s3746] ss:$2 sm:$0xff]
  %s3748 = scalar_lea.vmem [#allocation2], 439
  %v3749 = vld [vmem:[%s3748] ss:$2 sm:$0xff]
  %s3750 = scalar_lea.vmem [#allocation2], 455
  %v3751 = vld [vmem:[%s3750] ss:$2 sm:$0xff]
  %s3752 = scalar_lea.vmem [#allocation2], 471
  %v3753 = vld [vmem:[%s3752] ss:$2 sm:$0xff]
  %s3754 = scalar_lea.vmem [#allocation2], 487
  %v3755 = vld [vmem:[%s3754] ss:$2 sm:$0xff]
  %s3756 = scalar_lea.vmem [#allocation2], 503
  %v3757 = vld [vmem:[%s3756] ss:$2 sm:$0xff]
  %s3758 = scalar_lea.vmem [#allocation2], 519
  %v3759 = vld [vmem:[%s3758] ss:$2 sm:$0xff]
  %s3760 = scalar_lea.vmem [#allocation2], 535
  %v3761 = vld [vmem:[%s3760] ss:$2 sm:$0xff]
  %s3762 = scalar_lea.vmem [#allocation2], 551
  %v3763 = vld [vmem:[%s3762] ss:$2 sm:$0xff]
  %s3764 = scalar_lea.vmem [#allocation2], 567
  %v3765 = vld [vmem:[%s3764] ss:$2 sm:$0xff]
  %s3766 = scalar_lea.vmem [#allocation2], 583
  %v3767 = vld [vmem:[%s3766] ss:$2 sm:$0xff]
  %s3768 = scalar_lea.vmem [#allocation2], 599
  %v3769 = vld [vmem:[%s3768] ss:$2 sm:$0xff]
  %s3770 = scalar_lea.vmem [#allocation2], 615
  %v3771 = vld [vmem:[%s3770] ss:$2 sm:$0xff]
  %s3772 = scalar_lea.vmem [#allocation2], 8
  %v3773 = vld [vmem:[%s3772] ss:$2 sm:$0xff]
  %s3774 = scalar_lea.vmem [#allocation2], 24
  %v3775 = vld [vmem:[%s3774] ss:$2 sm:$0xff]
  %s3776 = scalar_lea.vmem [#allocation2], 40
  %v3777 = vld [vmem:[%s3776] ss:$2 sm:$0xff]
  %s3778 = scalar_lea.vmem [#allocation2], 56
  %v3779 = vld [vmem:[%s3778] ss:$2 sm:$0xff]
  %s3780 = scalar_lea.vmem [#allocation2], 72
  %v3781 = vld [vmem:[%s3780] ss:$2 sm:$0xff]
  %s3782 = scalar_lea.vmem [#allocation2], 88
  %v3783 = vld [vmem:[%s3782] ss:$2 sm:$0xff]
  %s3784 = scalar_lea.vmem [#allocation2], 104
  %v3785 = vld [vmem:[%s3784] ss:$2 sm:$0xff]
  %s3786 = scalar_lea.vmem [#allocation2], 120
  %v3787 = vld [vmem:[%s3786] ss:$2 sm:$0xff]
  %s3788 = scalar_lea.vmem [#allocation2], 136
  %v3789 = vld [vmem:[%s3788] ss:$2 sm:$0xff]
  %s3790 = scalar_lea.vmem [#allocation2], 152
  %v3791 = vld [vmem:[%s3790] ss:$2 sm:$0xff]
  %s3792 = scalar_lea.vmem [#allocation2], 168
  %v3793 = vld [vmem:[%s3792] ss:$2 sm:$0xff]
  %s3794 = scalar_lea.vmem [#allocation2], 184
  %v3795 = vld [vmem:[%s3794] ss:$2 sm:$0xff]
  %s3796 = scalar_lea.vmem [#allocation2], 200
  %v3797 = vld [vmem:[%s3796] ss:$2 sm:$0xff]
  %s3798 = scalar_lea.vmem [#allocation2], 216
  %v3799 = vld [vmem:[%s3798] ss:$2 sm:$0xff]
  %s3800 = scalar_lea.vmem [#allocation2], 232
  %v3801 = vld [vmem:[%s3800] ss:$2 sm:$0xff]
  %s3802 = scalar_lea.vmem [#allocation2], 248
  %v3803 = vld [vmem:[%s3802] ss:$2 sm:$0xff]
  %s3804 = scalar_lea.vmem [#allocation2], 264
  %v3805 = vld [vmem:[%s3804] ss:$2 sm:$0xff]
  %s3806 = scalar_lea.vmem [#allocation2], 280
  %v3807 = vld [vmem:[%s3806] ss:$2 sm:$0xff]
  %s3808 = scalar_lea.vmem [#allocation2], 296
  %v3809 = vld [vmem:[%s3808] ss:$2 sm:$0xff]
  %s3810 = scalar_lea.vmem [#allocation2], 312
  %v3811 = vld [vmem:[%s3810] ss:$2 sm:$0xff]
  %s3812 = scalar_lea.vmem [#allocation2], 328
  %v3813 = vld [vmem:[%s3812] ss:$2 sm:$0xff]
  %s3814 = scalar_lea.vmem [#allocation2], 344
  %v3815 = vld [vmem:[%s3814] ss:$2 sm:$0xff]
  %s3816 = scalar_lea.vmem [#allocation2], 360
  %v3817 = vld [vmem:[%s3816] ss:$2 sm:$0xff]
  %s3818 = scalar_lea.vmem [#allocation2], 376
  %v3819 = vld [vmem:[%s3818] ss:$2 sm:$0xff]
  %s3820 = scalar_lea.vmem [#allocation2], 392
  %v3821 = vld [vmem:[%s3820] ss:$2 sm:$0xff]
  %s3822 = scalar_lea.vmem [#allocation2], 408
  %v3823 = vld [vmem:[%s3822] ss:$2 sm:$0xff]
  %s3824 = scalar_lea.vmem [#allocation2], 424
  %v3825 = vld [vmem:[%s3824] ss:$2 sm:$0xff]
  %s3826 = scalar_lea.vmem [#allocation2], 440
  %v3827 = vld [vmem:[%s3826] ss:$2 sm:$0xff]
  %s3828 = scalar_lea.vmem [#allocation2], 456
  %v3829 = vld [vmem:[%s3828] ss:$2 sm:$0xff]
  %s3830 = scalar_lea.vmem [#allocation2], 472
  %v3831 = vld [vmem:[%s3830] ss:$2 sm:$0xff]
  %s3832 = scalar_lea.vmem [#allocation2], 488
  %v3833 = vld [vmem:[%s3832] ss:$2 sm:$0xff]
  %s3834 = scalar_lea.vmem [#allocation2], 504
  %v3835 = vld [vmem:[%s3834] ss:$2 sm:$0xff]
  %s3836 = scalar_lea.vmem [#allocation2], 520
  %v3837 = vld [vmem:[%s3836] ss:$2 sm:$0xff]
  %s3838 = scalar_lea.vmem [#allocation2], 536
  %v3839 = vld [vmem:[%s3838] ss:$2 sm:$0xff]
  %s3840 = scalar_lea.vmem [#allocation2], 552
  %v3841 = vld [vmem:[%s3840] ss:$2 sm:$0xff]
  %s3842 = scalar_lea.vmem [#allocation2], 568
  %v3843 = vld [vmem:[%s3842] ss:$2 sm:$0xff]
  %s3844 = scalar_lea.vmem [#allocation2], 584
  %v3845 = vld [vmem:[%s3844] ss:$2 sm:$0xff]
  %s3846 = scalar_lea.vmem [#allocation2], 600
  %v3847 = vld [vmem:[%s3846] ss:$2 sm:$0xff]
  %s3848 = scalar_lea.vmem [#allocation2], 616
  %v3849 = vld [vmem:[%s3848] ss:$2 sm:$0xff]
  %s3850 = scalar_lea.vmem %s3, 32
  %v3851 = vld [vmem:[%s3850] sm:$0xff]
  %v3852 = vld [vmem:[%s3850 + $0x8] sm:$0xff]
  %v3853 = vld [vmem:[%s3850 + $0x10] sm:$0xff]
  %v3854 = vld [vmem:[%s3850 + $0x18] sm:$0xff]
  %s3855 = scalar_lea.vmem [#allocation2], 9
  %v3856 = vld [vmem:[%s3855] ss:$2 sm:$0xff]
  %s3857 = scalar_lea.vmem [#allocation2], 25
  %v3858 = vld [vmem:[%s3857] ss:$2 sm:$0xff]
  %s3859 = scalar_lea.vmem [#allocation2], 41
  %v3860 = vld [vmem:[%s3859] ss:$2 sm:$0xff]
  %s3861 = scalar_lea.vmem [#allocation2], 57
  %v3862 = vld [vmem:[%s3861] ss:$2 sm:$0xff]
  %s3863 = scalar_lea.vmem [#allocation2], 73
  %v3864 = vld [vmem:[%s3863] ss:$2 sm:$0xff]
  %s3865 = scalar_lea.vmem [#allocation2], 89
  %v3866 = vld [vmem:[%s3865] ss:$2 sm:$0xff]
  %s3867 = scalar_lea.vmem [#allocation2], 105
  %v3868 = vld [vmem:[%s3867] ss:$2 sm:$0xff]
  %s3869 = scalar_lea.vmem [#allocation2], 121
  %v3870 = vld [vmem:[%s3869] ss:$2 sm:$0xff]
  %s3871 = scalar_lea.vmem [#allocation2], 137
  %v3872 = vld [vmem:[%s3871] ss:$2 sm:$0xff]
  %s3873 = scalar_lea.vmem [#allocation2], 153
  %v3874 = vld [vmem:[%s3873] ss:$2 sm:$0xff]
  %s3875 = scalar_lea.vmem [#allocation2], 169
  %v3876 = vld [vmem:[%s3875] ss:$2 sm:$0xff]
  %s3877 = scalar_lea.vmem [#allocation2], 185
  %v3878 = vld [vmem:[%s3877] ss:$2 sm:$0xff]
  %s3879 = scalar_lea.vmem [#allocation2], 201
  %v3880 = vld [vmem:[%s3879] ss:$2 sm:$0xff]
  %s3881 = scalar_lea.vmem [#allocation2], 217
  %v3882 = vld [vmem:[%s3881] ss:$2 sm:$0xff]
  %s3883 = scalar_lea.vmem [#allocation2], 233
  %v3884 = vld [vmem:[%s3883] ss:$2 sm:$0xff]
  %s3885 = scalar_lea.vmem [#allocation2], 249
  %v3886 = vld [vmem:[%s3885] ss:$2 sm:$0xff]
  %s3887 = scalar_lea.vmem [#allocation2], 265
  %v3888 = vld [vmem:[%s3887] ss:$2 sm:$0xff]
  %s3889 = scalar_lea.vmem [#allocation2], 281
  %v3890 = vld [vmem:[%s3889] ss:$2 sm:$0xff]
  %s3891 = scalar_lea.vmem [#allocation2], 297
  %v3892 = vld [vmem:[%s3891] ss:$2 sm:$0xff]
  %s3893 = scalar_lea.vmem [#allocation2], 313
  %v3894 = vld [vmem:[%s3893] ss:$2 sm:$0xff]
  %s3895 = scalar_lea.vmem [#allocation2], 329
  %v3896 = vld [vmem:[%s3895] ss:$2 sm:$0xff]
  %s3897 = scalar_lea.vmem [#allocation2], 345
  %v3898 = vld [vmem:[%s3897] ss:$2 sm:$0xff]
  %s3899 = scalar_lea.vmem [#allocation2], 361
  %v3900 = vld [vmem:[%s3899] ss:$2 sm:$0xff]
  %s3901 = scalar_lea.vmem [#allocation2], 377
  %v3902 = vld [vmem:[%s3901] ss:$2 sm:$0xff]
  %s3903 = scalar_lea.vmem [#allocation2], 393
  %v3904 = vld [vmem:[%s3903] ss:$2 sm:$0xff]
  %s3905 = scalar_lea.vmem [#allocation2], 409
  %v3906 = vld [vmem:[%s3905] ss:$2 sm:$0xff]
  %s3907 = scalar_lea.vmem [#allocation2], 425
  %v3908 = vld [vmem:[%s3907] ss:$2 sm:$0xff]
  %s3909 = scalar_lea.vmem [#allocation2], 441
  %v3910 = vld [vmem:[%s3909] ss:$2 sm:$0xff]
  %s3911 = scalar_lea.vmem [#allocation2], 457
  %v3912 = vld [vmem:[%s3911] ss:$2 sm:$0xff]
  %s3913 = scalar_lea.vmem [#allocation2], 473
  %v3914 = vld [vmem:[%s3913] ss:$2 sm:$0xff]
  %s3915 = scalar_lea.vmem [#allocation2], 489
  %v3916 = vld [vmem:[%s3915] ss:$2 sm:$0xff]
  %s3917 = scalar_lea.vmem [#allocation2], 505
  %v3918 = vld [vmem:[%s3917] ss:$2 sm:$0xff]
  %s3919 = scalar_lea.vmem [#allocation2], 521
  %v3920 = vld [vmem:[%s3919] ss:$2 sm:$0xff]
  %s3921 = scalar_lea.vmem [#allocation2], 537
  %v3922 = vld [vmem:[%s3921] ss:$2 sm:$0xff]
  %s3923 = scalar_lea.vmem [#allocation2], 553
  %v3924 = vld [vmem:[%s3923] ss:$2 sm:$0xff]
  %s3925 = scalar_lea.vmem [#allocation2], 569
  %v3926 = vld [vmem:[%s3925] ss:$2 sm:$0xff]
  %s3927 = scalar_lea.vmem [#allocation2], 585
  %v3928 = vld [vmem:[%s3927] ss:$2 sm:$0xff]
  %s3929 = scalar_lea.vmem [#allocation2], 601
  %v3930 = vld [vmem:[%s3929] ss:$2 sm:$0xff]
  %s3931 = scalar_lea.vmem [#allocation2], 617
  %v3932 = vld [vmem:[%s3931] ss:$2 sm:$0xff]
  %v3934 = vsel %vm3609, %v3773, 0
  %v3937 = vsel %vm3609, %v3775, 0
  %v3940 = vsel %vm3609, %v3777, 0
  %v3943 = vsel %vm3609, %v3779, 0
  %v3946 = vsel %vm3609, %v3781, 0
  %v3949 = vsel %vm3609, %v3783, 0
  %v3952 = vsel %vm3609, %v3785, 0
  %v3955 = vsel %vm3609, %v3787, 0
  %v3958 = vsel %vm3609, %v3789, 0
  %v3961 = vsel %vm3609, %v3791, 0
  %v3964 = vsel %vm3609, %v3793, 0
  %v3967 = vsel %vm3609, %v3795, 0
  %v3970 = vsel %vm3609, %v3797, 0
  %v3973 = vsel %vm3609, %v3799, 0
  %v3976 = vsel %vm3609, %v3801, 0
  %v3979 = vsel %vm3609, %v3803, 0
  %v3982 = vsel %vm3609, %v3805, 0
  %v3985 = vsel %vm3609, %v3807, 0
  %v3988 = vsel %vm3609, %v3809, 0
  %v3991 = vsel %vm3609, %v3811, 0
  %v3994 = vsel %vm3609, %v3813, 0
  %v3997 = vsel %vm3609, %v3815, 0
  %v4000 = vsel %vm3609, %v3817, 0
  %v4003 = vsel %vm3609, %v3819, 0
  %v4006 = vsel %vm3609, %v3821, 0
  %v4009 = vsel %vm3609, %v3823, 0
  %v4012 = vsel %vm3609, %v3825, 0
  %v4015 = vsel %vm3609, %v3827, 0
  %v4018 = vsel %vm3609, %v3829, 0
  %v4021 = vsel %vm3609, %v3831, 0
  %v4024 = vsel %vm3609, %v3833, 0
  %v4027 = vsel %vm3609, %v3835, 0
  %v4030 = vsel %vm3609, %v3837, 0
  %v4033 = vsel %vm3609, %v3839, 0
  %v4036 = vsel %vm3609, %v3841, 0
  %v4039 = vsel %vm3609, %v3843, 0
  %v4042 = vsel %vm3609, %v3845, 0
  %v4045 = vsel %vm3609, %v3847, 0
  %v4048 = vsel %vm3609, %v3849, 0
  %4050 = vmatprep.subr.mxu0 0.0
  %4051 = vmatpush1.msra.mxu0 %v3851
  %4052 = vmatprep.subr.mxu0 0.0
  %4053 = vmatpush1.msra.mxu0 %v3852
  %4054 = vmatprep.subr.mxu0 0.0
  %4055 = vmatpush1.msra.mxu0 %v3853
  %4056 = vmatprep.subr.mxu0 0.0
  %4057 = vmatpush1.msra.mxu0 %v3854
  %4058 = vmatprep.subr.mxu0 0.0
  %4059 = vmatpush1.msra.mxu0 0.0
  %4060 = vmatprep.subr.mxu0 0.0
  %4061 = vmatpush1.msra.mxu0 0.0
  %4062 = vmatprep.subr.mxu0 0.0
  %4063 = vmatpush1.msra.mxu0 0.0
  %4064 = vmatprep.subr.mxu0 0.0
  %4065 = vmatpush1.msra.mxu0 0.0
  %4066 = vmatprep.subr.mxu0 0.0
  %4067 = vmatpush1.msra.mxu0 0.0
  %4068 = vmatprep.subr.mxu0 0.0
  %4069 = vmatpush1.msra.mxu0 0.0
  %4070 = vmatprep.subr.mxu0 0.0
  %4071 = vmatpush1.msra.mxu0 0.0
  %4072 = vmatprep.subr.mxu0 0.0
  %4073 = vmatpush1.msra.mxu0 0.0
  %4074 = vmatprep.subr.mxu0 0.0
  %4075 = vmatpush1.msra.mxu0 0.0
  %4076 = vmatprep.subr.mxu0 0.0
  %4077 = vmatpush1.msra.mxu0 0.0
  %4078 = vmatprep.subr.mxu0 0.0
  %4079 = vmatpush1.msra.mxu0 0.0
  %4080 = vmatprep.subr.mxu0 0.0
  %4081 = vmatpush1.msra.mxu0 0.0
  %4082 = vmatprep.subr.mxu0 0.0
  %4083 = vmatpush1.msra.mxu0 0.0
  %4084 = vmatprep.subr.mxu0 0.0
  %4085 = vmatpush1.msra.mxu0 0.0
  %4086 = vmatprep.subr.mxu0 0.0
  %4087 = vmatpush1.msra.mxu0 0.0
  %4088 = vmatprep.subr.mxu0 0.0
  %4089 = vmatpush1.msra.mxu0 0.0
  %4090 = vmatprep.subr.mxu0 0.0
  %4091 = vmatpush1.msra.mxu0 0.0
  %4092 = vmatprep.subr.mxu0 0.0
  %4093 = vmatpush1.msra.mxu0 0.0
  %4094 = vmatprep.subr.mxu0 0.0
  %4095 = vmatpush1.msra.mxu0 0.0
  %4096 = vmatprep.subr.mxu0 0.0
  %4097 = vmatpush1.msra.mxu0 0.0
  %4098 = vmatprep.subr.mxu0 0.0
  %4099 = vmatpush1.msra.mxu0 0.0
  %4100 = vmatprep.subr.mxu0 0.0
  %4101 = vmatpush1.msra.mxu0 0.0
  %4102 = vmatprep.subr.mxu0 0.0
  %4103 = vmatpush1.msra.mxu0 0.0
  %4104 = vmatprep.subr.mxu0 0.0
  %4105 = vmatpush1.msra.mxu0 0.0
  %4106 = vmatprep.subr.mxu0 0.0
  %4107 = vmatpush1.msra.mxu0 0.0
  %4108 = vmatprep.subr.mxu0 0.0
  %4109 = vmatpush1.msra.mxu0 0.0
  %4110 = vmatprep.subr.mxu0 0.0
  %4111 = vmatpush1.msra.mxu0 0.0
  %4112 = vmatprep.subr.mxu0 0.0
  %4113 = vmatpush1.msra.mxu0 0.0
  %4114 = vmatprep.mubr.f32.mxu0 0.0
  %4115 = vmatmul.mubr.f32.gmra.mrb[0].mxu0 %v3934
  %v4116 = vpop.f32.mrb[0].mxu0
  %v4117 = vadd.f32 0.0, %v4116
  %v4118 = vpop.f32.mrb[0].mxu0
  %4119 = vmatprep.mubr.f32.mxu0 0.0
  %4120 = vmatmul.mubr.f32.gmra.mrb[0].mxu0 %v3937
  %v4121 = vpop.f32.mrb[0].mxu0
  %v4122 = vadd.f32 0.0, %v4121
  %v4123 = vpop.f32.mrb[0].mxu0
  %4124 = vmatprep.mubr.f32.mxu0 0.0
  %4125 = vmatmul.mubr.f32.gmra.mrb[0].mxu0 %v3940
  %v4126 = vpop.f32.mrb[0].mxu0
  %v4127 = vadd.f32 0.0, %v4126
  %v4128 = vpop.f32.mrb[0].mxu0
  %4129 = vmatprep.mubr.f32.mxu0 0.0
  %4130 = vmatmul.mubr.f32.gmra.mrb[0].mxu0 %v3943
  %v4131 = vpop.f32.mrb[0].mxu0
  %v4132 = vadd.f32 0.0, %v4131
  %v4133 = vpop.f32.mrb[0].mxu0
  %4134 = vmatprep.mubr.f32.mxu0 0.0
  %4135 = vmatmul.mubr.f32.gmra.mrb[0].mxu0 %v3946
  %v4136 = vpop.f32.mrb[0].mxu0
  %v4137 = vadd.f32 0.0, %v4136
  %v4138 = vpop.f32.mrb[0].mxu0
  %4139 = vmatprep.mubr.f32.mxu0 0.0
  %4140 = vmatmul.mubr.f32.gmra.mrb[0].mxu0 %v3949
  %v4141 = vpop.f32.mrb[0].mxu0
  %v4142 = vadd.f32 0.0, %v4141
  %v4143 = vpop.f32.mrb[0].mxu0
  %4144 = vmatprep.mubr.f32.mxu0 0.0
  %4145 = vmatmul.mubr.f32.gmra.mrb[0].mxu0 %v3952
  %v4146 = vpop.f32.mrb[0].mxu0
  %v4147 = vadd.f32 0.0, %v4146
  %v4148 = vpop.f32.mrb[0].mxu0
  %4149 = vmatprep.mubr.f32.mxu0 0.0
  %4150 = vmatmul.mubr.f32.gmra.mrb[0].mxu0 %v3955
  %v4151 = vpop.f32.mrb[0].mxu0
  %v4152 = vadd.f32 0.0, %v4151
  %v4153 = vpop.f32.mrb[0].mxu0
  %4154 = vmatprep.mubr.f32.mxu0 0.0
  %4155 = vmatmul.mubr.f32.gmra.mrb[0].mxu0 %v3958
  %v4156 = vpop.f32.mrb[0].mxu0
  %v4157 = vadd.f32 0.0, %v4156
  %v4158 = vpop.f32.mrb[0].mxu0
  %4159 = vmatprep.mubr.f32.mxu0 0.0
  %4160 = vmatmul.mubr.f32.gmra.mrb[0].mxu0 %v3961
  %v4161 = vpop.f32.mrb[0].mxu0
  %v4162 = vadd.f32 0.0, %v4161
  %v4163 = vpop.f32.mrb[0].mxu0
  %4164 = vmatprep.mubr.f32.mxu0 0.0
  %4165 = vmatmul.mubr.f32.gmra.mrb[0].mxu0 %v3964
  %v4166 = vpop.f32.mrb[0].mxu0
  %v4167 = vadd.f32 0.0, %v4166
  %v4168 = vpop.f32.mrb[0].mxu0
  %4169 = vmatprep.mubr.f32.mxu0 0.0
  %4170 = vmatmul.mubr.f32.gmra.mrb[0].mxu0 %v3967
  %v4171 = vpop.f32.mrb[0].mxu0
  %v4172 = vadd.f32 0.0, %v4171
  %v4173 = vpop.f32.mrb[0].mxu0
  %4174 = vmatprep.mubr.f32.mxu0 0.0
  %4175 = vmatmul.mubr.f32.gmra.mrb[0].mxu0 %v3970
  %v4176 = vpop.f32.mrb[0].mxu0
  %v4177 = vadd.f32 0.0, %v4176
  %v4178 = vpop.f32.mrb[0].mxu0
  %4179 = vmatprep.mubr.f32.mxu0 0.0
  %4180 = vmatmul.mubr.f32.gmra.mrb[0].mxu0 %v3973
  %v4181 = vpop.f32.mrb[0].mxu0
  %v4182 = vadd.f32 0.0, %v4181
  %v4183 = vpop.f32.mrb[0].mxu0
  %4184 = vmatprep.mubr.f32.mxu0 0.0
  %4185 = vmatmul.mubr.f32.gmra.mrb[0].mxu0 %v3976
  %v4186 = vpop.f32.mrb[0].mxu0
  %v4187 = vadd.f32 0.0, %v4186
  %v4188 = vpop.f32.mrb[0].mxu0
  %4189 = vmatprep.mubr.f32.mxu0 0.0
  %4190 = vmatmul.mubr.f32.gmra.mrb[0].mxu0 %v3979
  %v4191 = vpop.f32.mrb[0].mxu0
  %v4192 = vadd.f32 0.0, %v4191
  %v4193 = vpop.f32.mrb[0].mxu0
  %4194 = vmatprep.mubr.f32.mxu0 0.0
  %4195 = vmatmul.mubr.f32.gmra.mrb[0].mxu0 %v3982
  %v4196 = vpop.f32.mrb[0].mxu0
  %v4197 = vadd.f32 0.0, %v4196
  %v4198 = vpop.f32.mrb[0].mxu0
  %4199 = vmatprep.mubr.f32.mxu0 0.0
  %4200 = vmatmul.mubr.f32.gmra.mrb[0].mxu0 %v3985
  %v4201 = vpop.f32.mrb[0].mxu0
  %v4202 = vadd.f32 0.0, %v4201
  %v4203 = vpop.f32.mrb[0].mxu0
  %4204 = vmatprep.mubr.f32.mxu0 0.0
  %4205 = vmatmul.mubr.f32.gmra.mrb[0].mxu0 %v3988
  %v4206 = vpop.f32.mrb[0].mxu0
  %v4207 = vadd.f32 0.0, %v4206
  %v4208 = vpop.f32.mrb[0].mxu0
  %4209 = vmatprep.mubr.f32.mxu0 0.0
  %4210 = vmatmul.mubr.f32.gmra.mrb[0].mxu0 %v3991
  %v4211 = vpop.f32.mrb[0].mxu0
  %v4212 = vadd.f32 0.0, %v4211
  %v4213 = vpop.f32.mrb[0].mxu0
  %4214 = vmatprep.mubr.f32.mxu0 0.0
  %4215 = vmatmul.mubr.f32.gmra.mrb[0].mxu0 %v3994
  %v4216 = vpop.f32.mrb[0].mxu0
  %v4217 = vadd.f32 0.0, %v4216
  %v4218 = vpop.f32.mrb[0].mxu0
  %4219 = vmatprep.mubr.f32.mxu0 0.0
  %4220 = vmatmul.mubr.f32.gmra.mrb[0].mxu0 %v3997
  %v4221 = vpop.f32.mrb[0].mxu0
  %v4222 = vadd.f32 0.0, %v4221
  %v4223 = vpop.f32.mrb[0].mxu0
  %4224 = vmatprep.mubr.f32.mxu0 0.0
  %4225 = vmatmul.mubr.f32.gmra.mrb[0].mxu0 %v4000
  %v4226 = vpop.f32.mrb[0].mxu0
  %v4227 = vadd.f32 0.0, %v4226
  %v4228 = vpop.f32.mrb[0].mxu0
  %4229 = vmatprep.mubr.f32.mxu0 0.0
  %4230 = vmatmul.mubr.f32.gmra.mrb[0].mxu0 %v4003
  %v4231 = vpop.f32.mrb[0].mxu0
  %v4232 = vadd.f32 0.0, %v4231
  %v4233 = vpop.f32.mrb[0].mxu0
  %4234 = vmatprep.mubr.f32.mxu0 0.0
  %4235 = vmatmul.mubr.f32.gmra.mrb[0].mxu0 %v4006
  %v4236 = vpop.f32.mrb[0].mxu0
  %v4237 = vadd.f32 0.0, %v4236
  %v4238 = vpop.f32.mrb[0].mxu0
  %4239 = vmatprep.mubr.f32.mxu0 0.0
  %4240 = vmatmul.mubr.f32.gmra.mrb[0].mxu0 %v4009
  %v4241 = vpop.f32.mrb[0].mxu0
  %v4242 = vadd.f32 0.0, %v4241
  %v4243 = vpop.f32.mrb[0].mxu0
  %4244 = vmatprep.mubr.f32.mxu0 0.0
  %4245 = vmatmul.mubr.f32.gmra.mrb[0].mxu0 %v4012
  %v4246 = vpop.f32.mrb[0].mxu0
  %v4247 = vadd.f32 0.0, %v4246
  %v4248 = vpop.f32.mrb[0].mxu0
  %4249 = vmatprep.mubr.f32.mxu0 0.0
  %4250 = vmatmul.mubr.f32.gmra.mrb[0].mxu0 %v4015
  %v4251 = vpop.f32.mrb[0].mxu0
  %v4252 = vadd.f32 0.0, %v4251
  %v4253 = vpop.f32.mrb[0].mxu0
  %4254 = vmatprep.mubr.f32.mxu0 0.0
  %4255 = vmatmul.mubr.f32.gmra.mrb[0].mxu0 %v4018
  %v4256 = vpop.f32.mrb[0].mxu0
  %v4257 = vadd.f32 0.0, %v4256
  %v4258 = vpop.f32.mrb[0].mxu0
  %4259 = vmatprep.mubr.f32.mxu0 0.0
  %4260 = vmatmul.mubr.f32.gmra.mrb[0].mxu0 %v4021
  %v4261 = vpop.f32.mrb[0].mxu0
  %v4262 = vadd.f32 0.0, %v4261
  %v4263 = vpop.f32.mrb[0].mxu0
  %4264 = vmatprep.mubr.f32.mxu0 0.0
  %4265 = vmatmul.mubr.f32.gmra.mrb[0].mxu0 %v4024
  %v4266 = vpop.f32.mrb[0].mxu0
  %v4267 = vadd.f32 0.0, %v4266
  %v4268 = vpop.f32.mrb[0].mxu0
  %4269 = vmatprep.mubr.f32.mxu0 0.0
  %4270 = vmatmul.mubr.f32.gmra.mrb[0].mxu0 %v4027
  %v4271 = vpop.f32.mrb[0].mxu0
  %v4272 = vadd.f32 0.0, %v4271
  %v4273 = vpop.f32.mrb[0].mxu0
  %4274 = vmatprep.mubr.f32.mxu0 0.0
  %4275 = vmatmul.mubr.f32.gmra.mrb[0].mxu0 %v4030
  %v4276 = vpop.f32.mrb[0].mxu0
  %v4277 = vadd.f32 0.0, %v4276
  %v4278 = vpop.f32.mrb[0].mxu0
  %4279 = vmatprep.mubr.f32.mxu0 0.0
  %4280 = vmatmul.mubr.f32.gmra.mrb[0].mxu0 %v4033
  %v4281 = vpop.f32.mrb[0].mxu0
  %v4282 = vadd.f32 0.0, %v4281
  %v4283 = vpop.f32.mrb[0].mxu0
  %4284 = vmatprep.mubr.f32.mxu0 0.0
  %4285 = vmatmul.mubr.f32.gmra.mrb[0].mxu0 %v4036
  %v4286 = vpop.f32.mrb[0].mxu0
  %v4287 = vadd.f32 0.0, %v4286
  %v4288 = vpop.f32.mrb[0].mxu0
  %4289 = vmatprep.mubr.f32.mxu0 0.0
  %4290 = vmatmul.mubr.f32.gmra.mrb[0].mxu0 %v4039
  %v4291 = vpop.f32.mrb[0].mxu0
  %v4292 = vadd.f32 0.0, %v4291
  %v4293 = vpop.f32.mrb[0].mxu0
  %4294 = vmatprep.mubr.f32.mxu0 0.0
  %4295 = vmatmul.mubr.f32.gmra.mrb[0].mxu0 %v4042
  %v4296 = vpop.f32.mrb[0].mxu0
  %v4297 = vadd.f32 0.0, %v4296
  %v4298 = vpop.f32.mrb[0].mxu0
  %4299 = vmatprep.mubr.f32.mxu0 0.0
  %4300 = vmatmul.mubr.f32.gmra.mrb[0].mxu0 %v4045
  %v4301 = vpop.f32.mrb[0].mxu0
  %v4302 = vadd.f32 0.0, %v4301
  %v4303 = vpop.f32.mrb[0].mxu0
  %4304 = vmatprep.mubr.f32.mxu0 0.0
  %4305 = vmatmul.mubr.f32.gmra.mrb[0].mxu0 %v4048
  %v4306 = vpop.f32.mrb[0].mxu0
  %v4307 = vadd.f32 0.0, %v4306
  %v4308 = vpop.f32.mrb[0].mxu0
  %4309 = vdwg.mxu0
  %v4311 = vsel %vm3609, %v3856, 0
  %v4314 = vsel %vm3609, %v3858, 0
  %v4317 = vsel %vm3609, %v3860, 0
  %v4320 = vsel %vm3609, %v3862, 0
  %v4323 = vsel %vm3609, %v3864, 0
  %v4326 = vsel %vm3609, %v3866, 0
  %v4329 = vsel %vm3609, %v3868, 0
  %v4332 = vsel %vm3609, %v3870, 0
  %v4335 = vsel %vm3609, %v3872, 0
  %v4338 = vsel %vm3609, %v3874, 0
  %v4341 = vsel %vm3609, %v3876, 0
  %v4344 = vsel %vm3609, %v3878, 0
  %v4347 = vsel %vm3609, %v3880, 0
  %v4350 = vsel %vm3609, %v3882, 0
  %v4353 = vsel %vm3609, %v3884, 0
  %v4356 = vsel %vm3609, %v3886, 0
  %v4359 = vsel %vm3609, %v3888, 0
  %v4362 = vsel %vm3609, %v3890, 0
  %v4365 = vsel %vm3609, %v3892, 0
  %v4368 = vsel %vm3609, %v3894, 0
  %v4371 = vsel %vm3609, %v3896, 0
  %v4374 = vsel %vm3609, %v3898, 0
  %v4377 = vsel %vm3609, %v3900, 0
  %v4380 = vsel %vm3609, %v3902, 0
  %v4383 = vsel %vm3609, %v3904, 0
  %v4386 = vsel %vm3609, %v3906, 0
  %v4389 = vsel %vm3609, %v3908, 0
  %v4392 = vsel %vm3609, %v3910, 0
  %v4395 = vsel %vm3609, %v3912, 0
  %v4398 = vsel %vm3609, %v3914, 0
  %v4401 = vsel %vm3609, %v3916, 0
  %v4404 = vsel %vm3609, %v3918, 0
  %v4407 = vsel %vm3609, %v3920, 0
  %v4410 = vsel %vm3609, %v3922, 0
  %v4413 = vsel %vm3609, %v3924, 0
  %v4416 = vsel %vm3609, %v3926, 0
  %v4419 = vsel %vm3609, %v3928, 0
  %v4422 = vsel %vm3609, %v3930, 0
  %v4425 = vsel %vm3609, %v3932, 0
  %4427 = vmatprep.subr.mxu0 0.0
  %4428 = vmatpush1.msra.mxu0 %v3851
  %4429 = vmatprep.subr.mxu0 0.0
  %4430 = vmatpush1.msra.mxu0 %v3852
  %4431 = vmatprep.subr.mxu0 0.0
  %4432 = vmatpush1.msra.mxu0 %v3853
  %4433 = vmatprep.subr.mxu0 0.0
  %4434 = vmatpush1.msra.mxu0 %v3854
  %4435 = vmatprep.subr.mxu0 0.0
  %4436 = vmatpush1.msra.mxu0 0.0
  %4437 = vmatprep.subr.mxu0 0.0
  %4438 = vmatpush1.msra.mxu0 0.0
  %4439 = vmatprep.subr.mxu0 0.0
  %4440 = vmatpush1.msra.mxu0 0.0
  %4441 = vmatprep.subr.mxu0 0.0
  %4442 = vmatpush1.msra.mxu0 0.0
  %4443 = vmatprep.subr.mxu0 0.0
  %4444 = vmatpush1.msra.mxu0 0.0
  %4445 = vmatprep.subr.mxu0 0.0
  %4446 = vmatpush1.msra.mxu0 0.0
  %4447 = vmatprep.subr.mxu0 0.0
  %4448 = vmatpush1.msra.mxu0 0.0
  %4449 = vmatprep.subr.mxu0 0.0
  %4450 = vmatpush1.msra.mxu0 0.0
  %4451 = vmatprep.subr.mxu0 0.0
  %4452 = vmatpush1.msra.mxu0 0.0
  %4453 = vmatprep.subr.mxu0 0.0
  %4454 = vmatpush1.msra.mxu0 0.0
  %4455 = vmatprep.subr.mxu0 0.0
  %4456 = vmatpush1.msra.mxu0 0.0
  %4457 = vmatprep.subr.mxu0 0.0
  %4458 = vmatpush1.msra.mxu0 0.0
  %4459 = vmatprep.subr.mxu0 0.0
  %4460 = vmatpush1.msra.mxu0 0.0
  %4461 = vmatprep.subr.mxu0 0.0
  %4462 = vmatpush1.msra.mxu0 0.0
  %4463 = vmatprep.subr.mxu0 0.0
  %4464 = vmatpush1.msra.mxu0 0.0
  %4465 = vmatprep.subr.mxu0 0.0
  %4466 = vmatpush1.msra.mxu0 0.0
  %4467 = vmatprep.subr.mxu0 0.0
  %4468 = vmatpush1.msra.mxu0 0.0
  %4469 = vmatprep.subr.mxu0 0.0
  %4470 = vmatpush1.msra.mxu0 0.0
  %4471 = vmatprep.subr.mxu0 0.0
  %4472 = vmatpush1.msra.mxu0 0.0
  %4473 = vmatprep.subr.mxu0 0.0
  %4474 = vmatpush1.msra.mxu0 0.0
  %4475 = vmatprep.subr.mxu0 0.0
  %4476 = vmatpush1.msra.mxu0 0.0
  %4477 = vmatprep.subr.mxu0 0.0
  %4478 = vmatpush1.msra.mxu0 0.0
  %4479 = vmatprep.subr.mxu0 0.0
  %4480 = vmatpush1.msra.mxu0 0.0
  %4481 = vmatprep.subr.mxu0 0.0
  %4482 = vmatpush1.msra.mxu0 0.0
  %4483 = vmatprep.subr.mxu0 0.0
  %4484 = vmatpush1.msra.mxu0 0.0
  %4485 = vmatprep.subr.mxu0 0.0
  %4486 = vmatpush1.msra.mxu0 0.0
  %4487 = vmatprep.subr.mxu0 0.0
  %4488 = vmatpush1.msra.mxu0 0.0
  %4489 = vmatprep.subr.mxu0 0.0
  %4490 = vmatpush1.msra.mxu0 0.0
  %4491 = vmatprep.mubr.f32.mxu0 0.0
  %4492 = vmatmul.mubr.f32.gmra.mrb[0].mxu0 %v4311
  %v4493 = vpop.f32.mrb[0].mxu0
  %v4494 = vadd.f32 0.0, %v4493
  %v4495 = vpop.f32.mrb[0].mxu0
  %4496 = vmatprep.mubr.f32.mxu0 0.0
  %4497 = vmatmul.mubr.f32.gmra.mrb[0].mxu0 %v4314
  %v4498 = vpop.f32.mrb[0].mxu0
  %v4499 = vadd.f32 0.0, %v4498
  %v4500 = vpop.f32.mrb[0].mxu0
  %4501 = vmatprep.mubr.f32.mxu0 0.0
  %4502 = vmatmul.mubr.f32.gmra.mrb[0].mxu0 %v4317
  %v4503 = vpop.f32.mrb[0].mxu0
  %v4504 = vadd.f32 0.0, %v4503
  %v4505 = vpop.f32.mrb[0].mxu0
  %4506 = vmatprep.mubr.f32.mxu0 0.0
  %4507 = vmatmul.mubr.f32.gmra.mrb[0].mxu0 %v4320
  %v4508 = vpop.f32.mrb[0].mxu0
  %v4509 = vadd.f32 0.0, %v4508
  %v4510 = vpop.f32.mrb[0].mxu0
  %4511 = vmatprep.mubr.f32.mxu0 0.0
  %4512 = vmatmul.mubr.f32.gmra.mrb[0].mxu0 %v4323
  %v4513 = vpop.f32.mrb[0].mxu0
  %v4514 = vadd.f32 0.0, %v4513
  %v4515 = vpop.f32.mrb[0].mxu0
  %4516 = vmatprep.mubr.f32.mxu0 0.0
  %4517 = vmatmul.mubr.f32.gmra.mrb[0].mxu0 %v4326
  %v4518 = vpop.f32.mrb[0].mxu0
  %v4519 = vadd.f32 0.0, %v4518
  %v4520 = vpop.f32.mrb[0].mxu0
  %4521 = vmatprep.mubr.f32.mxu0 0.0
  %4522 = vmatmul.mubr.f32.gmra.mrb[0].mxu0 %v4329
  %v4523 = vpop.f32.mrb[0].mxu0
  %v4524 = vadd.f32 0.0, %v4523
  %v4525 = vpop.f32.mrb[0].mxu0
  %4526 = vmatprep.mubr.f32.mxu0 0.0
  %4527 = vmatmul.mubr.f32.gmra.mrb[0].mxu0 %v4332
  %v4528 = vpop.f32.mrb[0].mxu0
  %v4529 = vadd.f32 0.0, %v4528
  %v4530 = vpop.f32.mrb[0].mxu0
  %4531 = vmatprep.mubr.f32.mxu0 0.0
  %4532 = vmatmul.mubr.f32.gmra.mrb[0].mxu0 %v4335
  %v4533 = vpop.f32.mrb[0].mxu0
  %v4534 = vadd.f32 0.0, %v4533
  %v4535 = vpop.f32.mrb[0].mxu0
  %4536 = vmatprep.mubr.f32.mxu0 0.0
  %4537 = vmatmul.mubr.f32.gmra.mrb[0].mxu0 %v4338
  %v4538 = vpop.f32.mrb[0].mxu0
  %v4539 = vadd.f32 0.0, %v4538
  %v4540 = vpop.f32.mrb[0].mxu0
  %4541 = vmatprep.mubr.f32.mxu0 0.0
  %4542 = vmatmul.mubr.f32.gmra.mrb[0].mxu0 %v4341
  %v4543 = vpop.f32.mrb[0].mxu0
  %v4544 = vadd.f32 0.0, %v4543
  %v4545 = vpop.f32.mrb[0].mxu0
  %4546 = vmatprep.mubr.f32.mxu0 0.0
  %4547 = vmatmul.mubr.f32.gmra.mrb[0].mxu0 %v4344
  %v4548 = vpop.f32.mrb[0].mxu0
  %v4549 = vadd.f32 0.0, %v4548
  %v4550 = vpop.f32.mrb[0].mxu0
  %4551 = vmatprep.mubr.f32.mxu0 0.0
  %4552 = vmatmul.mubr.f32.gmra.mrb[0].mxu0 %v4347
  %v4553 = vpop.f32.mrb[0].mxu0
  %v4554 = vadd.f32 0.0, %v4553
  %v4555 = vpop.f32.mrb[0].mxu0
  %4556 = vmatprep.mubr.f32.mxu0 0.0
  %4557 = vmatmul.mubr.f32.gmra.mrb[0].mxu0 %v4350
  %v4558 = vpop.f32.mrb[0].mxu0
  %v4559 = vadd.f32 0.0, %v4558
  %v4560 = vpop.f32.mrb[0].mxu0
  %4561 = vmatprep.mubr.f32.mxu0 0.0
  %4562 = vmatmul.mubr.f32.gmra.mrb[0].mxu0 %v4353
  %v4563 = vpop.f32.mrb[0].mxu0
  %v4564 = vadd.f32 0.0, %v4563
  %v4565 = vpop.f32.mrb[0].mxu0
  %4566 = vmatprep.mubr.f32.mxu0 0.0
  %4567 = vmatmul.mubr.f32.gmra.mrb[0].mxu0 %v4356
  %v4568 = vpop.f32.mrb[0].mxu0
  %v4569 = vadd.f32 0.0, %v4568
  %v4570 = vpop.f32.mrb[0].mxu0
  %4571 = vmatprep.mubr.f32.mxu0 0.0
  %4572 = vmatmul.mubr.f32.gmra.mrb[0].mxu0 %v4359
  %v4573 = vpop.f32.mrb[0].mxu0
  %v4574 = vadd.f32 0.0, %v4573
  %v4575 = vpop.f32.mrb[0].mxu0
  %4576 = vmatprep.mubr.f32.mxu0 0.0
  %4577 = vmatmul.mubr.f32.gmra.mrb[0].mxu0 %v4362
  %v4578 = vpop.f32.mrb[0].mxu0
  %v4579 = vadd.f32 0.0, %v4578
  %v4580 = vpop.f32.mrb[0].mxu0
  %4581 = vmatprep.mubr.f32.mxu0 0.0
  %4582 = vmatmul.mubr.f32.gmra.mrb[0].mxu0 %v4365
  %v4583 = vpop.f32.mrb[0].mxu0
  %v4584 = vadd.f32 0.0, %v4583
  %v4585 = vpop.f32.mrb[0].mxu0
  %4586 = vmatprep.mubr.f32.mxu0 0.0
  %4587 = vmatmul.mubr.f32.gmra.mrb[0].mxu0 %v4368
  %v4588 = vpop.f32.mrb[0].mxu0
  %v4589 = vadd.f32 0.0, %v4588
  %v4590 = vpop.f32.mrb[0].mxu0
  %4591 = vmatprep.mubr.f32.mxu0 0.0
  %4592 = vmatmul.mubr.f32.gmra.mrb[0].mxu0 %v4371
  %v4593 = vpop.f32.mrb[0].mxu0
  %v4594 = vadd.f32 0.0, %v4593
  %v4595 = vpop.f32.mrb[0].mxu0
  %4596 = vmatprep.mubr.f32.mxu0 0.0
  %4597 = vmatmul.mubr.f32.gmra.mrb[0].mxu0 %v4374
  %v4598 = vpop.f32.mrb[0].mxu0
  %v4599 = vadd.f32 0.0, %v4598
  %v4600 = vpop.f32.mrb[0].mxu0
  %4601 = vmatprep.mubr.f32.mxu0 0.0
  %4602 = vmatmul.mubr.f32.gmra.mrb[0].mxu0 %v4377
  %v4603 = vpop.f32.mrb[0].mxu0
  %v4604 = vadd.f32 0.0, %v4603
  %v4605 = vpop.f32.mrb[0].mxu0
  %4606 = vmatprep.mubr.f32.mxu0 0.0
  %4607 = vmatmul.mubr.f32.gmra.mrb[0].mxu0 %v4380
  %v4608 = vpop.f32.mrb[0].mxu0
  %v4609 = vadd.f32 0.0, %v4608
  %v4610 = vpop.f32.mrb[0].mxu0
  %4611 = vmatprep.mubr.f32.mxu0 0.0
  %4612 = vmatmul.mubr.f32.gmra.mrb[0].mxu0 %v4383
  %v4613 = vpop.f32.mrb[0].mxu0
  %v4614 = vadd.f32 0.0, %v4613
  %v4615 = vpop.f32.mrb[0].mxu0
  %4616 = vmatprep.mubr.f32.mxu0 0.0
  %4617 = vmatmul.mubr.f32.gmra.mrb[0].mxu0 %v4386
  %v4618 = vpop.f32.mrb[0].mxu0
  %v4619 = vadd.f32 0.0, %v4618
  %v4620 = vpop.f32.mrb[0].mxu0
  %4621 = vmatprep.mubr.f32.mxu0 0.0
  %4622 = vmatmul.mubr.f32.gmra.mrb[0].mxu0 %v4389
  %v4623 = vpop.f32.mrb[0].mxu0
  %v4624 = vadd.f32 0.0, %v4623
  %v4625 = vpop.f32.mrb[0].mxu0
  %4626 = vmatprep.mubr.f32.mxu0 0.0
  %4627 = vmatmul.mubr.f32.gmra.mrb[0].mxu0 %v4392
  %v4628 = vpop.f32.mrb[0].mxu0
  %v4629 = vadd.f32 0.0, %v4628
  %v4630 = vpop.f32.mrb[0].mxu0
  %4631 = vmatprep.mubr.f32.mxu0 0.0
  %4632 = vmatmul.mubr.f32.gmra.mrb[0].mxu0 %v4395
  %v4633 = vpop.f32.mrb[0].mxu0
  %v4634 = vadd.f32 0.0, %v4633
  %v4635 = vpop.f32.mrb[0].mxu0
  %4636 = vmatprep.mubr.f32.mxu0 0.0
  %4637 = vmatmul.mubr.f32.gmra.mrb[0].mxu0 %v4398
  %v4638 = vpop.f32.mrb[0].mxu0
  %v4639 = vadd.f32 0.0, %v4638
  %v4640 = vpop.f32.mrb[0].mxu0
  %4641 = vmatprep.mubr.f32.mxu0 0.0
  %4642 = vmatmul.mubr.f32.gmra.mrb[0].mxu0 %v4401
  %v4643 = vpop.f32.mrb[0].mxu0
  %v4644 = vadd.f32 0.0, %v4643
  %v4645 = vpop.f32.mrb[0].mxu0
  %4646 = vmatprep.mubr.f32.mxu0 0.0
  %4647 = vmatmul.mubr.f32.gmra.mrb[0].mxu0 %v4404
  %v4648 = vpop.f32.mrb[0].mxu0
  %v4649 = vadd.f32 0.0, %v4648
  %v4650 = vpop.f32.mrb[0].mxu0
  %4651 = vmatprep.mubr.f32.mxu0 0.0
  %4652 = vmatmul.mubr.f32.gmra.mrb[0].mxu0 %v4407
  %v4653 = vpop.f32.mrb[0].mxu0
  %v4654 = vadd.f32 0.0, %v4653
  %v4655 = vpop.f32.mrb[0].mxu0
  %4656 = vmatprep.mubr.f32.mxu0 0.0
  %4657 = vmatmul.mubr.f32.gmra.mrb[0].mxu0 %v4410
  %v4658 = vpop.f32.mrb[0].mxu0
  %v4659 = vadd.f32 0.0, %v4658
  %v4660 = vpop.f32.mrb[0].mxu0
  %4661 = vmatprep.mubr.f32.mxu0 0.0
  %4662 = vmatmul.mubr.f32.gmra.mrb[0].mxu0 %v4413
  %v4663 = vpop.f32.mrb[0].mxu0
  %v4664 = vadd.f32 0.0, %v4663
  %v4665 = vpop.f32.mrb[0].mxu0
  %4666 = vmatprep.mubr.f32.mxu0 0.0
  %4667 = vmatmul.mubr.f32.gmra.mrb[0].mxu0 %v4416
  %v4668 = vpop.f32.mrb[0].mxu0
  %v4669 = vadd.f32 0.0, %v4668
  %v4670 = vpop.f32.mrb[0].mxu0
  %4671 = vmatprep.mubr.f32.mxu0 0.0
  %4672 = vmatmul.mubr.f32.gmra.mrb[0].mxu0 %v4419
  %v4673 = vpop.f32.mrb[0].mxu0
  %v4674 = vadd.f32 0.0, %v4673
  %v4675 = vpop.f32.mrb[0].mxu0
  %4676 = vmatprep.mubr.f32.mxu0 0.0
  %4677 = vmatmul.mubr.f32.gmra.mrb[0].mxu0 %v4422
  %v4678 = vpop.f32.mrb[0].mxu0
  %v4679 = vadd.f32 0.0, %v4678
  %v4680 = vpop.f32.mrb[0].mxu0
  %4681 = vmatprep.mubr.f32.mxu0 0.0
  %4682 = vmatmul.mubr.f32.gmra.mrb[0].mxu0 %v4425
  %v4683 = vpop.f32.mrb[0].mxu0
  %v4684 = vadd.f32 0.0, %v4683
  %v4685 = vpop.f32.mrb[0].mxu0
  %4686 = vdwg.mxu0
  %v4688 = vsel %vm3609, %v3695, 0
  %v4691 = vsel %vm3609, %v3697, 0
  %v4694 = vsel %vm3609, %v3699, 0
  %v4697 = vsel %vm3609, %v3701, 0
  %v4700 = vsel %vm3609, %v3703, 0
  %v4703 = vsel %vm3609, %v3705, 0
  %v4706 = vsel %vm3609, %v3707, 0
  %v4709 = vsel %vm3609, %v3709, 0
  %v4712 = vsel %vm3609, %v3711, 0
  %v4715 = vsel %vm3609, %v3713, 0
  %v4718 = vsel %vm3609, %v3715, 0
  %v4721 = vsel %vm3609, %v3717, 0
  %v4724 = vsel %vm3609, %v3719, 0
  %v4727 = vsel %vm3609, %v3721, 0
  %v4730 = vsel %vm3609, %v3723, 0
  %v4733 = vsel %vm3609, %v3725, 0
  %v4736 = vsel %vm3609, %v3727, 0
  %v4739 = vsel %vm3609, %v3729, 0
  %v4742 = vsel %vm3609, %v3731, 0
  %v4745 = vsel %vm3609, %v3733, 0
  %v4748 = vsel %vm3609, %v3735, 0
  %v4751 = vsel %vm3609, %v3737, 0
  %v4754 = vsel %vm3609, %v3739, 0
  %v4757 = vsel %vm3609, %v3741, 0
  %v4760 = vsel %vm3609, %v3743, 0
  %v4763 = vsel %vm3609, %v3745, 0
  %v4766 = vsel %vm3609, %v3747, 0
  %v4769 = vsel %vm3609, %v3749, 0
  %v4772 = vsel %vm3609, %v3751, 0
  %v4775 = vsel %vm3609, %v3753, 0
  %v4778 = vsel %vm3609, %v3755, 0
  %v4781 = vsel %vm3609, %v3757, 0
  %v4784 = vsel %vm3609, %v3759, 0
  %v4787 = vsel %vm3609, %v3761, 0
  %v4790 = vsel %vm3609, %v3763, 0
  %v4793 = vsel %vm3609, %v3765, 0
  %v4796 = vsel %vm3609, %v3767, 0
  %v4799 = vsel %vm3609, %v3769, 0
  %v4802 = vsel %vm3609, %v3771, 0
  %4804 = vmatprep.subr.mxu0 0.0
  %4805 = vmatpush1.msra.mxu0 %v3690
  %4806 = vmatprep.subr.mxu0 0.0
  %4807 = vmatpush1.msra.mxu0 %v3691
  %4808 = vmatprep.subr.mxu0 0.0
  %4809 = vmatpush1.msra.mxu0 %v3692
  %4810 = vmatprep.subr.mxu0 0.0
  %4811 = vmatpush1.msra.mxu0 %v3693
  %4812 = vmatprep.subr.mxu0 0.0
  %4813 = vmatpush1.msra.mxu0 0.0
  %4814 = vmatprep.subr.mxu0 0.0
  %4815 = vmatpush1.msra.mxu0 0.0
  %4816 = vmatprep.subr.mxu0 0.0
  %4817 = vmatpush1.msra.mxu0 0.0
  %4818 = vmatprep.subr.mxu0 0.0
  %4819 = vmatpush1.msra.mxu0 0.0
  %4820 = vmatprep.subr.mxu0 0.0
  %4821 = vmatpush1.msra.mxu0 0.0
  %4822 = vmatprep.subr.mxu0 0.0
  %4823 = vmatpush1.msra.mxu0 0.0
  %4824 = vmatprep.subr.mxu0 0.0
  %4825 = vmatpush1.msra.mxu0 0.0
  %4826 = vmatprep.subr.mxu0 0.0
  %4827 = vmatpush1.msra.mxu0 0.0
  %4828 = vmatprep.subr.mxu0 0.0
  %4829 = vmatpush1.msra.mxu0 0.0
  %4830 = vmatprep.subr.mxu0 0.0
  %4831 = vmatpush1.msra.mxu0 0.0
  %4832 = vmatprep.subr.mxu0 0.0
  %4833 = vmatpush1.msra.mxu0 0.0
  %4834 = vmatprep.subr.mxu0 0.0
  %4835 = vmatpush1.msra.mxu0 0.0
  %4836 = vmatprep.subr.mxu0 0.0
  %4837 = vmatpush1.msra.mxu0 0.0
  %4838 = vmatprep.subr.mxu0 0.0
  %4839 = vmatpush1.msra.mxu0 0.0
  %4840 = vmatprep.subr.mxu0 0.0
  %4841 = vmatpush1.msra.mxu0 0.0
  %4842 = vmatprep.subr.mxu0 0.0
  %4843 = vmatpush1.msra.mxu0 0.0
  %4844 = vmatprep.subr.mxu0 0.0
  %4845 = vmatpush1.msra.mxu0 0.0
  %4846 = vmatprep.subr.mxu0 0.0
  %4847 = vmatpush1.msra.mxu0 0.0
  %4848 = vmatprep.subr.mxu0 0.0
  %4849 = vmatpush1.msra.mxu0 0.0
  %4850 = vmatprep.subr.mxu0 0.0
  %4851 = vmatpush1.msra.mxu0 0.0
  %4852 = vmatprep.subr.mxu0 0.0
  %4853 = vmatpush1.msra.mxu0 0.0
  %4854 = vmatprep.subr.mxu0 0.0
  %4855 = vmatpush1.msra.mxu0 0.0
  %4856 = vmatprep.subr.mxu0 0.0
  %4857 = vmatpush1.msra.mxu0 0.0
  %4858 = vmatprep.subr.mxu0 0.0
  %4859 = vmatpush1.msra.mxu0 0.0
  %4860 = vmatprep.subr.mxu0 0.0
  %4861 = vmatpush1.msra.mxu0 0.0
  %4862 = vmatprep.subr.mxu0 0.0
  %4863 = vmatpush1.msra.mxu0 0.0
  %4864 = vmatprep.subr.mxu0 0.0
  %4865 = vmatpush1.msra.mxu0 0.0
  %4866 = vmatprep.subr.mxu0 0.0
  %4867 = vmatpush1.msra.mxu0 0.0
  %4868 = vmatprep.mubr.f32.mxu0 0.0
  %4869 = vmatmul.mubr.f32.gmra.mrb[0].mxu0 %v4688
  %v4870 = vpop.f32.mrb[0].mxu0
  %v4871 = vadd.f32 %v4117, %v4870
  %v4872 = vpop.f32.mrb[0].mxu0
  %4873 = vmatprep.mubr.f32.mxu0 0.0
  %4874 = vmatmul.mubr.f32.gmra.mrb[0].mxu0 %v4691
  %v4875 = vpop.f32.mrb[0].mxu0
  %v4876 = vadd.f32 %v4122, %v4875
  %v4877 = vpop.f32.mrb[0].mxu0
  %4878 = vmatprep.mubr.f32.mxu0 0.0
  %4879 = vmatmul.mubr.f32.gmra.mrb[0].mxu0 %v4694
  %v4880 = vpop.f32.mrb[0].mxu0
  %v4881 = vadd.f32 %v4127, %v4880
  %v4882 = vpop.f32.mrb[0].mxu0
  %4883 = vmatprep.mubr.f32.mxu0 0.0
  %4884 = vmatmul.mubr.f32.gmra.mrb[0].mxu0 %v4697
  %v4885 = vpop.f32.mrb[0].mxu0
  %v4886 = vadd.f32 %v4132, %v4885
  %v4887 = vpop.f32.mrb[0].mxu0
  %4888 = vmatprep.mubr.f32.mxu0 0.0
  %4889 = vmatmul.mubr.f32.gmra.mrb[0].mxu0 %v4700
  %v4890 = vpop.f32.mrb[0].mxu0
  %v4891 = vadd.f32 %v4137, %v4890
  %v4892 = vpop.f32.mrb[0].mxu0
  %4893 = vmatprep.mubr.f32.mxu0 0.0
  %4894 = vmatmul.mubr.f32.gmra.mrb[0].mxu0 %v4703
  %v4895 = vpop.f32.mrb[0].mxu0
  %v4896 = vadd.f32 %v4142, %v4895
  %v4897 = vpop.f32.mrb[0].mxu0
  %4898 = vmatprep.mubr.f32.mxu0 0.0
  %4899 = vmatmul.mubr.f32.gmra.mrb[0].mxu0 %v4706
  %v4900 = vpop.f32.mrb[0].mxu0
  %v4901 = vadd.f32 %v4147, %v4900
  %v4902 = vpop.f32.mrb[0].mxu0
  %4903 = vmatprep.mubr.f32.mxu0 0.0
  %4904 = vmatmul.mubr.f32.gmra.mrb[0].mxu0 %v4709
  %v4905 = vpop.f32.mrb[0].mxu0
  %v4906 = vadd.f32 %v4152, %v4905
  %v4907 = vpop.f32.mrb[0].mxu0
  %4908 = vmatprep.mubr.f32.mxu0 0.0
  %4909 = vmatmul.mubr.f32.gmra.mrb[0].mxu0 %v4712
  %v4910 = vpop.f32.mrb[0].mxu0
  %v4911 = vadd.f32 %v4157, %v4910
  %v4912 = vpop.f32.mrb[0].mxu0
  %4913 = vmatprep.mubr.f32.mxu0 0.0
  %4914 = vmatmul.mubr.f32.gmra.mrb[0].mxu0 %v4715
  %v4915 = vpop.f32.mrb[0].mxu0
  %v4916 = vadd.f32 %v4162, %v4915
  %v4917 = vpop.f32.mrb[0].mxu0
  %4918 = vmatprep.mubr.f32.mxu0 0.0
  %4919 = vmatmul.mubr.f32.gmra.mrb[0].mxu0 %v4718
  %v4920 = vpop.f32.mrb[0].mxu0
  %v4921 = vadd.f32 %v4167, %v4920
  %v4922 = vpop.f32.mrb[0].mxu0
  %4923 = vmatprep.mubr.f32.mxu0 0.0
  %4924 = vmatmul.mubr.f32.gmra.mrb[0].mxu0 %v4721
  %v4925 = vpop.f32.mrb[0].mxu0
  %v4926 = vadd.f32 %v4172, %v4925
  %v4927 = vpop.f32.mrb[0].mxu0
  %4928 = vmatprep.mubr.f32.mxu0 0.0
  %4929 = vmatmul.mubr.f32.gmra.mrb[0].mxu0 %v4724
  %v4930 = vpop.f32.mrb[0].mxu0
  %v4931 = vadd.f32 %v4177, %v4930
  %v4932 = vpop.f32.mrb[0].mxu0
  %4933 = vmatprep.mubr.f32.mxu0 0.0
  %4934 = vmatmul.mubr.f32.gmra.mrb[0].mxu0 %v4727
  %v4935 = vpop.f32.mrb[0].mxu0
  %v4936 = vadd.f32 %v4182, %v4935
  %v4937 = vpop.f32.mrb[0].mxu0
  %4938 = vmatprep.mubr.f32.mxu0 0.0
  %4939 = vmatmul.mubr.f32.gmra.mrb[0].mxu0 %v4730
  %v4940 = vpop.f32.mrb[0].mxu0
  %v4941 = vadd.f32 %v4187, %v4940
  %v4942 = vpop.f32.mrb[0].mxu0
  %4943 = vmatprep.mubr.f32.mxu0 0.0
  %4944 = vmatmul.mubr.f32.gmra.mrb[0].mxu0 %v4733
  %v4945 = vpop.f32.mrb[0].mxu0
  %v4946 = vadd.f32 %v4192, %v4945
  %v4947 = vpop.f32.mrb[0].mxu0
  %4948 = vmatprep.mubr.f32.mxu0 0.0
  %4949 = vmatmul.mubr.f32.gmra.mrb[0].mxu0 %v4736
  %v4950 = vpop.f32.mrb[0].mxu0
  %v4951 = vadd.f32 %v4197, %v4950
  %v4952 = vpop.f32.mrb[0].mxu0
  %4953 = vmatprep.mubr.f32.mxu0 0.0
  %4954 = vmatmul.mubr.f32.gmra.mrb[0].mxu0 %v4739
  %v4955 = vpop.f32.mrb[0].mxu0
  %v4956 = vadd.f32 %v4202, %v4955
  %v4957 = vpop.f32.mrb[0].mxu0
  %4958 = vmatprep.mubr.f32.mxu0 0.0
  %4959 = vmatmul.mubr.f32.gmra.mrb[0].mxu0 %v4742
  %v4960 = vpop.f32.mrb[0].mxu0
  %v4961 = vadd.f32 %v4207, %v4960
  %v4962 = vpop.f32.mrb[0].mxu0
  %4963 = vmatprep.mubr.f32.mxu0 0.0
  %4964 = vmatmul.mubr.f32.gmra.mrb[0].mxu0 %v4745
  %v4965 = vpop.f32.mrb[0].mxu0
  %v4966 = vadd.f32 %v4212, %v4965
  %v4967 = vpop.f32.mrb[0].mxu0
  %4968 = vmatprep.mubr.f32.mxu0 0.0
  %4969 = vmatmul.mubr.f32.gmra.mrb[0].mxu0 %v4748
  %v4970 = vpop.f32.mrb[0].mxu0
  %v4971 = vadd.f32 %v4217, %v4970
  %v4972 = vpop.f32.mrb[0].mxu0
  %4973 = vmatprep.mubr.f32.mxu0 0.0
  %4974 = vmatmul.mubr.f32.gmra.mrb[0].mxu0 %v4751
  %v4975 = vpop.f32.mrb[0].mxu0
  %v4976 = vadd.f32 %v4222, %v4975
  %v4977 = vpop.f32.mrb[0].mxu0
  %4978 = vmatprep.mubr.f32.mxu0 0.0
  %4979 = vmatmul.mubr.f32.gmra.mrb[0].mxu0 %v4754
  %v4980 = vpop.f32.mrb[0].mxu0
  %v4981 = vadd.f32 %v4227, %v4980
  %v4982 = vpop.f32.mrb[0].mxu0
  %4983 = vmatprep.mubr.f32.mxu0 0.0
  %4984 = vmatmul.mubr.f32.gmra.mrb[0].mxu0 %v4757
  %v4985 = vpop.f32.mrb[0].mxu0
  %v4986 = vadd.f32 %v4232, %v4985
  %v4987 = vpop.f32.mrb[0].mxu0
  %4988 = vmatprep.mubr.f32.mxu0 0.0
  %4989 = vmatmul.mubr.f32.gmra.mrb[0].mxu0 %v4760
  %v4990 = vpop.f32.mrb[0].mxu0
  %v4991 = vadd.f32 %v4237, %v4990
  %v4992 = vpop.f32.mrb[0].mxu0
  %4993 = vmatprep.mubr.f32.mxu0 0.0
  %4994 = vmatmul.mubr.f32.gmra.mrb[0].mxu0 %v4763
  %v4995 = vpop.f32.mrb[0].mxu0
  %v4996 = vadd.f32 %v4242, %v4995
  %v4997 = vpop.f32.mrb[0].mxu0
  %4998 = vmatprep.mubr.f32.mxu0 0.0
  %4999 = vmatmul.mubr.f32.gmra.mrb[0].mxu0 %v4766
  %v5000 = vpop.f32.mrb[0].mxu0
  %v5001 = vadd.f32 %v4247, %v5000
  %v5002 = vpop.f32.mrb[0].mxu0
  %5003 = vmatprep.mubr.f32.mxu0 0.0
  %5004 = vmatmul.mubr.f32.gmra.mrb[0].mxu0 %v4769
  %v5005 = vpop.f32.mrb[0].mxu0
  %v5006 = vadd.f32 %v4252, %v5005
  %v5007 = vpop.f32.mrb[0].mxu0
  %5008 = vmatprep.mubr.f32.mxu0 0.0
  %5009 = vmatmul.mubr.f32.gmra.mrb[0].mxu0 %v4772
  %v5010 = vpop.f32.mrb[0].mxu0
  %v5011 = vadd.f32 %v4257, %v5010
  %v5012 = vpop.f32.mrb[0].mxu0
  %5013 = vmatprep.mubr.f32.mxu0 0.0
  %5014 = vmatmul.mubr.f32.gmra.mrb[0].mxu0 %v4775
  %v5015 = vpop.f32.mrb[0].mxu0
  %v5016 = vadd.f32 %v4262, %v5015
  %v5017 = vpop.f32.mrb[0].mxu0
  %5018 = vmatprep.mubr.f32.mxu0 0.0
  %5019 = vmatmul.mubr.f32.gmra.mrb[0].mxu0 %v4778
  %v5020 = vpop.f32.mrb[0].mxu0
  %v5021 = vadd.f32 %v4267, %v5020
  %v5022 = vpop.f32.mrb[0].mxu0
  %5023 = vmatprep.mubr.f32.mxu0 0.0
  %5024 = vmatmul.mubr.f32.gmra.mrb[0].mxu0 %v4781
  %v5025 = vpop.f32.mrb[0].mxu0
  %v5026 = vadd.f32 %v4272, %v5025
  %v5027 = vpop.f32.mrb[0].mxu0
  %5028 = vmatprep.mubr.f32.mxu0 0.0
  %5029 = vmatmul.mubr.f32.gmra.mrb[0].mxu0 %v4784
  %v5030 = vpop.f32.mrb[0].mxu0
  %v5031 = vadd.f32 %v4277, %v5030
  %v5032 = vpop.f32.mrb[0].mxu0
  %5033 = vmatprep.mubr.f32.mxu0 0.0
  %5034 = vmatmul.mubr.f32.gmra.mrb[0].mxu0 %v4787
  %v5035 = vpop.f32.mrb[0].mxu0
  %v5036 = vadd.f32 %v4282, %v5035
  %v5037 = vpop.f32.mrb[0].mxu0
  %5038 = vmatprep.mubr.f32.mxu0 0.0
  %5039 = vmatmul.mubr.f32.gmra.mrb[0].mxu0 %v4790
  %v5040 = vpop.f32.mrb[0].mxu0
  %v5041 = vadd.f32 %v4287, %v5040
  %v5042 = vpop.f32.mrb[0].mxu0
  %5043 = vmatprep.mubr.f32.mxu0 0.0
  %5044 = vmatmul.mubr.f32.gmra.mrb[0].mxu0 %v4793
  %v5045 = vpop.f32.mrb[0].mxu0
  %v5046 = vadd.f32 %v4292, %v5045
  %v5047 = vpop.f32.mrb[0].mxu0
  %5048 = vmatprep.mubr.f32.mxu0 0.0
  %5049 = vmatmul.mubr.f32.gmra.mrb[0].mxu0 %v4796
  %v5050 = vpop.f32.mrb[0].mxu0
  %v5051 = vadd.f32 %v4297, %v5050
  %v5052 = vpop.f32.mrb[0].mxu0
  %5053 = vmatprep.mubr.f32.mxu0 0.0
  %5054 = vmatmul.mubr.f32.gmra.mrb[0].mxu0 %v4799
  %v5055 = vpop.f32.mrb[0].mxu0
  %v5056 = vadd.f32 %v4302, %v5055
  %v5057 = vpop.f32.mrb[0].mxu0
  %5058 = vmatprep.mubr.f32.mxu0 0.0
  %5059 = vmatmul.mubr.f32.gmra.mrb[0].mxu0 %v4802
  %v5060 = vpop.f32.mrb[0].mxu0
  %v5061 = vadd.f32 %v4307, %v5060
  %v5062 = vpop.f32.mrb[0].mxu0
  %5063 = vdwg.mxu0
  %5064 = vmatprep.subr.mxu0 0.0
  %5065 = vmatpush1.msra.mxu0 %v3690
  %5066 = vmatprep.subr.mxu0 0.0
  %5067 = vmatpush1.msra.mxu0 %v3691
  %5068 = vmatprep.subr.mxu0 0.0
  %5069 = vmatpush1.msra.mxu0 %v3692
  %5070 = vmatprep.subr.mxu0 0.0
  %5071 = vmatpush1.msra.mxu0 %v3693
  %5072 = vmatprep.subr.mxu0 0.0
  %5073 = vmatpush1.msra.mxu0 0.0
  %5074 = vmatprep.subr.mxu0 0.0
  %5075 = vmatpush1.msra.mxu0 0.0
  %5076 = vmatprep.subr.mxu0 0.0
  %5077 = vmatpush1.msra.mxu0 0.0
  %5078 = vmatprep.subr.mxu0 0.0
  %5079 = vmatpush1.msra.mxu0 0.0
  %5080 = vmatprep.subr.mxu0 0.0
  %5081 = vmatpush1.msra.mxu0 0.0
  %5082 = vmatprep.subr.mxu0 0.0
  %5083 = vmatpush1.msra.mxu0 0.0
  %5084 = vmatprep.subr.mxu0 0.0
  %5085 = vmatpush1.msra.mxu0 0.0
  %5086 = vmatprep.subr.mxu0 0.0
  %5087 = vmatpush1.msra.mxu0 0.0
  %5088 = vmatprep.subr.mxu0 0.0
  %5089 = vmatpush1.msra.mxu0 0.0
  %5090 = vmatprep.subr.mxu0 0.0
  %5091 = vmatpush1.msra.mxu0 0.0
  %5092 = vmatprep.subr.mxu0 0.0
  %5093 = vmatpush1.msra.mxu0 0.0
  %5094 = vmatprep.subr.mxu0 0.0
  %5095 = vmatpush1.msra.mxu0 0.0
  %5096 = vmatprep.subr.mxu0 0.0
  %5097 = vmatpush1.msra.mxu0 0.0
  %5098 = vmatprep.subr.mxu0 0.0
  %5099 = vmatpush1.msra.mxu0 0.0
  %5100 = vmatprep.subr.mxu0 0.0
  %5101 = vmatpush1.msra.mxu0 0.0
  %5102 = vmatprep.subr.mxu0 0.0
  %5103 = vmatpush1.msra.mxu0 0.0
  %5104 = vmatprep.subr.mxu0 0.0
  %5105 = vmatpush1.msra.mxu0 0.0
  %5106 = vmatprep.subr.mxu0 0.0
  %5107 = vmatpush1.msra.mxu0 0.0
  %5108 = vmatprep.subr.mxu0 0.0
  %5109 = vmatpush1.msra.mxu0 0.0
  %5110 = vmatprep.subr.mxu0 0.0
  %5111 = vmatpush1.msra.mxu0 0.0
  %5112 = vmatprep.subr.mxu0 0.0
  %5113 = vmatpush1.msra.mxu0 0.0
  %5114 = vmatprep.subr.mxu0 0.0
  %5115 = vmatpush1.msra.mxu0 0.0
  %5116 = vmatprep.subr.mxu0 0.0
  %5117 = vmatpush1.msra.mxu0 0.0
  %5118 = vmatprep.subr.mxu0 0.0
  %5119 = vmatpush1.msra.mxu0 0.0
  %5120 = vmatprep.subr.mxu0 0.0
  %5121 = vmatpush1.msra.mxu0 0.0
  %5122 = vmatprep.subr.mxu0 0.0
  %5123 = vmatpush1.msra.mxu0 0.0
  %5124 = vmatprep.subr.mxu0 0.0
  %5125 = vmatpush1.msra.mxu0 0.0
  %5126 = vmatprep.subr.mxu0 0.0
  %5127 = vmatpush1.msra.mxu0 0.0
  %5128 = vmatprep.mubr.f32.mxu0 0.0
  %5129 = vmatmul.mubr.f32.gmra.mrb[0].mxu0 %v3934
  %v5130 = vpop.f32.mrb[0].mxu0
  %v5131 = vadd.f32 %v4494, %v5130
  %v5132 = vpop.f32.mrb[0].mxu0
  %5133 = vmatprep.mubr.f32.mxu0 0.0
  %5134 = vmatmul.mubr.f32.gmra.mrb[0].mxu0 %v3937
  %v5135 = vpop.f32.mrb[0].mxu0
  %v5136 = vadd.f32 %v4499, %v5135
  %v5137 = vpop.f32.mrb[0].mxu0
  %5138 = vmatprep.mubr.f32.mxu0 0.0
  %5139 = vmatmul.mubr.f32.gmra.mrb[0].mxu0 %v3940
  %v5140 = vpop.f32.mrb[0].mxu0
  %v5141 = vadd.f32 %v4504, %v5140
  %v5142 = vpop.f32.mrb[0].mxu0
  %5143 = vmatprep.mubr.f32.mxu0 0.0
  %5144 = vmatmul.mubr.f32.gmra.mrb[0].mxu0 %v3943
  %v5145 = vpop.f32.mrb[0].mxu0
  %v5146 = vadd.f32 %v4509, %v5145
  %v5147 = vpop.f32.mrb[0].mxu0
  %5148 = vmatprep.mubr.f32.mxu0 0.0
  %5149 = vmatmul.mubr.f32.gmra.mrb[0].mxu0 %v3946
  %v5150 = vpop.f32.mrb[0].mxu0
  %v5151 = vadd.f32 %v4514, %v5150
  %v5152 = vpop.f32.mrb[0].mxu0
  %5153 = vmatprep.mubr.f32.mxu0 0.0
  %5154 = vmatmul.mubr.f32.gmra.mrb[0].mxu0 %v3949
  %v5155 = vpop.f32.mrb[0].mxu0
  %v5156 = vadd.f32 %v4519, %v5155
  %v5157 = vpop.f32.mrb[0].mxu0
  %5158 = vmatprep.mubr.f32.mxu0 0.0
  %5159 = vmatmul.mubr.f32.gmra.mrb[0].mxu0 %v3952
  %v5160 = vpop.f32.mrb[0].mxu0
  %v5161 = vadd.f32 %v4524, %v5160
  %v5162 = vpop.f32.mrb[0].mxu0
  %5163 = vmatprep.mubr.f32.mxu0 0.0
  %5164 = vmatmul.mubr.f32.gmra.mrb[0].mxu0 %v3955
  %v5165 = vpop.f32.mrb[0].mxu0
  %v5166 = vadd.f32 %v4529, %v5165
  %v5167 = vpop.f32.mrb[0].mxu0
  %5168 = vmatprep.mubr.f32.mxu0 0.0
  %5169 = vmatmul.mubr.f32.gmra.mrb[0].mxu0 %v3958
  %v5170 = vpop.f32.mrb[0].mxu0
  %v5171 = vadd.f32 %v4534, %v5170
  %v5172 = vpop.f32.mrb[0].mxu0
  %5173 = vmatprep.mubr.f32.mxu0 0.0
  %5174 = vmatmul.mubr.f32.gmra.mrb[0].mxu0 %v3961
  %v5175 = vpop.f32.mrb[0].mxu0
  %v5176 = vadd.f32 %v4539, %v5175
  %v5177 = vpop.f32.mrb[0].mxu0
  %5178 = vmatprep.mubr.f32.mxu0 0.0
  %5179 = vmatmul.mubr.f32.gmra.mrb[0].mxu0 %v3964
  %v5180 = vpop.f32.mrb[0].mxu0
  %v5181 = vadd.f32 %v4544, %v5180
  %v5182 = vpop.f32.mrb[0].mxu0
  %5183 = vmatprep.mubr.f32.mxu0 0.0
  %5184 = vmatmul.mubr.f32.gmra.mrb[0].mxu0 %v3967
  %v5185 = vpop.f32.mrb[0].mxu0
  %v5186 = vadd.f32 %v4549, %v5185
  %v5187 = vpop.f32.mrb[0].mxu0
  %5188 = vmatprep.mubr.f32.mxu0 0.0
  %5189 = vmatmul.mubr.f32.gmra.mrb[0].mxu0 %v3970
  %v5190 = vpop.f32.mrb[0].mxu0
  %v5191 = vadd.f32 %v4554, %v5190
  %v5192 = vpop.f32.mrb[0].mxu0
  %5193 = vmatprep.mubr.f32.mxu0 0.0
  %5194 = vmatmul.mubr.f32.gmra.mrb[0].mxu0 %v3973
  %v5195 = vpop.f32.mrb[0].mxu0
  %v5196 = vadd.f32 %v4559, %v5195
  %v5197 = vpop.f32.mrb[0].mxu0
  %5198 = vmatprep.mubr.f32.mxu0 0.0
  %5199 = vmatmul.mubr.f32.gmra.mrb[0].mxu0 %v3976
  %v5200 = vpop.f32.mrb[0].mxu0
  %v5201 = vadd.f32 %v4564, %v5200
  %v5202 = vpop.f32.mrb[0].mxu0
  %5203 = vmatprep.mubr.f32.mxu0 0.0
  %5204 = vmatmul.mubr.f32.gmra.mrb[0].mxu0 %v3979
  %v5205 = vpop.f32.mrb[0].mxu0
  %v5206 = vadd.f32 %v4569, %v5205
  %v5207 = vpop.f32.mrb[0].mxu0
  %5208 = vmatprep.mubr.f32.mxu0 0.0
  %5209 = vmatmul.mubr.f32.gmra.mrb[0].mxu0 %v3982
  %v5210 = vpop.f32.mrb[0].mxu0
  %v5211 = vadd.f32 %v4574, %v5210
  %v5212 = vpop.f32.mrb[0].mxu0
  %5213 = vmatprep.mubr.f32.mxu0 0.0
  %5214 = vmatmul.mubr.f32.gmra.mrb[0].mxu0 %v3985
  %v5215 = vpop.f32.mrb[0].mxu0
  %v5216 = vadd.f32 %v4579, %v5215
  %v5217 = vpop.f32.mrb[0].mxu0
  %5218 = vmatprep.mubr.f32.mxu0 0.0
  %5219 = vmatmul.mubr.f32.gmra.mrb[0].mxu0 %v3988
  %v5220 = vpop.f32.mrb[0].mxu0
  %v5221 = vadd.f32 %v4584, %v5220
  %v5222 = vpop.f32.mrb[0].mxu0
  %5223 = vmatprep.mubr.f32.mxu0 0.0
  %5224 = vmatmul.mubr.f32.gmra.mrb[0].mxu0 %v3991
  %v5225 = vpop.f32.mrb[0].mxu0
  %v5226 = vadd.f32 %v4589, %v5225
  %v5227 = vpop.f32.mrb[0].mxu0
  %5228 = vmatprep.mubr.f32.mxu0 0.0
  %5229 = vmatmul.mubr.f32.gmra.mrb[0].mxu0 %v3994
  %v5230 = vpop.f32.mrb[0].mxu0
  %v5231 = vadd.f32 %v4594, %v5230
  %v5232 = vpop.f32.mrb[0].mxu0
  %5233 = vmatprep.mubr.f32.mxu0 0.0
  %5234 = vmatmul.mubr.f32.gmra.mrb[0].mxu0 %v3997
  %v5235 = vpop.f32.mrb[0].mxu0
  %v5236 = vadd.f32 %v4599, %v5235
  %v5237 = vpop.f32.mrb[0].mxu0
  %5238 = vmatprep.mubr.f32.mxu0 0.0
  %5239 = vmatmul.mubr.f32.gmra.mrb[0].mxu0 %v4000
  %v5240 = vpop.f32.mrb[0].mxu0
  %v5241 = vadd.f32 %v4604, %v5240
  %v5242 = vpop.f32.mrb[0].mxu0
  %5243 = vmatprep.mubr.f32.mxu0 0.0
  %5244 = vmatmul.mubr.f32.gmra.mrb[0].mxu0 %v4003
  %v5245 = vpop.f32.mrb[0].mxu0
  %v5246 = vadd.f32 %v4609, %v5245
  %v5247 = vpop.f32.mrb[0].mxu0
  %5248 = vmatprep.mubr.f32.mxu0 0.0
  %5249 = vmatmul.mubr.f32.gmra.mrb[0].mxu0 %v4006
  %v5250 = vpop.f32.mrb[0].mxu0
  %v5251 = vadd.f32 %v4614, %v5250
  %v5252 = vpop.f32.mrb[0].mxu0
  %5253 = vmatprep.mubr.f32.mxu0 0.0
  %5254 = vmatmul.mubr.f32.gmra.mrb[0].mxu0 %v4009
  %v5255 = vpop.f32.mrb[0].mxu0
  %v5256 = vadd.f32 %v4619, %v5255
  %v5257 = vpop.f32.mrb[0].mxu0
  %5258 = vmatprep.mubr.f32.mxu0 0.0
  %5259 = vmatmul.mubr.f32.gmra.mrb[0].mxu0 %v4012
  %v5260 = vpop.f32.mrb[0].mxu0
  %v5261 = vadd.f32 %v4624, %v5260
  %v5262 = vpop.f32.mrb[0].mxu0
  %5263 = vmatprep.mubr.f32.mxu0 0.0
  %5264 = vmatmul.mubr.f32.gmra.mrb[0].mxu0 %v4015
  %v5265 = vpop.f32.mrb[0].mxu0
  %v5266 = vadd.f32 %v4629, %v5265
  %v5267 = vpop.f32.mrb[0].mxu0
  %5268 = vmatprep.mubr.f32.mxu0 0.0
  %5269 = vmatmul.mubr.f32.gmra.mrb[0].mxu0 %v4018
  %v5270 = vpop.f32.mrb[0].mxu0
  %v5271 = vadd.f32 %v4634, %v5270
  %v5272 = vpop.f32.mrb[0].mxu0
  %5273 = vmatprep.mubr.f32.mxu0 0.0
  %5274 = vmatmul.mubr.f32.gmra.mrb[0].mxu0 %v4021
  %v5275 = vpop.f32.mrb[0].mxu0
  %v5276 = vadd.f32 %v4639, %v5275
  %v5277 = vpop.f32.mrb[0].mxu0
  %5278 = vmatprep.mubr.f32.mxu0 0.0
  %5279 = vmatmul.mubr.f32.gmra.mrb[0].mxu0 %v4024
  %v5280 = vpop.f32.mrb[0].mxu0
  %v5281 = vadd.f32 %v4644, %v5280
  %v5282 = vpop.f32.mrb[0].mxu0
  %5283 = vmatprep.mubr.f32.mxu0 0.0
  %5284 = vmatmul.mubr.f32.gmra.mrb[0].mxu0 %v4027
  %v5285 = vpop.f32.mrb[0].mxu0
  %v5286 = vadd.f32 %v4649, %v5285
  %v5287 = vpop.f32.mrb[0].mxu0
  %5288 = vmatprep.mubr.f32.mxu0 0.0
  %5289 = vmatmul.mubr.f32.gmra.mrb[0].mxu0 %v4030
  %v5290 = vpop.f32.mrb[0].mxu0
  %v5291 = vadd.f32 %v4654, %v5290
  %v5292 = vpop.f32.mrb[0].mxu0
  %5293 = vmatprep.mubr.f32.mxu0 0.0
  %5294 = vmatmul.mubr.f32.gmra.mrb[0].mxu0 %v4033
  %v5295 = vpop.f32.mrb[0].mxu0
  %v5296 = vadd.f32 %v4659, %v5295
  %v5297 = vpop.f32.mrb[0].mxu0
  %5298 = vmatprep.mubr.f32.mxu0 0.0
  %5299 = vmatmul.mubr.f32.gmra.mrb[0].mxu0 %v4036
  %v5300 = vpop.f32.mrb[0].mxu0
  %v5301 = vadd.f32 %v4664, %v5300
  %v5302 = vpop.f32.mrb[0].mxu0
  %5303 = vmatprep.mubr.f32.mxu0 0.0
  %5304 = vmatmul.mubr.f32.gmra.mrb[0].mxu0 %v4039
  %v5305 = vpop.f32.mrb[0].mxu0
  %v5306 = vadd.f32 %v4669, %v5305
  %v5307 = vpop.f32.mrb[0].mxu0
  %5308 = vmatprep.mubr.f32.mxu0 0.0
  %5309 = vmatmul.mubr.f32.gmra.mrb[0].mxu0 %v4042
  %v5310 = vpop.f32.mrb[0].mxu0
  %v5311 = vadd.f32 %v4674, %v5310
  %v5312 = vpop.f32.mrb[0].mxu0
  %5313 = vmatprep.mubr.f32.mxu0 0.0
  %5314 = vmatmul.mubr.f32.gmra.mrb[0].mxu0 %v4045
  %v5315 = vpop.f32.mrb[0].mxu0
  %v5316 = vadd.f32 %v4679, %v5315
  %v5317 = vpop.f32.mrb[0].mxu0
  %5318 = vmatprep.mubr.f32.mxu0 0.0
  %5319 = vmatmul.mubr.f32.gmra.mrb[0].mxu0 %v4048
  %v5320 = vpop.f32.mrb[0].mxu0
  %v5321 = vadd.f32 %v4684, %v5320
  %v5322 = vpop.f32.mrb[0].mxu0
  %5323 = vdwg.mxu0
  %s5324 = scalar_lea.vmem %s3, 64
  %v5325 = vld [vmem:[%s5324] sm:$0xff]
  %v5326 = vld [vmem:[%s5324 + $0x8] sm:$0xff]
  %v5327 = vld [vmem:[%s5324 + $0x10] sm:$0xff]
  %v5328 = vld [vmem:[%s5324 + $0x18] sm:$0xff]
  %s5329 = scalar_lea.vmem [#allocation2], 10
  %v5330 = vld [vmem:[%s5329] ss:$2 sm:$0xff]
  %s5331 = scalar_lea.vmem [#allocation2], 26
  %v5332 = vld [vmem:[%s5331] ss:$2 sm:$0xff]
  %s5333 = scalar_lea.vmem [#allocation2], 42
  %v5334 = vld [vmem:[%s5333] ss:$2 sm:$0xff]
  %s5335 = scalar_lea.vmem [#allocation2], 58
  %v5336 = vld [vmem:[%s5335] ss:$2 sm:$0xff]
  %s5337 = scalar_lea.vmem [#allocation2], 74
  %v5338 = vld [vmem:[%s5337] ss:$2 sm:$0xff]
  %s5339 = scalar_lea.vmem [#allocation2], 90
  %v5340 = vld [vmem:[%s5339] ss:$2 sm:$0xff]
  %s5341 = scalar_lea.vmem [#allocation2], 106
  %v5342 = vld [vmem:[%s5341] ss:$2 sm:$0xff]
  %s5343 = scalar_lea.vmem [#allocation2], 122
  %v5344 = vld [vmem:[%s5343] ss:$2 sm:$0xff]
  %s5345 = scalar_lea.vmem [#allocation2], 138
  %v5346 = vld [vmem:[%s5345] ss:$2 sm:$0xff]
  %s5347 = scalar_lea.vmem [#allocation2], 154
  %v5348 = vld [vmem:[%s5347] ss:$2 sm:$0xff]
  %s5349 = scalar_lea.vmem [#allocation2], 170
  %v5350 = vld [vmem:[%s5349] ss:$2 sm:$0xff]
  %s5351 = scalar_lea.vmem [#allocation2], 186
  %v5352 = vld [vmem:[%s5351] ss:$2 sm:$0xff]
  %s5353 = scalar_lea.vmem [#allocation2], 202
  %v5354 = vld [vmem:[%s5353] ss:$2 sm:$0xff]
  %s5355 = scalar_lea.vmem [#allocation2], 218
  %v5356 = vld [vmem:[%s5355] ss:$2 sm:$0xff]
  %s5357 = scalar_lea.vmem [#allocation2], 234
  %v5358 = vld [vmem:[%s5357] ss:$2 sm:$0xff]
  %s5359 = scalar_lea.vmem [#allocation2], 250
  %v5360 = vld [vmem:[%s5359] ss:$2 sm:$0xff]
  %s5361 = scalar_lea.vmem [#allocation2], 266
  %v5362 = vld [vmem:[%s5361] ss:$2 sm:$0xff]
  %s5363 = scalar_lea.vmem [#allocation2], 282
  %v5364 = vld [vmem:[%s5363] ss:$2 sm:$0xff]
  %s5365 = scalar_lea.vmem [#allocation2], 298
  %v5366 = vld [vmem:[%s5365] ss:$2 sm:$0xff]
  %s5367 = scalar_lea.vmem [#allocation2], 314
  %v5368 = vld [vmem:[%s5367] ss:$2 sm:$0xff]
  %s5369 = scalar_lea.vmem [#allocation2], 330
  %v5370 = vld [vmem:[%s5369] ss:$2 sm:$0xff]
  %s5371 = scalar_lea.vmem [#allocation2], 346
  %v5372 = vld [vmem:[%s5371] ss:$2 sm:$0xff]
  %s5373 = scalar_lea.vmem [#allocation2], 362
  %v5374 = vld [vmem:[%s5373] ss:$2 sm:$0xff]
  %s5375 = scalar_lea.vmem [#allocation2], 378
  %v5376 = vld [vmem:[%s5375] ss:$2 sm:$0xff]
  %s5377 = scalar_lea.vmem [#allocation2], 394
  %v5378 = vld [vmem:[%s5377] ss:$2 sm:$0xff]
  %s5379 = scalar_lea.vmem [#allocation2], 410
  %v5380 = vld [vmem:[%s5379] ss:$2 sm:$0xff]
  %s5381 = scalar_lea.vmem [#allocation2], 426
  %v5382 = vld [vmem:[%s5381] ss:$2 sm:$0xff]
  %s5383 = scalar_lea.vmem [#allocation2], 442
  %v5384 = vld [vmem:[%s5383] ss:$2 sm:$0xff]
  %s5385 = scalar_lea.vmem [#allocation2], 458
  %v5386 = vld [vmem:[%s5385] ss:$2 sm:$0xff]
  %s5387 = scalar_lea.vmem [#allocation2], 474
  %v5388 = vld [vmem:[%s5387] ss:$2 sm:$0xff]
  %s5389 = scalar_lea.vmem [#allocation2], 490
  %v5390 = vld [vmem:[%s5389] ss:$2 sm:$0xff]
  %s5391 = scalar_lea.vmem [#allocation2], 506
  %v5392 = vld [vmem:[%s5391] ss:$2 sm:$0xff]
  %s5393 = scalar_lea.vmem [#allocation2], 522
  %v5394 = vld [vmem:[%s5393] ss:$2 sm:$0xff]
  %s5395 = scalar_lea.vmem [#allocation2], 538
  %v5396 = vld [vmem:[%s5395] ss:$2 sm:$0xff]
  %s5397 = scalar_lea.vmem [#allocation2], 554
  %v5398 = vld [vmem:[%s5397] ss:$2 sm:$0xff]
  %s5399 = scalar_lea.vmem [#allocation2], 570
  %v5400 = vld [vmem:[%s5399] ss:$2 sm:$0xff]
  %s5401 = scalar_lea.vmem [#allocation2], 586
  %v5402 = vld [vmem:[%s5401] ss:$2 sm:$0xff]
  %s5403 = scalar_lea.vmem [#allocation2], 602
  %v5404 = vld [vmem:[%s5403] ss:$2 sm:$0xff]
  %s5405 = scalar_lea.vmem [#allocation2], 618
  %v5406 = vld [vmem:[%s5405] ss:$2 sm:$0xff]
  %5407 = vmatprep.subr.mxu0 0.0
  %5408 = vmatpush1.msra.mxu0 %v5325
  %5409 = vmatprep.subr.mxu0 0.0
  %5410 = vmatpush1.msra.mxu0 %v5326
  %5411 = vmatprep.subr.mxu0 0.0
  %5412 = vmatpush1.msra.mxu0 %v5327
  %5413 = vmatprep.subr.mxu0 0.0
  %5414 = vmatpush1.msra.mxu0 %v5328
  %5415 = vmatprep.subr.mxu0 0.0
  %5416 = vmatpush1.msra.mxu0 0.0
  %5417 = vmatprep.subr.mxu0 0.0
  %5418 = vmatpush1.msra.mxu0 0.0
  %5419 = vmatprep.subr.mxu0 0.0
  %5420 = vmatpush1.msra.mxu0 0.0
  %5421 = vmatprep.subr.mxu0 0.0
  %5422 = vmatpush1.msra.mxu0 0.0
  %5423 = vmatprep.subr.mxu0 0.0
  %5424 = vmatpush1.msra.mxu0 0.0
  %5425 = vmatprep.subr.mxu0 0.0
  %5426 = vmatpush1.msra.mxu0 0.0
  %5427 = vmatprep.subr.mxu0 0.0
  %5428 = vmatpush1.msra.mxu0 0.0
  %5429 = vmatprep.subr.mxu0 0.0
  %5430 = vmatpush1.msra.mxu0 0.0
  %5431 = vmatprep.subr.mxu0 0.0
  %5432 = vmatpush1.msra.mxu0 0.0
  %5433 = vmatprep.subr.mxu0 0.0
  %5434 = vmatpush1.msra.mxu0 0.0
  %5435 = vmatprep.subr.mxu0 0.0
  %5436 = vmatpush1.msra.mxu0 0.0
  %5437 = vmatprep.subr.mxu0 0.0
  %5438 = vmatpush1.msra.mxu0 0.0
  %5439 = vmatprep.subr.mxu0 0.0
  %5440 = vmatpush1.msra.mxu0 0.0
  %5441 = vmatprep.subr.mxu0 0.0
  %5442 = vmatpush1.msra.mxu0 0.0
  %5443 = vmatprep.subr.mxu0 0.0
  %5444 = vmatpush1.msra.mxu0 0.0
  %5445 = vmatprep.subr.mxu0 0.0
  %5446 = vmatpush1.msra.mxu0 0.0
  %5447 = vmatprep.subr.mxu0 0.0
  %5448 = vmatpush1.msra.mxu0 0.0
  %5449 = vmatprep.subr.mxu0 0.0
  %5450 = vmatpush1.msra.mxu0 0.0
  %5451 = vmatprep.subr.mxu0 0.0
  %5452 = vmatpush1.msra.mxu0 0.0
  %5453 = vmatprep.subr.mxu0 0.0
  %5454 = vmatpush1.msra.mxu0 0.0
  %5455 = vmatprep.subr.mxu0 0.0
  %5456 = vmatpush1.msra.mxu0 0.0
  %5457 = vmatprep.subr.mxu0 0.0
  %5458 = vmatpush1.msra.mxu0 0.0
  %5459 = vmatprep.subr.mxu0 0.0
  %5460 = vmatpush1.msra.mxu0 0.0
  %5461 = vmatprep.subr.mxu0 0.0
  %5462 = vmatpush1.msra.mxu0 0.0
  %5463 = vmatprep.subr.mxu0 0.0
  %5464 = vmatpush1.msra.mxu0 0.0
  %5465 = vmatprep.subr.mxu0 0.0
  %5466 = vmatpush1.msra.mxu0 0.0
  %5467 = vmatprep.subr.mxu0 0.0
  %5468 = vmatpush1.msra.mxu0 0.0
  %5469 = vmatprep.subr.mxu0 0.0
  %5470 = vmatpush1.msra.mxu0 0.0
  %5471 = vmatprep.mubr.f32.mxu0 0.0
  %5472 = vmatmul.mubr.f32.gmra.mrb[0].mxu0 %v4311
  %v5473 = vpop.f32.mrb[0].mxu0
  %v5474 = vadd.f32 0.0, %v5473
  %v5475 = vpop.f32.mrb[0].mxu0
  %5476 = vmatprep.mubr.f32.mxu0 0.0
  %5477 = vmatmul.mubr.f32.gmra.mrb[0].mxu0 %v4314
  %v5478 = vpop.f32.mrb[0].mxu0
  %v5479 = vadd.f32 0.0, %v5478
  %v5480 = vpop.f32.mrb[0].mxu0
  %5481 = vmatprep.mubr.f32.mxu0 0.0
  %5482 = vmatmul.mubr.f32.gmra.mrb[0].mxu0 %v4317
  %v5483 = vpop.f32.mrb[0].mxu0
  %v5484 = vadd.f32 0.0, %v5483
  %v5485 = vpop.f32.mrb[0].mxu0
  %5486 = vmatprep.mubr.f32.mxu0 0.0
  %5487 = vmatmul.mubr.f32.gmra.mrb[0].mxu0 %v4320
  %v5488 = vpop.f32.mrb[0].mxu0
  %v5489 = vadd.f32 0.0, %v5488
  %v5490 = vpop.f32.mrb[0].mxu0
  %5491 = vmatprep.mubr.f32.mxu0 0.0
  %5492 = vmatmul.mubr.f32.gmra.mrb[0].mxu0 %v4323
  %v5493 = vpop.f32.mrb[0].mxu0
  %v5494 = vadd.f32 0.0, %v5493
  %v5495 = vpop.f32.mrb[0].mxu0
  %5496 = vmatprep.mubr.f32.mxu0 0.0
  %5497 = vmatmul.mubr.f32.gmra.mrb[0].mxu0 %v4326
  %v5498 = vpop.f32.mrb[0].mxu0
  %v5499 = vadd.f32 0.0, %v5498
  %v5500 = vpop.f32.mrb[0].mxu0
  %5501 = vmatprep.mubr.f32.mxu0 0.0
  %5502 = vmatmul.mubr.f32.gmra.mrb[0].mxu0 %v4329
  %v5503 = vpop.f32.mrb[0].mxu0
  %v5504 = vadd.f32 0.0, %v5503
  %v5505 = vpop.f32.mrb[0].mxu0
  %5506 = vmatprep.mubr.f32.mxu0 0.0
  %5507 = vmatmul.mubr.f32.gmra.mrb[0].mxu0 %v4332
  %v5508 = vpop.f32.mrb[0].mxu0
  %v5509 = vadd.f32 0.0, %v5508
  %v5510 = vpop.f32.mrb[0].mxu0
  %5511 = vmatprep.mubr.f32.mxu0 0.0
  %5512 = vmatmul.mubr.f32.gmra.mrb[0].mxu0 %v4335
  %v5513 = vpop.f32.mrb[0].mxu0
  %v5514 = vadd.f32 0.0, %v5513
  %v5515 = vpop.f32.mrb[0].mxu0
  %5516 = vmatprep.mubr.f32.mxu0 0.0
  %5517 = vmatmul.mubr.f32.gmra.mrb[0].mxu0 %v4338
  %v5518 = vpop.f32.mrb[0].mxu0
  %v5519 = vadd.f32 0.0, %v5518
  %v5520 = vpop.f32.mrb[0].mxu0
  %5521 = vmatprep.mubr.f32.mxu0 0.0
  %5522 = vmatmul.mubr.f32.gmra.mrb[0].mxu0 %v4341
  %v5523 = vpop.f32.mrb[0].mxu0
  %v5524 = vadd.f32 0.0, %v5523
  %v5525 = vpop.f32.mrb[0].mxu0
  %5526 = vmatprep.mubr.f32.mxu0 0.0
  %5527 = vmatmul.mubr.f32.gmra.mrb[0].mxu0 %v4344
  %v5528 = vpop.f32.mrb[0].mxu0
  %v5529 = vadd.f32 0.0, %v5528
  %v5530 = vpop.f32.mrb[0].mxu0
  %5531 = vmatprep.mubr.f32.mxu0 0.0
  %5532 = vmatmul.mubr.f32.gmra.mrb[0].mxu0 %v4347
  %v5533 = vpop.f32.mrb[0].mxu0
  %v5534 = vadd.f32 0.0, %v5533
  %v5535 = vpop.f32.mrb[0].mxu0
  %5536 = vmatprep.mubr.f32.mxu0 0.0
  %5537 = vmatmul.mubr.f32.gmra.mrb[0].mxu0 %v4350
  %v5538 = vpop.f32.mrb[0].mxu0
  %v5539 = vadd.f32 0.0, %v5538
  %v5540 = vpop.f32.mrb[0].mxu0
  %5541 = vmatprep.mubr.f32.mxu0 0.0
  %5542 = vmatmul.mubr.f32.gmra.mrb[0].mxu0 %v4353
  %v5543 = vpop.f32.mrb[0].mxu0
  %v5544 = vadd.f32 0.0, %v5543
  %v5545 = vpop.f32.mrb[0].mxu0
  %5546 = vmatprep.mubr.f32.mxu0 0.0
  %5547 = vmatmul.mubr.f32.gmra.mrb[0].mxu0 %v4356
  %v5548 = vpop.f32.mrb[0].mxu0
  %v5549 = vadd.f32 0.0, %v5548
  %v5550 = vpop.f32.mrb[0].mxu0
  %5551 = vmatprep.mubr.f32.mxu0 0.0
  %5552 = vmatmul.mubr.f32.gmra.mrb[0].mxu0 %v4359
  %v5553 = vpop.f32.mrb[0].mxu0
  %v5554 = vadd.f32 0.0, %v5553
  %v5555 = vpop.f32.mrb[0].mxu0
  %5556 = vmatprep.mubr.f32.mxu0 0.0
  %5557 = vmatmul.mubr.f32.gmra.mrb[0].mxu0 %v4362
  %v5558 = vpop.f32.mrb[0].mxu0
  %v5559 = vadd.f32 0.0, %v5558
  %v5560 = vpop.f32.mrb[0].mxu0
  %5561 = vmatprep.mubr.f32.mxu0 0.0
  %5562 = vmatmul.mubr.f32.gmra.mrb[0].mxu0 %v4365
  %v5563 = vpop.f32.mrb[0].mxu0
  %v5564 = vadd.f32 0.0, %v5563
  %v5565 = vpop.f32.mrb[0].mxu0
  %5566 = vmatprep.mubr.f32.mxu0 0.0
  %5567 = vmatmul.mubr.f32.gmra.mrb[0].mxu0 %v4368
  %v5568 = vpop.f32.mrb[0].mxu0
  %v5569 = vadd.f32 0.0, %v5568
  %v5570 = vpop.f32.mrb[0].mxu0
  %5571 = vmatprep.mubr.f32.mxu0 0.0
  %5572 = vmatmul.mubr.f32.gmra.mrb[0].mxu0 %v4371
  %v5573 = vpop.f32.mrb[0].mxu0
  %v5574 = vadd.f32 0.0, %v5573
  %v5575 = vpop.f32.mrb[0].mxu0
  %5576 = vmatprep.mubr.f32.mxu0 0.0
  %5577 = vmatmul.mubr.f32.gmra.mrb[0].mxu0 %v4374
  %v5578 = vpop.f32.mrb[0].mxu0
  %v5579 = vadd.f32 0.0, %v5578
  %v5580 = vpop.f32.mrb[0].mxu0
  %5581 = vmatprep.mubr.f32.mxu0 0.0
  %5582 = vmatmul.mubr.f32.gmra.mrb[0].mxu0 %v4377
  %v5583 = vpop.f32.mrb[0].mxu0
  %v5584 = vadd.f32 0.0, %v5583
  %v5585 = vpop.f32.mrb[0].mxu0
  %5586 = vmatprep.mubr.f32.mxu0 0.0
  %5587 = vmatmul.mubr.f32.gmra.mrb[0].mxu0 %v4380
  %v5588 = vpop.f32.mrb[0].mxu0
  %v5589 = vadd.f32 0.0, %v5588
  %v5590 = vpop.f32.mrb[0].mxu0
  %5591 = vmatprep.mubr.f32.mxu0 0.0
  %5592 = vmatmul.mubr.f32.gmra.mrb[0].mxu0 %v4383
  %v5593 = vpop.f32.mrb[0].mxu0
  %v5594 = vadd.f32 0.0, %v5593
  %v5595 = vpop.f32.mrb[0].mxu0
  %5596 = vmatprep.mubr.f32.mxu0 0.0
  %5597 = vmatmul.mubr.f32.gmra.mrb[0].mxu0 %v4386
  %v5598 = vpop.f32.mrb[0].mxu0
  %v5599 = vadd.f32 0.0, %v5598
  %v5600 = vpop.f32.mrb[0].mxu0
  %5601 = vmatprep.mubr.f32.mxu0 0.0
  %5602 = vmatmul.mubr.f32.gmra.mrb[0].mxu0 %v4389
  %v5603 = vpop.f32.mrb[0].mxu0
  %v5604 = vadd.f32 0.0, %v5603
  %v5605 = vpop.f32.mrb[0].mxu0
  %5606 = vmatprep.mubr.f32.mxu0 0.0
  %5607 = vmatmul.mubr.f32.gmra.mrb[0].mxu0 %v4392
  %v5608 = vpop.f32.mrb[0].mxu0
  %v5609 = vadd.f32 0.0, %v5608
  %v5610 = vpop.f32.mrb[0].mxu0
  %5611 = vmatprep.mubr.f32.mxu0 0.0
  %5612 = vmatmul.mubr.f32.gmra.mrb[0].mxu0 %v4395
  %v5613 = vpop.f32.mrb[0].mxu0
  %v5614 = vadd.f32 0.0, %v5613
  %v5615 = vpop.f32.mrb[0].mxu0
  %5616 = vmatprep.mubr.f32.mxu0 0.0
  %5617 = vmatmul.mubr.f32.gmra.mrb[0].mxu0 %v4398
  %v5618 = vpop.f32.mrb[0].mxu0
  %v5619 = vadd.f32 0.0, %v5618
  %v5620 = vpop.f32.mrb[0].mxu0
  %5621 = vmatprep.mubr.f32.mxu0 0.0
  %5622 = vmatmul.mubr.f32.gmra.mrb[0].mxu0 %v4401
  %v5623 = vpop.f32.mrb[0].mxu0
  %v5624 = vadd.f32 0.0, %v5623
  %v5625 = vpop.f32.mrb[0].mxu0
  %5626 = vmatprep.mubr.f32.mxu0 0.0
  %5627 = vmatmul.mubr.f32.gmra.mrb[0].mxu0 %v4404
  %v5628 = vpop.f32.mrb[0].mxu0
  %v5629 = vadd.f32 0.0, %v5628
  %v5630 = vpop.f32.mrb[0].mxu0
  %5631 = vmatprep.mubr.f32.mxu0 0.0
  %5632 = vmatmul.mubr.f32.gmra.mrb[0].mxu0 %v4407
  %v5633 = vpop.f32.mrb[0].mxu0
  %v5634 = vadd.f32 0.0, %v5633
  %v5635 = vpop.f32.mrb[0].mxu0
  %5636 = vmatprep.mubr.f32.mxu0 0.0
  %5637 = vmatmul.mubr.f32.gmra.mrb[0].mxu0 %v4410
  %v5638 = vpop.f32.mrb[0].mxu0
  %v5639 = vadd.f32 0.0, %v5638
  %v5640 = vpop.f32.mrb[0].mxu0
  %5641 = vmatprep.mubr.f32.mxu0 0.0
  %5642 = vmatmul.mubr.f32.gmra.mrb[0].mxu0 %v4413
  %v5643 = vpop.f32.mrb[0].mxu0
  %v5644 = vadd.f32 0.0, %v5643
  %v5645 = vpop.f32.mrb[0].mxu0
  %5646 = vmatprep.mubr.f32.mxu0 0.0
  %5647 = vmatmul.mubr.f32.gmra.mrb[0].mxu0 %v4416
  %v5648 = vpop.f32.mrb[0].mxu0
  %v5649 = vadd.f32 0.0, %v5648
  %v5650 = vpop.f32.mrb[0].mxu0
  %5651 = vmatprep.mubr.f32.mxu0 0.0
  %5652 = vmatmul.mubr.f32.gmra.mrb[0].mxu0 %v4419
  %v5653 = vpop.f32.mrb[0].mxu0
  %v5654 = vadd.f32 0.0, %v5653
  %v5655 = vpop.f32.mrb[0].mxu0
  %5656 = vmatprep.mubr.f32.mxu0 0.0
  %5657 = vmatmul.mubr.f32.gmra.mrb[0].mxu0 %v4422
  %v5658 = vpop.f32.mrb[0].mxu0
  %v5659 = vadd.f32 0.0, %v5658
  %v5660 = vpop.f32.mrb[0].mxu0
  %5661 = vmatprep.mubr.f32.mxu0 0.0
  %5662 = vmatmul.mubr.f32.gmra.mrb[0].mxu0 %v4425
  %v5663 = vpop.f32.mrb[0].mxu0
  %v5664 = vadd.f32 0.0, %v5663
  %v5665 = vpop.f32.mrb[0].mxu0
  %5666 = vdwg.mxu0
  %v5668 = vsel %vm3609, %v5330, 0
  %v5671 = vsel %vm3609, %v5332, 0
  %v5674 = vsel %vm3609, %v5334, 0
  %v5677 = vsel %vm3609, %v5336, 0
  %v5680 = vsel %vm3609, %v5338, 0
  %v5683 = vsel %vm3609, %v5340, 0
  %v5686 = vsel %vm3609, %v5342, 0
  %v5689 = vsel %vm3609, %v5344, 0
  %v5692 = vsel %vm3609, %v5346, 0
  %v5695 = vsel %vm3609, %v5348, 0
  %v5698 = vsel %vm3609, %v5350, 0
  %v5701 = vsel %vm3609, %v5352, 0
  %v5704 = vsel %vm3609, %v5354, 0
  %v5707 = vsel %vm3609, %v5356, 0
  %v5710 = vsel %vm3609, %v5358, 0
  %v5713 = vsel %vm3609, %v5360, 0
  %v5716 = vsel %vm3609, %v5362, 0
  %v5719 = vsel %vm3609, %v5364, 0
  %v5722 = vsel %vm3609, %v5366, 0
  %v5725 = vsel %vm3609, %v5368, 0
  %v5728 = vsel %vm3609, %v5370, 0
  %v5731 = vsel %vm3609, %v5372, 0
  %v5734 = vsel %vm3609, %v5374, 0
  %v5737 = vsel %vm3609, %v5376, 0
  %v5740 = vsel %vm3609, %v5378, 0
  %v5743 = vsel %vm3609, %v5380, 0
  %v5746 = vsel %vm3609, %v5382, 0
  %v5749 = vsel %vm3609, %v5384, 0
  %v5752 = vsel %vm3609, %v5386, 0
  %v5755 = vsel %vm3609, %v5388, 0
  %v5758 = vsel %vm3609, %v5390, 0
  %v5761 = vsel %vm3609, %v5392, 0
  %v5764 = vsel %vm3609, %v5394, 0
  %v5767 = vsel %vm3609, %v5396, 0
  %v5770 = vsel %vm3609, %v5398, 0
  %v5773 = vsel %vm3609, %v5400, 0
  %v5776 = vsel %vm3609, %v5402, 0
  %v5779 = vsel %vm3609, %v5404, 0
  %v5782 = vsel %vm3609, %v5406, 0
  %5784 = vmatprep.subr.mxu0 0.0
  %5785 = vmatpush1.msra.mxu0 %v5325
  %5786 = vmatprep.subr.mxu0 0.0
  %5787 = vmatpush1.msra.mxu0 %v5326
  %5788 = vmatprep.subr.mxu0 0.0
  %5789 = vmatpush1.msra.mxu0 %v5327
  %5790 = vmatprep.subr.mxu0 0.0
  %5791 = vmatpush1.msra.mxu0 %v5328
  %5792 = vmatprep.subr.mxu0 0.0
  %5793 = vmatpush1.msra.mxu0 0.0
  %5794 = vmatprep.subr.mxu0 0.0
  %5795 = vmatpush1.msra.mxu0 0.0
  %5796 = vmatprep.subr.mxu0 0.0
  %5797 = vmatpush1.msra.mxu0 0.0
  %5798 = vmatprep.subr.mxu0 0.0
  %5799 = vmatpush1.msra.mxu0 0.0
  %5800 = vmatprep.subr.mxu0 0.0
  %5801 = vmatpush1.msra.mxu0 0.0
  %5802 = vmatprep.subr.mxu0 0.0
  %5803 = vmatpush1.msra.mxu0 0.0
  %5804 = vmatprep.subr.mxu0 0.0
  %5805 = vmatpush1.msra.mxu0 0.0
  %5806 = vmatprep.subr.mxu0 0.0
  %5807 = vmatpush1.msra.mxu0 0.0
  %5808 = vmatprep.subr.mxu0 0.0
  %5809 = vmatpush1.msra.mxu0 0.0
  %5810 = vmatprep.subr.mxu0 0.0
  %5811 = vmatpush1.msra.mxu0 0.0
  %5812 = vmatprep.subr.mxu0 0.0
  %5813 = vmatpush1.msra.mxu0 0.0
  %5814 = vmatprep.subr.mxu0 0.0
  %5815 = vmatpush1.msra.mxu0 0.0
  %5816 = vmatprep.subr.mxu0 0.0
  %5817 = vmatpush1.msra.mxu0 0.0
  %5818 = vmatprep.subr.mxu0 0.0
  %5819 = vmatpush1.msra.mxu0 0.0
  %5820 = vmatprep.subr.mxu0 0.0
  %5821 = vmatpush1.msra.mxu0 0.0
  %5822 = vmatprep.subr.mxu0 0.0
  %5823 = vmatpush1.msra.mxu0 0.0
  %5824 = vmatprep.subr.mxu0 0.0
  %5825 = vmatpush1.msra.mxu0 0.0
  %5826 = vmatprep.subr.mxu0 0.0
  %5827 = vmatpush1.msra.mxu0 0.0
  %5828 = vmatprep.subr.mxu0 0.0
  %5829 = vmatpush1.msra.mxu0 0.0
  %5830 = vmatprep.subr.mxu0 0.0
  %5831 = vmatpush1.msra.mxu0 0.0
  %5832 = vmatprep.subr.mxu0 0.0
  %5833 = vmatpush1.msra.mxu0 0.0
  %5834 = vmatprep.subr.mxu0 0.0
  %5835 = vmatpush1.msra.mxu0 0.0
  %5836 = vmatprep.subr.mxu0 0.0
  %5837 = vmatpush1.msra.mxu0 0.0
  %5838 = vmatprep.subr.mxu0 0.0
  %5839 = vmatpush1.msra.mxu0 0.0
  %5840 = vmatprep.subr.mxu0 0.0
  %5841 = vmatpush1.msra.mxu0 0.0
  %5842 = vmatprep.subr.mxu0 0.0
  %5843 = vmatpush1.msra.mxu0 0.0
  %5844 = vmatprep.subr.mxu0 0.0
  %5845 = vmatpush1.msra.mxu0 0.0
  %5846 = vmatprep.subr.mxu0 0.0
  %5847 = vmatpush1.msra.mxu0 0.0
  %5848 = vmatprep.mubr.f32.mxu0 0.0
  %5849 = vmatmul.mubr.f32.gmra.mrb[0].mxu0 %v5668
  %v5850 = vpop.f32.mrb[0].mxu0
  %v5851 = vadd.f32 0.0, %v5850
  %v5852 = vpop.f32.mrb[0].mxu0
  %5853 = vmatprep.mubr.f32.mxu0 0.0
  %5854 = vmatmul.mubr.f32.gmra.mrb[0].mxu0 %v5671
  %v5855 = vpop.f32.mrb[0].mxu0
  %v5856 = vadd.f32 0.0, %v5855
  %v5857 = vpop.f32.mrb[0].mxu0
  %5858 = vmatprep.mubr.f32.mxu0 0.0
  %5859 = vmatmul.mubr.f32.gmra.mrb[0].mxu0 %v5674
  %v5860 = vpop.f32.mrb[0].mxu0
  %v5861 = vadd.f32 0.0, %v5860
  %v5862 = vpop.f32.mrb[0].mxu0
  %5863 = vmatprep.mubr.f32.mxu0 0.0
  %5864 = vmatmul.mubr.f32.gmra.mrb[0].mxu0 %v5677
  %v5865 = vpop.f32.mrb[0].mxu0
  %v5866 = vadd.f32 0.0, %v5865
  %v5867 = vpop.f32.mrb[0].mxu0
  %5868 = vmatprep.mubr.f32.mxu0 0.0
  %5869 = vmatmul.mubr.f32.gmra.mrb[0].mxu0 %v5680
  %v5870 = vpop.f32.mrb[0].mxu0
  %v5871 = vadd.f32 0.0, %v5870
  %v5872 = vpop.f32.mrb[0].mxu0
  %5873 = vmatprep.mubr.f32.mxu0 0.0
  %5874 = vmatmul.mubr.f32.gmra.mrb[0].mxu0 %v5683
  %v5875 = vpop.f32.mrb[0].mxu0
  %v5876 = vadd.f32 0.0, %v5875
  %v5877 = vpop.f32.mrb[0].mxu0
  %5878 = vmatprep.mubr.f32.mxu0 0.0
  %5879 = vmatmul.mubr.f32.gmra.mrb[0].mxu0 %v5686
  %v5880 = vpop.f32.mrb[0].mxu0
  %v5881 = vadd.f32 0.0, %v5880
  %v5882 = vpop.f32.mrb[0].mxu0
  %5883 = vmatprep.mubr.f32.mxu0 0.0
  %5884 = vmatmul.mubr.f32.gmra.mrb[0].mxu0 %v5689
  %v5885 = vpop.f32.mrb[0].mxu0
  %v5886 = vadd.f32 0.0, %v5885
  %v5887 = vpop.f32.mrb[0].mxu0
  %5888 = vmatprep.mubr.f32.mxu0 0.0
  %5889 = vmatmul.mubr.f32.gmra.mrb[0].mxu0 %v5692
  %v5890 = vpop.f32.mrb[0].mxu0
  %v5891 = vadd.f32 0.0, %v5890
  %v5892 = vpop.f32.mrb[0].mxu0
  %5893 = vmatprep.mubr.f32.mxu0 0.0
  %5894 = vmatmul.mubr.f32.gmra.mrb[0].mxu0 %v5695
  %v5895 = vpop.f32.mrb[0].mxu0
  %v5896 = vadd.f32 0.0, %v5895
  %v5897 = vpop.f32.mrb[0].mxu0
  %5898 = vmatprep.mubr.f32.mxu0 0.0
  %5899 = vmatmul.mubr.f32.gmra.mrb[0].mxu0 %v5698
  %v5900 = vpop.f32.mrb[0].mxu0
  %v5901 = vadd.f32 0.0, %v5900
  %v5902 = vpop.f32.mrb[0].mxu0
  %5903 = vmatprep.mubr.f32.mxu0 0.0
  %5904 = vmatmul.mubr.f32.gmra.mrb[0].mxu0 %v5701
  %v5905 = vpop.f32.mrb[0].mxu0
  %v5906 = vadd.f32 0.0, %v5905
  %v5907 = vpop.f32.mrb[0].mxu0
  %5908 = vmatprep.mubr.f32.mxu0 0.0
  %5909 = vmatmul.mubr.f32.gmra.mrb[0].mxu0 %v5704
  %v5910 = vpop.f32.mrb[0].mxu0
  %v5911 = vadd.f32 0.0, %v5910
  %v5912 = vpop.f32.mrb[0].mxu0
  %5913 = vmatprep.mubr.f32.mxu0 0.0
  %5914 = vmatmul.mubr.f32.gmra.mrb[0].mxu0 %v5707
  %v5915 = vpop.f32.mrb[0].mxu0
  %v5916 = vadd.f32 0.0, %v5915
  %v5917 = vpop.f32.mrb[0].mxu0
  %5918 = vmatprep.mubr.f32.mxu0 0.0
  %5919 = vmatmul.mubr.f32.gmra.mrb[0].mxu0 %v5710
  %v5920 = vpop.f32.mrb[0].mxu0
  %v5921 = vadd.f32 0.0, %v5920
  %v5922 = vpop.f32.mrb[0].mxu0
  %5923 = vmatprep.mubr.f32.mxu0 0.0
  %5924 = vmatmul.mubr.f32.gmra.mrb[0].mxu0 %v5713
  %v5925 = vpop.f32.mrb[0].mxu0
  %v5926 = vadd.f32 0.0, %v5925
  %v5927 = vpop.f32.mrb[0].mxu0
  %5928 = vmatprep.mubr.f32.mxu0 0.0
  %5929 = vmatmul.mubr.f32.gmra.mrb[0].mxu0 %v5716
  %v5930 = vpop.f32.mrb[0].mxu0
  %v5931 = vadd.f32 0.0, %v5930
  %v5932 = vpop.f32.mrb[0].mxu0
  %5933 = vmatprep.mubr.f32.mxu0 0.0
  %5934 = vmatmul.mubr.f32.gmra.mrb[0].mxu0 %v5719
  %v5935 = vpop.f32.mrb[0].mxu0
  %v5936 = vadd.f32 0.0, %v5935
  %v5937 = vpop.f32.mrb[0].mxu0
  %5938 = vmatprep.mubr.f32.mxu0 0.0
  %5939 = vmatmul.mubr.f32.gmra.mrb[0].mxu0 %v5722
  %v5940 = vpop.f32.mrb[0].mxu0
  %v5941 = vadd.f32 0.0, %v5940
  %v5942 = vpop.f32.mrb[0].mxu0
  %5943 = vmatprep.mubr.f32.mxu0 0.0
  %5944 = vmatmul.mubr.f32.gmra.mrb[0].mxu0 %v5725
  %v5945 = vpop.f32.mrb[0].mxu0
  %v5946 = vadd.f32 0.0, %v5945
  %v5947 = vpop.f32.mrb[0].mxu0
  %5948 = vmatprep.mubr.f32.mxu0 0.0
  %5949 = vmatmul.mubr.f32.gmra.mrb[0].mxu0 %v5728
  %v5950 = vpop.f32.mrb[0].mxu0
  %v5951 = vadd.f32 0.0, %v5950
  %v5952 = vpop.f32.mrb[0].mxu0
  %5953 = vmatprep.mubr.f32.mxu0 0.0
  %5954 = vmatmul.mubr.f32.gmra.mrb[0].mxu0 %v5731
  %v5955 = vpop.f32.mrb[0].mxu0
  %v5956 = vadd.f32 0.0, %v5955
  %v5957 = vpop.f32.mrb[0].mxu0
  %5958 = vmatprep.mubr.f32.mxu0 0.0
  %5959 = vmatmul.mubr.f32.gmra.mrb[0].mxu0 %v5734
  %v5960 = vpop.f32.mrb[0].mxu0
  %v5961 = vadd.f32 0.0, %v5960
  %v5962 = vpop.f32.mrb[0].mxu0
  %5963 = vmatprep.mubr.f32.mxu0 0.0
  %5964 = vmatmul.mubr.f32.gmra.mrb[0].mxu0 %v5737
  %v5965 = vpop.f32.mrb[0].mxu0
  %v5966 = vadd.f32 0.0, %v5965
  %v5967 = vpop.f32.mrb[0].mxu0
  %5968 = vmatprep.mubr.f32.mxu0 0.0
  %5969 = vmatmul.mubr.f32.gmra.mrb[0].mxu0 %v5740
  %v5970 = vpop.f32.mrb[0].mxu0
  %v5971 = vadd.f32 0.0, %v5970
  %v5972 = vpop.f32.mrb[0].mxu0
  %5973 = vmatprep.mubr.f32.mxu0 0.0
  %5974 = vmatmul.mubr.f32.gmra.mrb[0].mxu0 %v5743
  %v5975 = vpop.f32.mrb[0].mxu0
  %v5976 = vadd.f32 0.0, %v5975
  %v5977 = vpop.f32.mrb[0].mxu0
  %5978 = vmatprep.mubr.f32.mxu0 0.0
  %5979 = vmatmul.mubr.f32.gmra.mrb[0].mxu0 %v5746
  %v5980 = vpop.f32.mrb[0].mxu0
  %v5981 = vadd.f32 0.0, %v5980
  %v5982 = vpop.f32.mrb[0].mxu0
  %5983 = vmatprep.mubr.f32.mxu0 0.0
  %5984 = vmatmul.mubr.f32.gmra.mrb[0].mxu0 %v5749
  %v5985 = vpop.f32.mrb[0].mxu0
  %v5986 = vadd.f32 0.0, %v5985
  %v5987 = vpop.f32.mrb[0].mxu0
  %5988 = vmatprep.mubr.f32.mxu0 0.0
  %5989 = vmatmul.mubr.f32.gmra.mrb[0].mxu0 %v5752
  %v5990 = vpop.f32.mrb[0].mxu0
  %v5991 = vadd.f32 0.0, %v5990
  %v5992 = vpop.f32.mrb[0].mxu0
  %5993 = vmatprep.mubr.f32.mxu0 0.0
  %5994 = vmatmul.mubr.f32.gmra.mrb[0].mxu0 %v5755
  %v5995 = vpop.f32.mrb[0].mxu0
  %v5996 = vadd.f32 0.0, %v5995
  %v5997 = vpop.f32.mrb[0].mxu0
  %5998 = vmatprep.mubr.f32.mxu0 0.0
  %5999 = vmatmul.mubr.f32.gmra.mrb[0].mxu0 %v5758
  %v6000 = vpop.f32.mrb[0].mxu0
  %v6001 = vadd.f32 0.0, %v6000
  %v6002 = vpop.f32.mrb[0].mxu0
  %6003 = vmatprep.mubr.f32.mxu0 0.0
  %6004 = vmatmul.mubr.f32.gmra.mrb[0].mxu0 %v5761
  %v6005 = vpop.f32.mrb[0].mxu0
  %v6006 = vadd.f32 0.0, %v6005
  %v6007 = vpop.f32.mrb[0].mxu0
  %6008 = vmatprep.mubr.f32.mxu0 0.0
  %6009 = vmatmul.mubr.f32.gmra.mrb[0].mxu0 %v5764
  %v6010 = vpop.f32.mrb[0].mxu0
  %v6011 = vadd.f32 0.0, %v6010
  %v6012 = vpop.f32.mrb[0].mxu0
  %6013 = vmatprep.mubr.f32.mxu0 0.0
  %6014 = vmatmul.mubr.f32.gmra.mrb[0].mxu0 %v5767
  %v6015 = vpop.f32.mrb[0].mxu0
  %v6016 = vadd.f32 0.0, %v6015
  %v6017 = vpop.f32.mrb[0].mxu0
  %6018 = vmatprep.mubr.f32.mxu0 0.0
  %6019 = vmatmul.mubr.f32.gmra.mrb[0].mxu0 %v5770
  %v6020 = vpop.f32.mrb[0].mxu0
  %v6021 = vadd.f32 0.0, %v6020
  %v6022 = vpop.f32.mrb[0].mxu0
  %6023 = vmatprep.mubr.f32.mxu0 0.0
  %6024 = vmatmul.mubr.f32.gmra.mrb[0].mxu0 %v5773
  %v6025 = vpop.f32.mrb[0].mxu0
  %v6026 = vadd.f32 0.0, %v6025
  %v6027 = vpop.f32.mrb[0].mxu0
  %6028 = vmatprep.mubr.f32.mxu0 0.0
  %6029 = vmatmul.mubr.f32.gmra.mrb[0].mxu0 %v5776
  %v6030 = vpop.f32.mrb[0].mxu0
  %v6031 = vadd.f32 0.0, %v6030
  %v6032 = vpop.f32.mrb[0].mxu0
  %6033 = vmatprep.mubr.f32.mxu0 0.0
  %6034 = vmatmul.mubr.f32.gmra.mrb[0].mxu0 %v5779
  %v6035 = vpop.f32.mrb[0].mxu0
  %v6036 = vadd.f32 0.0, %v6035
  %v6037 = vpop.f32.mrb[0].mxu0
  %6038 = vmatprep.mubr.f32.mxu0 0.0
  %6039 = vmatmul.mubr.f32.gmra.mrb[0].mxu0 %v5782
  %v6040 = vpop.f32.mrb[0].mxu0
  %v6041 = vadd.f32 0.0, %v6040
  %v6042 = vpop.f32.mrb[0].mxu0
  %6043 = vdwg.mxu0
  %v6044 = vadd.f32 %v4871, %v5474
  %v6045 = vadd.f32 %v4876, %v5479
  %v6046 = vadd.f32 %v4881, %v5484
  %v6047 = vadd.f32 %v4886, %v5489
  %v6048 = vadd.f32 %v4891, %v5494
  %v6049 = vadd.f32 %v4896, %v5499
  %v6050 = vadd.f32 %v4901, %v5504
  %v6051 = vadd.f32 %v4906, %v5509
  %v6052 = vadd.f32 %v4911, %v5514
  %v6053 = vadd.f32 %v4916, %v5519
  %v6054 = vadd.f32 %v4921, %v5524
  %v6055 = vadd.f32 %v4926, %v5529
  %v6056 = vadd.f32 %v4931, %v5534
  %v6057 = vadd.f32 %v4936, %v5539
  %v6058 = vadd.f32 %v4941, %v5544
  %v6059 = vadd.f32 %v4946, %v5549
  %v6060 = vadd.f32 %v4951, %v5554
  %v6061 = vadd.f32 %v4956, %v5559
  %v6062 = vadd.f32 %v4961, %v5564
  %v6063 = vadd.f32 %v4966, %v5569
  %v6064 = vadd.f32 %v4971, %v5574
  %v6065 = vadd.f32 %v4976, %v5579
  %v6066 = vadd.f32 %v4981, %v5584
  %v6067 = vadd.f32 %v4986, %v5589
  %v6068 = vadd.f32 %v4991, %v5594
  %v6069 = vadd.f32 %v4996, %v5599
  %v6070 = vadd.f32 %v5001, %v5604
  %v6071 = vadd.f32 %v5006, %v5609
  %v6072 = vadd.f32 %v5011, %v5614
  %v6073 = vadd.f32 %v5016, %v5619
  %v6074 = vadd.f32 %v5021, %v5624
  %v6075 = vadd.f32 %v5026, %v5629
  %v6076 = vadd.f32 %v5031, %v5634
  %v6077 = vadd.f32 %v5036, %v5639
  %v6078 = vadd.f32 %v5041, %v5644
  %v6079 = vadd.f32 %v5046, %v5649
  %v6080 = vadd.f32 %v5051, %v5654
  %v6081 = vadd.f32 %v5056, %v5659
  %v6082 = vadd.f32 %v5061, %v5664
  %v6083 = vadd.f32 %v5131, %v5851
  %v6084 = vadd.f32 %v5136, %v5856
  %v6085 = vadd.f32 %v5141, %v5861
  %v6086 = vadd.f32 %v5146, %v5866
  %v6087 = vadd.f32 %v5151, %v5871
  %v6088 = vadd.f32 %v5156, %v5876
  %v6089 = vadd.f32 %v5161, %v5881
  %v6090 = vadd.f32 %v5166, %v5886
  %v6091 = vadd.f32 %v5171, %v5891
  %v6092 = vadd.f32 %v5176, %v5896
  %v6093 = vadd.f32 %v5181, %v5901
  %v6094 = vadd.f32 %v5186, %v5906
  %v6095 = vadd.f32 %v5191, %v5911
  %v6096 = vadd.f32 %v5196, %v5916
  %v6097 = vadd.f32 %v5201, %v5921
  %v6098 = vadd.f32 %v5206, %v5926
  %v6099 = vadd.f32 %v5211, %v5931
  %v6100 = vadd.f32 %v5216, %v5936
  %v6101 = vadd.f32 %v5221, %v5941
  %v6102 = vadd.f32 %v5226, %v5946
  %v6103 = vadd.f32 %v5231, %v5951
  %v6104 = vadd.f32 %v5236, %v5956
  %v6105 = vadd.f32 %v5241, %v5961
  %v6106 = vadd.f32 %v5246, %v5966
  %v6107 = vadd.f32 %v5251, %v5971
  %v6108 = vadd.f32 %v5256, %v5976
  %v6109 = vadd.f32 %v5261, %v5981
  %v6110 = vadd.f32 %v5266, %v5986
  %v6111 = vadd.f32 %v5271, %v5991
  %v6112 = vadd.f32 %v5276, %v5996
  %v6113 = vadd.f32 %v5281, %v6001
  %v6114 = vadd.f32 %v5286, %v6006
  %v6115 = vadd.f32 %v5291, %v6011
  %v6116 = vadd.f32 %v5296, %v6016
  %v6117 = vadd.f32 %v5301, %v6021
  %v6118 = vadd.f32 %v5306, %v6026
  %v6119 = vadd.f32 %v5311, %v6031
  %v6120 = vadd.f32 %v5316, %v6036
  %v6121 = vadd.f32 %v5321, %v6041
  %v6122 = vmax.f32 %v6044, %v6083
  %v6123 = vmax.f32 %v6045, %v6084
  %v6124 = vmax.f32 %v6046, %v6085
  %v6125 = vmax.f32 %v6047, %v6086
  %v6126 = vmax.f32 %v6048, %v6087
  %v6127 = vmax.f32 %v6049, %v6088
  %v6128 = vmax.f32 %v6050, %v6089
  %v6129 = vmax.f32 %v6051, %v6090
  %v6130 = vmax.f32 %v6052, %v6091
  %v6131 = vmax.f32 %v6053, %v6092
  %v6132 = vmax.f32 %v6054, %v6093
  %v6133 = vmax.f32 %v6055, %v6094
  %v6134 = vmax.f32 %v6056, %v6095
  %v6135 = vmax.f32 %v6057, %v6096
  %v6136 = vmax.f32 %v6058, %v6097
  %v6137 = vmax.f32 %v6059, %v6098
  %v6138 = vmax.f32 %v6060, %v6099
  %v6139 = vmax.f32 %v6061, %v6100
  %v6140 = vmax.f32 %v6062, %v6101
  %v6141 = vmax.f32 %v6063, %v6102
  %v6142 = vmax.f32 %v6064, %v6103
  %v6143 = vmax.f32 %v6065, %v6104
  %v6144 = vmax.f32 %v6066, %v6105
  %v6145 = vmax.f32 %v6067, %v6106
  %v6146 = vmax.f32 %v6068, %v6107
  %v6147 = vmax.f32 %v6069, %v6108
  %v6148 = vmax.f32 %v6070, %v6109
  %v6149 = vmax.f32 %v6071, %v6110
  %v6150 = vmax.f32 %v6072, %v6111
  %v6151 = vmax.f32 %v6073, %v6112
  %v6152 = vmax.f32 %v6074, %v6113
  %v6153 = vmax.f32 %v6075, %v6114
  %v6154 = vmax.f32 %v6076, %v6115
  %v6155 = vmax.f32 %v6077, %v6116
  %v6156 = vmax.f32 %v6078, %v6117
  %v6157 = vmax.f32 %v6079, %v6118
  %v6158 = vmax.f32 %v6080, %v6119
  %v6159 = vmax.f32 %v6081, %v6120
  %v6160 = vmax.f32 %v6082, %v6121
  %v6161 = vld [vmem:[%s4] sm:$0x1]
  %v6163 = vlaneseq
  %v6164 = vshrl.u32 %v6163, 7
  %v6165 = vsub.s32 0, %v6164
  %v6166 = vrot.slane %v6161, %v6165
  %v6168 = vadd.f32 %v6122, %v6166
  %v6169 = vadd.f32 %v6123, %v6166
  %v6170 = vadd.f32 %v6124, %v6166
  %v6171 = vadd.f32 %v6125, %v6166
  %v6172 = vadd.f32 %v6126, %v6166
  %v6173 = vadd.f32 %v6127, %v6166
  %v6174 = vadd.f32 %v6128, %v6166
  %v6175 = vadd.f32 %v6129, %v6166
  %v6176 = vadd.f32 %v6130, %v6166
  %v6177 = vadd.f32 %v6131, %v6166
  %v6178 = vadd.f32 %v6132, %v6166
  %v6179 = vadd.f32 %v6133, %v6166
  %v6180 = vadd.f32 %v6134, %v6166
  %v6181 = vadd.f32 %v6135, %v6166
  %v6182 = vadd.f32 %v6136, %v6166
  %v6183 = vadd.f32 %v6137, %v6166
  %v6184 = vadd.f32 %v6138, %v6166
  %v6185 = vadd.f32 %v6139, %v6166
  %v6186 = vadd.f32 %v6140, %v6166
  %v6187 = vadd.f32 %v6141, %v6166
  %v6188 = vadd.f32 %v6142, %v6166
  %v6189 = vadd.f32 %v6143, %v6166
  %v6190 = vadd.f32 %v6144, %v6166
  %v6191 = vadd.f32 %v6145, %v6166
  %v6192 = vadd.f32 %v6146, %v6166
  %v6193 = vadd.f32 %v6147, %v6166
  %v6194 = vadd.f32 %v6148, %v6166
  %v6195 = vadd.f32 %v6149, %v6166
  %v6196 = vadd.f32 %v6150, %v6166
  %v6197 = vadd.f32 %v6151, %v6166
  %v6198 = vadd.f32 %v6152, %v6166
  %v6199 = vadd.f32 %v6153, %v6166
  %v6200 = vadd.f32 %v6154, %v6166
  %v6201 = vadd.f32 %v6155, %v6166
  %v6202 = vadd.f32 %v6156, %v6166
  %v6203 = vadd.f32 %v6157, %v6166
  %v6204 = vadd.f32 %v6158, %v6166
  %v6205 = vadd.f32 %v6159, %v6166
  %v6206 = vadd.f32 %v6160, %v6166
  %v6207 = vmax.f32 %v6168, 0.0
  %v6208 = vmax.f32 %v6169, 0.0
  %v6209 = vmax.f32 %v6170, 0.0
  %v6210 = vmax.f32 %v6171, 0.0
  %v6211 = vmax.f32 %v6172, 0.0
  %v6212 = vmax.f32 %v6173, 0.0
  %v6213 = vmax.f32 %v6174, 0.0
  %v6214 = vmax.f32 %v6175, 0.0
  %v6215 = vmax.f32 %v6176, 0.0
  %v6216 = vmax.f32 %v6177, 0.0
  %v6217 = vmax.f32 %v6178, 0.0
  %v6218 = vmax.f32 %v6179, 0.0
  %v6219 = vmax.f32 %v6180, 0.0
  %v6220 = vmax.f32 %v6181, 0.0
  %v6221 = vmax.f32 %v6182, 0.0
  %v6222 = vmax.f32 %v6183, 0.0
  %v6223 = vmax.f32 %v6184, 0.0
  %v6224 = vmax.f32 %v6185, 0.0
  %v6225 = vmax.f32 %v6186, 0.0
  %v6226 = vmax.f32 %v6187, 0.0
  %v6227 = vmax.f32 %v6188, 0.0
  %v6228 = vmax.f32 %v6189, 0.0
  %v6229 = vmax.f32 %v6190, 0.0
  %v6230 = vmax.f32 %v6191, 0.0
  %v6231 = vmax.f32 %v6192, 0.0
  %v6232 = vmax.f32 %v6193, 0.0
  %v6233 = vmax.f32 %v6194, 0.0
  %v6234 = vmax.f32 %v6195, 0.0
  %v6235 = vmax.f32 %v6196, 0.0
  %v6236 = vmax.f32 %v6197, 0.0
  %v6237 = vmax.f32 %v6198, 0.0
  %v6238 = vmax.f32 %v6199, 0.0
  %v6239 = vmax.f32 %v6200, 0.0
  %v6240 = vmax.f32 %v6201, 0.0
  %v6241 = vmax.f32 %v6202, 0.0
  %v6242 = vmax.f32 %v6203, 0.0
  %v6243 = vmax.f32 %v6204, 0.0
  %v6244 = vmax.f32 %v6205, 0.0
  %v6245 = vmax.f32 %v6206, 0.0
  %vm6246 = vcmask 523264
  %6247 = vst.msk [vmem:[#allocation3] sm:$0xff] %vm6246, 0.0
  %6248 = vst.msk [vmem:[#allocation3 + $0x140] sm:$0xff] %vm6246, 0.0
  %6249 = vst.msk [vmem:[#allocation3 + $0x8] sm:$0xff] %vm6246, %v6207
  %6250 = vst.msk [vmem:[#allocation3 + $0x10] sm:$0xff] %vm6246, %v6208
  %6251 = vst.msk [vmem:[#allocation3 + $0x18] sm:$0xff] %vm6246, %v6209
  %6252 = vst.msk [vmem:[#allocation3 + $0x20] sm:$0xff] %vm6246, %v6210
  %6253 = vst.msk [vmem:[#allocation3 + $0x28] sm:$0xff] %vm6246, %v6211
  %6254 = vst.msk [vmem:[#allocation3 + $0x30] sm:$0xff] %vm6246, %v6212
  %6255 = vst.msk [vmem:[#allocation3 + $0x38] sm:$0xff] %vm6246, %v6213
  %6256 = vst.msk [vmem:[#allocation3 + $0x40] sm:$0xff] %vm6246, %v6214
  %6257 = vst.msk [vmem:[#allocation3 + $0x48] sm:$0xff] %vm6246, %v6215
  %6258 = vst.msk [vmem:[#allocation3 + $0x50] sm:$0xff] %vm6246, %v6216
  %6259 = vst.msk [vmem:[#allocation3 + $0x58] sm:$0xff] %vm6246, %v6217
  %6260 = vst.msk [vmem:[#allocation3 + $0x60] sm:$0xff] %vm6246, %v6218
  %6261 = vst.msk [vmem:[#allocation3 + $0x68] sm:$0xff] %vm6246, %v6219
  %6262 = vst.msk [vmem:[#allocation3 + $0x70] sm:$0xff] %vm6246, %v6220
  %6263 = vst.msk [vmem:[#allocation3 + $0x78] sm:$0xff] %vm6246, %v6221
  %6264 = vst.msk [vmem:[#allocation3 + $0x80] sm:$0xff] %vm6246, %v6222
  %6265 = vst.msk [vmem:[#allocation3 + $0x88] sm:$0xff] %vm6246, %v6223
  %6266 = vst.msk [vmem:[#allocation3 + $0x90] sm:$0xff] %vm6246, %v6224
  %6267 = vst.msk [vmem:[#allocation3 + $0x98] sm:$0xff] %vm6246, %v6225
  %6268 = vst.msk [vmem:[#allocation3 + $0xa0] sm:$0xff] %vm6246, %v6226
  %6269 = vst.msk [vmem:[#allocation3 + $0xa8] sm:$0xff] %vm6246, %v6227
  %6270 = vst.msk [vmem:[#allocation3 + $0xb0] sm:$0xff] %vm6246, %v6228
  %6271 = vst.msk [vmem:[#allocation3 + $0xb8] sm:$0xff] %vm6246, %v6229
  %6272 = vst.msk [vmem:[#allocation3 + $0xc0] sm:$0xff] %vm6246, %v6230
  %6273 = vst.msk [vmem:[#allocation3 + $0xc8] sm:$0xff] %vm6246, %v6231
  %6274 = vst.msk [vmem:[#allocation3 + $0xd0] sm:$0xff] %vm6246, %v6232
  %6275 = vst.msk [vmem:[#allocation3 + $0xd8] sm:$0xff] %vm6246, %v6233
  %6276 = vst.msk [vmem:[#allocation3 + $0xe0] sm:$0xff] %vm6246, %v6234
  %6277 = vst.msk [vmem:[#allocation3 + $0xe8] sm:$0xff] %vm6246, %v6235
  %6278 = vst.msk [vmem:[#allocation3 + $0xf0] sm:$0xff] %vm6246, %v6236
  %6279 = vst.msk [vmem:[#allocation3 + $0xf8] sm:$0xff] %vm6246, %v6237
  %6280 = vst.msk [vmem:[#allocation3 + $0x100] sm:$0xff] %vm6246, %v6238
  %6281 = vst.msk [vmem:[#allocation3 + $0x108] sm:$0xff] %vm6246, %v6239
  %6282 = vst.msk [vmem:[#allocation3 + $0x110] sm:$0xff] %vm6246, %v6240
  %6283 = vst.msk [vmem:[#allocation3 + $0x118] sm:$0xff] %vm6246, %v6241
  %6284 = vst.msk [vmem:[#allocation3 + $0x120] sm:$0xff] %vm6246, %v6242
  %6285 = vst.msk [vmem:[#allocation3 + $0x128] sm:$0xff] %vm6246, %v6243
  %6286 = vst.msk [vmem:[#allocation3 + $0x130] sm:$0xff] %vm6246, %v6244
  %6287 = vst.msk [vmem:[#allocation3 + $0x138] sm:$0xff] %vm6246, %v6245
  %v6288 = vld [vmem:[%s5] sm:$0xff]
  %v6289 = vld [vmem:[%s5 + $0x8] sm:$0xff]
  %v6290 = vld [vmem:[%s5 + $0x10] sm:$0xff]
  %v6291 = vld [vmem:[%s5 + $0x18] sm:$0xff]
  %v6292 = vld [vmem:[%s5 + $0x20] sm:$0xff]
  %v6293 = vld [vmem:[%s5 + $0x28] sm:$0xff]
  %v6294 = vld [vmem:[%s5 + $0x30] sm:$0xff]
  %v6295 = vld [vmem:[%s5 + $0x38] sm:$0xff]
  %s6296 = scalar_lea.vmem [#allocation3], 7
  %v6297 = vld [vmem:[%s6296] ss:$2 sm:$0xff]
  %s6298 = scalar_lea.vmem [#allocation3], 23
  %v6299 = vld [vmem:[%s6298] ss:$2 sm:$0xff]
  %s6300 = scalar_lea.vmem [#allocation3], 39
  %v6301 = vld [vmem:[%s6300] ss:$2 sm:$0xff]
  %s6302 = scalar_lea.vmem [#allocation3], 55
  %v6303 = vld [vmem:[%s6302] ss:$2 sm:$0xff]
  %s6304 = scalar_lea.vmem [#allocation3], 71
  %v6305 = vld [vmem:[%s6304] ss:$2 sm:$0xff]
  %s6306 = scalar_lea.vmem [#allocation3], 87
  %v6307 = vld [vmem:[%s6306] ss:$2 sm:$0xff]
  %s6308 = scalar_lea.vmem [#allocation3], 103
  %v6309 = vld [vmem:[%s6308] ss:$2 sm:$0xff]
  %s6310 = scalar_lea.vmem [#allocation3], 119
  %v6311 = vld [vmem:[%s6310] ss:$2 sm:$0xff]
  %s6312 = scalar_lea.vmem [#allocation3], 135
  %v6313 = vld [vmem:[%s6312] ss:$2 sm:$0xff]
  %s6314 = scalar_lea.vmem [#allocation3], 151
  %v6315 = vld [vmem:[%s6314] ss:$2 sm:$0xff]
  %s6316 = scalar_lea.vmem [#allocation3], 167
  %v6317 = vld [vmem:[%s6316] ss:$2 sm:$0xff]
  %s6318 = scalar_lea.vmem [#allocation3], 183
  %v6319 = vld [vmem:[%s6318] ss:$2 sm:$0xff]
  %s6320 = scalar_lea.vmem [#allocation3], 199
  %v6321 = vld [vmem:[%s6320] ss:$2 sm:$0xff]
  %s6322 = scalar_lea.vmem [#allocation3], 215
  %v6323 = vld [vmem:[%s6322] ss:$2 sm:$0xff]
  %s6324 = scalar_lea.vmem [#allocation3], 231
  %v6325 = vld [vmem:[%s6324] ss:$2 sm:$0xff]
  %s6326 = scalar_lea.vmem [#allocation3], 247
  %v6327 = vld [vmem:[%s6326] ss:$2 sm:$0xff]
  %s6328 = scalar_lea.vmem [#allocation3], 263
  %v6329 = vld [vmem:[%s6328] ss:$2 sm:$0xff]
  %s6330 = scalar_lea.vmem [#allocation3], 279
  %v6331 = vld [vmem:[%s6330] ss:$2 sm:$0xff]
  %s6332 = scalar_lea.vmem [#allocation3], 295
  %v6333 = vld [vmem:[%s6332] ss:$2 sm:$0xff]
  %s6334 = scalar_lea.vmem [#allocation3], 311
  %v6335 = vld [vmem:[%s6334] ss:$2 sm:$0xf]
  %s6336 = scalar_lea.vmem [#allocation3], 8
  %v6337 = vld [vmem:[%s6336] ss:$2 sm:$0xff]
  %s6338 = scalar_lea.vmem [#allocation3], 24
  %v6339 = vld [vmem:[%s6338] ss:$2 sm:$0xff]
  %s6340 = scalar_lea.vmem [#allocation3], 40
  %v6341 = vld [vmem:[%s6340] ss:$2 sm:$0xff]
  %s6342 = scalar_lea.vmem [#allocation3], 56
  %v6343 = vld [vmem:[%s6342] ss:$2 sm:$0xff]
  %s6344 = scalar_lea.vmem [#allocation3], 72
  %v6345 = vld [vmem:[%s6344] ss:$2 sm:$0xff]
  %s6346 = scalar_lea.vmem [#allocation3], 88
  %v6347 = vld [vmem:[%s6346] ss:$2 sm:$0xff]
  %s6348 = scalar_lea.vmem [#allocation3], 104
  %v6349 = vld [vmem:[%s6348] ss:$2 sm:$0xff]
  %s6350 = scalar_lea.vmem [#allocation3], 120
  %v6351 = vld [vmem:[%s6350] ss:$2 sm:$0xff]
  %s6352 = scalar_lea.vmem [#allocation3], 136
  %v6353 = vld [vmem:[%s6352] ss:$2 sm:$0xff]
  %s6354 = scalar_lea.vmem [#allocation3], 152
  %v6355 = vld [vmem:[%s6354] ss:$2 sm:$0xff]
  %s6356 = scalar_lea.vmem [#allocation3], 168
  %v6357 = vld [vmem:[%s6356] ss:$2 sm:$0xff]
  %s6358 = scalar_lea.vmem [#allocation3], 184
  %v6359 = vld [vmem:[%s6358] ss:$2 sm:$0xff]
  %s6360 = scalar_lea.vmem [#allocation3], 200
  %v6361 = vld [vmem:[%s6360] ss:$2 sm:$0xff]
  %s6362 = scalar_lea.vmem [#allocation3], 216
  %v6363 = vld [vmem:[%s6362] ss:$2 sm:$0xff]
  %s6364 = scalar_lea.vmem [#allocation3], 232
  %v6365 = vld [vmem:[%s6364] ss:$2 sm:$0xff]
  %s6366 = scalar_lea.vmem [#allocation3], 248
  %v6367 = vld [vmem:[%s6366] ss:$2 sm:$0xff]
  %s6368 = scalar_lea.vmem [#allocation3], 264
  %v6369 = vld [vmem:[%s6368] ss:$2 sm:$0xff]
  %s6370 = scalar_lea.vmem [#allocation3], 280
  %v6371 = vld [vmem:[%s6370] ss:$2 sm:$0xff]
  %s6372 = scalar_lea.vmem [#allocation3], 296
  %v6373 = vld [vmem:[%s6372] ss:$2 sm:$0xff]
  %s6374 = scalar_lea.vmem [#allocation3], 312
  %v6375 = vld [vmem:[%s6374] ss:$2 sm:$0xf]
  %s6376 = scalar_lea.vmem %s5, 64
  %v6377 = vld [vmem:[%s6376] sm:$0xff]
  %v6378 = vld [vmem:[%s6376 + $0x8] sm:$0xff]
  %v6379 = vld [vmem:[%s6376 + $0x10] sm:$0xff]
  %v6380 = vld [vmem:[%s6376 + $0x18] sm:$0xff]
  %v6381 = vld [vmem:[%s6376 + $0x20] sm:$0xff]
  %v6382 = vld [vmem:[%s6376 + $0x28] sm:$0xff]
  %v6383 = vld [vmem:[%s6376 + $0x30] sm:$0xff]
  %v6384 = vld [vmem:[%s6376 + $0x38] sm:$0xff]
  %s6385 = scalar_lea.vmem [#allocation3], 9
  %v6386 = vld [vmem:[%s6385] ss:$2 sm:$0xff]
  %s6387 = scalar_lea.vmem [#allocation3], 25
  %v6388 = vld [vmem:[%s6387] ss:$2 sm:$0xff]
  %s6389 = scalar_lea.vmem [#allocation3], 41
  %v6390 = vld [vmem:[%s6389] ss:$2 sm:$0xff]
  %s6391 = scalar_lea.vmem [#allocation3], 57
  %v6392 = vld [vmem:[%s6391] ss:$2 sm:$0xff]
  %s6393 = scalar_lea.vmem [#allocation3], 73
  %v6394 = vld [vmem:[%s6393] ss:$2 sm:$0xff]
  %s6395 = scalar_lea.vmem [#allocation3], 89
  %v6396 = vld [vmem:[%s6395] ss:$2 sm:$0xff]
  %s6397 = scalar_lea.vmem [#allocation3], 105
  %v6398 = vld [vmem:[%s6397] ss:$2 sm:$0xff]
  %s6399 = scalar_lea.vmem [#allocation3], 121
  %v6400 = vld [vmem:[%s6399] ss:$2 sm:$0xff]
  %s6401 = scalar_lea.vmem [#allocation3], 137
  %v6402 = vld [vmem:[%s6401] ss:$2 sm:$0xff]
  %s6403 = scalar_lea.vmem [#allocation3], 153
  %v6404 = vld [vmem:[%s6403] ss:$2 sm:$0xff]
  %s6405 = scalar_lea.vmem [#allocation3], 169
  %v6406 = vld [vmem:[%s6405] ss:$2 sm:$0xff]
  %s6407 = scalar_lea.vmem [#allocation3], 185
  %v6408 = vld [vmem:[%s6407] ss:$2 sm:$0xff]
  %s6409 = scalar_lea.vmem [#allocation3], 201
  %v6410 = vld [vmem:[%s6409] ss:$2 sm:$0xff]
  %s6411 = scalar_lea.vmem [#allocation3], 217
  %v6412 = vld [vmem:[%s6411] ss:$2 sm:$0xff]
  %s6413 = scalar_lea.vmem [#allocation3], 233
  %v6414 = vld [vmem:[%s6413] ss:$2 sm:$0xff]
  %s6415 = scalar_lea.vmem [#allocation3], 249
  %v6416 = vld [vmem:[%s6415] ss:$2 sm:$0xff]
  %s6417 = scalar_lea.vmem [#allocation3], 265
  %v6418 = vld [vmem:[%s6417] ss:$2 sm:$0xff]
  %s6419 = scalar_lea.vmem [#allocation3], 281
  %v6420 = vld [vmem:[%s6419] ss:$2 sm:$0xff]
  %s6421 = scalar_lea.vmem [#allocation3], 297
  %v6422 = vld [vmem:[%s6421] ss:$2 sm:$0xff]
  %s6423 = scalar_lea.vmem [#allocation3], 313
  %v6424 = vld [vmem:[%s6423] ss:$2 sm:$0xf]
  %v6426 = vsel %vm6246, %v6337, 0
  %v6429 = vsel %vm6246, %v6339, 0
  %v6432 = vsel %vm6246, %v6341, 0
  %v6435 = vsel %vm6246, %v6343, 0
  %v6438 = vsel %vm6246, %v6345, 0
  %v6441 = vsel %vm6246, %v6347, 0
  %v6444 = vsel %vm6246, %v6349, 0
  %v6447 = vsel %vm6246, %v6351, 0
  %v6450 = vsel %vm6246, %v6353, 0
  %v6453 = vsel %vm6246, %v6355, 0
  %v6456 = vsel %vm6246, %v6357, 0
  %v6459 = vsel %vm6246, %v6359, 0
  %v6462 = vsel %vm6246, %v6361, 0
  %v6465 = vsel %vm6246, %v6363, 0
  %v6468 = vsel %vm6246, %v6365, 0
  %v6471 = vsel %vm6246, %v6367, 0
  %v6474 = vsel %vm6246, %v6369, 0
  %v6477 = vsel %vm6246, %v6371, 0
  %v6480 = vsel %vm6246, %v6373, 0
  %v6483 = vsel %vm6246, %v6375, 0
  %6485 = vmatprep.subr.mxu0 0.0
  %6486 = vmatpush1.msra.mxu0 %v6377
  %6487 = vmatprep.subr.mxu0 0.0
  %6488 = vmatpush1.msra.mxu0 %v6378
  %6489 = vmatprep.subr.mxu0 0.0
  %6490 = vmatpush1.msra.mxu0 %v6379
  %6491 = vmatprep.subr.mxu0 0.0
  %6492 = vmatpush1.msra.mxu0 %v6380
  %6493 = vmatprep.subr.mxu0 0.0
  %6494 = vmatpush1.msra.mxu0 %v6381
  %6495 = vmatprep.subr.mxu0 0.0
  %6496 = vmatpush1.msra.mxu0 %v6382
  %6497 = vmatprep.subr.mxu0 0.0
  %6498 = vmatpush1.msra.mxu0 %v6383
  %6499 = vmatprep.subr.mxu0 0.0
  %6500 = vmatpush1.msra.mxu0 %v6384
  %6501 = vmatprep.subr.mxu0 0.0
  %6502 = vmatpush1.msra.mxu0 0.0
  %6503 = vmatprep.subr.mxu0 0.0
  %6504 = vmatpush1.msra.mxu0 0.0
  %6505 = vmatprep.subr.mxu0 0.0
  %6506 = vmatpush1.msra.mxu0 0.0
  %6507 = vmatprep.subr.mxu0 0.0
  %6508 = vmatpush1.msra.mxu0 0.0
  %6509 = vmatprep.subr.mxu0 0.0
  %6510 = vmatpush1.msra.mxu0 0.0
  %6511 = vmatprep.subr.mxu0 0.0
  %6512 = vmatpush1.msra.mxu0 0.0
  %6513 = vmatprep.subr.mxu0 0.0
  %6514 = vmatpush1.msra.mxu0 0.0
  %6515 = vmatprep.subr.mxu0 0.0
  %6516 = vmatpush1.msra.mxu0 0.0
  %6517 = vmatprep.subr.mxu0 0.0
  %6518 = vmatpush1.msra.mxu0 0.0
  %6519 = vmatprep.subr.mxu0 0.0
  %6520 = vmatpush1.msra.mxu0 0.0
  %6521 = vmatprep.subr.mxu0 0.0
  %6522 = vmatpush1.msra.mxu0 0.0
  %6523 = vmatprep.subr.mxu0 0.0
  %6524 = vmatpush1.msra.mxu0 0.0
  %6525 = vmatprep.subr.mxu0 0.0
  %6526 = vmatpush1.msra.mxu0 0.0
  %6527 = vmatprep.subr.mxu0 0.0
  %6528 = vmatpush1.msra.mxu0 0.0
  %6529 = vmatprep.subr.mxu0 0.0
  %6530 = vmatpush1.msra.mxu0 0.0
  %6531 = vmatprep.subr.mxu0 0.0
  %6532 = vmatpush1.msra.mxu0 0.0
  %6533 = vmatprep.subr.mxu0 0.0
  %6534 = vmatpush1.msra.mxu0 0.0
  %6535 = vmatprep.subr.mxu0 0.0
  %6536 = vmatpush1.msra.mxu0 0.0
  %6537 = vmatprep.subr.mxu0 0.0
  %6538 = vmatpush1.msra.mxu0 0.0
  %6539 = vmatprep.subr.mxu0 0.0
  %6540 = vmatpush1.msra.mxu0 0.0
  %6541 = vmatprep.subr.mxu0 0.0
  %6542 = vmatpush1.msra.mxu0 0.0
  %6543 = vmatprep.subr.mxu0 0.0
  %6544 = vmatpush1.msra.mxu0 0.0
  %6545 = vmatprep.subr.mxu0 0.0
  %6546 = vmatpush1.msra.mxu0 0.0
  %6547 = vmatprep.subr.mxu0 0.0
  %6548 = vmatpush1.msra.mxu0 0.0
  %6549 = vmatprep.mubr.f32.mxu0 0.0
  %6550 = vmatmul.mubr.f32.gmra.mrb[0].mxu0 %v6426
  %v6551 = vpop.f32.mrb[0].mxu0
  %v6552 = vadd.f32 0.0, %v6551
  %v6553 = vpop.f32.mrb[0].mxu0
  %6554 = vmatprep.mubr.f32.mxu0 0.0
  %6555 = vmatmul.mubr.f32.gmra.mrb[0].mxu0 %v6429
  %v6556 = vpop.f32.mrb[0].mxu0
  %v6557 = vadd.f32 0.0, %v6556
  %v6558 = vpop.f32.mrb[0].mxu0
  %6559 = vmatprep.mubr.f32.mxu0 0.0
  %6560 = vmatmul.mubr.f32.gmra.mrb[0].mxu0 %v6432
  %v6561 = vpop.f32.mrb[0].mxu0
  %v6562 = vadd.f32 0.0, %v6561
  %v6563 = vpop.f32.mrb[0].mxu0
  %6564 = vmatprep.mubr.f32.mxu0 0.0
  %6565 = vmatmul.mubr.f32.gmra.mrb[0].mxu0 %v6435
  %v6566 = vpop.f32.mrb[0].mxu0
  %v6567 = vadd.f32 0.0, %v6566
  %v6568 = vpop.f32.mrb[0].mxu0
  %6569 = vmatprep.mubr.f32.mxu0 0.0
  %6570 = vmatmul.mubr.f32.gmra.mrb[0].mxu0 %v6438
  %v6571 = vpop.f32.mrb[0].mxu0
  %v6572 = vadd.f32 0.0, %v6571
  %v6573 = vpop.f32.mrb[0].mxu0
  %6574 = vmatprep.mubr.f32.mxu0 0.0
  %6575 = vmatmul.mubr.f32.gmra.mrb[0].mxu0 %v6441
  %v6576 = vpop.f32.mrb[0].mxu0
  %v6577 = vadd.f32 0.0, %v6576
  %v6578 = vpop.f32.mrb[0].mxu0
  %6579 = vmatprep.mubr.f32.mxu0 0.0
  %6580 = vmatmul.mubr.f32.gmra.mrb[0].mxu0 %v6444
  %v6581 = vpop.f32.mrb[0].mxu0
  %v6582 = vadd.f32 0.0, %v6581
  %v6583 = vpop.f32.mrb[0].mxu0
  %6584 = vmatprep.mubr.f32.mxu0 0.0
  %6585 = vmatmul.mubr.f32.gmra.mrb[0].mxu0 %v6447
  %v6586 = vpop.f32.mrb[0].mxu0
  %v6587 = vadd.f32 0.0, %v6586
  %v6588 = vpop.f32.mrb[0].mxu0
  %6589 = vmatprep.mubr.f32.mxu0 0.0
  %6590 = vmatmul.mubr.f32.gmra.mrb[0].mxu0 %v6450
  %v6591 = vpop.f32.mrb[0].mxu0
  %v6592 = vadd.f32 0.0, %v6591
  %v6593 = vpop.f32.mrb[0].mxu0
  %6594 = vmatprep.mubr.f32.mxu0 0.0
  %6595 = vmatmul.mubr.f32.gmra.mrb[0].mxu0 %v6453
  %v6596 = vpop.f32.mrb[0].mxu0
  %v6597 = vadd.f32 0.0, %v6596
  %v6598 = vpop.f32.mrb[0].mxu0
  %6599 = vmatprep.mubr.f32.mxu0 0.0
  %6600 = vmatmul.mubr.f32.gmra.mrb[0].mxu0 %v6456
  %v6601 = vpop.f32.mrb[0].mxu0
  %v6602 = vadd.f32 0.0, %v6601
  %v6603 = vpop.f32.mrb[0].mxu0
  %6604 = vmatprep.mubr.f32.mxu0 0.0
  %6605 = vmatmul.mubr.f32.gmra.mrb[0].mxu0 %v6459
  %v6606 = vpop.f32.mrb[0].mxu0
  %v6607 = vadd.f32 0.0, %v6606
  %v6608 = vpop.f32.mrb[0].mxu0
  %6609 = vmatprep.mubr.f32.mxu0 0.0
  %6610 = vmatmul.mubr.f32.gmra.mrb[0].mxu0 %v6462
  %v6611 = vpop.f32.mrb[0].mxu0
  %v6612 = vadd.f32 0.0, %v6611
  %v6613 = vpop.f32.mrb[0].mxu0
  %6614 = vmatprep.mubr.f32.mxu0 0.0
  %6615 = vmatmul.mubr.f32.gmra.mrb[0].mxu0 %v6465
  %v6616 = vpop.f32.mrb[0].mxu0
  %v6617 = vadd.f32 0.0, %v6616
  %v6618 = vpop.f32.mrb[0].mxu0
  %6619 = vmatprep.mubr.f32.mxu0 0.0
  %6620 = vmatmul.mubr.f32.gmra.mrb[0].mxu0 %v6468
  %v6621 = vpop.f32.mrb[0].mxu0
  %v6622 = vadd.f32 0.0, %v6621
  %v6623 = vpop.f32.mrb[0].mxu0
  %6624 = vmatprep.mubr.f32.mxu0 0.0
  %6625 = vmatmul.mubr.f32.gmra.mrb[0].mxu0 %v6471
  %v6626 = vpop.f32.mrb[0].mxu0
  %v6627 = vadd.f32 0.0, %v6626
  %v6628 = vpop.f32.mrb[0].mxu0
  %6629 = vmatprep.mubr.f32.mxu0 0.0
  %6630 = vmatmul.mubr.f32.gmra.mrb[0].mxu0 %v6474
  %v6631 = vpop.f32.mrb[0].mxu0
  %v6632 = vadd.f32 0.0, %v6631
  %v6633 = vpop.f32.mrb[0].mxu0
  %6634 = vmatprep.mubr.f32.mxu0 0.0
  %6635 = vmatmul.mubr.f32.gmra.mrb[0].mxu0 %v6477
  %v6636 = vpop.f32.mrb[0].mxu0
  %v6637 = vadd.f32 0.0, %v6636
  %v6638 = vpop.f32.mrb[0].mxu0
  %6639 = vmatprep.mubr.f32.mxu0 0.0
  %6640 = vmatmul.mubr.f32.gmra.mrb[0].mxu0 %v6480
  %v6641 = vpop.f32.mrb[0].mxu0
  %v6642 = vadd.f32 0.0, %v6641
  %v6643 = vpop.f32.mrb[0].mxu0
  %6644 = vmatprep.mubr.f32.mxu0 0.0
  %6645 = vmatmul.mubr.f32.gmra.mrb[0].mxu0 %v6483
  %v6646 = vpop.f32.mrb[0].mxu0
  %v6647 = vadd.f32 0.0, %v6646
  %v6648 = vpop.f32.mrb[0].mxu0
  %6649 = vdwg.mxu0
  %v6651 = vsel %vm6246, %v6386, 0
  %v6654 = vsel %vm6246, %v6388, 0
  %v6657 = vsel %vm6246, %v6390, 0
  %v6660 = vsel %vm6246, %v6392, 0
  %v6663 = vsel %vm6246, %v6394, 0
  %v6666 = vsel %vm6246, %v6396, 0
  %v6669 = vsel %vm6246, %v6398, 0
  %v6672 = vsel %vm6246, %v6400, 0
  %v6675 = vsel %vm6246, %v6402, 0
  %v6678 = vsel %vm6246, %v6404, 0
  %v6681 = vsel %vm6246, %v6406, 0
  %v6684 = vsel %vm6246, %v6408, 0
  %v6687 = vsel %vm6246, %v6410, 0
  %v6690 = vsel %vm6246, %v6412, 0
  %v6693 = vsel %vm6246, %v6414, 0
  %v6696 = vsel %vm6246, %v6416, 0
  %v6699 = vsel %vm6246, %v6418, 0
  %v6702 = vsel %vm6246, %v6420, 0
  %v6705 = vsel %vm6246, %v6422, 0
  %v6708 = vsel %vm6246, %v6424, 0
  %6710 = vmatprep.subr.mxu0 0.0
  %6711 = vmatpush1.msra.mxu0 %v6377
  %6712 = vmatprep.subr.mxu0 0.0
  %6713 = vmatpush1.msra.mxu0 %v6378
  %6714 = vmatprep.subr.mxu0 0.0
  %6715 = vmatpush1.msra.mxu0 %v6379
  %6716 = vmatprep.subr.mxu0 0.0
  %6717 = vmatpush1.msra.mxu0 %v6380
  %6718 = vmatprep.subr.mxu0 0.0
  %6719 = vmatpush1.msra.mxu0 %v6381
  %6720 = vmatprep.subr.mxu0 0.0
  %6721 = vmatpush1.msra.mxu0 %v6382
  %6722 = vmatprep.subr.mxu0 0.0
  %6723 = vmatpush1.msra.mxu0 %v6383
  %6724 = vmatprep.subr.mxu0 0.0
  %6725 = vmatpush1.msra.mxu0 %v6384
  %6726 = vmatprep.subr.mxu0 0.0
  %6727 = vmatpush1.msra.mxu0 0.0
  %6728 = vmatprep.subr.mxu0 0.0
  %6729 = vmatpush1.msra.mxu0 0.0
  %6730 = vmatprep.subr.mxu0 0.0
  %6731 = vmatpush1.msra.mxu0 0.0
  %6732 = vmatprep.subr.mxu0 0.0
  %6733 = vmatpush1.msra.mxu0 0.0
  %6734 = vmatprep.subr.mxu0 0.0
  %6735 = vmatpush1.msra.mxu0 0.0
  %6736 = vmatprep.subr.mxu0 0.0
  %6737 = vmatpush1.msra.mxu0 0.0
  %6738 = vmatprep.subr.mxu0 0.0
  %6739 = vmatpush1.msra.mxu0 0.0
  %6740 = vmatprep.subr.mxu0 0.0
  %6741 = vmatpush1.msra.mxu0 0.0
  %6742 = vmatprep.subr.mxu0 0.0
  %6743 = vmatpush1.msra.mxu0 0.0
  %6744 = vmatprep.subr.mxu0 0.0
  %6745 = vmatpush1.msra.mxu0 0.0
  %6746 = vmatprep.subr.mxu0 0.0
  %6747 = vmatpush1.msra.mxu0 0.0
  %6748 = vmatprep.subr.mxu0 0.0
  %6749 = vmatpush1.msra.mxu0 0.0
  %6750 = vmatprep.subr.mxu0 0.0
  %6751 = vmatpush1.msra.mxu0 0.0
  %6752 = vmatprep.subr.mxu0 0.0
  %6753 = vmatpush1.msra.mxu0 0.0
  %6754 = vmatprep.subr.mxu0 0.0
  %6755 = vmatpush1.msra.mxu0 0.0
  %6756 = vmatprep.subr.mxu0 0.0
  %6757 = vmatpush1.msra.mxu0 0.0
  %6758 = vmatprep.subr.mxu0 0.0
  %6759 = vmatpush1.msra.mxu0 0.0
  %6760 = vmatprep.subr.mxu0 0.0
  %6761 = vmatpush1.msra.mxu0 0.0
  %6762 = vmatprep.subr.mxu0 0.0
  %6763 = vmatpush1.msra.mxu0 0.0
  %6764 = vmatprep.subr.mxu0 0.0
  %6765 = vmatpush1.msra.mxu0 0.0
  %6766 = vmatprep.subr.mxu0 0.0
  %6767 = vmatpush1.msra.mxu0 0.0
  %6768 = vmatprep.subr.mxu0 0.0
  %6769 = vmatpush1.msra.mxu0 0.0
  %6770 = vmatprep.subr.mxu0 0.0
  %6771 = vmatpush1.msra.mxu0 0.0
  %6772 = vmatprep.subr.mxu0 0.0
  %6773 = vmatpush1.msra.mxu0 0.0
  %6774 = vmatprep.mubr.f32.mxu0 0.0
  %6775 = vmatmul.mubr.f32.gmra.mrb[0].mxu0 %v6651
  %v6776 = vpop.f32.mrb[0].mxu0
  %v6777 = vadd.f32 0.0, %v6776
  %v6778 = vpop.f32.mrb[0].mxu0
  %6779 = vmatprep.mubr.f32.mxu0 0.0
  %6780 = vmatmul.mubr.f32.gmra.mrb[0].mxu0 %v6654
  %v6781 = vpop.f32.mrb[0].mxu0
  %v6782 = vadd.f32 0.0, %v6781
  %v6783 = vpop.f32.mrb[0].mxu0
  %6784 = vmatprep.mubr.f32.mxu0 0.0
  %6785 = vmatmul.mubr.f32.gmra.mrb[0].mxu0 %v6657
  %v6786 = vpop.f32.mrb[0].mxu0
  %v6787 = vadd.f32 0.0, %v6786
  %v6788 = vpop.f32.mrb[0].mxu0
  %6789 = vmatprep.mubr.f32.mxu0 0.0
  %6790 = vmatmul.mubr.f32.gmra.mrb[0].mxu0 %v6660
  %v6791 = vpop.f32.mrb[0].mxu0
  %v6792 = vadd.f32 0.0, %v6791
  %v6793 = vpop.f32.mrb[0].mxu0
  %6794 = vmatprep.mubr.f32.mxu0 0.0
  %6795 = vmatmul.mubr.f32.gmra.mrb[0].mxu0 %v6663
  %v6796 = vpop.f32.mrb[0].mxu0
  %v6797 = vadd.f32 0.0, %v6796
  %v6798 = vpop.f32.mrb[0].mxu0
  %6799 = vmatprep.mubr.f32.mxu0 0.0
  %6800 = vmatmul.mubr.f32.gmra.mrb[0].mxu0 %v6666
  %v6801 = vpop.f32.mrb[0].mxu0
  %v6802 = vadd.f32 0.0, %v6801
  %v6803 = vpop.f32.mrb[0].mxu0
  %6804 = vmatprep.mubr.f32.mxu0 0.0
  %6805 = vmatmul.mubr.f32.gmra.mrb[0].mxu0 %v6669
  %v6806 = vpop.f32.mrb[0].mxu0
  %v6807 = vadd.f32 0.0, %v6806
  %v6808 = vpop.f32.mrb[0].mxu0
  %6809 = vmatprep.mubr.f32.mxu0 0.0
  %6810 = vmatmul.mubr.f32.gmra.mrb[0].mxu0 %v6672
  %v6811 = vpop.f32.mrb[0].mxu0
  %v6812 = vadd.f32 0.0, %v6811
  %v6813 = vpop.f32.mrb[0].mxu0
  %6814 = vmatprep.mubr.f32.mxu0 0.0
  %6815 = vmatmul.mubr.f32.gmra.mrb[0].mxu0 %v6675
  %v6816 = vpop.f32.mrb[0].mxu0
  %v6817 = vadd.f32 0.0, %v6816
  %v6818 = vpop.f32.mrb[0].mxu0
  %6819 = vmatprep.mubr.f32.mxu0 0.0
  %6820 = vmatmul.mubr.f32.gmra.mrb[0].mxu0 %v6678
  %v6821 = vpop.f32.mrb[0].mxu0
  %v6822 = vadd.f32 0.0, %v6821
  %v6823 = vpop.f32.mrb[0].mxu0
  %6824 = vmatprep.mubr.f32.mxu0 0.0
  %6825 = vmatmul.mubr.f32.gmra.mrb[0].mxu0 %v6681
  %v6826 = vpop.f32.mrb[0].mxu0
  %v6827 = vadd.f32 0.0, %v6826
  %v6828 = vpop.f32.mrb[0].mxu0
  %6829 = vmatprep.mubr.f32.mxu0 0.0
  %6830 = vmatmul.mubr.f32.gmra.mrb[0].mxu0 %v6684
  %v6831 = vpop.f32.mrb[0].mxu0
  %v6832 = vadd.f32 0.0, %v6831
  %v6833 = vpop.f32.mrb[0].mxu0
  %6834 = vmatprep.mubr.f32.mxu0 0.0
  %6835 = vmatmul.mubr.f32.gmra.mrb[0].mxu0 %v6687
  %v6836 = vpop.f32.mrb[0].mxu0
  %v6837 = vadd.f32 0.0, %v6836
  %v6838 = vpop.f32.mrb[0].mxu0
  %6839 = vmatprep.mubr.f32.mxu0 0.0
  %6840 = vmatmul.mubr.f32.gmra.mrb[0].mxu0 %v6690
  %v6841 = vpop.f32.mrb[0].mxu0
  %v6842 = vadd.f32 0.0, %v6841
  %v6843 = vpop.f32.mrb[0].mxu0
  %6844 = vmatprep.mubr.f32.mxu0 0.0
  %6845 = vmatmul.mubr.f32.gmra.mrb[0].mxu0 %v6693
  %v6846 = vpop.f32.mrb[0].mxu0
  %v6847 = vadd.f32 0.0, %v6846
  %v6848 = vpop.f32.mrb[0].mxu0
  %6849 = vmatprep.mubr.f32.mxu0 0.0
  %6850 = vmatmul.mubr.f32.gmra.mrb[0].mxu0 %v6696
  %v6851 = vpop.f32.mrb[0].mxu0
  %v6852 = vadd.f32 0.0, %v6851
  %v6853 = vpop.f32.mrb[0].mxu0
  %6854 = vmatprep.mubr.f32.mxu0 0.0
  %6855 = vmatmul.mubr.f32.gmra.mrb[0].mxu0 %v6699
  %v6856 = vpop.f32.mrb[0].mxu0
  %v6857 = vadd.f32 0.0, %v6856
  %v6858 = vpop.f32.mrb[0].mxu0
  %6859 = vmatprep.mubr.f32.mxu0 0.0
  %6860 = vmatmul.mubr.f32.gmra.mrb[0].mxu0 %v6702
  %v6861 = vpop.f32.mrb[0].mxu0
  %v6862 = vadd.f32 0.0, %v6861
  %v6863 = vpop.f32.mrb[0].mxu0
  %6864 = vmatprep.mubr.f32.mxu0 0.0
  %6865 = vmatmul.mubr.f32.gmra.mrb[0].mxu0 %v6705
  %v6866 = vpop.f32.mrb[0].mxu0
  %v6867 = vadd.f32 0.0, %v6866
  %v6868 = vpop.f32.mrb[0].mxu0
  %6869 = vmatprep.mubr.f32.mxu0 0.0
  %6870 = vmatmul.mubr.f32.gmra.mrb[0].mxu0 %v6708
  %v6871 = vpop.f32.mrb[0].mxu0
  %v6872 = vadd.f32 0.0, %v6871
  %v6873 = vpop.f32.mrb[0].mxu0
  %6874 = vdwg.mxu0
  %v6876 = vsel %vm6246, %v6297, 0
  %v6879 = vsel %vm6246, %v6299, 0
  %v6882 = vsel %vm6246, %v6301, 0
  %v6885 = vsel %vm6246, %v6303, 0
  %v6888 = vsel %vm6246, %v6305, 0
  %v6891 = vsel %vm6246, %v6307, 0
  %v6894 = vsel %vm6246, %v6309, 0
  %v6897 = vsel %vm6246, %v6311, 0
  %v6900 = vsel %vm6246, %v6313, 0
  %v6903 = vsel %vm6246, %v6315, 0
  %v6906 = vsel %vm6246, %v6317, 0
  %v6909 = vsel %vm6246, %v6319, 0
  %v6912 = vsel %vm6246, %v6321, 0
  %v6915 = vsel %vm6246, %v6323, 0
  %v6918 = vsel %vm6246, %v6325, 0
  %v6921 = vsel %vm6246, %v6327, 0
  %v6924 = vsel %vm6246, %v6329, 0
  %v6927 = vsel %vm6246, %v6331, 0
  %v6930 = vsel %vm6246, %v6333, 0
  %v6933 = vsel %vm6246, %v6335, 0
  %6935 = vmatprep.subr.mxu0 0.0
  %6936 = vmatpush1.msra.mxu0 %v6288
  %6937 = vmatprep.subr.mxu0 0.0
  %6938 = vmatpush1.msra.mxu0 %v6289
  %6939 = vmatprep.subr.mxu0 0.0
  %6940 = vmatpush1.msra.mxu0 %v6290
  %6941 = vmatprep.subr.mxu0 0.0
  %6942 = vmatpush1.msra.mxu0 %v6291
  %6943 = vmatprep.subr.mxu0 0.0
  %6944 = vmatpush1.msra.mxu0 %v6292
  %6945 = vmatprep.subr.mxu0 0.0
  %6946 = vmatpush1.msra.mxu0 %v6293
  %6947 = vmatprep.subr.mxu0 0.0
  %6948 = vmatpush1.msra.mxu0 %v6294
  %6949 = vmatprep.subr.mxu0 0.0
  %6950 = vmatpush1.msra.mxu0 %v6295
  %6951 = vmatprep.subr.mxu0 0.0
  %6952 = vmatpush1.msra.mxu0 0.0
  %6953 = vmatprep.subr.mxu0 0.0
  %6954 = vmatpush1.msra.mxu0 0.0
  %6955 = vmatprep.subr.mxu0 0.0
  %6956 = vmatpush1.msra.mxu0 0.0
  %6957 = vmatprep.subr.mxu0 0.0
  %6958 = vmatpush1.msra.mxu0 0.0
  %6959 = vmatprep.subr.mxu0 0.0
  %6960 = vmatpush1.msra.mxu0 0.0
  %6961 = vmatprep.subr.mxu0 0.0
  %6962 = vmatpush1.msra.mxu0 0.0
  %6963 = vmatprep.subr.mxu0 0.0
  %6964 = vmatpush1.msra.mxu0 0.0
  %6965 = vmatprep.subr.mxu0 0.0
  %6966 = vmatpush1.msra.mxu0 0.0
  %6967 = vmatprep.subr.mxu0 0.0
  %6968 = vmatpush1.msra.mxu0 0.0
  %6969 = vmatprep.subr.mxu0 0.0
  %6970 = vmatpush1.msra.mxu0 0.0
  %6971 = vmatprep.subr.mxu0 0.0
  %6972 = vmatpush1.msra.mxu0 0.0
  %6973 = vmatprep.subr.mxu0 0.0
  %6974 = vmatpush1.msra.mxu0 0.0
  %6975 = vmatprep.subr.mxu0 0.0
  %6976 = vmatpush1.msra.mxu0 0.0
  %6977 = vmatprep.subr.mxu0 0.0
  %6978 = vmatpush1.msra.mxu0 0.0
  %6979 = vmatprep.subr.mxu0 0.0
  %6980 = vmatpush1.msra.mxu0 0.0
  %6981 = vmatprep.subr.mxu0 0.0
  %6982 = vmatpush1.msra.mxu0 0.0
  %6983 = vmatprep.subr.mxu0 0.0
  %6984 = vmatpush1.msra.mxu0 0.0
  %6985 = vmatprep.subr.mxu0 0.0
  %6986 = vmatpush1.msra.mxu0 0.0
  %6987 = vmatprep.subr.mxu0 0.0
  %6988 = vmatpush1.msra.mxu0 0.0
  %6989 = vmatprep.subr.mxu0 0.0
  %6990 = vmatpush1.msra.mxu0 0.0
  %6991 = vmatprep.subr.mxu0 0.0
  %6992 = vmatpush1.msra.mxu0 0.0
  %6993 = vmatprep.subr.mxu0 0.0
  %6994 = vmatpush1.msra.mxu0 0.0
  %6995 = vmatprep.subr.mxu0 0.0
  %6996 = vmatpush1.msra.mxu0 0.0
  %6997 = vmatprep.subr.mxu0 0.0
  %6998 = vmatpush1.msra.mxu0 0.0
  %6999 = vmatprep.mubr.f32.mxu0 0.0
  %7000 = vmatmul.mubr.f32.gmra.mrb[0].mxu0 %v6876
  %v7001 = vpop.f32.mrb[0].mxu0
  %v7002 = vadd.f32 %v6552, %v7001
  %v7003 = vpop.f32.mrb[0].mxu0
  %7004 = vmatprep.mubr.f32.mxu0 0.0
  %7005 = vmatmul.mubr.f32.gmra.mrb[0].mxu0 %v6879
  %v7006 = vpop.f32.mrb[0].mxu0
  %v7007 = vadd.f32 %v6557, %v7006
  %v7008 = vpop.f32.mrb[0].mxu0
  %7009 = vmatprep.mubr.f32.mxu0 0.0
  %7010 = vmatmul.mubr.f32.gmra.mrb[0].mxu0 %v6882
  %v7011 = vpop.f32.mrb[0].mxu0
  %v7012 = vadd.f32 %v6562, %v7011
  %v7013 = vpop.f32.mrb[0].mxu0
  %7014 = vmatprep.mubr.f32.mxu0 0.0
  %7015 = vmatmul.mubr.f32.gmra.mrb[0].mxu0 %v6885
  %v7016 = vpop.f32.mrb[0].mxu0
  %v7017 = vadd.f32 %v6567, %v7016
  %v7018 = vpop.f32.mrb[0].mxu0
  %7019 = vmatprep.mubr.f32.mxu0 0.0
  %7020 = vmatmul.mubr.f32.gmra.mrb[0].mxu0 %v6888
  %v7021 = vpop.f32.mrb[0].mxu0
  %v7022 = vadd.f32 %v6572, %v7021
  %v7023 = vpop.f32.mrb[0].mxu0
  %7024 = vmatprep.mubr.f32.mxu0 0.0
  %7025 = vmatmul.mubr.f32.gmra.mrb[0].mxu0 %v6891
  %v7026 = vpop.f32.mrb[0].mxu0
  %v7027 = vadd.f32 %v6577, %v7026
  %v7028 = vpop.f32.mrb[0].mxu0
  %7029 = vmatprep.mubr.f32.mxu0 0.0
  %7030 = vmatmul.mubr.f32.gmra.mrb[0].mxu0 %v6894
  %v7031 = vpop.f32.mrb[0].mxu0
  %v7032 = vadd.f32 %v6582, %v7031
  %v7033 = vpop.f32.mrb[0].mxu0
  %7034 = vmatprep.mubr.f32.mxu0 0.0
  %7035 = vmatmul.mubr.f32.gmra.mrb[0].mxu0 %v6897
  %v7036 = vpop.f32.mrb[0].mxu0
  %v7037 = vadd.f32 %v6587, %v7036
  %v7038 = vpop.f32.mrb[0].mxu0
  %7039 = vmatprep.mubr.f32.mxu0 0.0
  %7040 = vmatmul.mubr.f32.gmra.mrb[0].mxu0 %v6900
  %v7041 = vpop.f32.mrb[0].mxu0
  %v7042 = vadd.f32 %v6592, %v7041
  %v7043 = vpop.f32.mrb[0].mxu0
  %7044 = vmatprep.mubr.f32.mxu0 0.0
  %7045 = vmatmul.mubr.f32.gmra.mrb[0].mxu0 %v6903
  %v7046 = vpop.f32.mrb[0].mxu0
  %v7047 = vadd.f32 %v6597, %v7046
  %v7048 = vpop.f32.mrb[0].mxu0
  %7049 = vmatprep.mubr.f32.mxu0 0.0
  %7050 = vmatmul.mubr.f32.gmra.mrb[0].mxu0 %v6906
  %v7051 = vpop.f32.mrb[0].mxu0
  %v7052 = vadd.f32 %v6602, %v7051
  %v7053 = vpop.f32.mrb[0].mxu0
  %7054 = vmatprep.mubr.f32.mxu0 0.0
  %7055 = vmatmul.mubr.f32.gmra.mrb[0].mxu0 %v6909
  %v7056 = vpop.f32.mrb[0].mxu0
  %v7057 = vadd.f32 %v6607, %v7056
  %v7058 = vpop.f32.mrb[0].mxu0
  %7059 = vmatprep.mubr.f32.mxu0 0.0
  %7060 = vmatmul.mubr.f32.gmra.mrb[0].mxu0 %v6912
  %v7061 = vpop.f32.mrb[0].mxu0
  %v7062 = vadd.f32 %v6612, %v7061
  %v7063 = vpop.f32.mrb[0].mxu0
  %7064 = vmatprep.mubr.f32.mxu0 0.0
  %7065 = vmatmul.mubr.f32.gmra.mrb[0].mxu0 %v6915
  %v7066 = vpop.f32.mrb[0].mxu0
  %v7067 = vadd.f32 %v6617, %v7066
  %v7068 = vpop.f32.mrb[0].mxu0
  %7069 = vmatprep.mubr.f32.mxu0 0.0
  %7070 = vmatmul.mubr.f32.gmra.mrb[0].mxu0 %v6918
  %v7071 = vpop.f32.mrb[0].mxu0
  %v7072 = vadd.f32 %v6622, %v7071
  %v7073 = vpop.f32.mrb[0].mxu0
  %7074 = vmatprep.mubr.f32.mxu0 0.0
  %7075 = vmatmul.mubr.f32.gmra.mrb[0].mxu0 %v6921
  %v7076 = vpop.f32.mrb[0].mxu0
  %v7077 = vadd.f32 %v6627, %v7076
  %v7078 = vpop.f32.mrb[0].mxu0
  %7079 = vmatprep.mubr.f32.mxu0 0.0
  %7080 = vmatmul.mubr.f32.gmra.mrb[0].mxu0 %v6924
  %v7081 = vpop.f32.mrb[0].mxu0
  %v7082 = vadd.f32 %v6632, %v7081
  %v7083 = vpop.f32.mrb[0].mxu0
  %7084 = vmatprep.mubr.f32.mxu0 0.0
  %7085 = vmatmul.mubr.f32.gmra.mrb[0].mxu0 %v6927
  %v7086 = vpop.f32.mrb[0].mxu0
  %v7087 = vadd.f32 %v6637, %v7086
  %v7088 = vpop.f32.mrb[0].mxu0
  %7089 = vmatprep.mubr.f32.mxu0 0.0
  %7090 = vmatmul.mubr.f32.gmra.mrb[0].mxu0 %v6930
  %v7091 = vpop.f32.mrb[0].mxu0
  %v7092 = vadd.f32 %v6642, %v7091
  %v7093 = vpop.f32.mrb[0].mxu0
  %7094 = vmatprep.mubr.f32.mxu0 0.0
  %7095 = vmatmul.mubr.f32.gmra.mrb[0].mxu0 %v6933
  %v7096 = vpop.f32.mrb[0].mxu0
  %v7097 = vadd.f32 %v6647, %v7096
  %v7098 = vpop.f32.mrb[0].mxu0
  %7099 = vdwg.mxu0
  %7100 = vmatprep.subr.mxu0 0.0
  %7101 = vmatpush1.msra.mxu0 %v6288
  %7102 = vmatprep.subr.mxu0 0.0
  %7103 = vmatpush1.msra.mxu0 %v6289
  %7104 = vmatprep.subr.mxu0 0.0
  %7105 = vmatpush1.msra.mxu0 %v6290
  %7106 = vmatprep.subr.mxu0 0.0
  %7107 = vmatpush1.msra.mxu0 %v6291
  %7108 = vmatprep.subr.mxu0 0.0
  %7109 = vmatpush1.msra.mxu0 %v6292
  %7110 = vmatprep.subr.mxu0 0.0
  %7111 = vmatpush1.msra.mxu0 %v6293
  %7112 = vmatprep.subr.mxu0 0.0
  %7113 = vmatpush1.msra.mxu0 %v6294
  %7114 = vmatprep.subr.mxu0 0.0
  %7115 = vmatpush1.msra.mxu0 %v6295
  %7116 = vmatprep.subr.mxu0 0.0
  %7117 = vmatpush1.msra.mxu0 0.0
  %7118 = vmatprep.subr.mxu0 0.0
  %7119 = vmatpush1.msra.mxu0 0.0
  %7120 = vmatprep.subr.mxu0 0.0
  %7121 = vmatpush1.msra.mxu0 0.0
  %7122 = vmatprep.subr.mxu0 0.0
  %7123 = vmatpush1.msra.mxu0 0.0
  %7124 = vmatprep.subr.mxu0 0.0
  %7125 = vmatpush1.msra.mxu0 0.0
  %7126 = vmatprep.subr.mxu0 0.0
  %7127 = vmatpush1.msra.mxu0 0.0
  %7128 = vmatprep.subr.mxu0 0.0
  %7129 = vmatpush1.msra.mxu0 0.0
  %7130 = vmatprep.subr.mxu0 0.0
  %7131 = vmatpush1.msra.mxu0 0.0
  %7132 = vmatprep.subr.mxu0 0.0
  %7133 = vmatpush1.msra.mxu0 0.0
  %7134 = vmatprep.subr.mxu0 0.0
  %7135 = vmatpush1.msra.mxu0 0.0
  %7136 = vmatprep.subr.mxu0 0.0
  %7137 = vmatpush1.msra.mxu0 0.0
  %7138 = vmatprep.subr.mxu0 0.0
  %7139 = vmatpush1.msra.mxu0 0.0
  %7140 = vmatprep.subr.mxu0 0.0
  %7141 = vmatpush1.msra.mxu0 0.0
  %7142 = vmatprep.subr.mxu0 0.0
  %7143 = vmatpush1.msra.mxu0 0.0
  %7144 = vmatprep.subr.mxu0 0.0
  %7145 = vmatpush1.msra.mxu0 0.0
  %7146 = vmatprep.subr.mxu0 0.0
  %7147 = vmatpush1.msra.mxu0 0.0
  %7148 = vmatprep.subr.mxu0 0.0
  %7149 = vmatpush1.msra.mxu0 0.0
  %7150 = vmatprep.subr.mxu0 0.0
  %7151 = vmatpush1.msra.mxu0 0.0
  %7152 = vmatprep.subr.mxu0 0.0
  %7153 = vmatpush1.msra.mxu0 0.0
  %7154 = vmatprep.subr.mxu0 0.0
  %7155 = vmatpush1.msra.mxu0 0.0
  %7156 = vmatprep.subr.mxu0 0.0
  %7157 = vmatpush1.msra.mxu0 0.0
  %7158 = vmatprep.subr.mxu0 0.0
  %7159 = vmatpush1.msra.mxu0 0.0
  %7160 = vmatprep.subr.mxu0 0.0
  %7161 = vmatpush1.msra.mxu0 0.0
  %7162 = vmatprep.subr.mxu0 0.0
  %7163 = vmatpush1.msra.mxu0 0.0
  %7164 = vmatprep.mubr.f32.mxu0 0.0
  %7165 = vmatmul.mubr.f32.gmra.mrb[0].mxu0 %v6426
  %v7166 = vpop.f32.mrb[0].mxu0
  %v7167 = vadd.f32 %v6777, %v7166
  %v7168 = vpop.f32.mrb[0].mxu0
  %7169 = vmatprep.mubr.f32.mxu0 0.0
  %7170 = vmatmul.mubr.f32.gmra.mrb[0].mxu0 %v6429
  %v7171 = vpop.f32.mrb[0].mxu0
  %v7172 = vadd.f32 %v6782, %v7171
  %v7173 = vpop.f32.mrb[0].mxu0
  %7174 = vmatprep.mubr.f32.mxu0 0.0
  %7175 = vmatmul.mubr.f32.gmra.mrb[0].mxu0 %v6432
  %v7176 = vpop.f32.mrb[0].mxu0
  %v7177 = vadd.f32 %v6787, %v7176
  %v7178 = vpop.f32.mrb[0].mxu0
  %7179 = vmatprep.mubr.f32.mxu0 0.0
  %7180 = vmatmul.mubr.f32.gmra.mrb[0].mxu0 %v6435
  %v7181 = vpop.f32.mrb[0].mxu0
  %v7182 = vadd.f32 %v6792, %v7181
  %v7183 = vpop.f32.mrb[0].mxu0
  %7184 = vmatprep.mubr.f32.mxu0 0.0
  %7185 = vmatmul.mubr.f32.gmra.mrb[0].mxu0 %v6438
  %v7186 = vpop.f32.mrb[0].mxu0
  %v7187 = vadd.f32 %v6797, %v7186
  %v7188 = vpop.f32.mrb[0].mxu0
  %7189 = vmatprep.mubr.f32.mxu0 0.0
  %7190 = vmatmul.mubr.f32.gmra.mrb[0].mxu0 %v6441
  %v7191 = vpop.f32.mrb[0].mxu0
  %v7192 = vadd.f32 %v6802, %v7191
  %v7193 = vpop.f32.mrb[0].mxu0
  %7194 = vmatprep.mubr.f32.mxu0 0.0
  %7195 = vmatmul.mubr.f32.gmra.mrb[0].mxu0 %v6444
  %v7196 = vpop.f32.mrb[0].mxu0
  %v7197 = vadd.f32 %v6807, %v7196
  %v7198 = vpop.f32.mrb[0].mxu0
  %7199 = vmatprep.mubr.f32.mxu0 0.0
  %7200 = vmatmul.mubr.f32.gmra.mrb[0].mxu0 %v6447
  %v7201 = vpop.f32.mrb[0].mxu0
  %v7202 = vadd.f32 %v6812, %v7201
  %v7203 = vpop.f32.mrb[0].mxu0
  %7204 = vmatprep.mubr.f32.mxu0 0.0
  %7205 = vmatmul.mubr.f32.gmra.mrb[0].mxu0 %v6450
  %v7206 = vpop.f32.mrb[0].mxu0
  %v7207 = vadd.f32 %v6817, %v7206
  %v7208 = vpop.f32.mrb[0].mxu0
  %7209 = vmatprep.mubr.f32.mxu0 0.0
  %7210 = vmatmul.mubr.f32.gmra.mrb[0].mxu0 %v6453
  %v7211 = vpop.f32.mrb[0].mxu0
  %v7212 = vadd.f32 %v6822, %v7211
  %v7213 = vpop.f32.mrb[0].mxu0
  %7214 = vmatprep.mubr.f32.mxu0 0.0
  %7215 = vmatmul.mubr.f32.gmra.mrb[0].mxu0 %v6456
  %v7216 = vpop.f32.mrb[0].mxu0
  %v7217 = vadd.f32 %v6827, %v7216
  %v7218 = vpop.f32.mrb[0].mxu0
  %7219 = vmatprep.mubr.f32.mxu0 0.0
  %7220 = vmatmul.mubr.f32.gmra.mrb[0].mxu0 %v6459
  %v7221 = vpop.f32.mrb[0].mxu0
  %v7222 = vadd.f32 %v6832, %v7221
  %v7223 = vpop.f32.mrb[0].mxu0
  %7224 = vmatprep.mubr.f32.mxu0 0.0
  %7225 = vmatmul.mubr.f32.gmra.mrb[0].mxu0 %v6462
  %v7226 = vpop.f32.mrb[0].mxu0
  %v7227 = vadd.f32 %v6837, %v7226
  %v7228 = vpop.f32.mrb[0].mxu0
  %7229 = vmatprep.mubr.f32.mxu0 0.0
  %7230 = vmatmul.mubr.f32.gmra.mrb[0].mxu0 %v6465
  %v7231 = vpop.f32.mrb[0].mxu0
  %v7232 = vadd.f32 %v6842, %v7231
  %v7233 = vpop.f32.mrb[0].mxu0
  %7234 = vmatprep.mubr.f32.mxu0 0.0
  %7235 = vmatmul.mubr.f32.gmra.mrb[0].mxu0 %v6468
  %v7236 = vpop.f32.mrb[0].mxu0
  %v7237 = vadd.f32 %v6847, %v7236
  %v7238 = vpop.f32.mrb[0].mxu0
  %7239 = vmatprep.mubr.f32.mxu0 0.0
  %7240 = vmatmul.mubr.f32.gmra.mrb[0].mxu0 %v6471
  %v7241 = vpop.f32.mrb[0].mxu0
  %v7242 = vadd.f32 %v6852, %v7241
  %v7243 = vpop.f32.mrb[0].mxu0
  %7244 = vmatprep.mubr.f32.mxu0 0.0
  %7245 = vmatmul.mubr.f32.gmra.mrb[0].mxu0 %v6474
  %v7246 = vpop.f32.mrb[0].mxu0
  %v7247 = vadd.f32 %v6857, %v7246
  %v7248 = vpop.f32.mrb[0].mxu0
  %7249 = vmatprep.mubr.f32.mxu0 0.0
  %7250 = vmatmul.mubr.f32.gmra.mrb[0].mxu0 %v6477
  %v7251 = vpop.f32.mrb[0].mxu0
  %v7252 = vadd.f32 %v6862, %v7251
  %v7253 = vpop.f32.mrb[0].mxu0
  %7254 = vmatprep.mubr.f32.mxu0 0.0
  %7255 = vmatmul.mubr.f32.gmra.mrb[0].mxu0 %v6480
  %v7256 = vpop.f32.mrb[0].mxu0
  %v7257 = vadd.f32 %v6867, %v7256
  %v7258 = vpop.f32.mrb[0].mxu0
  %7259 = vmatprep.mubr.f32.mxu0 0.0
  %7260 = vmatmul.mubr.f32.gmra.mrb[0].mxu0 %v6483
  %v7261 = vpop.f32.mrb[0].mxu0
  %v7262 = vadd.f32 %v6872, %v7261
  %v7263 = vpop.f32.mrb[0].mxu0
  %7264 = vdwg.mxu0
  %s7265 = scalar_lea.vmem %s5, 128
  %v7266 = vld [vmem:[%s7265] sm:$0xff]
  %v7267 = vld [vmem:[%s7265 + $0x8] sm:$0xff]
  %v7268 = vld [vmem:[%s7265 + $0x10] sm:$0xff]
  %v7269 = vld [vmem:[%s7265 + $0x18] sm:$0xff]
  %v7270 = vld [vmem:[%s7265 + $0x20] sm:$0xff]
  %v7271 = vld [vmem:[%s7265 + $0x28] sm:$0xff]
  %v7272 = vld [vmem:[%s7265 + $0x30] sm:$0xff]
  %v7273 = vld [vmem:[%s7265 + $0x38] sm:$0xff]
  %s7274 = scalar_lea.vmem [#allocation3], 10
  %v7275 = vld [vmem:[%s7274] ss:$2 sm:$0xff]
  %s7276 = scalar_lea.vmem [#allocation3], 26
  %v7277 = vld [vmem:[%s7276] ss:$2 sm:$0xff]
  %s7278 = scalar_lea.vmem [#allocation3], 42
  %v7279 = vld [vmem:[%s7278] ss:$2 sm:$0xff]
  %s7280 = scalar_lea.vmem [#allocation3], 58
  %v7281 = vld [vmem:[%s7280] ss:$2 sm:$0xff]
  %s7282 = scalar_lea.vmem [#allocation3], 74
  %v7283 = vld [vmem:[%s7282] ss:$2 sm:$0xff]
  %s7284 = scalar_lea.vmem [#allocation3], 90
  %v7285 = vld [vmem:[%s7284] ss:$2 sm:$0xff]
  %s7286 = scalar_lea.vmem [#allocation3], 106
  %v7287 = vld [vmem:[%s7286] ss:$2 sm:$0xff]
  %s7288 = scalar_lea.vmem [#allocation3], 122
  %v7289 = vld [vmem:[%s7288] ss:$2 sm:$0xff]
  %s7290 = scalar_lea.vmem [#allocation3], 138
  %v7291 = vld [vmem:[%s7290] ss:$2 sm:$0xff]
  %s7292 = scalar_lea.vmem [#allocation3], 154
  %v7293 = vld [vmem:[%s7292] ss:$2 sm:$0xff]
  %s7294 = scalar_lea.vmem [#allocation3], 170
  %v7295 = vld [vmem:[%s7294] ss:$2 sm:$0xff]
  %s7296 = scalar_lea.vmem [#allocation3], 186
  %v7297 = vld [vmem:[%s7296] ss:$2 sm:$0xff]
  %s7298 = scalar_lea.vmem [#allocation3], 202
  %v7299 = vld [vmem:[%s7298] ss:$2 sm:$0xff]
  %s7300 = scalar_lea.vmem [#allocation3], 218
  %v7301 = vld [vmem:[%s7300] ss:$2 sm:$0xff]
  %s7302 = scalar_lea.vmem [#allocation3], 234
  %v7303 = vld [vmem:[%s7302] ss:$2 sm:$0xff]
  %s7304 = scalar_lea.vmem [#allocation3], 250
  %v7305 = vld [vmem:[%s7304] ss:$2 sm:$0xff]
  %s7306 = scalar_lea.vmem [#allocation3], 266
  %v7307 = vld [vmem:[%s7306] ss:$2 sm:$0xff]
  %s7308 = scalar_lea.vmem [#allocation3], 282
  %v7309 = vld [vmem:[%s7308] ss:$2 sm:$0xff]
  %s7310 = scalar_lea.vmem [#allocation3], 298
  %v7311 = vld [vmem:[%s7310] ss:$2 sm:$0xff]
  %s7312 = scalar_lea.vmem [#allocation3], 314
  %v7313 = vld [vmem:[%s7312] ss:$2 sm:$0xf]
  %7314 = vmatprep.subr.mxu0 0.0
  %7315 = vmatpush1.msra.mxu0 %v7266
  %7316 = vmatprep.subr.mxu0 0.0
  %7317 = vmatpush1.msra.mxu0 %v7267
  %7318 = vmatprep.subr.mxu0 0.0
  %7319 = vmatpush1.msra.mxu0 %v7268
  %7320 = vmatprep.subr.mxu0 0.0
  %7321 = vmatpush1.msra.mxu0 %v7269
  %7322 = vmatprep.subr.mxu0 0.0
  %7323 = vmatpush1.msra.mxu0 %v7270
  %7324 = vmatprep.subr.mxu0 0.0
  %7325 = vmatpush1.msra.mxu0 %v7271
  %7326 = vmatprep.subr.mxu0 0.0
  %7327 = vmatpush1.msra.mxu0 %v7272
  %7328 = vmatprep.subr.mxu0 0.0
  %7329 = vmatpush1.msra.mxu0 %v7273
  %7330 = vmatprep.subr.mxu0 0.0
  %7331 = vmatpush1.msra.mxu0 0.0
  %7332 = vmatprep.subr.mxu0 0.0
  %7333 = vmatpush1.msra.mxu0 0.0
  %7334 = vmatprep.subr.mxu0 0.0
  %7335 = vmatpush1.msra.mxu0 0.0
  %7336 = vmatprep.subr.mxu0 0.0
  %7337 = vmatpush1.msra.mxu0 0.0
  %7338 = vmatprep.subr.mxu0 0.0
  %7339 = vmatpush1.msra.mxu0 0.0
  %7340 = vmatprep.subr.mxu0 0.0
  %7341 = vmatpush1.msra.mxu0 0.0
  %7342 = vmatprep.subr.mxu0 0.0
  %7343 = vmatpush1.msra.mxu0 0.0
  %7344 = vmatprep.subr.mxu0 0.0
  %7345 = vmatpush1.msra.mxu0 0.0
  %7346 = vmatprep.subr.mxu0 0.0
  %7347 = vmatpush1.msra.mxu0 0.0
  %7348 = vmatprep.subr.mxu0 0.0
  %7349 = vmatpush1.msra.mxu0 0.0
  %7350 = vmatprep.subr.mxu0 0.0
  %7351 = vmatpush1.msra.mxu0 0.0
  %7352 = vmatprep.subr.mxu0 0.0
  %7353 = vmatpush1.msra.mxu0 0.0
  %7354 = vmatprep.subr.mxu0 0.0
  %7355 = vmatpush1.msra.mxu0 0.0
  %7356 = vmatprep.subr.mxu0 0.0
  %7357 = vmatpush1.msra.mxu0 0.0
  %7358 = vmatprep.subr.mxu0 0.0
  %7359 = vmatpush1.msra.mxu0 0.0
  %7360 = vmatprep.subr.mxu0 0.0
  %7361 = vmatpush1.msra.mxu0 0.0
  %7362 = vmatprep.subr.mxu0 0.0
  %7363 = vmatpush1.msra.mxu0 0.0
  %7364 = vmatprep.subr.mxu0 0.0
  %7365 = vmatpush1.msra.mxu0 0.0
  %7366 = vmatprep.subr.mxu0 0.0
  %7367 = vmatpush1.msra.mxu0 0.0
  %7368 = vmatprep.subr.mxu0 0.0
  %7369 = vmatpush1.msra.mxu0 0.0
  %7370 = vmatprep.subr.mxu0 0.0
  %7371 = vmatpush1.msra.mxu0 0.0
  %7372 = vmatprep.subr.mxu0 0.0
  %7373 = vmatpush1.msra.mxu0 0.0
  %7374 = vmatprep.subr.mxu0 0.0
  %7375 = vmatpush1.msra.mxu0 0.0
  %7376 = vmatprep.subr.mxu0 0.0
  %7377 = vmatpush1.msra.mxu0 0.0
  %7378 = vmatprep.mubr.f32.mxu0 0.0
  %7379 = vmatmul.mubr.f32.gmra.mrb[0].mxu0 %v6651
  %v7380 = vpop.f32.mrb[0].mxu0
  %v7381 = vadd.f32 0.0, %v7380
  %v7382 = vpop.f32.mrb[0].mxu0
  %7383 = vmatprep.mubr.f32.mxu0 0.0
  %7384 = vmatmul.mubr.f32.gmra.mrb[0].mxu0 %v6654
  %v7385 = vpop.f32.mrb[0].mxu0
  %v7386 = vadd.f32 0.0, %v7385
  %v7387 = vpop.f32.mrb[0].mxu0
  %7388 = vmatprep.mubr.f32.mxu0 0.0
  %7389 = vmatmul.mubr.f32.gmra.mrb[0].mxu0 %v6657
  %v7390 = vpop.f32.mrb[0].mxu0
  %v7391 = vadd.f32 0.0, %v7390
  %v7392 = vpop.f32.mrb[0].mxu0
  %7393 = vmatprep.mubr.f32.mxu0 0.0
  %7394 = vmatmul.mubr.f32.gmra.mrb[0].mxu0 %v6660
  %v7395 = vpop.f32.mrb[0].mxu0
  %v7396 = vadd.f32 0.0, %v7395
  %v7397 = vpop.f32.mrb[0].mxu0
  %7398 = vmatprep.mubr.f32.mxu0 0.0
  %7399 = vmatmul.mubr.f32.gmra.mrb[0].mxu0 %v6663
  %v7400 = vpop.f32.mrb[0].mxu0
  %v7401 = vadd.f32 0.0, %v7400
  %v7402 = vpop.f32.mrb[0].mxu0
  %7403 = vmatprep.mubr.f32.mxu0 0.0
  %7404 = vmatmul.mubr.f32.gmra.mrb[0].mxu0 %v6666
  %v7405 = vpop.f32.mrb[0].mxu0
  %v7406 = vadd.f32 0.0, %v7405
  %v7407 = vpop.f32.mrb[0].mxu0
  %7408 = vmatprep.mubr.f32.mxu0 0.0
  %7409 = vmatmul.mubr.f32.gmra.mrb[0].mxu0 %v6669
  %v7410 = vpop.f32.mrb[0].mxu0
  %v7411 = vadd.f32 0.0, %v7410
  %v7412 = vpop.f32.mrb[0].mxu0
  %7413 = vmatprep.mubr.f32.mxu0 0.0
  %7414 = vmatmul.mubr.f32.gmra.mrb[0].mxu0 %v6672
  %v7415 = vpop.f32.mrb[0].mxu0
  %v7416 = vadd.f32 0.0, %v7415
  %v7417 = vpop.f32.mrb[0].mxu0
  %7418 = vmatprep.mubr.f32.mxu0 0.0
  %7419 = vmatmul.mubr.f32.gmra.mrb[0].mxu0 %v6675
  %v7420 = vpop.f32.mrb[0].mxu0
  %v7421 = vadd.f32 0.0, %v7420
  %v7422 = vpop.f32.mrb[0].mxu0
  %7423 = vmatprep.mubr.f32.mxu0 0.0
  %7424 = vmatmul.mubr.f32.gmra.mrb[0].mxu0 %v6678
  %v7425 = vpop.f32.mrb[0].mxu0
  %v7426 = vadd.f32 0.0, %v7425
  %v7427 = vpop.f32.mrb[0].mxu0
  %7428 = vmatprep.mubr.f32.mxu0 0.0
  %7429 = vmatmul.mubr.f32.gmra.mrb[0].mxu0 %v6681
  %v7430 = vpop.f32.mrb[0].mxu0
  %v7431 = vadd.f32 0.0, %v7430
  %v7432 = vpop.f32.mrb[0].mxu0
  %7433 = vmatprep.mubr.f32.mxu0 0.0
  %7434 = vmatmul.mubr.f32.gmra.mrb[0].mxu0 %v6684
  %v7435 = vpop.f32.mrb[0].mxu0
  %v7436 = vadd.f32 0.0, %v7435
  %v7437 = vpop.f32.mrb[0].mxu0
  %7438 = vmatprep.mubr.f32.mxu0 0.0
  %7439 = vmatmul.mubr.f32.gmra.mrb[0].mxu0 %v6687
  %v7440 = vpop.f32.mrb[0].mxu0
  %v7441 = vadd.f32 0.0, %v7440
  %v7442 = vpop.f32.mrb[0].mxu0
  %7443 = vmatprep.mubr.f32.mxu0 0.0
  %7444 = vmatmul.mubr.f32.gmra.mrb[0].mxu0 %v6690
  %v7445 = vpop.f32.mrb[0].mxu0
  %v7446 = vadd.f32 0.0, %v7445
  %v7447 = vpop.f32.mrb[0].mxu0
  %7448 = vmatprep.mubr.f32.mxu0 0.0
  %7449 = vmatmul.mubr.f32.gmra.mrb[0].mxu0 %v6693
  %v7450 = vpop.f32.mrb[0].mxu0
  %v7451 = vadd.f32 0.0, %v7450
  %v7452 = vpop.f32.mrb[0].mxu0
  %7453 = vmatprep.mubr.f32.mxu0 0.0
  %7454 = vmatmul.mubr.f32.gmra.mrb[0].mxu0 %v6696
  %v7455 = vpop.f32.mrb[0].mxu0
  %v7456 = vadd.f32 0.0, %v7455
  %v7457 = vpop.f32.mrb[0].mxu0
  %7458 = vmatprep.mubr.f32.mxu0 0.0
  %7459 = vmatmul.mubr.f32.gmra.mrb[0].mxu0 %v6699
  %v7460 = vpop.f32.mrb[0].mxu0
  %v7461 = vadd.f32 0.0, %v7460
  %v7462 = vpop.f32.mrb[0].mxu0
  %7463 = vmatprep.mubr.f32.mxu0 0.0
  %7464 = vmatmul.mubr.f32.gmra.mrb[0].mxu0 %v6702
  %v7465 = vpop.f32.mrb[0].mxu0
  %v7466 = vadd.f32 0.0, %v7465
  %v7467 = vpop.f32.mrb[0].mxu0
  %7468 = vmatprep.mubr.f32.mxu0 0.0
  %7469 = vmatmul.mubr.f32.gmra.mrb[0].mxu0 %v6705
  %v7470 = vpop.f32.mrb[0].mxu0
  %v7471 = vadd.f32 0.0, %v7470
  %v7472 = vpop.f32.mrb[0].mxu0
  %7473 = vmatprep.mubr.f32.mxu0 0.0
  %7474 = vmatmul.mubr.f32.gmra.mrb[0].mxu0 %v6708
  %v7475 = vpop.f32.mrb[0].mxu0
  %v7476 = vadd.f32 0.0, %v7475
  %v7477 = vpop.f32.mrb[0].mxu0
  %7478 = vdwg.mxu0
  %v7480 = vsel %vm6246, %v7275, 0
  %v7483 = vsel %vm6246, %v7277, 0
  %v7486 = vsel %vm6246, %v7279, 0
  %v7489 = vsel %vm6246, %v7281, 0
  %v7492 = vsel %vm6246, %v7283, 0
  %v7495 = vsel %vm6246, %v7285, 0
  %v7498 = vsel %vm6246, %v7287, 0
  %v7501 = vsel %vm6246, %v7289, 0
  %v7504 = vsel %vm6246, %v7291, 0
  %v7507 = vsel %vm6246, %v7293, 0
  %v7510 = vsel %vm6246, %v7295, 0
  %v7513 = vsel %vm6246, %v7297, 0
  %v7516 = vsel %vm6246, %v7299, 0
  %v7519 = vsel %vm6246, %v7301, 0
  %v7522 = vsel %vm6246, %v7303, 0
  %v7525 = vsel %vm6246, %v7305, 0
  %v7528 = vsel %vm6246, %v7307, 0
  %v7531 = vsel %vm6246, %v7309, 0
  %v7534 = vsel %vm6246, %v7311, 0
  %v7537 = vsel %vm6246, %v7313, 0
  %7539 = vmatprep.subr.mxu0 0.0
  %7540 = vmatpush1.msra.mxu0 %v7266
  %7541 = vmatprep.subr.mxu0 0.0
  %7542 = vmatpush1.msra.mxu0 %v7267
  %7543 = vmatprep.subr.mxu0 0.0
  %7544 = vmatpush1.msra.mxu0 %v7268
  %7545 = vmatprep.subr.mxu0 0.0
  %7546 = vmatpush1.msra.mxu0 %v7269
  %7547 = vmatprep.subr.mxu0 0.0
  %7548 = vmatpush1.msra.mxu0 %v7270
  %7549 = vmatprep.subr.mxu0 0.0
  %7550 = vmatpush1.msra.mxu0 %v7271
  %7551 = vmatprep.subr.mxu0 0.0
  %7552 = vmatpush1.msra.mxu0 %v7272
  %7553 = vmatprep.subr.mxu0 0.0
  %7554 = vmatpush1.msra.mxu0 %v7273
  %7555 = vmatprep.subr.mxu0 0.0
  %7556 = vmatpush1.msra.mxu0 0.0
  %7557 = vmatprep.subr.mxu0 0.0
  %7558 = vmatpush1.msra.mxu0 0.0
  %7559 = vmatprep.subr.mxu0 0.0
  %7560 = vmatpush1.msra.mxu0 0.0
  %7561 = vmatprep.subr.mxu0 0.0
  %7562 = vmatpush1.msra.mxu0 0.0
  %7563 = vmatprep.subr.mxu0 0.0
  %7564 = vmatpush1.msra.mxu0 0.0
  %7565 = vmatprep.subr.mxu0 0.0
  %7566 = vmatpush1.msra.mxu0 0.0
  %7567 = vmatprep.subr.mxu0 0.0
  %7568 = vmatpush1.msra.mxu0 0.0
  %7569 = vmatprep.subr.mxu0 0.0
  %7570 = vmatpush1.msra.mxu0 0.0
  %7571 = vmatprep.subr.mxu0 0.0
  %7572 = vmatpush1.msra.mxu0 0.0
  %7573 = vmatprep.subr.mxu0 0.0
  %7574 = vmatpush1.msra.mxu0 0.0
  %7575 = vmatprep.subr.mxu0 0.0
  %7576 = vmatpush1.msra.mxu0 0.0
  %7577 = vmatprep.subr.mxu0 0.0
  %7578 = vmatpush1.msra.mxu0 0.0
  %7579 = vmatprep.subr.mxu0 0.0
  %7580 = vmatpush1.msra.mxu0 0.0
  %7581 = vmatprep.subr.mxu0 0.0
  %7582 = vmatpush1.msra.mxu0 0.0
  %7583 = vmatprep.subr.mxu0 0.0
  %7584 = vmatpush1.msra.mxu0 0.0
  %7585 = vmatprep.subr.mxu0 0.0
  %7586 = vmatpush1.msra.mxu0 0.0
  %7587 = vmatprep.subr.mxu0 0.0
  %7588 = vmatpush1.msra.mxu0 0.0
  %7589 = vmatprep.subr.mxu0 0.0
  %7590 = vmatpush1.msra.mxu0 0.0
  %7591 = vmatprep.subr.mxu0 0.0
  %7592 = vmatpush1.msra.mxu0 0.0
  %7593 = vmatprep.subr.mxu0 0.0
  %7594 = vmatpush1.msra.mxu0 0.0
  %7595 = vmatprep.subr.mxu0 0.0
  %7596 = vmatpush1.msra.mxu0 0.0
  %7597 = vmatprep.subr.mxu0 0.0
  %7598 = vmatpush1.msra.mxu0 0.0
  %7599 = vmatprep.subr.mxu0 0.0
  %7600 = vmatpush1.msra.mxu0 0.0
  %7601 = vmatprep.subr.mxu0 0.0
  %7602 = vmatpush1.msra.mxu0 0.0
  %7603 = vmatprep.mubr.f32.mxu0 0.0
  %7604 = vmatmul.mubr.f32.gmra.mrb[0].mxu0 %v7480
  %v7605 = vpop.f32.mrb[0].mxu0
  %v7606 = vadd.f32 0.0, %v7605
  %v7607 = vpop.f32.mrb[0].mxu0
  %7608 = vmatprep.mubr.f32.mxu0 0.0
  %7609 = vmatmul.mubr.f32.gmra.mrb[0].mxu0 %v7483
  %v7610 = vpop.f32.mrb[0].mxu0
  %v7611 = vadd.f32 0.0, %v7610
  %v7612 = vpop.f32.mrb[0].mxu0
  %7613 = vmatprep.mubr.f32.mxu0 0.0
  %7614 = vmatmul.mubr.f32.gmra.mrb[0].mxu0 %v7486
  %v7615 = vpop.f32.mrb[0].mxu0
  %v7616 = vadd.f32 0.0, %v7615
  %v7617 = vpop.f32.mrb[0].mxu0
  %7618 = vmatprep.mubr.f32.mxu0 0.0
  %7619 = vmatmul.mubr.f32.gmra.mrb[0].mxu0 %v7489
  %v7620 = vpop.f32.mrb[0].mxu0
  %v7621 = vadd.f32 0.0, %v7620
  %v7622 = vpop.f32.mrb[0].mxu0
  %7623 = vmatprep.mubr.f32.mxu0 0.0
  %7624 = vmatmul.mubr.f32.gmra.mrb[0].mxu0 %v7492
  %v7625 = vpop.f32.mrb[0].mxu0
  %v7626 = vadd.f32 0.0, %v7625
  %v7627 = vpop.f32.mrb[0].mxu0
  %7628 = vmatprep.mubr.f32.mxu0 0.0
  %7629 = vmatmul.mubr.f32.gmra.mrb[0].mxu0 %v7495
  %v7630 = vpop.f32.mrb[0].mxu0
  %v7631 = vadd.f32 0.0, %v7630
  %v7632 = vpop.f32.mrb[0].mxu0
  %7633 = vmatprep.mubr.f32.mxu0 0.0
  %7634 = vmatmul.mubr.f32.gmra.mrb[0].mxu0 %v7498
  %v7635 = vpop.f32.mrb[0].mxu0
  %v7636 = vadd.f32 0.0, %v7635
  %v7637 = vpop.f32.mrb[0].mxu0
  %7638 = vmatprep.mubr.f32.mxu0 0.0
  %7639 = vmatmul.mubr.f32.gmra.mrb[0].mxu0 %v7501
  %v7640 = vpop.f32.mrb[0].mxu0
  %v7641 = vadd.f32 0.0, %v7640
  %v7642 = vpop.f32.mrb[0].mxu0
  %7643 = vmatprep.mubr.f32.mxu0 0.0
  %7644 = vmatmul.mubr.f32.gmra.mrb[0].mxu0 %v7504
  %v7645 = vpop.f32.mrb[0].mxu0
  %v7646 = vadd.f32 0.0, %v7645
  %v7647 = vpop.f32.mrb[0].mxu0
  %7648 = vmatprep.mubr.f32.mxu0 0.0
  %7649 = vmatmul.mubr.f32.gmra.mrb[0].mxu0 %v7507
  %v7650 = vpop.f32.mrb[0].mxu0
  %v7651 = vadd.f32 0.0, %v7650
  %v7652 = vpop.f32.mrb[0].mxu0
  %7653 = vmatprep.mubr.f32.mxu0 0.0
  %7654 = vmatmul.mubr.f32.gmra.mrb[0].mxu0 %v7510
  %v7655 = vpop.f32.mrb[0].mxu0
  %v7656 = vadd.f32 0.0, %v7655
  %v7657 = vpop.f32.mrb[0].mxu0
  %7658 = vmatprep.mubr.f32.mxu0 0.0
  %7659 = vmatmul.mubr.f32.gmra.mrb[0].mxu0 %v7513
  %v7660 = vpop.f32.mrb[0].mxu0
  %v7661 = vadd.f32 0.0, %v7660
  %v7662 = vpop.f32.mrb[0].mxu0
  %7663 = vmatprep.mubr.f32.mxu0 0.0
  %7664 = vmatmul.mubr.f32.gmra.mrb[0].mxu0 %v7516
  %v7665 = vpop.f32.mrb[0].mxu0
  %v7666 = vadd.f32 0.0, %v7665
  %v7667 = vpop.f32.mrb[0].mxu0
  %7668 = vmatprep.mubr.f32.mxu0 0.0
  %7669 = vmatmul.mubr.f32.gmra.mrb[0].mxu0 %v7519
  %v7670 = vpop.f32.mrb[0].mxu0
  %v7671 = vadd.f32 0.0, %v7670
  %v7672 = vpop.f32.mrb[0].mxu0
  %7673 = vmatprep.mubr.f32.mxu0 0.0
  %7674 = vmatmul.mubr.f32.gmra.mrb[0].mxu0 %v7522
  %v7675 = vpop.f32.mrb[0].mxu0
  %v7676 = vadd.f32 0.0, %v7675
  %v7677 = vpop.f32.mrb[0].mxu0
  %7678 = vmatprep.mubr.f32.mxu0 0.0
  %7679 = vmatmul.mubr.f32.gmra.mrb[0].mxu0 %v7525
  %v7680 = vpop.f32.mrb[0].mxu0
  %v7681 = vadd.f32 0.0, %v7680
  %v7682 = vpop.f32.mrb[0].mxu0
  %7683 = vmatprep.mubr.f32.mxu0 0.0
  %7684 = vmatmul.mubr.f32.gmra.mrb[0].mxu0 %v7528
  %v7685 = vpop.f32.mrb[0].mxu0
  %v7686 = vadd.f32 0.0, %v7685
  %v7687 = vpop.f32.mrb[0].mxu0
  %7688 = vmatprep.mubr.f32.mxu0 0.0
  %7689 = vmatmul.mubr.f32.gmra.mrb[0].mxu0 %v7531
  %v7690 = vpop.f32.mrb[0].mxu0
  %v7691 = vadd.f32 0.0, %v7690
  %v7692 = vpop.f32.mrb[0].mxu0
  %7693 = vmatprep.mubr.f32.mxu0 0.0
  %7694 = vmatmul.mubr.f32.gmra.mrb[0].mxu0 %v7534
  %v7695 = vpop.f32.mrb[0].mxu0
  %v7696 = vadd.f32 0.0, %v7695
  %v7697 = vpop.f32.mrb[0].mxu0
  %7698 = vmatprep.mubr.f32.mxu0 0.0
  %7699 = vmatmul.mubr.f32.gmra.mrb[0].mxu0 %v7537
  %v7700 = vpop.f32.mrb[0].mxu0
  %v7701 = vadd.f32 0.0, %v7700
  %v7702 = vpop.f32.mrb[0].mxu0
  %7703 = vdwg.mxu0
  %v7704 = vadd.f32 %v7002, %v7381
  %v7705 = vadd.f32 %v7007, %v7386
  %v7706 = vadd.f32 %v7012, %v7391
  %v7707 = vadd.f32 %v7017, %v7396
  %v7708 = vadd.f32 %v7022, %v7401
  %v7709 = vadd.f32 %v7027, %v7406
  %v7710 = vadd.f32 %v7032, %v7411
  %v7711 = vadd.f32 %v7037, %v7416
  %v7712 = vadd.f32 %v7042, %v7421
  %v7713 = vadd.f32 %v7047, %v7426
  %v7714 = vadd.f32 %v7052, %v7431
  %v7715 = vadd.f32 %v7057, %v7436
  %v7716 = vadd.f32 %v7062, %v7441
  %v7717 = vadd.f32 %v7067, %v7446
  %v7718 = vadd.f32 %v7072, %v7451
  %v7719 = vadd.f32 %v7077, %v7456
  %v7720 = vadd.f32 %v7082, %v7461
  %v7721 = vadd.f32 %v7087, %v7466
  %v7722 = vadd.f32 %v7092, %v7471
  %v7723 = vadd.f32 %v7097, %v7476
  %v7724 = vadd.f32 %v7167, %v7606
  %v7725 = vadd.f32 %v7172, %v7611
  %v7726 = vadd.f32 %v7177, %v7616
  %v7727 = vadd.f32 %v7182, %v7621
  %v7728 = vadd.f32 %v7187, %v7626
  %v7729 = vadd.f32 %v7192, %v7631
  %v7730 = vadd.f32 %v7197, %v7636
  %v7731 = vadd.f32 %v7202, %v7641
  %v7732 = vadd.f32 %v7207, %v7646
  %v7733 = vadd.f32 %v7212, %v7651
  %v7734 = vadd.f32 %v7217, %v7656
  %v7735 = vadd.f32 %v7222, %v7661
  %v7736 = vadd.f32 %v7227, %v7666
  %v7737 = vadd.f32 %v7232, %v7671
  %v7738 = vadd.f32 %v7237, %v7676
  %v7739 = vadd.f32 %v7242, %v7681
  %v7740 = vadd.f32 %v7247, %v7686
  %v7741 = vadd.f32 %v7252, %v7691
  %v7742 = vadd.f32 %v7257, %v7696
  %v7743 = vadd.f32 %v7262, %v7701
  %v7744 = vmax.f32 %v7704, %v7724
  %v7745 = vmax.f32 %v7705, %v7725
  %v7746 = vmax.f32 %v7706, %v7726
  %v7747 = vmax.f32 %v7707, %v7727
  %v7748 = vmax.f32 %v7708, %v7728
  %v7749 = vmax.f32 %v7709, %v7729
  %v7750 = vmax.f32 %v7710, %v7730
  %v7751 = vmax.f32 %v7711, %v7731
  %v7752 = vmax.f32 %v7712, %v7732
  %v7753 = vmax.f32 %v7713, %v7733
  %v7754 = vmax.f32 %v7714, %v7734
  %v7755 = vmax.f32 %v7715, %v7735
  %v7756 = vmax.f32 %v7716, %v7736
  %v7757 = vmax.f32 %v7717, %v7737
  %v7758 = vmax.f32 %v7718, %v7738
  %v7759 = vmax.f32 %v7719, %v7739
  %v7760 = vmax.f32 %v7720, %v7740
  %v7761 = vmax.f32 %v7721, %v7741
  %v7762 = vmax.f32 %v7722, %v7742
  %v7763 = vmax.f32 %v7723, %v7743
  %v7764 = vld [vmem:[%s6] sm:$0x1]
  %v7766 = vlaneseq
  %v7767 = vshrl.u32 %v7766, 7
  %v7768 = vsub.s32 0, %v7767
  %v7769 = vrot.slane %v7764, %v7768
  %v7771 = vadd.f32 %v7744, %v7769
  %v7772 = vadd.f32 %v7745, %v7769
  %v7773 = vadd.f32 %v7746, %v7769
  %v7774 = vadd.f32 %v7747, %v7769
  %v7775 = vadd.f32 %v7748, %v7769
  %v7776 = vadd.f32 %v7749, %v7769
  %v7777 = vadd.f32 %v7750, %v7769
  %v7778 = vadd.f32 %v7751, %v7769
  %v7779 = vadd.f32 %v7752, %v7769
  %v7780 = vadd.f32 %v7753, %v7769
  %v7781 = vadd.f32 %v7754, %v7769
  %v7782 = vadd.f32 %v7755, %v7769
  %v7783 = vadd.f32 %v7756, %v7769
  %v7784 = vadd.f32 %v7757, %v7769
  %v7785 = vadd.f32 %v7758, %v7769
  %v7786 = vadd.f32 %v7759, %v7769
  %v7787 = vadd.f32 %v7760, %v7769
  %v7788 = vadd.f32 %v7761, %v7769
  %v7789 = vadd.f32 %v7762, %v7769
  %v7790 = vadd.f32 %v7763, %v7769
  %v7791 = vmax.f32 %v7771, 0.0
  %v7792 = vmax.f32 %v7772, 0.0
  %v7793 = vmax.f32 %v7773, 0.0
  %v7794 = vmax.f32 %v7774, 0.0
  %v7795 = vmax.f32 %v7775, 0.0
  %v7796 = vmax.f32 %v7776, 0.0
  %v7797 = vmax.f32 %v7777, 0.0
  %v7798 = vmax.f32 %v7778, 0.0
  %v7799 = vmax.f32 %v7779, 0.0
  %v7800 = vmax.f32 %v7780, 0.0
  %v7801 = vmax.f32 %v7781, 0.0
  %v7802 = vmax.f32 %v7782, 0.0
  %v7803 = vmax.f32 %v7783, 0.0
  %v7804 = vmax.f32 %v7784, 0.0
  %v7805 = vmax.f32 %v7785, 0.0
  %v7806 = vmax.f32 %v7786, 0.0
  %v7807 = vmax.f32 %v7787, 0.0
  %v7808 = vmax.f32 %v7788, 0.0
  %v7809 = vmax.f32 %v7789, 0.0
  %v7810 = vmax.f32 %v7790, 0.0
  %7811 = vst [vmem:[#allocation4] sm:$0xff] 0.0
  %7812 = vst [vmem:[#allocation4 + $0xa4] sm:$0xf] 0.0
  %7813 = vst [vmem:[#allocation4 + $0x8] sm:$0xff] %v7791
  %7814 = vst [vmem:[#allocation4 + $0x10] sm:$0xff] %v7792
  %7815 = vst [vmem:[#allocation4 + $0x18] sm:$0xff] %v7793
  %7816 = vst [vmem:[#allocation4 + $0x20] sm:$0xff] %v7794
  %7817 = vst [vmem:[#allocation4 + $0x28] sm:$0xff] %v7795
  %7818 = vst [vmem:[#allocation4 + $0x30] sm:$0xff] %v7796
  %7819 = vst [vmem:[#allocation4 + $0x38] sm:$0xff] %v7797
  %7820 = vst [vmem:[#allocation4 + $0x40] sm:$0xff] %v7798
  %7821 = vst [vmem:[#allocation4 + $0x48] sm:$0xff] %v7799
  %7822 = vst [vmem:[#allocation4 + $0x50] sm:$0xff] %v7800
  %7823 = vst [vmem:[#allocation4 + $0x58] sm:$0xff] %v7801
  %7824 = vst [vmem:[#allocation4 + $0x60] sm:$0xff] %v7802
  %7825 = vst [vmem:[#allocation4 + $0x68] sm:$0xff] %v7803
  %7826 = vst [vmem:[#allocation4 + $0x70] sm:$0xff] %v7804
  %7827 = vst [vmem:[#allocation4 + $0x78] sm:$0xff] %v7805
  %7828 = vst [vmem:[#allocation4 + $0x80] sm:$0xff] %v7806
  %7829 = vst [vmem:[#allocation4 + $0x88] sm:$0xff] %v7807
  %7830 = vst [vmem:[#allocation4 + $0x90] sm:$0xff] %v7808
  %7831 = vst [vmem:[#allocation4 + $0x98] sm:$0xff] %v7809
  %7832 = vst [vmem:[#allocation4 + $0xa0] sm:$0xf] %v7810
  %v7833 = vld [vmem:[%s7] sm:$0xff]
  %v7834 = vld [vmem:[%s7 + $0x8] sm:$0xff]
  %v7835 = vld [vmem:[%s7 + $0x10] sm:$0xff]
  %v7836 = vld [vmem:[%s7 + $0x18] sm:$0xff]
  %v7837 = vld [vmem:[%s7 + $0x20] sm:$0xff]
  %v7838 = vld [vmem:[%s7 + $0x28] sm:$0xff]
  %v7839 = vld [vmem:[%s7 + $0x30] sm:$0xff]
  %v7840 = vld [vmem:[%s7 + $0x38] sm:$0xff]
  %v7841 = vld [vmem:[%s7 + $0x40] sm:$0xff]
  %v7842 = vld [vmem:[%s7 + $0x48] sm:$0xff]
  %v7843 = vld [vmem:[%s7 + $0x50] sm:$0xff]
  %v7844 = vld [vmem:[%s7 + $0x58] sm:$0xff]
  %v7845 = vld [vmem:[%s7 + $0x60] sm:$0xff]
  %v7846 = vld [vmem:[%s7 + $0x68] sm:$0xff]
  %v7847 = vld [vmem:[%s7 + $0x70] sm:$0xff]
  %v7848 = vld [vmem:[%s7 + $0x78] sm:$0xff]
  %s7849 = scalar_lea.vmem [#allocation4], 7
  %v7850 = vld [vmem:[%s7849] ss:$2 sm:$0xff]
  %s7851 = scalar_lea.vmem [#allocation4], 23
  %v7852 = vld [vmem:[%s7851] ss:$2 sm:$0xff]
  %s7853 = scalar_lea.vmem [#allocation4], 39
  %v7854 = vld [vmem:[%s7853] ss:$2 sm:$0xff]
  %s7855 = scalar_lea.vmem [#allocation4], 55
  %v7856 = vld [vmem:[%s7855] ss:$2 sm:$0xff]
  %s7857 = scalar_lea.vmem [#allocation4], 71
  %v7858 = vld [vmem:[%s7857] ss:$2 sm:$0xff]
  %s7859 = scalar_lea.vmem [#allocation4], 87
  %v7860 = vld [vmem:[%s7859] ss:$2 sm:$0xff]
  %s7861 = scalar_lea.vmem [#allocation4], 103
  %v7862 = vld [vmem:[%s7861] ss:$2 sm:$0xff]
  %s7863 = scalar_lea.vmem [#allocation4], 119
  %v7864 = vld [vmem:[%s7863] ss:$2 sm:$0xff]
  %s7865 = scalar_lea.vmem [#allocation4], 135
  %v7866 = vld [vmem:[%s7865] ss:$2 sm:$0xff]
  %s7867 = scalar_lea.vmem [#allocation4], 151
  %v7868 = vld [vmem:[%s7867] ss:$2 sm:$0x3f]
  %s7869 = scalar_lea.vmem [#allocation4], 8
  %v7870 = vld [vmem:[%s7869] ss:$2 sm:$0xff]
  %s7871 = scalar_lea.vmem [#allocation4], 24
  %v7872 = vld [vmem:[%s7871] ss:$2 sm:$0xff]
  %s7873 = scalar_lea.vmem [#allocation4], 40
  %v7874 = vld [vmem:[%s7873] ss:$2 sm:$0xff]
  %s7875 = scalar_lea.vmem [#allocation4], 56
  %v7876 = vld [vmem:[%s7875] ss:$2 sm:$0xff]
  %s7877 = scalar_lea.vmem [#allocation4], 72
  %v7878 = vld [vmem:[%s7877] ss:$2 sm:$0xff]
  %s7879 = scalar_lea.vmem [#allocation4], 88
  %v7880 = vld [vmem:[%s7879] ss:$2 sm:$0xff]
  %s7881 = scalar_lea.vmem [#allocation4], 104
  %v7882 = vld [vmem:[%s7881] ss:$2 sm:$0xff]
  %s7883 = scalar_lea.vmem [#allocation4], 120
  %v7884 = vld [vmem:[%s7883] ss:$2 sm:$0xff]
  %s7885 = scalar_lea.vmem [#allocation4], 136
  %v7886 = vld [vmem:[%s7885] ss:$2 sm:$0xff]
  %s7887 = scalar_lea.vmem [#allocation4], 152
  %v7888 = vld [vmem:[%s7887] ss:$2 sm:$0x3f]
  %s7889 = scalar_lea.vmem %s7, 128
  %v7890 = vld [vmem:[%s7889] sm:$0xff]
  %v7891 = vld [vmem:[%s7889 + $0x8] sm:$0xff]
  %v7892 = vld [vmem:[%s7889 + $0x10] sm:$0xff]
  %v7893 = vld [vmem:[%s7889 + $0x18] sm:$0xff]
  %v7894 = vld [vmem:[%s7889 + $0x20] sm:$0xff]
  %v7895 = vld [vmem:[%s7889 + $0x28] sm:$0xff]
  %v7896 = vld [vmem:[%s7889 + $0x30] sm:$0xff]
  %v7897 = vld [vmem:[%s7889 + $0x38] sm:$0xff]
  %v7898 = vld [vmem:[%s7889 + $0x40] sm:$0xff]
  %v7899 = vld [vmem:[%s7889 + $0x48] sm:$0xff]
  %v7900 = vld [vmem:[%s7889 + $0x50] sm:$0xff]
  %v7901 = vld [vmem:[%s7889 + $0x58] sm:$0xff]
  %v7902 = vld [vmem:[%s7889 + $0x60] sm:$0xff]
  %v7903 = vld [vmem:[%s7889 + $0x68] sm:$0xff]
  %v7904 = vld [vmem:[%s7889 + $0x70] sm:$0xff]
  %v7905 = vld [vmem:[%s7889 + $0x78] sm:$0xff]
  %s7906 = scalar_lea.vmem [#allocation4], 9
  %v7907 = vld [vmem:[%s7906] ss:$2 sm:$0xff]
  %s7908 = scalar_lea.vmem [#allocation4], 25
  %v7909 = vld [vmem:[%s7908] ss:$2 sm:$0xff]
  %s7910 = scalar_lea.vmem [#allocation4], 41
  %v7911 = vld [vmem:[%s7910] ss:$2 sm:$0xff]
  %s7912 = scalar_lea.vmem [#allocation4], 57
  %v7913 = vld [vmem:[%s7912] ss:$2 sm:$0xff]
  %s7914 = scalar_lea.vmem [#allocation4], 73
  %v7915 = vld [vmem:[%s7914] ss:$2 sm:$0xff]
  %s7916 = scalar_lea.vmem [#allocation4], 89
  %v7917 = vld [vmem:[%s7916] ss:$2 sm:$0xff]
  %s7918 = scalar_lea.vmem [#allocation4], 105
  %v7919 = vld [vmem:[%s7918] ss:$2 sm:$0xff]
  %s7920 = scalar_lea.vmem [#allocation4], 121
  %v7921 = vld [vmem:[%s7920] ss:$2 sm:$0xff]
  %s7922 = scalar_lea.vmem [#allocation4], 137
  %v7923 = vld [vmem:[%s7922] ss:$2 sm:$0xff]
  %s7924 = scalar_lea.vmem [#allocation4], 153
  %v7925 = vld [vmem:[%s7924] ss:$2 sm:$0x3f]
  %7926 = vmatprep.subr.mxu0 0.0
  %7927 = vmatpush1.msra.mxu0 %v7890
  %7928 = vmatprep.subr.mxu0 0.0
  %7929 = vmatpush1.msra.mxu0 %v7891
  %7930 = vmatprep.subr.mxu0 0.0
  %7931 = vmatpush1.msra.mxu0 %v7892
  %7932 = vmatprep.subr.mxu0 0.0
  %7933 = vmatpush1.msra.mxu0 %v7893
  %7934 = vmatprep.subr.mxu0 0.0
  %7935 = vmatpush1.msra.mxu0 %v7894
  %7936 = vmatprep.subr.mxu0 0.0
  %7937 = vmatpush1.msra.mxu0 %v7895
  %7938 = vmatprep.subr.mxu0 0.0
  %7939 = vmatpush1.msra.mxu0 %v7896
  %7940 = vmatprep.subr.mxu0 0.0
  %7941 = vmatpush1.msra.mxu0 %v7897
  %7942 = vmatprep.subr.mxu0 0.0
  %7943 = vmatpush1.msra.mxu0 %v7898
  %7944 = vmatprep.subr.mxu0 0.0
  %7945 = vmatpush1.msra.mxu0 %v7899
  %7946 = vmatprep.subr.mxu0 0.0
  %7947 = vmatpush1.msra.mxu0 %v7900
  %7948 = vmatprep.subr.mxu0 0.0
  %7949 = vmatpush1.msra.mxu0 %v7901
  %7950 = vmatprep.subr.mxu0 0.0
  %7951 = vmatpush1.msra.mxu0 %v7902
  %7952 = vmatprep.subr.mxu0 0.0
  %7953 = vmatpush1.msra.mxu0 %v7903
  %7954 = vmatprep.subr.mxu0 0.0
  %7955 = vmatpush1.msra.mxu0 %v7904
  %7956 = vmatprep.subr.mxu0 0.0
  %7957 = vmatpush1.msra.mxu0 %v7905
  %7958 = vmatprep.subr.mxu0 0.0
  %7959 = vmatpush1.msra.mxu0 0.0
  %7960 = vmatprep.subr.mxu0 0.0
  %7961 = vmatpush1.msra.mxu0 0.0
  %7962 = vmatprep.subr.mxu0 0.0
  %7963 = vmatpush1.msra.mxu0 0.0
  %7964 = vmatprep.subr.mxu0 0.0
  %7965 = vmatpush1.msra.mxu0 0.0
  %7966 = vmatprep.subr.mxu0 0.0
  %7967 = vmatpush1.msra.mxu0 0.0
  %7968 = vmatprep.subr.mxu0 0.0
  %7969 = vmatpush1.msra.mxu0 0.0
  %7970 = vmatprep.subr.mxu0 0.0
  %7971 = vmatpush1.msra.mxu0 0.0
  %7972 = vmatprep.subr.mxu0 0.0
  %7973 = vmatpush1.msra.mxu0 0.0
  %7974 = vmatprep.subr.mxu0 0.0
  %7975 = vmatpush1.msra.mxu0 0.0
  %7976 = vmatprep.subr.mxu0 0.0
  %7977 = vmatpush1.msra.mxu0 0.0
  %7978 = vmatprep.subr.mxu0 0.0
  %7979 = vmatpush1.msra.mxu0 0.0
  %7980 = vmatprep.subr.mxu0 0.0
  %7981 = vmatpush1.msra.mxu0 0.0
  %7982 = vmatprep.subr.mxu0 0.0
  %7983 = vmatpush1.msra.mxu0 0.0
  %7984 = vmatprep.subr.mxu0 0.0
  %7985 = vmatpush1.msra.mxu0 0.0
  %7986 = vmatprep.subr.mxu0 0.0
  %7987 = vmatpush1.msra.mxu0 0.0
  %7988 = vmatprep.subr.mxu0 0.0
  %7989 = vmatpush1.msra.mxu0 0.0
  %7990 = vmatprep.mubr.f32.mxu0 0.0
  %7991 = vmatmul.mubr.f32.gmra.mrb[0].mxu0 %v7870
  %v7992 = vpop.f32.mrb[0].mxu0
  %v7993 = vadd.f32 0.0, %v7992
  %v7994 = vpop.f32.mrb[0].mxu0
  %7995 = vmatprep.mubr.f32.mxu0 0.0
  %7996 = vmatmul.mubr.f32.gmra.mrb[0].mxu0 %v7872
  %v7997 = vpop.f32.mrb[0].mxu0
  %v7998 = vadd.f32 0.0, %v7997
  %v7999 = vpop.f32.mrb[0].mxu0
  %8000 = vmatprep.mubr.f32.mxu0 0.0
  %8001 = vmatmul.mubr.f32.gmra.mrb[0].mxu0 %v7874
  %v8002 = vpop.f32.mrb[0].mxu0
  %v8003 = vadd.f32 0.0, %v8002
  %v8004 = vpop.f32.mrb[0].mxu0
  %8005 = vmatprep.mubr.f32.mxu0 0.0
  %8006 = vmatmul.mubr.f32.gmra.mrb[0].mxu0 %v7876
  %v8007 = vpop.f32.mrb[0].mxu0
  %v8008 = vadd.f32 0.0, %v8007
  %v8009 = vpop.f32.mrb[0].mxu0
  %8010 = vmatprep.mubr.f32.mxu0 0.0
  %8011 = vmatmul.mubr.f32.gmra.mrb[0].mxu0 %v7878
  %v8012 = vpop.f32.mrb[0].mxu0
  %v8013 = vadd.f32 0.0, %v8012
  %v8014 = vpop.f32.mrb[0].mxu0
  %8015 = vmatprep.mubr.f32.mxu0 0.0
  %8016 = vmatmul.mubr.f32.gmra.mrb[0].mxu0 %v7880
  %v8017 = vpop.f32.mrb[0].mxu0
  %v8018 = vadd.f32 0.0, %v8017
  %v8019 = vpop.f32.mrb[0].mxu0
  %8020 = vmatprep.mubr.f32.mxu0 0.0
  %8021 = vmatmul.mubr.f32.gmra.mrb[0].mxu0 %v7882
  %v8022 = vpop.f32.mrb[0].mxu0
  %v8023 = vadd.f32 0.0, %v8022
  %v8024 = vpop.f32.mrb[0].mxu0
  %8025 = vmatprep.mubr.f32.mxu0 0.0
  %8026 = vmatmul.mubr.f32.gmra.mrb[0].mxu0 %v7884
  %v8027 = vpop.f32.mrb[0].mxu0
  %v8028 = vadd.f32 0.0, %v8027
  %v8029 = vpop.f32.mrb[0].mxu0
  %8030 = vmatprep.mubr.f32.mxu0 0.0
  %8031 = vmatmul.mubr.f32.gmra.mrb[0].mxu0 %v7886
  %v8032 = vpop.f32.mrb[0].mxu0
  %v8033 = vadd.f32 0.0, %v8032
  %v8034 = vpop.f32.mrb[0].mxu0
  %8035 = vmatprep.mubr.f32.mxu0 0.0
  %8036 = vmatmul.mubr.f32.gmra.mrb[0].mxu0 %v7888
  %v8037 = vpop.f32.mrb[0].mxu0
  %v8038 = vadd.f32 0.0, %v8037
  %v8039 = vpop.f32.mrb[0].mxu0
  %8040 = vdwg.mxu0
  %8041 = vmatprep.subr.mxu0 0.0
  %8042 = vmatpush1.msra.mxu0 %v7890
  %8043 = vmatprep.subr.mxu0 0.0
  %8044 = vmatpush1.msra.mxu0 %v7891
  %8045 = vmatprep.subr.mxu0 0.0
  %8046 = vmatpush1.msra.mxu0 %v7892
  %8047 = vmatprep.subr.mxu0 0.0
  %8048 = vmatpush1.msra.mxu0 %v7893
  %8049 = vmatprep.subr.mxu0 0.0
  %8050 = vmatpush1.msra.mxu0 %v7894
  %8051 = vmatprep.subr.mxu0 0.0
  %8052 = vmatpush1.msra.mxu0 %v7895
  %8053 = vmatprep.subr.mxu0 0.0
  %8054 = vmatpush1.msra.mxu0 %v7896
  %8055 = vmatprep.subr.mxu0 0.0
  %8056 = vmatpush1.msra.mxu0 %v7897
  %8057 = vmatprep.subr.mxu0 0.0
  %8058 = vmatpush1.msra.mxu0 %v7898
  %8059 = vmatprep.subr.mxu0 0.0
  %8060 = vmatpush1.msra.mxu0 %v7899
  %8061 = vmatprep.subr.mxu0 0.0
  %8062 = vmatpush1.msra.mxu0 %v7900
  %8063 = vmatprep.subr.mxu0 0.0
  %8064 = vmatpush1.msra.mxu0 %v7901
  %8065 = vmatprep.subr.mxu0 0.0
  %8066 = vmatpush1.msra.mxu0 %v7902
  %8067 = vmatprep.subr.mxu0 0.0
  %8068 = vmatpush1.msra.mxu0 %v7903
  %8069 = vmatprep.subr.mxu0 0.0
  %8070 = vmatpush1.msra.mxu0 %v7904
  %8071 = vmatprep.subr.mxu0 0.0
  %8072 = vmatpush1.msra.mxu0 %v7905
  %8073 = vmatprep.subr.mxu0 0.0
  %8074 = vmatpush1.msra.mxu0 0.0
  %8075 = vmatprep.subr.mxu0 0.0
  %8076 = vmatpush1.msra.mxu0 0.0
  %8077 = vmatprep.subr.mxu0 0.0
  %8078 = vmatpush1.msra.mxu0 0.0
  %8079 = vmatprep.subr.mxu0 0.0
  %8080 = vmatpush1.msra.mxu0 0.0
  %8081 = vmatprep.subr.mxu0 0.0
  %8082 = vmatpush1.msra.mxu0 0.0
  %8083 = vmatprep.subr.mxu0 0.0
  %8084 = vmatpush1.msra.mxu0 0.0
  %8085 = vmatprep.subr.mxu0 0.0
  %8086 = vmatpush1.msra.mxu0 0.0
  %8087 = vmatprep.subr.mxu0 0.0
  %8088 = vmatpush1.msra.mxu0 0.0
  %8089 = vmatprep.subr.mxu0 0.0
  %8090 = vmatpush1.msra.mxu0 0.0
  %8091 = vmatprep.subr.mxu0 0.0
  %8092 = vmatpush1.msra.mxu0 0.0
  %8093 = vmatprep.subr.mxu0 0.0
  %8094 = vmatpush1.msra.mxu0 0.0
  %8095 = vmatprep.subr.mxu0 0.0
  %8096 = vmatpush1.msra.mxu0 0.0
  %8097 = vmatprep.subr.mxu0 0.0
  %8098 = vmatpush1.msra.mxu0 0.0
  %8099 = vmatprep.subr.mxu0 0.0
  %8100 = vmatpush1.msra.mxu0 0.0
  %8101 = vmatprep.subr.mxu0 0.0
  %8102 = vmatpush1.msra.mxu0 0.0
  %8103 = vmatprep.subr.mxu0 0.0
  %8104 = vmatpush1.msra.mxu0 0.0
  %8105 = vmatprep.mubr.f32.mxu0 0.0
  %8106 = vmatmul.mubr.f32.gmra.mrb[0].mxu0 %v7907
  %v8107 = vpop.f32.mrb[0].mxu0
  %v8108 = vadd.f32 0.0, %v8107
  %v8109 = vpop.f32.mrb[0].mxu0
  %8110 = vmatprep.mubr.f32.mxu0 0.0
  %8111 = vmatmul.mubr.f32.gmra.mrb[0].mxu0 %v7909
  %v8112 = vpop.f32.mrb[0].mxu0
  %v8113 = vadd.f32 0.0, %v8112
  %v8114 = vpop.f32.mrb[0].mxu0
  %8115 = vmatprep.mubr.f32.mxu0 0.0
  %8116 = vmatmul.mubr.f32.gmra.mrb[0].mxu0 %v7911
  %v8117 = vpop.f32.mrb[0].mxu0
  %v8118 = vadd.f32 0.0, %v8117
  %v8119 = vpop.f32.mrb[0].mxu0
  %8120 = vmatprep.mubr.f32.mxu0 0.0
  %8121 = vmatmul.mubr.f32.gmra.mrb[0].mxu0 %v7913
  %v8122 = vpop.f32.mrb[0].mxu0
  %v8123 = vadd.f32 0.0, %v8122
  %v8124 = vpop.f32.mrb[0].mxu0
  %8125 = vmatprep.mubr.f32.mxu0 0.0
  %8126 = vmatmul.mubr.f32.gmra.mrb[0].mxu0 %v7915
  %v8127 = vpop.f32.mrb[0].mxu0
  %v8128 = vadd.f32 0.0, %v8127
  %v8129 = vpop.f32.mrb[0].mxu0
  %8130 = vmatprep.mubr.f32.mxu0 0.0
  %8131 = vmatmul.mubr.f32.gmra.mrb[0].mxu0 %v7917
  %v8132 = vpop.f32.mrb[0].mxu0
  %v8133 = vadd.f32 0.0, %v8132
  %v8134 = vpop.f32.mrb[0].mxu0
  %8135 = vmatprep.mubr.f32.mxu0 0.0
  %8136 = vmatmul.mubr.f32.gmra.mrb[0].mxu0 %v7919
  %v8137 = vpop.f32.mrb[0].mxu0
  %v8138 = vadd.f32 0.0, %v8137
  %v8139 = vpop.f32.mrb[0].mxu0
  %8140 = vmatprep.mubr.f32.mxu0 0.0
  %8141 = vmatmul.mubr.f32.gmra.mrb[0].mxu0 %v7921
  %v8142 = vpop.f32.mrb[0].mxu0
  %v8143 = vadd.f32 0.0, %v8142
  %v8144 = vpop.f32.mrb[0].mxu0
  %8145 = vmatprep.mubr.f32.mxu0 0.0
  %8146 = vmatmul.mubr.f32.gmra.mrb[0].mxu0 %v7923
  %v8147 = vpop.f32.mrb[0].mxu0
  %v8148 = vadd.f32 0.0, %v8147
  %v8149 = vpop.f32.mrb[0].mxu0
  %8150 = vmatprep.mubr.f32.mxu0 0.0
  %8151 = vmatmul.mubr.f32.gmra.mrb[0].mxu0 %v7925
  %v8152 = vpop.f32.mrb[0].mxu0
  %v8153 = vadd.f32 0.0, %v8152
  %v8154 = vpop.f32.mrb[0].mxu0
  %8155 = vdwg.mxu0
  %8156 = vmatprep.subr.mxu0 0.0
  %8157 = vmatpush1.msra.mxu0 %v7833
  %8158 = vmatprep.subr.mxu0 0.0
  %8159 = vmatpush1.msra.mxu0 %v7834
  %8160 = vmatprep.subr.mxu0 0.0
  %8161 = vmatpush1.msra.mxu0 %v7835
  %8162 = vmatprep.subr.mxu0 0.0
  %8163 = vmatpush1.msra.mxu0 %v7836
  %8164 = vmatprep.subr.mxu0 0.0
  %8165 = vmatpush1.msra.mxu0 %v7837
  %8166 = vmatprep.subr.mxu0 0.0
  %8167 = vmatpush1.msra.mxu0 %v7838
  %8168 = vmatprep.subr.mxu0 0.0
  %8169 = vmatpush1.msra.mxu0 %v7839
  %8170 = vmatprep.subr.mxu0 0.0
  %8171 = vmatpush1.msra.mxu0 %v7840
  %8172 = vmatprep.subr.mxu0 0.0
  %8173 = vmatpush1.msra.mxu0 %v7841
  %8174 = vmatprep.subr.mxu0 0.0
  %8175 = vmatpush1.msra.mxu0 %v7842
  %8176 = vmatprep.subr.mxu0 0.0
  %8177 = vmatpush1.msra.mxu0 %v7843
  %8178 = vmatprep.subr.mxu0 0.0
  %8179 = vmatpush1.msra.mxu0 %v7844
  %8180 = vmatprep.subr.mxu0 0.0
  %8181 = vmatpush1.msra.mxu0 %v7845
  %8182 = vmatprep.subr.mxu0 0.0
  %8183 = vmatpush1.msra.mxu0 %v7846
  %8184 = vmatprep.subr.mxu0 0.0
  %8185 = vmatpush1.msra.mxu0 %v7847
  %8186 = vmatprep.subr.mxu0 0.0
  %8187 = vmatpush1.msra.mxu0 %v7848
  %8188 = vmatprep.subr.mxu0 0.0
  %8189 = vmatpush1.msra.mxu0 0.0
  %8190 = vmatprep.subr.mxu0 0.0
  %8191 = vmatpush1.msra.mxu0 0.0
  %8192 = vmatprep.subr.mxu0 0.0
  %8193 = vmatpush1.msra.mxu0 0.0
  %8194 = vmatprep.subr.mxu0 0.0
  %8195 = vmatpush1.msra.mxu0 0.0
  %8196 = vmatprep.subr.mxu0 0.0
  %8197 = vmatpush1.msra.mxu0 0.0
  %8198 = vmatprep.subr.mxu0 0.0
  %8199 = vmatpush1.msra.mxu0 0.0
  %8200 = vmatprep.subr.mxu0 0.0
  %8201 = vmatpush1.msra.mxu0 0.0
  %8202 = vmatprep.subr.mxu0 0.0
  %8203 = vmatpush1.msra.mxu0 0.0
  %8204 = vmatprep.subr.mxu0 0.0
  %8205 = vmatpush1.msra.mxu0 0.0
  %8206 = vmatprep.subr.mxu0 0.0
  %8207 = vmatpush1.msra.mxu0 0.0
  %8208 = vmatprep.subr.mxu0 0.0
  %8209 = vmatpush1.msra.mxu0 0.0
  %8210 = vmatprep.subr.mxu0 0.0
  %8211 = vmatpush1.msra.mxu0 0.0
  %8212 = vmatprep.subr.mxu0 0.0
  %8213 = vmatpush1.msra.mxu0 0.0
  %8214 = vmatprep.subr.mxu0 0.0
  %8215 = vmatpush1.msra.mxu0 0.0
  %8216 = vmatprep.subr.mxu0 0.0
  %8217 = vmatpush1.msra.mxu0 0.0
  %8218 = vmatprep.subr.mxu0 0.0
  %8219 = vmatpush1.msra.mxu0 0.0
  %8220 = vmatprep.mubr.f32.mxu0 0.0
  %8221 = vmatmul.mubr.f32.gmra.mrb[0].mxu0 %v7850
  %v8222 = vpop.f32.mrb[0].mxu0
  %v8223 = vadd.f32 %v7993, %v8222
  %v8224 = vpop.f32.mrb[0].mxu0
  %8225 = vmatprep.mubr.f32.mxu0 0.0
  %8226 = vmatmul.mubr.f32.gmra.mrb[0].mxu0 %v7852
  %v8227 = vpop.f32.mrb[0].mxu0
  %v8228 = vadd.f32 %v7998, %v8227
  %v8229 = vpop.f32.mrb[0].mxu0
  %8230 = vmatprep.mubr.f32.mxu0 0.0
  %8231 = vmatmul.mubr.f32.gmra.mrb[0].mxu0 %v7854
  %v8232 = vpop.f32.mrb[0].mxu0
  %v8233 = vadd.f32 %v8003, %v8232
  %v8234 = vpop.f32.mrb[0].mxu0
  %8235 = vmatprep.mubr.f32.mxu0 0.0
  %8236 = vmatmul.mubr.f32.gmra.mrb[0].mxu0 %v7856
  %v8237 = vpop.f32.mrb[0].mxu0
  %v8238 = vadd.f32 %v8008, %v8237
  %v8239 = vpop.f32.mrb[0].mxu0
  %8240 = vmatprep.mubr.f32.mxu0 0.0
  %8241 = vmatmul.mubr.f32.gmra.mrb[0].mxu0 %v7858
  %v8242 = vpop.f32.mrb[0].mxu0
  %v8243 = vadd.f32 %v8013, %v8242
  %v8244 = vpop.f32.mrb[0].mxu0
  %8245 = vmatprep.mubr.f32.mxu0 0.0
  %8246 = vmatmul.mubr.f32.gmra.mrb[0].mxu0 %v7860
  %v8247 = vpop.f32.mrb[0].mxu0
  %v8248 = vadd.f32 %v8018, %v8247
  %v8249 = vpop.f32.mrb[0].mxu0
  %8250 = vmatprep.mubr.f32.mxu0 0.0
  %8251 = vmatmul.mubr.f32.gmra.mrb[0].mxu0 %v7862
  %v8252 = vpop.f32.mrb[0].mxu0
  %v8253 = vadd.f32 %v8023, %v8252
  %v8254 = vpop.f32.mrb[0].mxu0
  %8255 = vmatprep.mubr.f32.mxu0 0.0
  %8256 = vmatmul.mubr.f32.gmra.mrb[0].mxu0 %v7864
  %v8257 = vpop.f32.mrb[0].mxu0
  %v8258 = vadd.f32 %v8028, %v8257
  %v8259 = vpop.f32.mrb[0].mxu0
  %8260 = vmatprep.mubr.f32.mxu0 0.0
  %8261 = vmatmul.mubr.f32.gmra.mrb[0].mxu0 %v7866
  %v8262 = vpop.f32.mrb[0].mxu0
  %v8263 = vadd.f32 %v8033, %v8262
  %v8264 = vpop.f32.mrb[0].mxu0
  %8265 = vmatprep.mubr.f32.mxu0 0.0
  %8266 = vmatmul.mubr.f32.gmra.mrb[0].mxu0 %v7868
  %v8267 = vpop.f32.mrb[0].mxu0
  %v8268 = vadd.f32 %v8038, %v8267
  %v8269 = vpop.f32.mrb[0].mxu0
  %8270 = vdwg.mxu0
  %8271 = vmatprep.subr.mxu0 0.0
  %8272 = vmatpush1.msra.mxu0 %v7833
  %8273 = vmatprep.subr.mxu0 0.0
  %8274 = vmatpush1.msra.mxu0 %v7834
  %8275 = vmatprep.subr.mxu0 0.0
  %8276 = vmatpush1.msra.mxu0 %v7835
  %8277 = vmatprep.subr.mxu0 0.0
  %8278 = vmatpush1.msra.mxu0 %v7836
  %8279 = vmatprep.subr.mxu0 0.0
  %8280 = vmatpush1.msra.mxu0 %v7837
  %8281 = vmatprep.subr.mxu0 0.0
  %8282 = vmatpush1.msra.mxu0 %v7838
  %8283 = vmatprep.subr.mxu0 0.0
  %8284 = vmatpush1.msra.mxu0 %v7839
  %8285 = vmatprep.subr.mxu0 0.0
  %8286 = vmatpush1.msra.mxu0 %v7840
  %8287 = vmatprep.subr.mxu0 0.0
  %8288 = vmatpush1.msra.mxu0 %v7841
  %8289 = vmatprep.subr.mxu0 0.0
  %8290 = vmatpush1.msra.mxu0 %v7842
  %8291 = vmatprep.subr.mxu0 0.0
  %8292 = vmatpush1.msra.mxu0 %v7843
  %8293 = vmatprep.subr.mxu0 0.0
  %8294 = vmatpush1.msra.mxu0 %v7844
  %8295 = vmatprep.subr.mxu0 0.0
  %8296 = vmatpush1.msra.mxu0 %v7845
  %8297 = vmatprep.subr.mxu0 0.0
  %8298 = vmatpush1.msra.mxu0 %v7846
  %8299 = vmatprep.subr.mxu0 0.0
  %8300 = vmatpush1.msra.mxu0 %v7847
  %8301 = vmatprep.subr.mxu0 0.0
  %8302 = vmatpush1.msra.mxu0 %v7848
  %8303 = vmatprep.subr.mxu0 0.0
  %8304 = vmatpush1.msra.mxu0 0.0
  %8305 = vmatprep.subr.mxu0 0.0
  %8306 = vmatpush1.msra.mxu0 0.0
  %8307 = vmatprep.subr.mxu0 0.0
  %8308 = vmatpush1.msra.mxu0 0.0
  %8309 = vmatprep.subr.mxu0 0.0
  %8310 = vmatpush1.msra.mxu0 0.0
  %8311 = vmatprep.subr.mxu0 0.0
  %8312 = vmatpush1.msra.mxu0 0.0
  %8313 = vmatprep.subr.mxu0 0.0
  %8314 = vmatpush1.msra.mxu0 0.0
  %8315 = vmatprep.subr.mxu0 0.0
  %8316 = vmatpush1.msra.mxu0 0.0
  %8317 = vmatprep.subr.mxu0 0.0
  %8318 = vmatpush1.msra.mxu0 0.0
  %8319 = vmatprep.subr.mxu0 0.0
  %8320 = vmatpush1.msra.mxu0 0.0
  %8321 = vmatprep.subr.mxu0 0.0
  %8322 = vmatpush1.msra.mxu0 0.0
  %8323 = vmatprep.subr.mxu0 0.0
  %8324 = vmatpush1.msra.mxu0 0.0
  %8325 = vmatprep.subr.mxu0 0.0
  %8326 = vmatpush1.msra.mxu0 0.0
  %8327 = vmatprep.subr.mxu0 0.0
  %8328 = vmatpush1.msra.mxu0 0.0
  %8329 = vmatprep.subr.mxu0 0.0
  %8330 = vmatpush1.msra.mxu0 0.0
  %8331 = vmatprep.subr.mxu0 0.0
  %8332 = vmatpush1.msra.mxu0 0.0
  %8333 = vmatprep.subr.mxu0 0.0
  %8334 = vmatpush1.msra.mxu0 0.0
  %8335 = vmatprep.mubr.f32.mxu0 0.0
  %8336 = vmatmul.mubr.f32.gmra.mrb[0].mxu0 %v7870
  %v8337 = vpop.f32.mrb[0].mxu0
  %v8338 = vadd.f32 %v8108, %v8337
  %v8339 = vpop.f32.mrb[0].mxu0
  %8340 = vmatprep.mubr.f32.mxu0 0.0
  %8341 = vmatmul.mubr.f32.gmra.mrb[0].mxu0 %v7872
  %v8342 = vpop.f32.mrb[0].mxu0
  %v8343 = vadd.f32 %v8113, %v8342
  %v8344 = vpop.f32.mrb[0].mxu0
  %8345 = vmatprep.mubr.f32.mxu0 0.0
  %8346 = vmatmul.mubr.f32.gmra.mrb[0].mxu0 %v7874
  %v8347 = vpop.f32.mrb[0].mxu0
  %v8348 = vadd.f32 %v8118, %v8347
  %v8349 = vpop.f32.mrb[0].mxu0
  %8350 = vmatprep.mubr.f32.mxu0 0.0
  %8351 = vmatmul.mubr.f32.gmra.mrb[0].mxu0 %v7876
  %v8352 = vpop.f32.mrb[0].mxu0
  %v8353 = vadd.f32 %v8123, %v8352
  %v8354 = vpop.f32.mrb[0].mxu0
  %8355 = vmatprep.mubr.f32.mxu0 0.0
  %8356 = vmatmul.mubr.f32.gmra.mrb[0].mxu0 %v7878
  %v8357 = vpop.f32.mrb[0].mxu0
  %v8358 = vadd.f32 %v8128, %v8357
  %v8359 = vpop.f32.mrb[0].mxu0
  %8360 = vmatprep.mubr.f32.mxu0 0.0
  %8361 = vmatmul.mubr.f32.gmra.mrb[0].mxu0 %v7880
  %v8362 = vpop.f32.mrb[0].mxu0
  %v8363 = vadd.f32 %v8133, %v8362
  %v8364 = vpop.f32.mrb[0].mxu0
  %8365 = vmatprep.mubr.f32.mxu0 0.0
  %8366 = vmatmul.mubr.f32.gmra.mrb[0].mxu0 %v7882
  %v8367 = vpop.f32.mrb[0].mxu0
  %v8368 = vadd.f32 %v8138, %v8367
  %v8369 = vpop.f32.mrb[0].mxu0
  %8370 = vmatprep.mubr.f32.mxu0 0.0
  %8371 = vmatmul.mubr.f32.gmra.mrb[0].mxu0 %v7884
  %v8372 = vpop.f32.mrb[0].mxu0
  %v8373 = vadd.f32 %v8143, %v8372
  %v8374 = vpop.f32.mrb[0].mxu0
  %8375 = vmatprep.mubr.f32.mxu0 0.0
  %8376 = vmatmul.mubr.f32.gmra.mrb[0].mxu0 %v7886
  %v8377 = vpop.f32.mrb[0].mxu0
  %v8378 = vadd.f32 %v8148, %v8377
  %v8379 = vpop.f32.mrb[0].mxu0
  %8380 = vmatprep.mubr.f32.mxu0 0.0
  %8381 = vmatmul.mubr.f32.gmra.mrb[0].mxu0 %v7888
  %v8382 = vpop.f32.mrb[0].mxu0
  %v8383 = vadd.f32 %v8153, %v8382
  %v8384 = vpop.f32.mrb[0].mxu0
  %8385 = vdwg.mxu0
  %s8386 = scalar_lea.vmem %s7, 256
  %v8387 = vld [vmem:[%s8386] sm:$0xff]
  %v8388 = vld [vmem:[%s8386 + $0x8] sm:$0xff]
  %v8389 = vld [vmem:[%s8386 + $0x10] sm:$0xff]
  %v8390 = vld [vmem:[%s8386 + $0x18] sm:$0xff]
  %v8391 = vld [vmem:[%s8386 + $0x20] sm:$0xff]
  %v8392 = vld [vmem:[%s8386 + $0x28] sm:$0xff]
  %v8393 = vld [vmem:[%s8386 + $0x30] sm:$0xff]
  %v8394 = vld [vmem:[%s8386 + $0x38] sm:$0xff]
  %v8395 = vld [vmem:[%s8386 + $0x40] sm:$0xff]
  %v8396 = vld [vmem:[%s8386 + $0x48] sm:$0xff]
  %v8397 = vld [vmem:[%s8386 + $0x50] sm:$0xff]
  %v8398 = vld [vmem:[%s8386 + $0x58] sm:$0xff]
  %v8399 = vld [vmem:[%s8386 + $0x60] sm:$0xff]
  %v8400 = vld [vmem:[%s8386 + $0x68] sm:$0xff]
  %v8401 = vld [vmem:[%s8386 + $0x70] sm:$0xff]
  %v8402 = vld [vmem:[%s8386 + $0x78] sm:$0xff]
  %s8403 = scalar_lea.vmem [#allocation4], 10
  %v8404 = vld [vmem:[%s8403] ss:$2 sm:$0xff]
  %s8405 = scalar_lea.vmem [#allocation4], 26
  %v8406 = vld [vmem:[%s8405] ss:$2 sm:$0xff]
  %s8407 = scalar_lea.vmem [#allocation4], 42
  %v8408 = vld [vmem:[%s8407] ss:$2 sm:$0xff]
  %s8409 = scalar_lea.vmem [#allocation4], 58
  %v8410 = vld [vmem:[%s8409] ss:$2 sm:$0xff]
  %s8411 = scalar_lea.vmem [#allocation4], 74
  %v8412 = vld [vmem:[%s8411] ss:$2 sm:$0xff]
  %s8413 = scalar_lea.vmem [#allocation4], 90
  %v8414 = vld [vmem:[%s8413] ss:$2 sm:$0xff]
  %s8415 = scalar_lea.vmem [#allocation4], 106
  %v8416 = vld [vmem:[%s8415] ss:$2 sm:$0xff]
  %s8417 = scalar_lea.vmem [#allocation4], 122
  %v8418 = vld [vmem:[%s8417] ss:$2 sm:$0xff]
  %s8419 = scalar_lea.vmem [#allocation4], 138
  %v8420 = vld [vmem:[%s8419] ss:$2 sm:$0xff]
  %s8421 = scalar_lea.vmem [#allocation4], 154
  %v8422 = vld [vmem:[%s8421] ss:$2 sm:$0x3f]
  %8423 = vmatprep.subr.mxu0 0.0
  %8424 = vmatpush1.msra.mxu0 %v8387
  %8425 = vmatprep.subr.mxu0 0.0
  %8426 = vmatpush1.msra.mxu0 %v8388
  %8427 = vmatprep.subr.mxu0 0.0
  %8428 = vmatpush1.msra.mxu0 %v8389
  %8429 = vmatprep.subr.mxu0 0.0
  %8430 = vmatpush1.msra.mxu0 %v8390
  %8431 = vmatprep.subr.mxu0 0.0
  %8432 = vmatpush1.msra.mxu0 %v8391
  %8433 = vmatprep.subr.mxu0 0.0
  %8434 = vmatpush1.msra.mxu0 %v8392
  %8435 = vmatprep.subr.mxu0 0.0
  %8436 = vmatpush1.msra.mxu0 %v8393
  %8437 = vmatprep.subr.mxu0 0.0
  %8438 = vmatpush1.msra.mxu0 %v8394
  %8439 = vmatprep.subr.mxu0 0.0
  %8440 = vmatpush1.msra.mxu0 %v8395
  %8441 = vmatprep.subr.mxu0 0.0
  %8442 = vmatpush1.msra.mxu0 %v8396
  %8443 = vmatprep.subr.mxu0 0.0
  %8444 = vmatpush1.msra.mxu0 %v8397
  %8445 = vmatprep.subr.mxu0 0.0
  %8446 = vmatpush1.msra.mxu0 %v8398
  %8447 = vmatprep.subr.mxu0 0.0
  %8448 = vmatpush1.msra.mxu0 %v8399
  %8449 = vmatprep.subr.mxu0 0.0
  %8450 = vmatpush1.msra.mxu0 %v8400
  %8451 = vmatprep.subr.mxu0 0.0
  %8452 = vmatpush1.msra.mxu0 %v8401
  %8453 = vmatprep.subr.mxu0 0.0
  %8454 = vmatpush1.msra.mxu0 %v8402
  %8455 = vmatprep.subr.mxu0 0.0
  %8456 = vmatpush1.msra.mxu0 0.0
  %8457 = vmatprep.subr.mxu0 0.0
  %8458 = vmatpush1.msra.mxu0 0.0
  %8459 = vmatprep.subr.mxu0 0.0
  %8460 = vmatpush1.msra.mxu0 0.0
  %8461 = vmatprep.subr.mxu0 0.0
  %8462 = vmatpush1.msra.mxu0 0.0
  %8463 = vmatprep.subr.mxu0 0.0
  %8464 = vmatpush1.msra.mxu0 0.0
  %8465 = vmatprep.subr.mxu0 0.0
  %8466 = vmatpush1.msra.mxu0 0.0
  %8467 = vmatprep.subr.mxu0 0.0
  %8468 = vmatpush1.msra.mxu0 0.0
  %8469 = vmatprep.subr.mxu0 0.0
  %8470 = vmatpush1.msra.mxu0 0.0
  %8471 = vmatprep.subr.mxu0 0.0
  %8472 = vmatpush1.msra.mxu0 0.0
  %8473 = vmatprep.subr.mxu0 0.0
  %8474 = vmatpush1.msra.mxu0 0.0
  %8475 = vmatprep.subr.mxu0 0.0
  %8476 = vmatpush1.msra.mxu0 0.0
  %8477 = vmatprep.subr.mxu0 0.0
  %8478 = vmatpush1.msra.mxu0 0.0
  %8479 = vmatprep.subr.mxu0 0.0
  %8480 = vmatpush1.msra.mxu0 0.0
  %8481 = vmatprep.subr.mxu0 0.0
  %8482 = vmatpush1.msra.mxu0 0.0
  %8483 = vmatprep.subr.mxu0 0.0
  %8484 = vmatpush1.msra.mxu0 0.0
  %8485 = vmatprep.subr.mxu0 0.0
  %8486 = vmatpush1.msra.mxu0 0.0
  %8487 = vmatprep.mubr.f32.mxu0 0.0
  %8488 = vmatmul.mubr.f32.gmra.mrb[0].mxu0 %v7907
  %v8489 = vpop.f32.mrb[0].mxu0
  %v8490 = vadd.f32 0.0, %v8489
  %v8491 = vpop.f32.mrb[0].mxu0
  %8492 = vmatprep.mubr.f32.mxu0 0.0
  %8493 = vmatmul.mubr.f32.gmra.mrb[0].mxu0 %v7909
  %v8494 = vpop.f32.mrb[0].mxu0
  %v8495 = vadd.f32 0.0, %v8494
  %v8496 = vpop.f32.mrb[0].mxu0
  %8497 = vmatprep.mubr.f32.mxu0 0.0
  %8498 = vmatmul.mubr.f32.gmra.mrb[0].mxu0 %v7911
  %v8499 = vpop.f32.mrb[0].mxu0
  %v8500 = vadd.f32 0.0, %v8499
  %v8501 = vpop.f32.mrb[0].mxu0
  %8502 = vmatprep.mubr.f32.mxu0 0.0
  %8503 = vmatmul.mubr.f32.gmra.mrb[0].mxu0 %v7913
  %v8504 = vpop.f32.mrb[0].mxu0
  %v8505 = vadd.f32 0.0, %v8504
  %v8506 = vpop.f32.mrb[0].mxu0
  %8507 = vmatprep.mubr.f32.mxu0 0.0
  %8508 = vmatmul.mubr.f32.gmra.mrb[0].mxu0 %v7915
  %v8509 = vpop.f32.mrb[0].mxu0
  %v8510 = vadd.f32 0.0, %v8509
  %v8511 = vpop.f32.mrb[0].mxu0
  %8512 = vmatprep.mubr.f32.mxu0 0.0
  %8513 = vmatmul.mubr.f32.gmra.mrb[0].mxu0 %v7917
  %v8514 = vpop.f32.mrb[0].mxu0
  %v8515 = vadd.f32 0.0, %v8514
  %v8516 = vpop.f32.mrb[0].mxu0
  %8517 = vmatprep.mubr.f32.mxu0 0.0
  %8518 = vmatmul.mubr.f32.gmra.mrb[0].mxu0 %v7919
  %v8519 = vpop.f32.mrb[0].mxu0
  %v8520 = vadd.f32 0.0, %v8519
  %v8521 = vpop.f32.mrb[0].mxu0
  %8522 = vmatprep.mubr.f32.mxu0 0.0
  %8523 = vmatmul.mubr.f32.gmra.mrb[0].mxu0 %v7921
  %v8524 = vpop.f32.mrb[0].mxu0
  %v8525 = vadd.f32 0.0, %v8524
  %v8526 = vpop.f32.mrb[0].mxu0
  %8527 = vmatprep.mubr.f32.mxu0 0.0
  %8528 = vmatmul.mubr.f32.gmra.mrb[0].mxu0 %v7923
  %v8529 = vpop.f32.mrb[0].mxu0
  %v8530 = vadd.f32 0.0, %v8529
  %v8531 = vpop.f32.mrb[0].mxu0
  %8532 = vmatprep.mubr.f32.mxu0 0.0
  %8533 = vmatmul.mubr.f32.gmra.mrb[0].mxu0 %v7925
  %v8534 = vpop.f32.mrb[0].mxu0
  %v8535 = vadd.f32 0.0, %v8534
  %v8536 = vpop.f32.mrb[0].mxu0
  %8537 = vdwg.mxu0
  %8538 = vmatprep.subr.mxu0 0.0
  %8539 = vmatpush1.msra.mxu0 %v8387
  %8540 = vmatprep.subr.mxu0 0.0
  %8541 = vmatpush1.msra.mxu0 %v8388
  %8542 = vmatprep.subr.mxu0 0.0
  %8543 = vmatpush1.msra.mxu0 %v8389
  %8544 = vmatprep.subr.mxu0 0.0
  %8545 = vmatpush1.msra.mxu0 %v8390
  %8546 = vmatprep.subr.mxu0 0.0
  %8547 = vmatpush1.msra.mxu0 %v8391
  %8548 = vmatprep.subr.mxu0 0.0
  %8549 = vmatpush1.msra.mxu0 %v8392
  %8550 = vmatprep.subr.mxu0 0.0
  %8551 = vmatpush1.msra.mxu0 %v8393
  %8552 = vmatprep.subr.mxu0 0.0
  %8553 = vmatpush1.msra.mxu0 %v8394
  %8554 = vmatprep.subr.mxu0 0.0
  %8555 = vmatpush1.msra.mxu0 %v8395
  %8556 = vmatprep.subr.mxu0 0.0
  %8557 = vmatpush1.msra.mxu0 %v8396
  %8558 = vmatprep.subr.mxu0 0.0
  %8559 = vmatpush1.msra.mxu0 %v8397
  %8560 = vmatprep.subr.mxu0 0.0
  %8561 = vmatpush1.msra.mxu0 %v8398
  %8562 = vmatprep.subr.mxu0 0.0
  %8563 = vmatpush1.msra.mxu0 %v8399
  %8564 = vmatprep.subr.mxu0 0.0
  %8565 = vmatpush1.msra.mxu0 %v8400
  %8566 = vmatprep.subr.mxu0 0.0
  %8567 = vmatpush1.msra.mxu0 %v8401
  %8568 = vmatprep.subr.mxu0 0.0
  %8569 = vmatpush1.msra.mxu0 %v8402
  %8570 = vmatprep.subr.mxu0 0.0
  %8571 = vmatpush1.msra.mxu0 0.0
  %8572 = vmatprep.subr.mxu0 0.0
  %8573 = vmatpush1.msra.mxu0 0.0
  %8574 = vmatprep.subr.mxu0 0.0
  %8575 = vmatpush1.msra.mxu0 0.0
  %8576 = vmatprep.subr.mxu0 0.0
  %8577 = vmatpush1.msra.mxu0 0.0
  %8578 = vmatprep.subr.mxu0 0.0
  %8579 = vmatpush1.msra.mxu0 0.0
  %8580 = vmatprep.subr.mxu0 0.0
  %8581 = vmatpush1.msra.mxu0 0.0
  %8582 = vmatprep.subr.mxu0 0.0
  %8583 = vmatpush1.msra.mxu0 0.0
  %8584 = vmatprep.subr.mxu0 0.0
  %8585 = vmatpush1.msra.mxu0 0.0
  %8586 = vmatprep.subr.mxu0 0.0
  %8587 = vmatpush1.msra.mxu0 0.0
  %8588 = vmatprep.subr.mxu0 0.0
  %8589 = vmatpush1.msra.mxu0 0.0
  %8590 = vmatprep.subr.mxu0 0.0
  %8591 = vmatpush1.msra.mxu0 0.0
  %8592 = vmatprep.subr.mxu0 0.0
  %8593 = vmatpush1.msra.mxu0 0.0
  %8594 = vmatprep.subr.mxu0 0.0
  %8595 = vmatpush1.msra.mxu0 0.0
  %8596 = vmatprep.subr.mxu0 0.0
  %8597 = vmatpush1.msra.mxu0 0.0
  %8598 = vmatprep.subr.mxu0 0.0
  %8599 = vmatpush1.msra.mxu0 0.0
  %8600 = vmatprep.subr.mxu0 0.0
  %8601 = vmatpush1.msra.mxu0 0.0
  %8602 = vmatprep.mubr.f32.mxu0 0.0
  %8603 = vmatmul.mubr.f32.gmra.mrb[0].mxu0 %v8404
  %v8604 = vpop.f32.mrb[0].mxu0
  %v8605 = vadd.f32 0.0, %v8604
  %v8606 = vpop.f32.mrb[0].mxu0
  %8607 = vmatprep.mubr.f32.mxu0 0.0
  %8608 = vmatmul.mubr.f32.gmra.mrb[0].mxu0 %v8406
  %v8609 = vpop.f32.mrb[0].mxu0
  %v8610 = vadd.f32 0.0, %v8609
  %v8611 = vpop.f32.mrb[0].mxu0
  %8612 = vmatprep.mubr.f32.mxu0 0.0
  %8613 = vmatmul.mubr.f32.gmra.mrb[0].mxu0 %v8408
  %v8614 = vpop.f32.mrb[0].mxu0
  %v8615 = vadd.f32 0.0, %v8614
  %v8616 = vpop.f32.mrb[0].mxu0
  %8617 = vmatprep.mubr.f32.mxu0 0.0
  %8618 = vmatmul.mubr.f32.gmra.mrb[0].mxu0 %v8410
  %v8619 = vpop.f32.mrb[0].mxu0
  %v8620 = vadd.f32 0.0, %v8619
  %v8621 = vpop.f32.mrb[0].mxu0
  %8622 = vmatprep.mubr.f32.mxu0 0.0
  %8623 = vmatmul.mubr.f32.gmra.mrb[0].mxu0 %v8412
  %v8624 = vpop.f32.mrb[0].mxu0
  %v8625 = vadd.f32 0.0, %v8624
  %v8626 = vpop.f32.mrb[0].mxu0
  %8627 = vmatprep.mubr.f32.mxu0 0.0
  %8628 = vmatmul.mubr.f32.gmra.mrb[0].mxu0 %v8414
  %v8629 = vpop.f32.mrb[0].mxu0
  %v8630 = vadd.f32 0.0, %v8629
  %v8631 = vpop.f32.mrb[0].mxu0
  %8632 = vmatprep.mubr.f32.mxu0 0.0
  %8633 = vmatmul.mubr.f32.gmra.mrb[0].mxu0 %v8416
  %v8634 = vpop.f32.mrb[0].mxu0
  %v8635 = vadd.f32 0.0, %v8634
  %v8636 = vpop.f32.mrb[0].mxu0
  %8637 = vmatprep.mubr.f32.mxu0 0.0
  %8638 = vmatmul.mubr.f32.gmra.mrb[0].mxu0 %v8418
  %v8639 = vpop.f32.mrb[0].mxu0
  %v8640 = vadd.f32 0.0, %v8639
  %v8641 = vpop.f32.mrb[0].mxu0
  %8642 = vmatprep.mubr.f32.mxu0 0.0
  %8643 = vmatmul.mubr.f32.gmra.mrb[0].mxu0 %v8420
  %v8644 = vpop.f32.mrb[0].mxu0
  %v8645 = vadd.f32 0.0, %v8644
  %v8646 = vpop.f32.mrb[0].mxu0
  %8647 = vmatprep.mubr.f32.mxu0 0.0
  %8648 = vmatmul.mubr.f32.gmra.mrb[0].mxu0 %v8422
  %v8649 = vpop.f32.mrb[0].mxu0
  %v8650 = vadd.f32 0.0, %v8649
  %v8651 = vpop.f32.mrb[0].mxu0
  %8652 = vdwg.mxu0
  %v8653 = vadd.f32 %v8223, %v8490
  %v8654 = vadd.f32 %v8228, %v8495
  %v8655 = vadd.f32 %v8233, %v8500
  %v8656 = vadd.f32 %v8238, %v8505
  %v8657 = vadd.f32 %v8243, %v8510
  %v8658 = vadd.f32 %v8248, %v8515
  %v8659 = vadd.f32 %v8253, %v8520
  %v8660 = vadd.f32 %v8258, %v8525
  %v8661 = vadd.f32 %v8263, %v8530
  %v8662 = vadd.f32 %v8268, %v8535
  %v8663 = vadd.f32 %v8338, %v8605
  %v8664 = vadd.f32 %v8343, %v8610
  %v8665 = vadd.f32 %v8348, %v8615
  %v8666 = vadd.f32 %v8353, %v8620
  %v8667 = vadd.f32 %v8358, %v8625
  %v8668 = vadd.f32 %v8363, %v8630
  %v8669 = vadd.f32 %v8368, %v8635
  %v8670 = vadd.f32 %v8373, %v8640
  %v8671 = vadd.f32 %v8378, %v8645
  %v8672 = vadd.f32 %v8383, %v8650
  %v8673 = vmax.f32 %v8653, %v8663
  %v8674 = vmax.f32 %v8654, %v8664
  %v8675 = vmax.f32 %v8655, %v8665
  %v8676 = vmax.f32 %v8656, %v8666
  %v8677 = vmax.f32 %v8657, %v8667
  %v8678 = vmax.f32 %v8658, %v8668
  %v8679 = vmax.f32 %v8659, %v8669
  %v8680 = vmax.f32 %v8660, %v8670
  %v8681 = vmax.f32 %v8661, %v8671
  %v8682 = vmax.f32 %v8662, %v8672
  %v8683 = vld [vmem:[%s8] sm:$0x1]
  %v8685 = vlaneseq
  %v8686 = vshrl.u32 %v8685, 7
  %v8687 = vsub.s32 0, %v8686
  %v8688 = vrot.slane %v8683, %v8687
  %v8690 = vadd.f32 %v8673, %v8688
  %v8691 = vadd.f32 %v8674, %v8688
  %v8692 = vadd.f32 %v8675, %v8688
  %v8693 = vadd.f32 %v8676, %v8688
  %v8694 = vadd.f32 %v8677, %v8688
  %v8695 = vadd.f32 %v8678, %v8688
  %v8696 = vadd.f32 %v8679, %v8688
  %v8697 = vadd.f32 %v8680, %v8688
  %v8698 = vadd.f32 %v8681, %v8688
  %v8699 = vadd.f32 %v8682, %v8688
  %v8700 = vmax.f32 %v8690, 0.0
  %v8701 = vmax.f32 %v8691, 0.0
  %v8702 = vmax.f32 %v8692, 0.0
  %v8703 = vmax.f32 %v8693, 0.0
  %v8704 = vmax.f32 %v8694, 0.0
  %v8705 = vmax.f32 %v8695, 0.0
  %v8706 = vmax.f32 %v8696, 0.0
  %v8707 = vmax.f32 %v8697, 0.0
  %v8708 = vmax.f32 %v8698, 0.0
  %v8709 = vmax.f32 %v8699, 0.0
  %8710 = vst [vmem:[#allocation5] sm:$0xff] %v8700
  %8711 = vst [vmem:[#allocation5 + $0x8] sm:$0xff] %v8701
  %8712 = vst [vmem:[#allocation5 + $0x10] sm:$0xff] %v8702
  %8713 = vst [vmem:[#allocation5 + $0x18] sm:$0xff] %v8703
  %8714 = vst [vmem:[#allocation5 + $0x20] sm:$0xff] %v8704
  %8715 = vst [vmem:[#allocation5 + $0x28] sm:$0xff] %v8705
  %8716 = vst [vmem:[#allocation5 + $0x30] sm:$0xff] %v8706
  %8717 = vst [vmem:[#allocation5 + $0x38] sm:$0xff] %v8707
  %8718 = vst [vmem:[#allocation5 + $0x40] sm:$0xff] %v8708
  %8719 = vst [vmem:[#allocation5 + $0x48] sm:$0x3f] %v8709
  %v8720 = vld [vmem:[%s9] sm:$0xff]
  %v8721 = vld [vmem:[%s9 + $0x8] sm:$0xff]
  %v8722 = vld [vmem:[%s9 + $0x10] sm:$0xff]
  %v8723 = vld [vmem:[%s9 + $0x18] sm:$0xff]
  %v8724 = vld [vmem:[%s9 + $0x20] sm:$0xff]
  %v8725 = vld [vmem:[%s9 + $0x28] sm:$0xff]
  %v8726 = vld [vmem:[%s9 + $0x30] sm:$0xff]
  %v8727 = vld [vmem:[%s9 + $0x38] sm:$0xff]
  %v8728 = vld [vmem:[%s9 + $0x40] sm:$0xff]
  %v8729 = vld [vmem:[%s9 + $0x48] sm:$0xff]
  %v8730 = vld [vmem:[%s9 + $0x50] sm:$0xff]
  %v8731 = vld [vmem:[%s9 + $0x58] sm:$0xff]
  %v8732 = vld [vmem:[%s9 + $0x60] sm:$0xff]
  %v8733 = vld [vmem:[%s9 + $0x68] sm:$0xff]
  %v8734 = vld [vmem:[%s9 + $0x70] sm:$0xff]
  %v8735 = vld [vmem:[%s9 + $0x78] sm:$0xff]
  %v8736 = vld [vmem:[#allocation5] ss:$2 sm:$0xff]
  %s8737 = scalar_lea.vmem [#allocation5], 16
  %v8738 = vld [vmem:[%s8737] ss:$2 sm:$0xff]
  %s8739 = scalar_lea.vmem [#allocation5], 32
  %v8740 = vld [vmem:[%s8739] ss:$2 sm:$0xff]
  %s8741 = scalar_lea.vmem [#allocation5], 48
  %v8742 = vld [vmem:[%s8741] ss:$2 sm:$0xff]
  %s8743 = scalar_lea.vmem [#allocation5], 64
  %v8744 = vld [vmem:[%s8743] ss:$2 sm:$0x3f]
  %s8745 = scalar_lea.vmem [#allocation5], 1
  %v8746 = vld [vmem:[%s8745] ss:$2 sm:$0xff]
  %s8747 = scalar_lea.vmem [#allocation5], 17
  %v8748 = vld [vmem:[%s8747] ss:$2 sm:$0xff]
  %s8749 = scalar_lea.vmem [#allocation5], 33
  %v8750 = vld [vmem:[%s8749] ss:$2 sm:$0xff]
  %s8751 = scalar_lea.vmem [#allocation5], 49
  %v8752 = vld [vmem:[%s8751] ss:$2 sm:$0xff]
  %s8753 = scalar_lea.vmem [#allocation5], 65
  %v8754 = vld [vmem:[%s8753] ss:$2 sm:$0x3f]
  %s8755 = scalar_lea.vmem %s9, 128
  %v8756 = vld [vmem:[%s8755] sm:$0xff]
  %v8757 = vld [vmem:[%s8755 + $0x8] sm:$0xff]
  %v8758 = vld [vmem:[%s8755 + $0x10] sm:$0xff]
  %v8759 = vld [vmem:[%s8755 + $0x18] sm:$0xff]
  %v8760 = vld [vmem:[%s8755 + $0x20] sm:$0xff]
  %v8761 = vld [vmem:[%s8755 + $0x28] sm:$0xff]
  %v8762 = vld [vmem:[%s8755 + $0x30] sm:$0xff]
  %v8763 = vld [vmem:[%s8755 + $0x38] sm:$0xff]
  %v8764 = vld [vmem:[%s8755 + $0x40] sm:$0xff]
  %v8765 = vld [vmem:[%s8755 + $0x48] sm:$0xff]
  %v8766 = vld [vmem:[%s8755 + $0x50] sm:$0xff]
  %v8767 = vld [vmem:[%s8755 + $0x58] sm:$0xff]
  %v8768 = vld [vmem:[%s8755 + $0x60] sm:$0xff]
  %v8769 = vld [vmem:[%s8755 + $0x68] sm:$0xff]
  %v8770 = vld [vmem:[%s8755 + $0x70] sm:$0xff]
  %v8771 = vld [vmem:[%s8755 + $0x78] sm:$0xff]
  %s8772 = scalar_lea.vmem [#allocation5], 2
  %v8773 = vld [vmem:[%s8772] ss:$2 sm:$0xff]
  %s8774 = scalar_lea.vmem [#allocation5], 18
  %v8775 = vld [vmem:[%s8774] ss:$2 sm:$0xff]
  %s8776 = scalar_lea.vmem [#allocation5], 34
  %v8777 = vld [vmem:[%s8776] ss:$2 sm:$0xff]
  %s8778 = scalar_lea.vmem [#allocation5], 50
  %v8779 = vld [vmem:[%s8778] ss:$2 sm:$0xff]
  %s8780 = scalar_lea.vmem [#allocation5], 66
  %v8781 = vld [vmem:[%s8780] ss:$2 sm:$0x3f]
  %8782 = vmatprep.subr.mxu0 0.0
  %8783 = vmatpush1.msra.mxu0 %v8756
  %8784 = vmatprep.subr.mxu0 0.0
  %8785 = vmatpush1.msra.mxu0 %v8757
  %8786 = vmatprep.subr.mxu0 0.0
  %8787 = vmatpush1.msra.mxu0 %v8758
  %8788 = vmatprep.subr.mxu0 0.0
  %8789 = vmatpush1.msra.mxu0 %v8759
  %8790 = vmatprep.subr.mxu0 0.0
  %8791 = vmatpush1.msra.mxu0 %v8760
  %8792 = vmatprep.subr.mxu0 0.0
  %8793 = vmatpush1.msra.mxu0 %v8761
  %8794 = vmatprep.subr.mxu0 0.0
  %8795 = vmatpush1.msra.mxu0 %v8762
  %8796 = vmatprep.subr.mxu0 0.0
  %8797 = vmatpush1.msra.mxu0 %v8763
  %8798 = vmatprep.subr.mxu0 0.0
  %8799 = vmatpush1.msra.mxu0 %v8764
  %8800 = vmatprep.subr.mxu0 0.0
  %8801 = vmatpush1.msra.mxu0 %v8765
  %8802 = vmatprep.subr.mxu0 0.0
  %8803 = vmatpush1.msra.mxu0 %v8766
  %8804 = vmatprep.subr.mxu0 0.0
  %8805 = vmatpush1.msra.mxu0 %v8767
  %8806 = vmatprep.subr.mxu0 0.0
  %8807 = vmatpush1.msra.mxu0 %v8768
  %8808 = vmatprep.subr.mxu0 0.0
  %8809 = vmatpush1.msra.mxu0 %v8769
  %8810 = vmatprep.subr.mxu0 0.0
  %8811 = vmatpush1.msra.mxu0 %v8770
  %8812 = vmatprep.subr.mxu0 0.0
  %8813 = vmatpush1.msra.mxu0 %v8771
  %8814 = vmatprep.subr.mxu0 0.0
  %8815 = vmatpush1.msra.mxu0 0.0
  %8816 = vmatprep.subr.mxu0 0.0
  %8817 = vmatpush1.msra.mxu0 0.0
  %8818 = vmatprep.subr.mxu0 0.0
  %8819 = vmatpush1.msra.mxu0 0.0
  %8820 = vmatprep.subr.mxu0 0.0
  %8821 = vmatpush1.msra.mxu0 0.0
  %8822 = vmatprep.subr.mxu0 0.0
  %8823 = vmatpush1.msra.mxu0 0.0
  %8824 = vmatprep.subr.mxu0 0.0
  %8825 = vmatpush1.msra.mxu0 0.0
  %8826 = vmatprep.subr.mxu0 0.0
  %8827 = vmatpush1.msra.mxu0 0.0
  %8828 = vmatprep.subr.mxu0 0.0
  %8829 = vmatpush1.msra.mxu0 0.0
  %8830 = vmatprep.subr.mxu0 0.0
  %8831 = vmatpush1.msra.mxu0 0.0
  %8832 = vmatprep.subr.mxu0 0.0
  %8833 = vmatpush1.msra.mxu0 0.0
  %8834 = vmatprep.subr.mxu0 0.0
  %8835 = vmatpush1.msra.mxu0 0.0
  %8836 = vmatprep.subr.mxu0 0.0
  %8837 = vmatpush1.msra.mxu0 0.0
  %8838 = vmatprep.subr.mxu0 0.0
  %8839 = vmatpush1.msra.mxu0 0.0
  %8840 = vmatprep.subr.mxu0 0.0
  %8841 = vmatpush1.msra.mxu0 0.0
  %8842 = vmatprep.subr.mxu0 0.0
  %8843 = vmatpush1.msra.mxu0 0.0
  %8844 = vmatprep.subr.mxu0 0.0
  %8845 = vmatpush1.msra.mxu0 0.0
  %8846 = vmatprep.mubr.f32.mxu0 0.0
  %8847 = vmatmul.mubr.f32.gmra.mrb[0].mxu0 %v8746
  %v8848 = vpop.f32.mrb[0].mxu0
  %v8849 = vadd.f32 0.0, %v8848
  %v8850 = vpop.f32.mrb[0].mxu0
  %8851 = vmatprep.mubr.f32.mxu0 0.0
  %8852 = vmatmul.mubr.f32.gmra.mrb[0].mxu0 %v8748
  %v8853 = vpop.f32.mrb[0].mxu0
  %v8854 = vadd.f32 0.0, %v8853
  %v8855 = vpop.f32.mrb[0].mxu0
  %8856 = vmatprep.mubr.f32.mxu0 0.0
  %8857 = vmatmul.mubr.f32.gmra.mrb[0].mxu0 %v8750
  %v8858 = vpop.f32.mrb[0].mxu0
  %v8859 = vadd.f32 0.0, %v8858
  %v8860 = vpop.f32.mrb[0].mxu0
  %8861 = vmatprep.mubr.f32.mxu0 0.0
  %8862 = vmatmul.mubr.f32.gmra.mrb[0].mxu0 %v8752
  %v8863 = vpop.f32.mrb[0].mxu0
  %v8864 = vadd.f32 0.0, %v8863
  %v8865 = vpop.f32.mrb[0].mxu0
  %8866 = vmatprep.mubr.f32.mxu0 0.0
  %8867 = vmatmul.mubr.f32.gmra.mrb[0].mxu0 %v8754
  %v8868 = vpop.f32.mrb[0].mxu0
  %v8869 = vadd.f32 0.0, %v8868
  %v8870 = vpop.f32.mrb[0].mxu0
  %8871 = vdwg.mxu0
  %8872 = vmatprep.subr.mxu0 0.0
  %8873 = vmatpush1.msra.mxu0 %v8756
  %8874 = vmatprep.subr.mxu0 0.0
  %8875 = vmatpush1.msra.mxu0 %v8757
  %8876 = vmatprep.subr.mxu0 0.0
  %8877 = vmatpush1.msra.mxu0 %v8758
  %8878 = vmatprep.subr.mxu0 0.0
  %8879 = vmatpush1.msra.mxu0 %v8759
  %8880 = vmatprep.subr.mxu0 0.0
  %8881 = vmatpush1.msra.mxu0 %v8760
  %8882 = vmatprep.subr.mxu0 0.0
  %8883 = vmatpush1.msra.mxu0 %v8761
  %8884 = vmatprep.subr.mxu0 0.0
  %8885 = vmatpush1.msra.mxu0 %v8762
  %8886 = vmatprep.subr.mxu0 0.0
  %8887 = vmatpush1.msra.mxu0 %v8763
  %8888 = vmatprep.subr.mxu0 0.0
  %8889 = vmatpush1.msra.mxu0 %v8764
  %8890 = vmatprep.subr.mxu0 0.0
  %8891 = vmatpush1.msra.mxu0 %v8765
  %8892 = vmatprep.subr.mxu0 0.0
  %8893 = vmatpush1.msra.mxu0 %v8766
  %8894 = vmatprep.subr.mxu0 0.0
  %8895 = vmatpush1.msra.mxu0 %v8767
  %8896 = vmatprep.subr.mxu0 0.0
  %8897 = vmatpush1.msra.mxu0 %v8768
  %8898 = vmatprep.subr.mxu0 0.0
  %8899 = vmatpush1.msra.mxu0 %v8769
  %8900 = vmatprep.subr.mxu0 0.0
  %8901 = vmatpush1.msra.mxu0 %v8770
  %8902 = vmatprep.subr.mxu0 0.0
  %8903 = vmatpush1.msra.mxu0 %v8771
  %8904 = vmatprep.subr.mxu0 0.0
  %8905 = vmatpush1.msra.mxu0 0.0
  %8906 = vmatprep.subr.mxu0 0.0
  %8907 = vmatpush1.msra.mxu0 0.0
  %8908 = vmatprep.subr.mxu0 0.0
  %8909 = vmatpush1.msra.mxu0 0.0
  %8910 = vmatprep.subr.mxu0 0.0
  %8911 = vmatpush1.msra.mxu0 0.0
  %8912 = vmatprep.subr.mxu0 0.0
  %8913 = vmatpush1.msra.mxu0 0.0
  %8914 = vmatprep.subr.mxu0 0.0
  %8915 = vmatpush1.msra.mxu0 0.0
  %8916 = vmatprep.subr.mxu0 0.0
  %8917 = vmatpush1.msra.mxu0 0.0
  %8918 = vmatprep.subr.mxu0 0.0
  %8919 = vmatpush1.msra.mxu0 0.0
  %8920 = vmatprep.subr.mxu0 0.0
  %8921 = vmatpush1.msra.mxu0 0.0
  %8922 = vmatprep.subr.mxu0 0.0
  %8923 = vmatpush1.msra.mxu0 0.0
  %8924 = vmatprep.subr.mxu0 0.0
  %8925 = vmatpush1.msra.mxu0 0.0
  %8926 = vmatprep.subr.mxu0 0.0
  %8927 = vmatpush1.msra.mxu0 0.0
  %8928 = vmatprep.subr.mxu0 0.0
  %8929 = vmatpush1.msra.mxu0 0.0
  %8930 = vmatprep.subr.mxu0 0.0
  %8931 = vmatpush1.msra.mxu0 0.0
  %8932 = vmatprep.subr.mxu0 0.0
  %8933 = vmatpush1.msra.mxu0 0.0
  %8934 = vmatprep.subr.mxu0 0.0
  %8935 = vmatpush1.msra.mxu0 0.0
  %8936 = vmatprep.mubr.f32.mxu0 0.0
  %8937 = vmatmul.mubr.f32.gmra.mrb[0].mxu0 %v8773
  %v8938 = vpop.f32.mrb[0].mxu0
  %v8939 = vadd.f32 0.0, %v8938
  %v8940 = vpop.f32.mrb[0].mxu0
  %8941 = vmatprep.mubr.f32.mxu0 0.0
  %8942 = vmatmul.mubr.f32.gmra.mrb[0].mxu0 %v8775
  %v8943 = vpop.f32.mrb[0].mxu0
  %v8944 = vadd.f32 0.0, %v8943
  %v8945 = vpop.f32.mrb[0].mxu0
  %8946 = vmatprep.mubr.f32.mxu0 0.0
  %8947 = vmatmul.mubr.f32.gmra.mrb[0].mxu0 %v8777
  %v8948 = vpop.f32.mrb[0].mxu0
  %v8949 = vadd.f32 0.0, %v8948
  %v8950 = vpop.f32.mrb[0].mxu0
  %8951 = vmatprep.mubr.f32.mxu0 0.0
  %8952 = vmatmul.mubr.f32.gmra.mrb[0].mxu0 %v8779
  %v8953 = vpop.f32.mrb[0].mxu0
  %v8954 = vadd.f32 0.0, %v8953
  %v8955 = vpop.f32.mrb[0].mxu0
  %8956 = vmatprep.mubr.f32.mxu0 0.0
  %8957 = vmatmul.mubr.f32.gmra.mrb[0].mxu0 %v8781
  %v8958 = vpop.f32.mrb[0].mxu0
  %v8959 = vadd.f32 0.0, %v8958
  %v8960 = vpop.f32.mrb[0].mxu0
  %8961 = vdwg.mxu0
  %8962 = vmatprep.subr.mxu0 0.0
  %8963 = vmatpush1.msra.mxu0 %v8720
  %8964 = vmatprep.subr.mxu0 0.0
  %8965 = vmatpush1.msra.mxu0 %v8721
  %8966 = vmatprep.subr.mxu0 0.0
  %8967 = vmatpush1.msra.mxu0 %v8722
  %8968 = vmatprep.subr.mxu0 0.0
  %8969 = vmatpush1.msra.mxu0 %v8723
  %8970 = vmatprep.subr.mxu0 0.0
  %8971 = vmatpush1.msra.mxu0 %v8724
  %8972 = vmatprep.subr.mxu0 0.0
  %8973 = vmatpush1.msra.mxu0 %v8725
  %8974 = vmatprep.subr.mxu0 0.0
  %8975 = vmatpush1.msra.mxu0 %v8726
  %8976 = vmatprep.subr.mxu0 0.0
  %8977 = vmatpush1.msra.mxu0 %v8727
  %8978 = vmatprep.subr.mxu0 0.0
  %8979 = vmatpush1.msra.mxu0 %v8728
  %8980 = vmatprep.subr.mxu0 0.0
  %8981 = vmatpush1.msra.mxu0 %v8729
  %8982 = vmatprep.subr.mxu0 0.0
  %8983 = vmatpush1.msra.mxu0 %v8730
  %8984 = vmatprep.subr.mxu0 0.0
  %8985 = vmatpush1.msra.mxu0 %v8731
  %8986 = vmatprep.subr.mxu0 0.0
  %8987 = vmatpush1.msra.mxu0 %v8732
  %8988 = vmatprep.subr.mxu0 0.0
  %8989 = vmatpush1.msra.mxu0 %v8733
  %8990 = vmatprep.subr.mxu0 0.0
  %8991 = vmatpush1.msra.mxu0 %v8734
  %8992 = vmatprep.subr.mxu0 0.0
  %8993 = vmatpush1.msra.mxu0 %v8735
  %8994 = vmatprep.subr.mxu0 0.0
  %8995 = vmatpush1.msra.mxu0 0.0
  %8996 = vmatprep.subr.mxu0 0.0
  %8997 = vmatpush1.msra.mxu0 0.0
  %8998 = vmatprep.subr.mxu0 0.0
  %8999 = vmatpush1.msra.mxu0 0.0
  %9000 = vmatprep.subr.mxu0 0.0
  %9001 = vmatpush1.msra.mxu0 0.0
  %9002 = vmatprep.subr.mxu0 0.0
  %9003 = vmatpush1.msra.mxu0 0.0
  %9004 = vmatprep.subr.mxu0 0.0
  %9005 = vmatpush1.msra.mxu0 0.0
  %9006 = vmatprep.subr.mxu0 0.0
  %9007 = vmatpush1.msra.mxu0 0.0
  %9008 = vmatprep.subr.mxu0 0.0
  %9009 = vmatpush1.msra.mxu0 0.0
  %9010 = vmatprep.subr.mxu0 0.0
  %9011 = vmatpush1.msra.mxu0 0.0
  %9012 = vmatprep.subr.mxu0 0.0
  %9013 = vmatpush1.msra.mxu0 0.0
  %9014 = vmatprep.subr.mxu0 0.0
  %9015 = vmatpush1.msra.mxu0 0.0
  %9016 = vmatprep.subr.mxu0 0.0
  %9017 = vmatpush1.msra.mxu0 0.0
  %9018 = vmatprep.subr.mxu0 0.0
  %9019 = vmatpush1.msra.mxu0 0.0
  %9020 = vmatprep.subr.mxu0 0.0
  %9021 = vmatpush1.msra.mxu0 0.0
  %9022 = vmatprep.subr.mxu0 0.0
  %9023 = vmatpush1.msra.mxu0 0.0
  %9024 = vmatprep.subr.mxu0 0.0
  %9025 = vmatpush1.msra.mxu0 0.0
  %9026 = vmatprep.mubr.f32.mxu0 0.0
  %9027 = vmatmul.mubr.f32.gmra.mrb[0].mxu0 %v8736
  %v9028 = vpop.f32.mrb[0].mxu0
  %v9029 = vadd.f32 %v8849, %v9028
  %v9030 = vpop.f32.mrb[0].mxu0
  %9031 = vmatprep.mubr.f32.mxu0 0.0
  %9032 = vmatmul.mubr.f32.gmra.mrb[0].mxu0 %v8738
  %v9033 = vpop.f32.mrb[0].mxu0
  %v9034 = vadd.f32 %v8854, %v9033
  %v9035 = vpop.f32.mrb[0].mxu0
  %9036 = vmatprep.mubr.f32.mxu0 0.0
  %9037 = vmatmul.mubr.f32.gmra.mrb[0].mxu0 %v8740
  %v9038 = vpop.f32.mrb[0].mxu0
  %v9039 = vadd.f32 %v8859, %v9038
  %v9040 = vpop.f32.mrb[0].mxu0
  %9041 = vmatprep.mubr.f32.mxu0 0.0
  %9042 = vmatmul.mubr.f32.gmra.mrb[0].mxu0 %v8742
  %v9043 = vpop.f32.mrb[0].mxu0
  %v9044 = vadd.f32 %v8864, %v9043
  %v9045 = vpop.f32.mrb[0].mxu0
  %9046 = vmatprep.mubr.f32.mxu0 0.0
  %9047 = vmatmul.mubr.f32.gmra.mrb[0].mxu0 %v8744
  %v9048 = vpop.f32.mrb[0].mxu0
  %v9049 = vadd.f32 %v8869, %v9048
  %v9050 = vpop.f32.mrb[0].mxu0
  %9051 = vdwg.mxu0
  %9052 = vmatprep.subr.mxu0 0.0
  %9053 = vmatpush1.msra.mxu0 %v8720
  %9054 = vmatprep.subr.mxu0 0.0
  %9055 = vmatpush1.msra.mxu0 %v8721
  %9056 = vmatprep.subr.mxu0 0.0
  %9057 = vmatpush1.msra.mxu0 %v8722
  %9058 = vmatprep.subr.mxu0 0.0
  %9059 = vmatpush1.msra.mxu0 %v8723
  %9060 = vmatprep.subr.mxu0 0.0
  %9061 = vmatpush1.msra.mxu0 %v8724
  %9062 = vmatprep.subr.mxu0 0.0
  %9063 = vmatpush1.msra.mxu0 %v8725
  %9064 = vmatprep.subr.mxu0 0.0
  %9065 = vmatpush1.msra.mxu0 %v8726
  %9066 = vmatprep.subr.mxu0 0.0
  %9067 = vmatpush1.msra.mxu0 %v8727
  %9068 = vmatprep.subr.mxu0 0.0
  %9069 = vmatpush1.msra.mxu0 %v8728
  %9070 = vmatprep.subr.mxu0 0.0
  %9071 = vmatpush1.msra.mxu0 %v8729
  %9072 = vmatprep.subr.mxu0 0.0
  %9073 = vmatpush1.msra.mxu0 %v8730
  %9074 = vmatprep.subr.mxu0 0.0
  %9075 = vmatpush1.msra.mxu0 %v8731
  %9076 = vmatprep.subr.mxu0 0.0
  %9077 = vmatpush1.msra.mxu0 %v8732
  %9078 = vmatprep.subr.mxu0 0.0
  %9079 = vmatpush1.msra.mxu0 %v8733
  %9080 = vmatprep.subr.mxu0 0.0
  %9081 = vmatpush1.msra.mxu0 %v8734
  %9082 = vmatprep.subr.mxu0 0.0
  %9083 = vmatpush1.msra.mxu0 %v8735
  %9084 = vmatprep.subr.mxu0 0.0
  %9085 = vmatpush1.msra.mxu0 0.0
  %9086 = vmatprep.subr.mxu0 0.0
  %9087 = vmatpush1.msra.mxu0 0.0
  %9088 = vmatprep.subr.mxu0 0.0
  %9089 = vmatpush1.msra.mxu0 0.0
  %9090 = vmatprep.subr.mxu0 0.0
  %9091 = vmatpush1.msra.mxu0 0.0
  %9092 = vmatprep.subr.mxu0 0.0
  %9093 = vmatpush1.msra.mxu0 0.0
  %9094 = vmatprep.subr.mxu0 0.0
  %9095 = vmatpush1.msra.mxu0 0.0
  %9096 = vmatprep.subr.mxu0 0.0
  %9097 = vmatpush1.msra.mxu0 0.0
  %9098 = vmatprep.subr.mxu0 0.0
  %9099 = vmatpush1.msra.mxu0 0.0
  %9100 = vmatprep.subr.mxu0 0.0
  %9101 = vmatpush1.msra.mxu0 0.0
  %9102 = vmatprep.subr.mxu0 0.0
  %9103 = vmatpush1.msra.mxu0 0.0
  %9104 = vmatprep.subr.mxu0 0.0
  %9105 = vmatpush1.msra.mxu0 0.0
  %9106 = vmatprep.subr.mxu0 0.0
  %9107 = vmatpush1.msra.mxu0 0.0
  %9108 = vmatprep.subr.mxu0 0.0
  %9109 = vmatpush1.msra.mxu0 0.0
  %9110 = vmatprep.subr.mxu0 0.0
  %9111 = vmatpush1.msra.mxu0 0.0
  %9112 = vmatprep.subr.mxu0 0.0
  %9113 = vmatpush1.msra.mxu0 0.0
  %9114 = vmatprep.subr.mxu0 0.0
  %9115 = vmatpush1.msra.mxu0 0.0
  %9116 = vmatprep.mubr.f32.mxu0 0.0
  %9117 = vmatmul.mubr.f32.gmra.mrb[0].mxu0 %v8746
  %v9118 = vpop.f32.mrb[0].mxu0
  %v9119 = vadd.f32 %v8939, %v9118
  %v9120 = vpop.f32.mrb[0].mxu0
  %9121 = vmatprep.mubr.f32.mxu0 0.0
  %9122 = vmatmul.mubr.f32.gmra.mrb[0].mxu0 %v8748
  %v9123 = vpop.f32.mrb[0].mxu0
  %v9124 = vadd.f32 %v8944, %v9123
  %v9125 = vpop.f32.mrb[0].mxu0
  %9126 = vmatprep.mubr.f32.mxu0 0.0
  %9127 = vmatmul.mubr.f32.gmra.mrb[0].mxu0 %v8750
  %v9128 = vpop.f32.mrb[0].mxu0
  %v9129 = vadd.f32 %v8949, %v9128
  %v9130 = vpop.f32.mrb[0].mxu0
  %9131 = vmatprep.mubr.f32.mxu0 0.0
  %9132 = vmatmul.mubr.f32.gmra.mrb[0].mxu0 %v8752
  %v9133 = vpop.f32.mrb[0].mxu0
  %v9134 = vadd.f32 %v8954, %v9133
  %v9135 = vpop.f32.mrb[0].mxu0
  %9136 = vmatprep.mubr.f32.mxu0 0.0
  %9137 = vmatmul.mubr.f32.gmra.mrb[0].mxu0 %v8754
  %v9138 = vpop.f32.mrb[0].mxu0
  %v9139 = vadd.f32 %v8959, %v9138
  %v9140 = vpop.f32.mrb[0].mxu0
  %9141 = vdwg.mxu0
  %s9142 = scalar_lea.vmem %s9, 256
  %v9143 = vld [vmem:[%s9142] sm:$0xff]
  %v9144 = vld [vmem:[%s9142 + $0x8] sm:$0xff]
  %v9145 = vld [vmem:[%s9142 + $0x10] sm:$0xff]
  %v9146 = vld [vmem:[%s9142 + $0x18] sm:$0xff]
  %v9147 = vld [vmem:[%s9142 + $0x20] sm:$0xff]
  %v9148 = vld [vmem:[%s9142 + $0x28] sm:$0xff]
  %v9149 = vld [vmem:[%s9142 + $0x30] sm:$0xff]
  %v9150 = vld [vmem:[%s9142 + $0x38] sm:$0xff]
  %v9151 = vld [vmem:[%s9142 + $0x40] sm:$0xff]
  %v9152 = vld [vmem:[%s9142 + $0x48] sm:$0xff]
  %v9153 = vld [vmem:[%s9142 + $0x50] sm:$0xff]
  %v9154 = vld [vmem:[%s9142 + $0x58] sm:$0xff]
  %v9155 = vld [vmem:[%s9142 + $0x60] sm:$0xff]
  %v9156 = vld [vmem:[%s9142 + $0x68] sm:$0xff]
  %v9157 = vld [vmem:[%s9142 + $0x70] sm:$0xff]
  %v9158 = vld [vmem:[%s9142 + $0x78] sm:$0xff]
  %s9159 = scalar_lea.vmem [#allocation5], 3
  %v9160 = vld [vmem:[%s9159] ss:$2 sm:$0xff]
  %s9161 = scalar_lea.vmem [#allocation5], 19
  %v9162 = vld [vmem:[%s9161] ss:$2 sm:$0xff]
  %s9163 = scalar_lea.vmem [#allocation5], 35
  %v9164 = vld [vmem:[%s9163] ss:$2 sm:$0xff]
  %s9165 = scalar_lea.vmem [#allocation5], 51
  %v9166 = vld [vmem:[%s9165] ss:$2 sm:$0xff]
  %s9167 = scalar_lea.vmem [#allocation5], 67
  %v9168 = vld [vmem:[%s9167] ss:$2 sm:$0x3f]
  %9169 = vmatprep.subr.mxu0 0.0
  %9170 = vmatpush1.msra.mxu0 %v9143
  %9171 = vmatprep.subr.mxu0 0.0
  %9172 = vmatpush1.msra.mxu0 %v9144
  %9173 = vmatprep.subr.mxu0 0.0
  %9174 = vmatpush1.msra.mxu0 %v9145
  %9175 = vmatprep.subr.mxu0 0.0
  %9176 = vmatpush1.msra.mxu0 %v9146
  %9177 = vmatprep.subr.mxu0 0.0
  %9178 = vmatpush1.msra.mxu0 %v9147
  %9179 = vmatprep.subr.mxu0 0.0
  %9180 = vmatpush1.msra.mxu0 %v9148
  %9181 = vmatprep.subr.mxu0 0.0
  %9182 = vmatpush1.msra.mxu0 %v9149
  %9183 = vmatprep.subr.mxu0 0.0
  %9184 = vmatpush1.msra.mxu0 %v9150
  %9185 = vmatprep.subr.mxu0 0.0
  %9186 = vmatpush1.msra.mxu0 %v9151
  %9187 = vmatprep.subr.mxu0 0.0
  %9188 = vmatpush1.msra.mxu0 %v9152
  %9189 = vmatprep.subr.mxu0 0.0
  %9190 = vmatpush1.msra.mxu0 %v9153
  %9191 = vmatprep.subr.mxu0 0.0
  %9192 = vmatpush1.msra.mxu0 %v9154
  %9193 = vmatprep.subr.mxu0 0.0
  %9194 = vmatpush1.msra.mxu0 %v9155
  %9195 = vmatprep.subr.mxu0 0.0
  %9196 = vmatpush1.msra.mxu0 %v9156
  %9197 = vmatprep.subr.mxu0 0.0
  %9198 = vmatpush1.msra.mxu0 %v9157
  %9199 = vmatprep.subr.mxu0 0.0
  %9200 = vmatpush1.msra.mxu0 %v9158
  %9201 = vmatprep.subr.mxu0 0.0
  %9202 = vmatpush1.msra.mxu0 0.0
  %9203 = vmatprep.subr.mxu0 0.0
  %9204 = vmatpush1.msra.mxu0 0.0
  %9205 = vmatprep.subr.mxu0 0.0
  %9206 = vmatpush1.msra.mxu0 0.0
  %9207 = vmatprep.subr.mxu0 0.0
  %9208 = vmatpush1.msra.mxu0 0.0
  %9209 = vmatprep.subr.mxu0 0.0
  %9210 = vmatpush1.msra.mxu0 0.0
  %9211 = vmatprep.subr.mxu0 0.0
  %9212 = vmatpush1.msra.mxu0 0.0
  %9213 = vmatprep.subr.mxu0 0.0
  %9214 = vmatpush1.msra.mxu0 0.0
  %9215 = vmatprep.subr.mxu0 0.0
  %9216 = vmatpush1.msra.mxu0 0.0
  %9217 = vmatprep.subr.mxu0 0.0
  %9218 = vmatpush1.msra.mxu0 0.0
  %9219 = vmatprep.subr.mxu0 0.0
  %9220 = vmatpush1.msra.mxu0 0.0
  %9221 = vmatprep.subr.mxu0 0.0
  %9222 = vmatpush1.msra.mxu0 0.0
  %9223 = vmatprep.subr.mxu0 0.0
  %9224 = vmatpush1.msra.mxu0 0.0
  %9225 = vmatprep.subr.mxu0 0.0
  %9226 = vmatpush1.msra.mxu0 0.0
  %9227 = vmatprep.subr.mxu0 0.0
  %9228 = vmatpush1.msra.mxu0 0.0
  %9229 = vmatprep.subr.mxu0 0.0
  %9230 = vmatpush1.msra.mxu0 0.0
  %9231 = vmatprep.subr.mxu0 0.0
  %9232 = vmatpush1.msra.mxu0 0.0
  %9233 = vmatprep.mubr.f32.mxu0 0.0
  %9234 = vmatmul.mubr.f32.gmra.mrb[0].mxu0 %v8773
  %v9235 = vpop.f32.mrb[0].mxu0
  %v9236 = vadd.f32 0.0, %v9235
  %v9237 = vpop.f32.mrb[0].mxu0
  %9238 = vmatprep.mubr.f32.mxu0 0.0
  %9239 = vmatmul.mubr.f32.gmra.mrb[0].mxu0 %v8775
  %v9240 = vpop.f32.mrb[0].mxu0
  %v9241 = vadd.f32 0.0, %v9240
  %v9242 = vpop.f32.mrb[0].mxu0
  %9243 = vmatprep.mubr.f32.mxu0 0.0
  %9244 = vmatmul.mubr.f32.gmra.mrb[0].mxu0 %v8777
  %v9245 = vpop.f32.mrb[0].mxu0
  %v9246 = vadd.f32 0.0, %v9245
  %v9247 = vpop.f32.mrb[0].mxu0
  %9248 = vmatprep.mubr.f32.mxu0 0.0
  %9249 = vmatmul.mubr.f32.gmra.mrb[0].mxu0 %v8779
  %v9250 = vpop.f32.mrb[0].mxu0
  %v9251 = vadd.f32 0.0, %v9250
  %v9252 = vpop.f32.mrb[0].mxu0
  %9253 = vmatprep.mubr.f32.mxu0 0.0
  %9254 = vmatmul.mubr.f32.gmra.mrb[0].mxu0 %v8781
  %v9255 = vpop.f32.mrb[0].mxu0
  %v9256 = vadd.f32 0.0, %v9255
  %v9257 = vpop.f32.mrb[0].mxu0
  %9258 = vdwg.mxu0
  %9259 = vmatprep.subr.mxu0 0.0
  %9260 = vmatpush1.msra.mxu0 %v9143
  %9261 = vmatprep.subr.mxu0 0.0
  %9262 = vmatpush1.msra.mxu0 %v9144
  %9263 = vmatprep.subr.mxu0 0.0
  %9264 = vmatpush1.msra.mxu0 %v9145
  %9265 = vmatprep.subr.mxu0 0.0
  %9266 = vmatpush1.msra.mxu0 %v9146
  %9267 = vmatprep.subr.mxu0 0.0
  %9268 = vmatpush1.msra.mxu0 %v9147
  %9269 = vmatprep.subr.mxu0 0.0
  %9270 = vmatpush1.msra.mxu0 %v9148
  %9271 = vmatprep.subr.mxu0 0.0
  %9272 = vmatpush1.msra.mxu0 %v9149
  %9273 = vmatprep.subr.mxu0 0.0
  %9274 = vmatpush1.msra.mxu0 %v9150
  %9275 = vmatprep.subr.mxu0 0.0
  %9276 = vmatpush1.msra.mxu0 %v9151
  %9277 = vmatprep.subr.mxu0 0.0
  %9278 = vmatpush1.msra.mxu0 %v9152
  %9279 = vmatprep.subr.mxu0 0.0
  %9280 = vmatpush1.msra.mxu0 %v9153
  %9281 = vmatprep.subr.mxu0 0.0
  %9282 = vmatpush1.msra.mxu0 %v9154
  %9283 = vmatprep.subr.mxu0 0.0
  %9284 = vmatpush1.msra.mxu0 %v9155
  %9285 = vmatprep.subr.mxu0 0.0
  %9286 = vmatpush1.msra.mxu0 %v9156
  %9287 = vmatprep.subr.mxu0 0.0
  %9288 = vmatpush1.msra.mxu0 %v9157
  %9289 = vmatprep.subr.mxu0 0.0
  %9290 = vmatpush1.msra.mxu0 %v9158
  %9291 = vmatprep.subr.mxu0 0.0
  %9292 = vmatpush1.msra.mxu0 0.0
  %9293 = vmatprep.subr.mxu0 0.0
  %9294 = vmatpush1.msra.mxu0 0.0
  %9295 = vmatprep.subr.mxu0 0.0
  %9296 = vmatpush1.msra.mxu0 0.0
  %9297 = vmatprep.subr.mxu0 0.0
  %9298 = vmatpush1.msra.mxu0 0.0
  %9299 = vmatprep.subr.mxu0 0.0
  %9300 = vmatpush1.msra.mxu0 0.0
  %9301 = vmatprep.subr.mxu0 0.0
  %9302 = vmatpush1.msra.mxu0 0.0
  %9303 = vmatprep.subr.mxu0 0.0
  %9304 = vmatpush1.msra.mxu0 0.0
  %9305 = vmatprep.subr.mxu0 0.0
  %9306 = vmatpush1.msra.mxu0 0.0
  %9307 = vmatprep.subr.mxu0 0.0
  %9308 = vmatpush1.msra.mxu0 0.0
  %9309 = vmatprep.subr.mxu0 0.0
  %9310 = vmatpush1.msra.mxu0 0.0
  %9311 = vmatprep.subr.mxu0 0.0
  %9312 = vmatpush1.msra.mxu0 0.0
  %9313 = vmatprep.subr.mxu0 0.0
  %9314 = vmatpush1.msra.mxu0 0.0
  %9315 = vmatprep.subr.mxu0 0.0
  %9316 = vmatpush1.msra.mxu0 0.0
  %9317 = vmatprep.subr.mxu0 0.0
  %9318 = vmatpush1.msra.mxu0 0.0
  %9319 = vmatprep.subr.mxu0 0.0
  %9320 = vmatpush1.msra.mxu0 0.0
  %9321 = vmatprep.subr.mxu0 0.0
  %9322 = vmatpush1.msra.mxu0 0.0
  %9323 = vmatprep.mubr.f32.mxu0 0.0
  %9324 = vmatmul.mubr.f32.gmra.mrb[0].mxu0 %v9160
  %v9325 = vpop.f32.mrb[0].mxu0
  %v9326 = vadd.f32 0.0, %v9325
  %v9327 = vpop.f32.mrb[0].mxu0
  %9328 = vmatprep.mubr.f32.mxu0 0.0
  %9329 = vmatmul.mubr.f32.gmra.mrb[0].mxu0 %v9162
  %v9330 = vpop.f32.mrb[0].mxu0
  %v9331 = vadd.f32 0.0, %v9330
  %v9332 = vpop.f32.mrb[0].mxu0
  %9333 = vmatprep.mubr.f32.mxu0 0.0
  %9334 = vmatmul.mubr.f32.gmra.mrb[0].mxu0 %v9164
  %v9335 = vpop.f32.mrb[0].mxu0
  %v9336 = vadd.f32 0.0, %v9335
  %v9337 = vpop.f32.mrb[0].mxu0
  %9338 = vmatprep.mubr.f32.mxu0 0.0
  %9339 = vmatmul.mubr.f32.gmra.mrb[0].mxu0 %v9166
  %v9340 = vpop.f32.mrb[0].mxu0
  %v9341 = vadd.f32 0.0, %v9340
  %v9342 = vpop.f32.mrb[0].mxu0
  %9343 = vmatprep.mubr.f32.mxu0 0.0
  %9344 = vmatmul.mubr.f32.gmra.mrb[0].mxu0 %v9168
  %v9345 = vpop.f32.mrb[0].mxu0
  %v9346 = vadd.f32 0.0, %v9345
  %v9347 = vpop.f32.mrb[0].mxu0
  %9348 = vdwg.mxu0
  %v9349 = vadd.f32 %v9029, %v9236
  %v9350 = vadd.f32 %v9034, %v9241
  %v9351 = vadd.f32 %v9039, %v9246
  %v9352 = vadd.f32 %v9044, %v9251
  %v9353 = vadd.f32 %v9049, %v9256
  %v9354 = vadd.f32 %v9119, %v9326
  %v9355 = vadd.f32 %v9124, %v9331
  %v9356 = vadd.f32 %v9129, %v9336
  %v9357 = vadd.f32 %v9134, %v9341
  %v9358 = vadd.f32 %v9139, %v9346
  %v9359 = vmax.f32 %v9349, %v9354
  %v9360 = vmax.f32 %v9350, %v9355
  %v9361 = vmax.f32 %v9351, %v9356
  %v9362 = vmax.f32 %v9352, %v9357
  %v9363 = vmax.f32 %v9353, %v9358
  %v9364 = vld [vmem:[%s10] sm:$0x1]
  %v9366 = vlaneseq
  %v9367 = vshrl.u32 %v9366, 7
  %v9368 = vsub.s32 0, %v9367
  %v9369 = vrot.slane %v9364, %v9368
  %v9371 = vadd.f32 %v9359, %v9369
  %v9372 = vadd.f32 %v9360, %v9369
  %v9373 = vadd.f32 %v9361, %v9369
  %v9374 = vadd.f32 %v9362, %v9369
  %v9375 = vadd.f32 %v9363, %v9369
  %v9376 = vmax.f32 %v9371, 0.0
  %v9377 = vmax.f32 %v9372, 0.0
  %v9378 = vmax.f32 %v9373, 0.0
  %v9379 = vmax.f32 %v9374, 0.0
  %v9380 = vmax.f32 %v9375, 0.0
  %9381 = vst [vmem:[%s11] sm:$0xff] %v9376
  %9382 = vst [vmem:[%s11 + $0x8] sm:$0xff] %v9377
  %9383 = vst [vmem:[%s11 + $0x10] sm:$0xff] %v9378
  %9384 = vst [vmem:[%s11 + $0x18] sm:$0xff] %v9379
  %9385 = vst [vmem:[%s11 + $0x20] sm:$0x3f] %v9380
  // Predicated region
  $region46: #{forward.2} parent=0 // pred_check
    _
  $region47: #{forward.2} parent=0 // pred_check_branch
    %9387 = sbr.rel (0) target = $region49
  $region48: #{forward.2} parent=0 // pred_region
    _
  $region49: #{forward.2} parent=0 // pred_fallthru
    _
  // Predicated region
  $region50: #{forward.2} parent=0 // pred_check
    _
  $region51: #{forward.2} parent=0 // pred_check_branch
    %9389 = sbr.rel (0) target = $region53
  $region52: #{forward.2} parent=0 // pred_region
    _
  $region53: #{forward.2} parent=0 // pred_fallthru
    _

</llo_original>
